<compile_context>
chip_gen: v5e
topology: v5e:2x2
jax: 0.10.0
libtpu: 0.0.40
codegen_flags: <defaults>
</compile_context>

<pallas_src>
import jax
import jax.numpy as jnp
from jax.experimental import pallas as pl
from jax.experimental.pallas import tpu as pltpu

# ---------------- model constants (win_size=5 configuration) ----------------
H0, W0 = 32, 15            # input spatial size (input_size_dict[5])
KH, KW = 5, 3              # filter_size
PH, PW = 2, 1              # padding = fs // 2
C1, C2 = 64, 128           # conv channels (inplanes=64, 2 layers)
NEG_SLOPE = 0.01           # nn.LeakyReLU default
BN_EPS = 1e-5              # nn.BatchNorm2d default

# Flat "row = h * WP + w" coordinate system used inside the kernel.
WP = W0 + 2 * PW                 # 17 : padded width == flat row stride per h
HP1 = H0 + 2 * PH                # 36 : padded input height
R1_IN = HP1 * WP                 # 612: flat rows of the padded input
R1_IN_PAD = R1_IN + 4            # 616: slack so tap reads of pad-col rows stay in-bounds
R1 = H0 * WP                     # 544: conv1 output rows (flat, incl. pad-col garbage)
H1 = H0 // 2                     # 16 : height after MaxPool2d((2,1))
R2_IN = (H1 + 2 * PH) * WP       # 340: flat rows of the padded layer-2 input
R2_IN_PAD = 352                  # padded (mult. of 16, >= 342 needed for tap reads)
R2 = H1 * WP                     # 272: conv2 output rows (flat)
H2 = H1 // 2                     # 8
M2_ROWS = R2 - WP                # 255: rows of the "max(row, row+WP)" tensor, layer 2
FC_IN = C2 * H2 * W0             # 15360
FC_OUT = 2

NTAP = KH * KW                   # 15 filter taps
NTAP_PAD = NTAP + 1              # 16: 15 taps + 1 bias/zero group
K2 = NTAP_PAD * C1               # 1024: packed MXU contraction dim for conv2

TAPS = [(dh, dw) for dh in range(KH) for dw in range(KW)]
# TODO(synk): MaxPool2d ceil_mode=True for odd H is not needed for win_size=5
# (H stays even: 32 -> 16 -> 8) and is not implemented.


def _leaky_relu(v):
    return jnp.where(v >= 0, v, NEG_SLOPE * v)


# ----------------------------------------------------------------------------
# Fused kernel: one batch element per grid step, everything VMEM-resident.
# ----------------------------------------------------------------------------
def fused_cnn_kernel(x_ref, w1_ref, w2_ref, s2_ref, wfc_ref, bfc_ref, o_ref,
                     act1_ref, a1_ref, stage_ref, act2_ref):
    # -------- layer 1: Conv2d(1->64,(5,3)) + BN + bias + LeakyReLU -----------
    # One (R1, 16) @ (16, C1) bf16 MXU matmul; the 16th input column is all
    # ones and the 16th weight row holds the BN-scaled bias.
    y1 = jnp.dot(x_ref[0], w1_ref[...], preferred_element_type=jnp.float32)
    act1_ref[...] = _leaky_relu(y1)                                  # (R1, C1) f32

    # -------- MaxPool2d((2,1)) fused into the layer-2 re-pad scatter ---------
    # Rows h and h+1 are WP flat rows apart; pooled row p lands at the interior
    # of the zero-padded layer-2 input (stride WP).
    a1_ref[...] = jnp.zeros_like(a1_ref)
    for p in range(H1):
        src = 2 * p * WP                          # conv1 rows (2p, 0..W0)
        dst = (p + PH) * WP + PW                  # interior of padded L2 input
        a1_ref[dst:dst + W0, :] = jnp.maximum(
            act1_ref[src:src + W0, :],
            act1_ref[src + WP:src + WP + W0, :])

    # -------- layer 2: Conv2d(64->128,(5,3)) + BN + LeakyReLU ----------------
    # Stage the 15 shifted tap views side-by-side along K (f32 load -> bf16
    # store fused), zero the 16th group, then ONE (R2, 1024) @ (1024, C2)
    # bf16 MXU matmul with f32 accumulation inside the MXU.
    for t, (dh, dw) in enumerate(TAPS):
        off = dh * WP + dw
        stage_ref[:, t * C1:(t + 1) * C1] = (
            a1_ref[off:off + R2, :].astype(jnp.bfloat16))
    stage_ref[:, NTAP * C1:] = jnp.zeros((R2, C1), jnp.bfloat16)
    y2 = jnp.dot(stage_ref[...], w2_ref[...],
                 preferred_element_type=jnp.float32)                 # (R2, C2)
    act2_ref[...] = _leaky_relu(y2 + s2_ref[...])

    # -------- MaxPool2d((2,1)) + Flatten + Linear(15360, 2) ------------------
    # The torch NCHW flatten order AND the flat-layout row mapping are folded
    # into zero-padded bf16 FC weight planes at init, so each logit is one
    # elementwise multiply + full reduction over the pooled activation.
    m2 = jnp.maximum(act2_ref[0:M2_ROWS, :], act2_ref[WP:R2, :])     # (255, C2)
    logits = bfc_ref[...]                                            # (1, FC_OUT)
    col = jax.lax.broadcasted_iota(jnp.int32, (1, FC_OUT), 1)
    for o in range(FC_OUT):
        onehot = (col == o).astype(jnp.float32)
        logits = logits + jnp.sum(m2 * wfc_ref[o]) * onehot
    o_ref[...] = logits.reshape(1, 1, FC_OUT)


# ----------------------------------------------------------------------------
# Wrapper
# ----------------------------------------------------------------------------
def _conv1_im2col(x_nchw):
    """Tiny wrapper-side im2col for layer 1 (pure layout plumbing):
    15 shifted flat views of the zero-padded input + one all-ones bias column
    -> (B, R1, 16) bf16 lane-dense slab."""
    B = x_nchw.shape[0]
    xp = jnp.pad(x_nchw[:, 0], ((0, 0), (PH, PH), (PW, PW)))      # (B, 36, 17)
    xflat = xp.reshape(B, R1_IN)
    xflat = jnp.pad(xflat, ((0, 0), (0, R1_IN_PAD - R1_IN)))      # (B, 616)
    cols = [xflat[:, dh * WP + dw:dh * WP + dw + R1] for (dh, dw) in TAPS]
    cols.append(jnp.ones((B, R1), xflat.dtype))                   # bias column
    return jnp.stack(cols, axis=-1).astype(jnp.bfloat16)          # (B, R1, 16)


def cnn_forward(x_nchw, params):
    B = x_nchw.shape[0]
    x_cols = _conv1_im2col(x_nchw)

    out = pl.pallas_call(
        fused_cnn_kernel,
        out_shape=jax.ShapeDtypeStruct((B, 1, FC_OUT), jnp.float32),
        grid=(B,),
        in_specs=[
            pl.BlockSpec((1, R1, NTAP_PAD), lambda b: (b, 0, 0)),     # x im2col (bf16)
            pl.BlockSpec((NTAP_PAD, C1), lambda b: (0, 0)),           # w1 taps+bias (bf16)
            pl.BlockSpec((K2, C2), lambda b: (0, 0)),                 # w2 K-packed (bf16)
            pl.BlockSpec((1, C2), lambda b: (0, 0)),                  # shift2 (f32)
            pl.BlockSpec((FC_OUT, M2_ROWS, C2), lambda b: (0, 0, 0)), # fc planes (bf16)
            pl.BlockSpec((1, FC_OUT), lambda b: (0, 0)),              # fc bias (f32)
        ],
        out_specs=pl.BlockSpec((1, 1, FC_OUT), lambda b: (b, 0, 0)),
        scratch_shapes=[
            pltpu.VMEM((R1, C1), jnp.float32),          # conv1 activation
            pltpu.VMEM((R2_IN_PAD, C1), jnp.float32),   # pooled+padded layer-2 input
            pltpu.VMEM((R2, K2), jnp.bfloat16),         # K-packed conv2 LHS stage
            pltpu.VMEM((R2, C2), jnp.float32),          # conv2 activation
        ],
        compiler_params=pltpu.CompilerParams(dimension_semantics=("parallel",)),
    )(x_cols, params["w1"], params["w2"], params["shift2"],
      params["wfc"], params["bfc"])
    return out.reshape(B, FC_OUT)


# ----------------------------------------------------------------------------
# Parameter init (matches the PyTorch module's init) + folding for the kernel
# ----------------------------------------------------------------------------
def _xavier_uniform(key, shape, fan_in, fan_out):
    bound = (6.0 / (fan_in + fan_out)) ** 0.5
    return jax.random.uniform(key, shape, jnp.float32, -bound, bound)


def init_raw_params(key):
    k1, k1b, k2, k2b, kfc = jax.random.split(key, 5)
    fan1 = 1 * KH * KW
    w1 = _xavier_uniform(k1, (C1, 1, KH, KW), fan1, C1 * KH * KW)
    b1 = jax.random.uniform(k1b, (C1,), jnp.float32, -fan1 ** -0.5, fan1 ** -0.5)
    fan2 = C1 * KH * KW
    w2 = _xavier_uniform(k2, (C2, C1, KH, KW), fan2, C2 * KH * KW)
    b2 = jax.random.uniform(k2b, (C2,), jnp.float32, -fan2 ** -0.5, fan2 ** -0.5)
    fcw = _xavier_uniform(kfc, (FC_IN, FC_OUT), FC_IN, FC_OUT)
    fcb = jnp.full((FC_OUT,), 0.01, jnp.float32)     # nn.Linear bias fill 0.01
    # Kernel stores these weights in bf16; quantize at init so the pure-JAX
    # reference uses identical parameters (the self-check then measures only
    # the bf16 activation path).
    w1 = w1.astype(jnp.bfloat16).astype(jnp.float32)
    w2 = w2.astype(jnp.bfloat16).astype(jnp.float32)
    fcw = fcw.astype(jnp.bfloat16).astype(jnp.float32)
    return dict(w1=w1, b1=b1, w2=w2, b2=b2, fcw=fcw, fcb=fcb)


def pack_params(raw):
    """Fold eval-mode BN into the conv weights/shift, pack conv taps for the
    MXU K dimension, and fold the NCHW flatten + flat-layout mapping into
    zero-padded FC weight planes."""
    bn_scale = 1.0 / jnp.sqrt(1.0 + BN_EPS)   # gamma=1, beta=0, mean=0, var=1

    # conv1: (15, C1) taps + BN-scaled bias as the 16th row (ones column).
    w1_taps = raw["w1"][:, 0].transpose(1, 2, 0).reshape(NTAP, C1) * bn_scale
    w1_packed = jnp.concatenate(
        [w1_taps, (raw["b1"] * bn_scale).reshape(1, C1)], axis=0
    ).astype(jnp.bfloat16)                                           # (16, 64)

    # conv2: 15 (C1, C2) tap blocks stacked along K + one zero group -> (1024, C2).
    w2_taps = raw["w2"].transpose(2, 3, 1, 0).reshape(NTAP, C1, C2) * bn_scale
    w2_packed = jnp.concatenate(
        [w2_taps, jnp.zeros((1, C1, C2), jnp.float32)], axis=0
    ).reshape(K2, C2).astype(jnp.bfloat16)                           # (1024, 128)

    shift2 = (raw["b2"] * bn_scale).reshape(1, C2)

    # Torch flatten index f = c*(H2*W0) + p*W0 + w  ->  plane row r = 2*WP*p + w
    core = raw["fcw"].reshape(C2, H2, W0, FC_OUT).transpose(3, 1, 2, 0)  # (2,8,15,128)
    planes = jnp.zeros((FC_OUT, H2, 2 * WP, C2), jnp.float32)
    planes = planes.at[:, :, :W0, :].set(core)
    planes = planes.reshape(FC_OUT, H2 * 2 * WP, C2)[:, :M2_ROWS, :]     # (2,255,128)
    planes = planes.astype(jnp.bfloat16)

    return dict(w1=w1_packed, w2=w2_packed, shift2=shift2,
                wfc=planes, bfc=raw["fcb"].reshape(1, FC_OUT))


# ----------------------------------------------------------------------------
# Pure-JAX reference (for a numerical self-check)
# ----------------------------------------------------------------------------
def reference_forward(x_nchw, raw):
    bn_scale = 1.0 / jnp.sqrt(1.0 + BN_EPS)

    def block(h, w, b):
        y = jax.lax.conv_general_dilated(
            h, w, window_strides=(1, 1), padding=((PH, PH), (PW, PW)),
            dimension_numbers=("NCHW", "OIHW", "NCHW"))
        y = (y + b[None, :, None, None]) * bn_scale
        y = jnp.where(y >= 0, y, NEG_SLOPE * y)
        B_, C_, Hh, Ww = y.shape
        return jnp.max(y.reshape(B_, C_, Hh // 2, 2, Ww), axis=3)   # MaxPool (2,1)

    h = block(x_nchw, raw["w1"], raw["b1"])
    h = block(h, raw["w2"], raw["b2"])
    flat = h.reshape(h.shape[0], -1)                                # NCHW flatten
    return flat @ raw["fcw"] + raw["fcb"][None, :]


# ----------------------------------------------------------------------------
if __name__ == "__main__":
    key = jax.random.PRNGKey(0)
    k_params, k_x = jax.random.split(key)

    raw = init_raw_params(k_params)
    params = pack_params(raw)

    # win_size=5 -> input_size (32, 15); batch of 2, single channel (NCHW)
    x = jax.random.normal(k_x, (2, 1, H0, W0), jnp.float32)

    out = jax.jit(cnn_forward)(x, params)
    out = jax.block_until_ready(out)

    assert out.shape == (2, FC_OUT), out.shape
    assert bool(jnp.all(jnp.isfinite(out)))

    # Numerical self-check against the pure-JAX reference (bf16 activations /
    # matmul inputs in the kernel -> loose tolerance).
    ref = jax.jit(reference_forward)(x, raw)
    err = float(jnp.max(jnp.abs(out - ref)))
    assert err < 2e-2, f"mismatch vs reference: max abs err {err}"

    print("KERNEL_OK")
</pallas_src>

<mosaic_0001>
module attributes {stable_mosaic.version = 11 : i64} {
  func.func @fused_cnn_kernel(%arg0: i32, %arg1: memref<1x544x16xbf16, #tpu.memory_space<vmem>>, %arg2: memref<16x64xbf16, #tpu.memory_space<vmem>>, %arg3: memref<1024x128xbf16, #tpu.memory_space<vmem>>, %arg4: memref<1x128xf32, #tpu.memory_space<vmem>>, %arg5: memref<2x255x128xbf16, #tpu.memory_space<vmem>>, %arg6: memref<1x2xf32, #tpu.memory_space<vmem>>, %arg7: memref<1x1x2xf32, #tpu.memory_space<vmem>>, %arg8: memref<544x64xf32, #tpu.memory_space<vmem>>, %arg9: memref<352x64xf32, #tpu.memory_space<vmem>>, %arg10: memref<272x1024xbf16, #tpu.memory_space<vmem>>, %arg11: memref<272x128xf32, #tpu.memory_space<vmem>>) attributes {dimension_semantics = [#tpu.dimension_semantics<parallel>], iteration_bounds = array<i64: 2>, scalar_prefetch = 0 : i64, scratch_operands = 4 : i64, tpu.core_type = #tpu.core_type<tc>, window_params = [{transform_indices = @transform_0, window_bounds = array<i64: 1, 544, 16>}, {pipeline_mode = #tpu.pipeline_mode<synchronous>, transform_indices = @transform_1, window_bounds = array<i64: 16, 64>}, {pipeline_mode = #tpu.pipeline_mode<synchronous>, transform_indices = @transform_2, window_bounds = array<i64: 1024, 128>}, {pipeline_mode = #tpu.pipeline_mode<synchronous>, transform_indices = @transform_3, window_bounds = array<i64: 1, 128>}, {pipeline_mode = #tpu.pipeline_mode<synchronous>, transform_indices = @transform_4, window_bounds = array<i64: 2, 255, 128>}, {pipeline_mode = #tpu.pipeline_mode<synchronous>, transform_indices = @transform_5, window_bounds = array<i64: 1, 2>}, {transform_indices = @transform_6, window_bounds = array<i64: 1, 1, 2>}]} {
    %c0 = arith.constant 0 : index
    %c0_0 = arith.constant 0 : index
    %c0_1 = arith.constant 0 : index
    %0 = vector.load %arg1[%c0, %c0_0, %c0_1] : memref<1x544x16xbf16, #tpu.memory_space<vmem>>, vector<1x544x16xbf16>
    %1 = vector.shape_cast %0 : vector<1x544x16xbf16> to vector<544x16xbf16>
    %c0_2 = arith.constant 0 : index
    %c0_3 = arith.constant 0 : index
    %2 = vector.load %arg2[%c0_2, %c0_3] : memref<16x64xbf16, #tpu.memory_space<vmem>>, vector<16x64xbf16>
    %cst = arith.constant dense<0.000000e+00> : vector<544x64xf32>
    %3 = tpu.matmul %1, %2, %cst {dimension_numbers = #tpu.dot_dimension_numbers<[1], [0], [0], [1], [0, 0, 1, 1], [], []>} : vector<544x16xbf16>, vector<16x64xbf16>, vector<544x64xf32> -> vector<544x64xf32>
    %cst_4 = arith.constant 0.000000e+00 : f32
    %4 = vector.broadcast %cst_4 : f32 to vector<544x64xf32>
    %5 = arith.cmpf oge, %3, %4 : vector<544x64xf32>
    %cst_5 = arith.constant 0.00999999977 : f32
    %6 = vector.broadcast %cst_5 : f32 to vector<544x64xf32>
    %7 = arith.mulf %6, %3 : vector<544x64xf32>
    %8 = arith.select %5, %3, %7 : vector<544x64xi1>, vector<544x64xf32>
    %c0_6 = arith.constant 0 : index
    %c0_7 = arith.constant 0 : index
    %9 = vector.load %arg8[%c0_6, %c0_7] : memref<544x64xf32, #tpu.memory_space<vmem>>, vector<544x64xf32>
    tpu.vector_store %arg8[%c0_6, %c0_7], %8 {strides = array<i32>} : memref<544x64xf32, #tpu.memory_space<vmem>>, vector<544x64xf32>,
    %cst_8 = arith.constant 0.000000e+00 : f32
    %10 = vector.broadcast %cst_8 : f32 to vector<352x64xf32>
    %c0_9 = arith.constant 0 : index
    %c0_10 = arith.constant 0 : index
    %11 = vector.load %arg9[%c0_9, %c0_10] : memref<352x64xf32, #tpu.memory_space<vmem>>, vector<352x64xf32>
    tpu.vector_store %arg9[%c0_9, %c0_10], %10 {strides = array<i32>} : memref<352x64xf32, #tpu.memory_space<vmem>>, vector<352x64xf32>,
    %c0_11 = arith.constant 0 : index
    %c0_12 = arith.constant 0 : index
    %12 = vector.load %arg8[%c0_11, %c0_12] : memref<544x64xf32, #tpu.memory_space<vmem>>, vector<15x64xf32>
    %c17 = arith.constant 17 : index
    %c0_13 = arith.constant 0 : index
    %13 = vector.load %arg8[%c17, %c0_13] : memref<544x64xf32, #tpu.memory_space<vmem>>, vector<15x64xf32>
    %14 = arith.maximumf %12, %13 : vector<15x64xf32>
    %c35 = arith.constant 35 : index
    %c0_14 = arith.constant 0 : index
    %15 = vector.load %arg9[%c35, %c0_14] : memref<352x64xf32, #tpu.memory_space<vmem>>, vector<15x64xf32>
    tpu.vector_store %arg9[%c35, %c0_14], %14 {strides = array<i32>} : memref<352x64xf32, #tpu.memory_space<vmem>>, vector<15x64xf32>,
    %c34 = arith.constant 34 : index
    %c0_15 = arith.constant 0 : index
    %16 = vector.load %arg8[%c34, %c0_15] : memref<544x64xf32, #tpu.memory_space<vmem>>, vector<15x64xf32>
    %c51 = arith.constant 51 : index
    %c0_16 = arith.constant 0 : index
    %17 = vector.load %arg8[%c51, %c0_16] : memref<544x64xf32, #tpu.memory_space<vmem>>, vector<15x64xf32>
    %18 = arith.maximumf %16, %17 : vector<15x64xf32>
    %c52 = arith.constant 52 : index
    %c0_17 = arith.constant 0 : index
    %19 = vector.load %arg9[%c52, %c0_17] : memref<352x64xf32, #tpu.memory_space<vmem>>, vector<15x64xf32>
    tpu.vector_store %arg9[%c52, %c0_17], %18 {strides = array<i32>} : memref<352x64xf32, #tpu.memory_space<vmem>>, vector<15x64xf32>,
    %c68 = arith.constant 68 : index
    %c0_18 = arith.constant 0 : index
    %20 = vector.load %arg8[%c68, %c0_18] : memref<544x64xf32, #tpu.memory_space<vmem>>, vector<15x64xf32>
    %c85 = arith.constant 85 : index
    %c0_19 = arith.constant 0 : index
    %21 = vector.load %arg8[%c85, %c0_19] : memref<544x64xf32, #tpu.memory_space<vmem>>, vector<15x64xf32>
    %22 = arith.maximumf %20, %21 : vector<15x64xf32>
    %c69 = arith.constant 69 : index
    %c0_20 = arith.constant 0 : index
    %23 = vector.load %arg9[%c69, %c0_20] : memref<352x64xf32, #tpu.memory_space<vmem>>, vector<15x64xf32>
    tpu.vector_store %arg9[%c69, %c0_20], %22 {strides = array<i32>} : memref<352x64xf32, #tpu.memory_space<vmem>>, vector<15x64xf32>,
    %c102 = arith.constant 102 : index
    %c0_21 = arith.constant 0 : index
    %24 = vector.load %arg8[%c102, %c0_21] : memref<544x64xf32, #tpu.memory_space<vmem>>, vector<15x64xf32>
    %c119 = arith.constant 119 : index
    %c0_22 = arith.constant 0 : index
    %25 = vector.load %arg8[%c119, %c0_22] : memref<544x64xf32, #tpu.memory_space<vmem>>, vector<15x64xf32>
    %26 = arith.maximumf %24, %25 : vector<15x64xf32>
    %c86 = arith.constant 86 : index
    %c0_23 = arith.constant 0 : index
    %27 = vector.load %arg9[%c86, %c0_23] : memref<352x64xf32, #tpu.memory_space<vmem>>, vector<15x64xf32>
    tpu.vector_store %arg9[%c86, %c0_23], %26 {strides = array<i32>} : memref<352x64xf32, #tpu.memory_space<vmem>>, vector<15x64xf32>,
    %c136 = arith.constant 136 : index
    %c0_24 = arith.constant 0 : index
    %28 = vector.load %arg8[%c136, %c0_24] : memref<544x64xf32, #tpu.memory_space<vmem>>, vector<15x64xf32>
    %c153 = arith.constant 153 : index
    %c0_25 = arith.constant 0 : index
    %29 = vector.load %arg8[%c153, %c0_25] : memref<544x64xf32, #tpu.memory_space<vmem>>, vector<15x64xf32>
    %30 = arith.maximumf %28, %29 : vector<15x64xf32>
    %c103 = arith.constant 103 : index
    %c0_26 = arith.constant 0 : index
    %31 = vector.load %arg9[%c103, %c0_26] : memref<352x64xf32, #tpu.memory_space<vmem>>, vector<15x64xf32>
    tpu.vector_store %arg9[%c103, %c0_26], %30 {strides = array<i32>} : memref<352x64xf32, #tpu.memory_space<vmem>>, vector<15x64xf32>,
    %c170 = arith.constant 170 : index
    %c0_27 = arith.constant 0 : index
    %32 = vector.load %arg8[%c170, %c0_27] : memref<544x64xf32, #tpu.memory_space<vmem>>, vector<15x64xf32>
    %c187 = arith.constant 187 : index
    %c0_28 = arith.constant 0 : index
    %33 = vector.load %arg8[%c187, %c0_28] : memref<544x64xf32, #tpu.memory_space<vmem>>, vector<15x64xf32>
    %34 = arith.maximumf %32, %33 : vector<15x64xf32>
    %c120 = arith.constant 120 : index
    %c0_29 = arith.constant 0 : index
    %35 = vector.load %arg9[%c120, %c0_29] : memref<352x64xf32, #tpu.memory_space<vmem>>, vector<15x64xf32>
    tpu.vector_store %arg9[%c120, %c0_29], %34 {strides = array<i32>} : memref<352x64xf32, #tpu.memory_space<vmem>>, vector<15x64xf32>,
    %c204 = arith.constant 204 : index
    %c0_30 = arith.constant 0 : index
    %36 = vector.load %arg8[%c204, %c0_30] : memref<544x64xf32, #tpu.memory_space<vmem>>, vector<15x64xf32>
    %c221 = arith.constant 221 : index
    %c0_31 = arith.constant 0 : index
    %37 = vector.load %arg8[%c221, %c0_31] : memref<544x64xf32, #tpu.memory_space<vmem>>, vector<15x64xf32>
    %38 = arith.maximumf %36, %37 : vector<15x64xf32>
    %c137 = arith.constant 137 : index
    %c0_32 = arith.constant 0 : index
    %39 = vector.load %arg9[%c137, %c0_32] : memref<352x64xf32, #tpu.memory_space<vmem>>, vector<15x64xf32>
    tpu.vector_store %arg9[%c137, %c0_32], %38 {strides = array<i32>} : memref<352x64xf32, #tpu.memory_space<vmem>>, vector<15x64xf32>,
    %c238 = arith.constant 238 : index
    %c0_33 = arith.constant 0 : index
    %40 = vector.load %arg8[%c238, %c0_33] : memref<544x64xf32, #tpu.memory_space<vmem>>, vector<15x64xf32>
    %c255 = arith.constant 255 : index
    %c0_34 = arith.constant 0 : index
    %41 = vector.load %arg8[%c255, %c0_34] : memref<544x64xf32, #tpu.memory_space<vmem>>, vector<15x64xf32>
    %42 = arith.maximumf %40, %41 : vector<15x64xf32>
    %c154 = arith.constant 154 : index
    %c0_35 = arith.constant 0 : index
    %43 = vector.load %arg9[%c154, %c0_35] : memref<352x64xf32, #tpu.memory_space<vmem>>, vector<15x64xf32>
    tpu.vector_store %arg9[%c154, %c0_35], %42 {strides = array<i32>} : memref<352x64xf32, #tpu.memory_space<vmem>>, vector<15x64xf32>,
    %c272 = arith.constant 272 : index
    %c0_36 = arith.constant 0 : index
    %44 = vector.load %arg8[%c272, %c0_36] : memref<544x64xf32, #tpu.memory_space<vmem>>, vector<15x64xf32>
    %c289 = arith.constant 289 : index
    %c0_37 = arith.constant 0 : index
    %45 = vector.load %arg8[%c289, %c0_37] : memref<544x64xf32, #tpu.memory_space<vmem>>, vector<15x64xf32>
    %46 = arith.maximumf %44, %45 : vector<15x64xf32>
    %c171 = arith.constant 171 : index
    %c0_38 = arith.constant 0 : index
    %47 = vector.load %arg9[%c171, %c0_38] : memref<352x64xf32, #tpu.memory_space<vmem>>, vector<15x64xf32>
    tpu.vector_store %arg9[%c171, %c0_38], %46 {strides = array<i32>} : memref<352x64xf32, #tpu.memory_space<vmem>>, vector<15x64xf32>,
    %c306 = arith.constant 306 : index
    %c0_39 = arith.constant 0 : index
    %48 = vector.load %arg8[%c306, %c0_39] : memref<544x64xf32, #tpu.memory_space<vmem>>, vector<15x64xf32>
    %c323 = arith.constant 323 : index
    %c0_40 = arith.constant 0 : index
    %49 = vector.load %arg8[%c323, %c0_40] : memref<544x64xf32, #tpu.memory_space<vmem>>, vector<15x64xf32>
    %50 = arith.maximumf %48, %49 : vector<15x64xf32>
    %c188 = arith.constant 188 : index
    %c0_41 = arith.constant 0 : index
    %51 = vector.load %arg9[%c188, %c0_41] : memref<352x64xf32, #tpu.memory_space<vmem>>, vector<15x64xf32>
    tpu.vector_store %arg9[%c188, %c0_41], %50 {strides = array<i32>} : memref<352x64xf32, #tpu.memory_space<vmem>>, vector<15x64xf32>,
    %c340 = arith.constant 340 : index
    %c0_42 = arith.constant 0 : index
    %52 = vector.load %arg8[%c340, %c0_42] : memref<544x64xf32, #tpu.memory_space<vmem>>, vector<15x64xf32>
    %c357 = arith.constant 357 : index
    %c0_43 = arith.constant 0 : index
    %53 = vector.load %arg8[%c357, %c0_43] : memref<544x64xf32, #tpu.memory_space<vmem>>, vector<15x64xf32>
    %54 = arith.maximumf %52, %53 : vector<15x64xf32>
    %c205 = arith.constant 205 : index
    %c0_44 = arith.constant 0 : index
    %55 = vector.load %arg9[%c205, %c0_44] : memref<352x64xf32, #tpu.memory_space<vmem>>, vector<15x64xf32>
    tpu.vector_store %arg9[%c205, %c0_44], %54 {strides = array<i32>} : memref<352x64xf32, #tpu.memory_space<vmem>>, vector<15x64xf32>,
    %c374 = arith.constant 374 : index
    %c0_45 = arith.constant 0 : index
    %56 = vector.load %arg8[%c374, %c0_45] : memref<544x64xf32, #tpu.memory_space<vmem>>, vector<15x64xf32>
    %c391 = arith.constant 391 : index
    %c0_46 = arith.constant 0 : index
    %57 = vector.load %arg8[%c391, %c0_46] : memref<544x64xf32, #tpu.memory_space<vmem>>, vector<15x64xf32>
    %58 = arith.maximumf %56, %57 : vector<15x64xf32>
    %c222 = arith.constant 222 : index
    %c0_47 = arith.constant 0 : index
    %59 = vector.load %arg9[%c222, %c0_47] : memref<352x64xf32, #tpu.memory_space<vmem>>, vector<15x64xf32>
    tpu.vector_store %arg9[%c222, %c0_47], %58 {strides = array<i32>} : memref<352x64xf32, #tpu.memory_space<vmem>>, vector<15x64xf32>,
    %c408 = arith.constant 408 : index
    %c0_48 = arith.constant 0 : index
    %60 = vector.load %arg8[%c408, %c0_48] : memref<544x64xf32, #tpu.memory_space<vmem>>, vector<15x64xf32>
    %c425 = arith.constant 425 : index
    %c0_49 = arith.constant 0 : index
    %61 = vector.load %arg8[%c425, %c0_49] : memref<544x64xf32, #tpu.memory_space<vmem>>, vector<15x64xf32>
    %62 = arith.maximumf %60, %61 : vector<15x64xf32>
    %c239 = arith.constant 239 : index
    %c0_50 = arith.constant 0 : index
    %63 = vector.load %arg9[%c239, %c0_50] : memref<352x64xf32, #tpu.memory_space<vmem>>, vector<15x64xf32>
    tpu.vector_store %arg9[%c239, %c0_50], %62 {strides = array<i32>} : memref<352x64xf32, #tpu.memory_space<vmem>>, vector<15x64xf32>,
    %c442 = arith.constant 442 : index
    %c0_51 = arith.constant 0 : index
    %64 = vector.load %arg8[%c442, %c0_51] : memref<544x64xf32, #tpu.memory_space<vmem>>, vector<15x64xf32>
    %c459 = arith.constant 459 : index
    %c0_52 = arith.constant 0 : index
    %65 = vector.load %arg8[%c459, %c0_52] : memref<544x64xf32, #tpu.memory_space<vmem>>, vector<15x64xf32>
    %66 = arith.maximumf %64, %65 : vector<15x64xf32>
    %c256 = arith.constant 256 : index
    %c0_53 = arith.constant 0 : index
    %67 = vector.load %arg9[%c256, %c0_53] : memref<352x64xf32, #tpu.memory_space<vmem>>, vector<15x64xf32>
    tpu.vector_store %arg9[%c256, %c0_53], %66 {strides = array<i32>} : memref<352x64xf32, #tpu.memory_space<vmem>>, vector<15x64xf32>,
    %c476 = arith.constant 476 : index
    %c0_54 = arith.constant 0 : index
    %68 = vector.load %arg8[%c476, %c0_54] : memref<544x64xf32, #tpu.memory_space<vmem>>, vector<15x64xf32>
    %c493 = arith.constant 493 : index
    %c0_55 = arith.constant 0 : index
    %69 = vector.load %arg8[%c493, %c0_55] : memref<544x64xf32, #tpu.memory_space<vmem>>, vector<15x64xf32>
    %70 = arith.maximumf %68, %69 : vector<15x64xf32>
    %c273 = arith.constant 273 : index
    %c0_56 = arith.constant 0 : index
    %71 = vector.load %arg9[%c273, %c0_56] : memref<352x64xf32, #tpu.memory_space<vmem>>, vector<15x64xf32>
    tpu.vector_store %arg9[%c273, %c0_56], %70 {strides = array<i32>} : memref<352x64xf32, #tpu.memory_space<vmem>>, vector<15x64xf32>,
    %c510 = arith.constant 510 : index
    %c0_57 = arith.constant 0 : index
    %72 = vector.load %arg8[%c510, %c0_57] : memref<544x64xf32, #tpu.memory_space<vmem>>, vector<15x64xf32>
    %c527 = arith.constant 527 : index
    %c0_58 = arith.constant 0 : index
    %73 = vector.load %arg8[%c527, %c0_58] : memref<544x64xf32, #tpu.memory_space<vmem>>, vector<15x64xf32>
    %74 = arith.maximumf %72, %73 : vector<15x64xf32>
    %c290 = arith.constant 290 : index
    %c0_59 = arith.constant 0 : index
    %75 = vector.load %arg9[%c290, %c0_59] : memref<352x64xf32, #tpu.memory_space<vmem>>, vector<15x64xf32>
    tpu.vector_store %arg9[%c290, %c0_59], %74 {strides = array<i32>} : memref<352x64xf32, #tpu.memory_space<vmem>>, vector<15x64xf32>,
    %c0_60 = arith.constant 0 : index
    %c0_61 = arith.constant 0 : index
    %76 = vector.load %arg9[%c0_60, %c0_61] : memref<352x64xf32, #tpu.memory_space<vmem>>, vector<272x64xf32>
    %77 = arith.truncf %76 : vector<272x64xf32> to vector<272x64xbf16>
    %c0_62 = arith.constant 0 : index
    %c0_63 = arith.constant 0 : index
    %78 = vector.load %arg10[%c0_62, %c0_63] : memref<272x1024xbf16, #tpu.memory_space<vmem>>, vector<272x64xbf16>
    tpu.vector_store %arg10[%c0_62, %c0_63], %77 {strides = array<i32>} : memref<272x1024xbf16, #tpu.memory_space<vmem>>, vector<272x64xbf16>,
    %c1 = arith.constant 1 : index
    %c0_64 = arith.constant 0 : index
    %79 = vector.load %arg9[%c1, %c0_64] : memref<352x64xf32, #tpu.memory_space<vmem>>, vector<272x64xf32>
    %80 = arith.truncf %79 : vector<272x64xf32> to vector<272x64xbf16>
    %c0_65 = arith.constant 0 : index
    %c64 = arith.constant 64 : index
    %81 = vector.load %arg10[%c0_65, %c64] : memref<272x1024xbf16, #tpu.memory_space<vmem>>, vector<272x64xbf16>
    tpu.vector_store %arg10[%c0_65, %c64], %80 {strides = array<i32>} : memref<272x1024xbf16, #tpu.memory_space<vmem>>, vector<272x64xbf16>,
    %c2 = arith.constant 2 : index
    %c0_66 = arith.constant 0 : index
    %82 = vector.load %arg9[%c2, %c0_66] : memref<352x64xf32, #tpu.memory_space<vmem>>, vector<272x64xf32>
    %83 = arith.truncf %82 : vector<272x64xf32> to vector<272x64xbf16>
    %c0_67 = arith.constant 0 : index
    %c128 = arith.constant 128 : index
    %84 = vector.load %arg10[%c0_67, %c128] : memref<272x1024xbf16, #tpu.memory_space<vmem>>, vector<272x64xbf16>
    tpu.vector_store %arg10[%c0_67, %c128], %83 {strides = array<i32>} : memref<272x1024xbf16, #tpu.memory_space<vmem>>, vector<272x64xbf16>,
    %c17_68 = arith.constant 17 : index
    %c0_69 = arith.constant 0 : index
    %85 = vector.load %arg9[%c17_68, %c0_69] : memref<352x64xf32, #tpu.memory_space<vmem>>, vector<272x64xf32>
    %86 = arith.truncf %85 : vector<272x64xf32> to vector<272x64xbf16>
    %c0_70 = arith.constant 0 : index
    %c192 = arith.constant 192 : index
    %87 = vector.load %arg10[%c0_70, %c192] : memref<272x1024xbf16, #tpu.memory_space<vmem>>, vector<272x64xbf16>
    tpu.vector_store %arg10[%c0_70, %c192], %86 {strides = array<i32>} : memref<272x1024xbf16, #tpu.memory_space<vmem>>, vector<272x64xbf16>,
    %c18 = arith.constant 18 : index
    %c0_71 = arith.constant 0 : index
    %88 = vector.load %arg9[%c18, %c0_71] : memref<352x64xf32, #tpu.memory_space<vmem>>, vector<272x64xf32>
    %89 = arith.truncf %88 : vector<272x64xf32> to vector<272x64xbf16>
    %c0_72 = arith.constant 0 : index
    %c256_73 = arith.constant 256 : index
    %90 = vector.load %arg10[%c0_72, %c256_73] : memref<272x1024xbf16, #tpu.memory_space<vmem>>, vector<272x64xbf16>
    tpu.vector_store %arg10[%c0_72, %c256_73], %89 {strides = array<i32>} : memref<272x1024xbf16, #tpu.memory_space<vmem>>, vector<272x64xbf16>,
    %c19 = arith.constant 19 : index
    %c0_74 = arith.constant 0 : index
    %91 = vector.load %arg9[%c19, %c0_74] : memref<352x64xf32, #tpu.memory_space<vmem>>, vector<272x64xf32>
    %92 = arith.truncf %91 : vector<272x64xf32> to vector<272x64xbf16>
    %c0_75 = arith.constant 0 : index
    %c320 = arith.constant 320 : index
    %93 = vector.load %arg10[%c0_75, %c320] : memref<272x1024xbf16, #tpu.memory_space<vmem>>, vector<272x64xbf16>
    tpu.vector_store %arg10[%c0_75, %c320], %92 {strides = array<i32>} : memref<272x1024xbf16, #tpu.memory_space<vmem>>, vector<272x64xbf16>,
    %c34_76 = arith.constant 34 : index
    %c0_77 = arith.constant 0 : index
    %94 = vector.load %arg9[%c34_76, %c0_77] : memref<352x64xf32, #tpu.memory_space<vmem>>, vector<272x64xf32>
    %95 = arith.truncf %94 : vector<272x64xf32> to vector<272x64xbf16>
    %c0_78 = arith.constant 0 : index
    %c384 = arith.constant 384 : index
    %96 = vector.load %arg10[%c0_78, %c384] : memref<272x1024xbf16, #tpu.memory_space<vmem>>, vector<272x64xbf16>
    tpu.vector_store %arg10[%c0_78, %c384], %95 {strides = array<i32>} : memref<272x1024xbf16, #tpu.memory_space<vmem>>, vector<272x64xbf16>,
    %c35_79 = arith.constant 35 : index
    %c0_80 = arith.constant 0 : index
    %97 = vector.load %arg9[%c35_79, %c0_80] : memref<352x64xf32, #tpu.memory_space<vmem>>, vector<272x64xf32>
    %98 = arith.truncf %97 : vector<272x64xf32> to vector<272x64xbf16>
    %c0_81 = arith.constant 0 : index
    %c448 = arith.constant 448 : index
    %99 = vector.load %arg10[%c0_81, %c448] : memref<272x1024xbf16, #tpu.memory_space<vmem>>, vector<272x64xbf16>
    tpu.vector_store %arg10[%c0_81, %c448], %98 {strides = array<i32>} : memref<272x1024xbf16, #tpu.memory_space<vmem>>, vector<272x64xbf16>,
    %c36 = arith.constant 36 : index
    %c0_82 = arith.constant 0 : index
    %100 = vector.load %arg9[%c36, %c0_82] : memref<352x64xf32, #tpu.memory_space<vmem>>, vector<272x64xf32>
    %101 = arith.truncf %100 : vector<272x64xf32> to vector<272x64xbf16>
    %c0_83 = arith.constant 0 : index
    %c512 = arith.constant 512 : index
    %102 = vector.load %arg10[%c0_83, %c512] : memref<272x1024xbf16, #tpu.memory_space<vmem>>, vector<272x64xbf16>
    tpu.vector_store %arg10[%c0_83, %c512], %101 {strides = array<i32>} : memref<272x1024xbf16, #tpu.memory_space<vmem>>, vector<272x64xbf16>,
    %c51_84 = arith.constant 51 : index
    %c0_85 = arith.constant 0 : index
    %103 = vector.load %arg9[%c51_84, %c0_85] : memref<352x64xf32, #tpu.memory_space<vmem>>, vector<272x64xf32>
    %104 = arith.truncf %103 : vector<272x64xf32> to vector<272x64xbf16>
    %c0_86 = arith.constant 0 : index
    %c576 = arith.constant 576 : index
    %105 = vector.load %arg10[%c0_86, %c576] : memref<272x1024xbf16, #tpu.memory_space<vmem>>, vector<272x64xbf16>
    tpu.vector_store %arg10[%c0_86, %c576], %104 {strides = array<i32>} : memref<272x1024xbf16, #tpu.memory_space<vmem>>, vector<272x64xbf16>,
    %c52_87 = arith.constant 52 : index
    %c0_88 = arith.constant 0 : index
    %106 = vector.load %arg9[%c52_87, %c0_88] : memref<352x64xf32, #tpu.memory_space<vmem>>, vector<272x64xf32>
    %107 = arith.truncf %106 : vector<272x64xf32> to vector<272x64xbf16>
    %c0_89 = arith.constant 0 : index
    %c640 = arith.constant 640 : index
    %108 = vector.load %arg10[%c0_89, %c640] : memref<272x1024xbf16, #tpu.memory_space<vmem>>, vector<272x64xbf16>
    tpu.vector_store %arg10[%c0_89, %c640], %107 {strides = array<i32>} : memref<272x1024xbf16, #tpu.memory_space<vmem>>, vector<272x64xbf16>,
    %c53 = arith.constant 53 : index
    %c0_90 = arith.constant 0 : index
    %109 = vector.load %arg9[%c53, %c0_90] : memref<352x64xf32, #tpu.memory_space<vmem>>, vector<272x64xf32>
    %110 = arith.truncf %109 : vector<272x64xf32> to vector<272x64xbf16>
    %c0_91 = arith.constant 0 : index
    %c704 = arith.constant 704 : index
    %111 = vector.load %arg10[%c0_91, %c704] : memref<272x1024xbf16, #tpu.memory_space<vmem>>, vector<272x64xbf16>
    tpu.vector_store %arg10[%c0_91, %c704], %110 {strides = array<i32>} : memref<272x1024xbf16, #tpu.memory_space<vmem>>, vector<272x64xbf16>,
    %c68_92 = arith.constant 68 : index
    %c0_93 = arith.constant 0 : index
    %112 = vector.load %arg9[%c68_92, %c0_93] : memref<352x64xf32, #tpu.memory_space<vmem>>, vector<272x64xf32>
    %113 = arith.truncf %112 : vector<272x64xf32> to vector<272x64xbf16>
    %c0_94 = arith.constant 0 : index
    %c768 = arith.constant 768 : index
    %114 = vector.load %arg10[%c0_94, %c768] : memref<272x1024xbf16, #tpu.memory_space<vmem>>, vector<272x64xbf16>
    tpu.vector_store %arg10[%c0_94, %c768], %113 {strides = array<i32>} : memref<272x1024xbf16, #tpu.memory_space<vmem>>, vector<272x64xbf16>,
    %c69_95 = arith.constant 69 : index
    %c0_96 = arith.constant 0 : index
    %115 = vector.load %arg9[%c69_95, %c0_96] : memref<352x64xf32, #tpu.memory_space<vmem>>, vector<272x64xf32>
    %116 = arith.truncf %115 : vector<272x64xf32> to vector<272x64xbf16>
    %c0_97 = arith.constant 0 : index
    %c832 = arith.constant 832 : index
    %117 = vector.load %arg10[%c0_97, %c832] : memref<272x1024xbf16, #tpu.memory_space<vmem>>, vector<272x64xbf16>
    tpu.vector_store %arg10[%c0_97, %c832], %116 {strides = array<i32>} : memref<272x1024xbf16, #tpu.memory_space<vmem>>, vector<272x64xbf16>,
    %c70 = arith.constant 70 : index
    %c0_98 = arith.constant 0 : index
    %118 = vector.load %arg9[%c70, %c0_98] : memref<352x64xf32, #tpu.memory_space<vmem>>, vector<272x64xf32>
    %119 = arith.truncf %118 : vector<272x64xf32> to vector<272x64xbf16>
    %c0_99 = arith.constant 0 : index
    %c896 = arith.constant 896 : index
    %120 = vector.load %arg10[%c0_99, %c896] : memref<272x1024xbf16, #tpu.memory_space<vmem>>, vector<272x64xbf16>
    tpu.vector_store %arg10[%c0_99, %c896], %119 {strides = array<i32>} : memref<272x1024xbf16, #tpu.memory_space<vmem>>, vector<272x64xbf16>,
    %cst_100 = arith.constant 0.000000e+00 : bf16
    %121 = vector.broadcast %cst_100 : bf16 to vector<272x64xbf16>
    %c0_101 = arith.constant 0 : index
    %c960 = arith.constant 960 : index
    %122 = vector.load %arg10[%c0_101, %c960] : memref<272x1024xbf16, #tpu.memory_space<vmem>>, vector<272x64xbf16>
    tpu.vector_store %arg10[%c0_101, %c960], %121 {strides = array<i32>} : memref<272x1024xbf16, #tpu.memory_space<vmem>>, vector<272x64xbf16>,
    %c0_102 = arith.constant 0 : index
    %c0_103 = arith.constant 0 : index
    %123 = vector.load %arg10[%c0_102, %c0_103] : memref<272x1024xbf16, #tpu.memory_space<vmem>>, vector<272x1024xbf16>
    %c0_104 = arith.constant 0 : index
    %c0_105 = arith.constant 0 : index
    %124 = vector.load %arg3[%c0_104, %c0_105] : memref<1024x128xbf16, #tpu.memory_space<vmem>>, vector<1024x128xbf16>
    %cst_106 = arith.constant dense<0.000000e+00> : vector<272x128xf32>
    %125 = tpu.matmul %123, %124, %cst_106 {dimension_numbers = #tpu.dot_dimension_numbers<[1], [0], [0], [1], [0, 0, 1, 1], [], []>} : vector<272x1024xbf16>, vector<1024x128xbf16>, vector<272x128xf32> -> vector<272x128xf32>
    %c0_107 = arith.constant 0 : index
    %c0_108 = arith.constant 0 : index
    %126 = vector.load %arg4[%c0_107, %c0_108] : memref<1x128xf32, #tpu.memory_space<vmem>>, vector<1x128xf32>
    %127 = vector.broadcast %126 : vector<1x128xf32> to vector<272x128xf32>
    %128 = arith.addf %125, %127 : vector<272x128xf32>
    %cst_109 = arith.constant 0.000000e+00 : f32
    %129 = vector.broadcast %cst_109 : f32 to vector<272x128xf32>
    %130 = arith.cmpf oge, %128, %129 : vector<272x128xf32>
    %cst_110 = arith.constant 0.00999999977 : f32
    %131 = vector.broadcast %cst_110 : f32 to vector<272x128xf32>
    %132 = arith.mulf %131, %128 : vector<272x128xf32>
    %133 = arith.select %130, %128, %132 : vector<272x128xi1>, vector<272x128xf32>
    %c0_111 = arith.constant 0 : index
    %c0_112 = arith.constant 0 : index
    %134 = vector.load %arg11[%c0_111, %c0_112] : memref<272x128xf32, #tpu.memory_space<vmem>>, vector<272x128xf32>
    tpu.vector_store %arg11[%c0_111, %c0_112], %133 {strides = array<i32>} : memref<272x128xf32, #tpu.memory_space<vmem>>, vector<272x128xf32>,
    %c0_113 = arith.constant 0 : index
    %c0_114 = arith.constant 0 : index
    %135 = vector.load %arg11[%c0_113, %c0_114] : memref<272x128xf32, #tpu.memory_space<vmem>>, vector<255x128xf32>
    %c17_115 = arith.constant 17 : index
    %c0_116 = arith.constant 0 : index
    %136 = vector.load %arg11[%c17_115, %c0_116] : memref<272x128xf32, #tpu.memory_space<vmem>>, vector<255x128xf32>
    %137 = arith.maximumf %135, %136 : vector<255x128xf32>
    %c0_117 = arith.constant 0 : index
    %c0_118 = arith.constant 0 : index
    %138 = vector.load %arg6[%c0_117, %c0_118] : memref<1x2xf32, #tpu.memory_space<vmem>>, vector<1x2xf32>
    %139 = tpu.iota {dimensions = array<i32: 1>} : vector<1x2xi32>
    %c0_i32 = arith.constant 0 : i32
    %140 = vector.broadcast %c0_i32 : i32 to vector<1x2xi32>
    %141 = arith.cmpi eq, %139, %140 : vector<1x2xi32>
    %142 = arith.extui %141 : vector<1x2xi1> to vector<1x2xi32>
    %143 = arith.sitofp %142 : vector<1x2xi32> to vector<1x2xf32>
    %c0_119 = arith.constant 0 : index
    %c0_120 = arith.constant 0 : index
    %c0_121 = arith.constant 0 : index
    %144 = vector.load %arg5[%c0_119, %c0_120, %c0_121] : memref<2x255x128xbf16, #tpu.memory_space<vmem>>, vector<1x255x128xbf16>
    %145 = vector.shape_cast %144 : vector<1x255x128xbf16> to vector<255x128xbf16>
    %146 = arith.extf %145 : vector<255x128xbf16> to vector<255x128xf32>
    %147 = arith.mulf %137, %146 : vector<255x128xf32>
    %148 = vector.shape_cast %147 : vector<255x128xf32> to vector<1x255x128xf32>
    %cst_122 = arith.constant dense<0.000000e+00> : vector<1xf32>
    %149 = vector.multi_reduction <add>, %148, %cst_122 [1, 2] : vector<1x255x128xf32> to vector<1xf32>
    %150 = vector.shape_cast %149 : vector<1xf32> to vector<1x1x1xf32>
    %151 = vector.extract %150[0, 0, 0] : f32 from vector<1x1x1xf32>
    %152 = vector.broadcast %151 : f32 to vector<1x2xf32>
    %153 = arith.mulf %152, %143 : vector<1x2xf32>
    %154 = arith.addf %138, %153 : vector<1x2xf32>
    %c1_i32 = arith.constant 1 : i32
    %155 = vector.broadcast %c1_i32 : i32 to vector<1x2xi32>
    %156 = arith.cmpi eq, %139, %155 : vector<1x2xi32>
    %157 = arith.extui %156 : vector<1x2xi1> to vector<1x2xi32>
    %158 = arith.sitofp %157 : vector<1x2xi32> to vector<1x2xf32>
    %c1_123 = arith.constant 1 : index
    %c0_124 = arith.constant 0 : index
    %c0_125 = arith.constant 0 : index
    %159 = vector.load %arg5[%c1_123, %c0_124, %c0_125] : memref<2x255x128xbf16, #tpu.memory_space<vmem>>, vector<1x255x128xbf16>
    %160 = vector.shape_cast %159 : vector<1x255x128xbf16> to vector<255x128xbf16>
    %161 = arith.extf %160 : vector<255x128xbf16> to vector<255x128xf32>
    %162 = arith.mulf %137, %161 : vector<255x128xf32>
    %163 = vector.shape_cast %162 : vector<255x128xf32> to vector<1x255x128xf32>
    %cst_126 = arith.constant dense<0.000000e+00> : vector<1xf32>
    %164 = vector.multi_reduction <add>, %163, %cst_126 [1, 2] : vector<1x255x128xf32> to vector<1xf32>
    %165 = vector.shape_cast %164 : vector<1xf32> to vector<1x1x1xf32>
    %166 = vector.extract %165[0, 0, 0] : f32 from vector<1x1x1xf32>
    %167 = vector.broadcast %166 : f32 to vector<1x2xf32>
    %168 = arith.mulf %167, %158 : vector<1x2xf32>
    %169 = arith.addf %154, %168 : vector<1x2xf32>
    %170 = vector.shape_cast %169 : vector<1x2xf32> to vector<1x1x2xf32>
    %c0_127 = arith.constant 0 : index
    %c0_128 = arith.constant 0 : index
    %c0_129 = arith.constant 0 : index
    %171 = vector.load %arg7[%c0_127, %c0_128, %c0_129] : memref<1x1x2xf32, #tpu.memory_space<vmem>>, vector<1x1x2xf32>
    tpu.vector_store %arg7[%c0_127, %c0_128, %c0_129], %170 {strides = array<i32>} : memref<1x1x2xf32, #tpu.memory_space<vmem>>, vector<1x1x2xf32>,
    return
  }
  func.func @transform_0(%arg0: i32) -> (i32, i32, i32) {
    %c0_i32 = arith.constant 0 : i32
    %c0_i32_0 = arith.constant 0 : i32
    %c0_i32_1 = arith.constant 0 : i32
    return %arg0, %c0_i32, %c0_i32_0 : i32, i32, i32
  }
  func.func @transform_1(%arg0: i32) -> (i32, i32) {
    %c0_i32 = arith.constant 0 : i32
    %c0_i32_0 = arith.constant 0 : i32
    %c0_i32_1 = arith.constant 0 : i32
    return %c0_i32, %c0_i32_0 : i32, i32
  }
  func.func @transform_2(%arg0: i32) -> (i32, i32) {
    %c0_i32 = arith.constant 0 : i32
    %c0_i32_0 = arith.constant 0 : i32
    %c0_i32_1 = arith.constant 0 : i32
    return %c0_i32, %c0_i32_0 : i32, i32
  }
  func.func @transform_3(%arg0: i32) -> (i32, i32) {
    %c0_i32 = arith.constant 0 : i32
    %c0_i32_0 = arith.constant 0 : i32
    %c0_i32_1 = arith.constant 0 : i32
    return %c0_i32, %c0_i32_0 : i32, i32
  }
  func.func @transform_4(%arg0: i32) -> (i32, i32, i32) {
    %c0_i32 = arith.constant 0 : i32
    %c0_i32_0 = arith.constant 0 : i32
    %c0_i32_1 = arith.constant 0 : i32
    %c0_i32_2 = arith.constant 0 : i32
    return %c0_i32, %c0_i32_0, %c0_i32_1 : i32, i32, i32
  }
  func.func @transform_5(%arg0: i32) -> (i32, i32) {
    %c0_i32 = arith.constant 0 : i32
    %c0_i32_0 = arith.constant 0 : i32
    %c0_i32_1 = arith.constant 0 : i32
    return %c0_i32, %c0_i32_0 : i32, i32
  }
  func.func @transform_6(%arg0: i32) -> (i32, i32, i32) {
    %c0_i32 = arith.constant 0 : i32
    %c0_i32_0 = arith.constant 0 : i32
    %c0_i32_1 = arith.constant 0 : i32
    return %arg0, %c0_i32, %c0_i32_0 : i32, i32, i32
  }
}

</mosaic_0001>

<llo_original>
// kernel: cnn_forward.1
$region0: #{cnn_forward.1}
  #allocation0 [shape = 'u32[]', space=smem, size = 0x4, offset = 0x4, fixed_abs, tag = 'smem constant byte address 0x4 - core index']
  #allocation1 [shape = 'u32[72,128]{1,0:T(1,128)}', space=vmem, size = 0x9000, scoped, tag = 'internal scratch']
  #allocation2 [shape = 'f32[544,64]{1,0:T(8,128)}', space=vmem, size = 0x44000, scoped, tag = 'scratch operand']
  #allocation3 [shape = 'f32[352,64]{1,0:T(8,128)}', space=vmem, size = 0x2c000, scoped, tag = 'scratch operand']
  #allocation4 [shape = 'bf16[272,1024]{1,0:T(8,128)(2,1)}', space=vmem, size = 0x88000, scoped, tag = 'scratch operand']
  #allocation5 [shape = 'f32[272,128]{1,0:T(8,128)}', space=vmem, size = 0x22000, scoped, tag = 'scratch operand']
  %s0 = inlined_call_operand.vmem [shape: bf16[2,544,16], index: 0, kind: input, shape index: {}]
  %s1 = inlined_call_operand.vmem [shape: bf16[16,64], index: 1, kind: input, shape index: {}]
  %s2 = inlined_call_operand.vmem [shape: bf16[1024,128], index: 2, kind: input, shape index: {}]
  %s3 = inlined_call_operand.vmem [shape: f32[1,128], index: 3, kind: input, shape index: {}]
  %s4 = inlined_call_operand.vmem [shape: bf16[2,255,128], index: 4, kind: input, shape index: {}]
  %s5 = inlined_call_operand.vmem [shape: f32[1,2], index: 5, kind: input, shape index: {}]
  %s6 = inlined_call_operand.hbm [shape: f32[2,1,2], index: 6, kind: output, shape index: {}]
  %s7 = sld [smem:[#allocation0]]
  $region57: #{cnn_forward.1} parent=0
    _
  %s9 = ssub.s32 1, %s7
  %s10 = scalar_select 0, %s9, %s7
  $region1: #{cnn_forward.1} parent=0
    #allocation6 [shape = 'u8[1024]{0}', space=vmem, size = 0x400, scoped, tag = 'output window, operand 0']
    #allocation7 [shape = 's32[2]{0}', space=sflag, size = 0x8, scoped, tag = 'scoped memory for cnn_forward.1']
    %11 = vsyncpa [#allocation7], 0
    %s12 = scalar_lea.sflag [#allocation7], 1
    %13 = vsyncpa %s12, 0
    loop: start=0, step=1, limit=4
    $region2: #{cnn_forward.1} parent=1 // loop_pre_header
      _
    $region3: #{cnn_forward.1} parent=1 // loop_header
      %s15 = sphi 0, %s19
      %p16 = scmp.ge.s32.totalorder %s15, 4
      %s25 = sphi 0, %s27
      %s28 = sphi 0, %s25
      %s29 = sphi 0, %s28
      %s45 = sphi 0, %s29
      %s49 = sphi 0, %s49
      %s51 = sphi 0, %s49
      %s52 = sphi 0, %s51
      %s66 = sphi 0, %s52
      %s70 = sphi 0, %s70
      %s72 = sphi 0, %s70
      %s73 = sphi 0, %s72
      %s87 = sphi 0, %s73
      %s91 = sphi 0, %s91
      %s93 = sphi 0, %s91
      %s94 = sphi 0, %s93
      %s108 = sphi 0, %s94
      %s112 = sphi 0, %s112
      %s114 = sphi 0, %s112
      %s115 = sphi 0, %s114
      %s129 = sphi 0, %s115
      %s133 = sphi 0, %s133
      %s135 = sphi 0, %s133
      %s136 = sphi 0, %s135
      %s150 = sphi 0, %s136
      %s156 = sphi 0, %s158
      %s159 = sphi 0, %s156
      %s160 = sphi 0, %s159
      %s176 = sphi 0, %s160
    $region4: #{cnn_forward.1} parent=1 // loop_header_branch
      %18 = sbr.rel (%p16) target = $region8
    $region5: #{cnn_forward.1} parent=1 // loop_body
      %s20 = ssub.s32 %s15, 1
      %s21 = ssub.s32 %s15, 2
      %s22 = sadd.s32 %s15, 1
      %s23 = ssub.s32 %s15, %s22
      %p24 = scmp.eq.s32.totalorder %s23, 0
      %s26 = sadd.s32 %s25, 1
      %s27 = scalar_select %p24, %s25, %s26
      %p30 = pneg %p24
      %p31 = scmp.eq.s32.totalorder %s15, 1
      %p32 = por %p30, %p31
      %p33 = scmp.ne.s32.totalorder %s25, %s28
      %p34 = scmp.eq.s32.totalorder %s15, 0
      %p35 = por %p33, %p34
      %p36 = scmp.ne.s32.totalorder %s25, %s28
      %p37 = scmp.eq.s32.totalorder %s20, 1
      %p38 = por %p36, %p37
      %p39 = scmp.ne.s32.totalorder %s28, %s29
      %p40 = scmp.eq.s32.totalorder %s20, 0
      %p41 = por %p39, %p40
      %p42 = scmp.ne.s32.totalorder %s28, %s29
      %p43 = scmp.eq.s32.totalorder %s21, 1
      %p44 = por %p42, %p43
      %p46 = scmp.ne.s32.totalorder %s29, %s45
      %p47 = scmp.eq.s32.totalorder %s21, 0
      %p48 = por %p46, %p47
      %s50 = sadd.s32 %s49, 1
      %p53 = scmp.eq.s32.totalorder %s15, 1
      %p54 = scmp.ne.s32.totalorder %s49, %s51
      %p55 = scmp.eq.s32.totalorder %s15, 0
      %p56 = por %p54, %p55
      %p57 = scmp.ne.s32.totalorder %s49, %s51
      %p58 = scmp.eq.s32.totalorder %s20, 1
      %p59 = por %p57, %p58
      %p60 = scmp.ne.s32.totalorder %s51, %s52
      %p61 = scmp.eq.s32.totalorder %s20, 0
      %p62 = por %p60, %p61
      %p63 = scmp.ne.s32.totalorder %s51, %s52
      %p64 = scmp.eq.s32.totalorder %s21, 1
      %p65 = por %p63, %p64
      %p67 = scmp.ne.s32.totalorder %s52, %s66
      %p68 = scmp.eq.s32.totalorder %s21, 0
      %p69 = por %p67, %p68
      %s71 = sadd.s32 %s70, 1
      %p74 = scmp.eq.s32.totalorder %s15, 1
      %p75 = scmp.ne.s32.totalorder %s70, %s72
      %p76 = scmp.eq.s32.totalorder %s15, 0
      %p77 = por %p75, %p76
      %p78 = scmp.ne.s32.totalorder %s70, %s72
      %p79 = scmp.eq.s32.totalorder %s20, 1
      %p80 = por %p78, %p79
      %p81 = scmp.ne.s32.totalorder %s72, %s73
      %p82 = scmp.eq.s32.totalorder %s20, 0
      %p83 = por %p81, %p82
      %p84 = scmp.ne.s32.totalorder %s72, %s73
      %p85 = scmp.eq.s32.totalorder %s21, 1
      %p86 = por %p84, %p85
      %p88 = scmp.ne.s32.totalorder %s73, %s87
      %p89 = scmp.eq.s32.totalorder %s21, 0
      %p90 = por %p88, %p89
      %s92 = sadd.s32 %s91, 1
      %p95 = scmp.eq.s32.totalorder %s15, 1
      %p96 = scmp.ne.s32.totalorder %s91, %s93
      %p97 = scmp.eq.s32.totalorder %s15, 0
      %p98 = por %p96, %p97
      %p99 = scmp.ne.s32.totalorder %s91, %s93
      %p100 = scmp.eq.s32.totalorder %s20, 1
      %p101 = por %p99, %p100
      %p102 = scmp.ne.s32.totalorder %s93, %s94
      %p103 = scmp.eq.s32.totalorder %s20, 0
      %p104 = por %p102, %p103
      %p105 = scmp.ne.s32.totalorder %s93, %s94
      %p106 = scmp.eq.s32.totalorder %s21, 1
      %p107 = por %p105, %p106
      %p109 = scmp.ne.s32.totalorder %s94, %s108
      %p110 = scmp.eq.s32.totalorder %s21, 0
      %p111 = por %p109, %p110
      %s113 = sadd.s32 %s112, 1
      %p116 = scmp.eq.s32.totalorder %s15, 1
      %p117 = scmp.ne.s32.totalorder %s112, %s114
      %p118 = scmp.eq.s32.totalorder %s15, 0
      %p119 = por %p117, %p118
      %p120 = scmp.ne.s32.totalorder %s112, %s114
      %p121 = scmp.eq.s32.totalorder %s20, 1
      %p122 = por %p120, %p121
      %p123 = scmp.ne.s32.totalorder %s114, %s115
      %p124 = scmp.eq.s32.totalorder %s20, 0
      %p125 = por %p123, %p124
      %p126 = scmp.ne.s32.totalorder %s114, %s115
      %p127 = scmp.eq.s32.totalorder %s21, 1
      %p128 = por %p126, %p127
      %p130 = scmp.ne.s32.totalorder %s115, %s129
      %p131 = scmp.eq.s32.totalorder %s21, 0
      %p132 = por %p130, %p131
      %s134 = sadd.s32 %s133, 1
      %p137 = scmp.eq.s32.totalorder %s15, 1
      %p138 = scmp.ne.s32.totalorder %s133, %s135
      %p139 = scmp.eq.s32.totalorder %s15, 0
      %p140 = por %p138, %p139
      %p141 = scmp.ne.s32.totalorder %s133, %s135
      %p142 = scmp.eq.s32.totalorder %s20, 1
      %p143 = por %p141, %p142
      %p144 = scmp.ne.s32.totalorder %s135, %s136
      %p145 = scmp.eq.s32.totalorder %s20, 0
      %p146 = por %p144, %p145
      %p147 = scmp.ne.s32.totalorder %s135, %s136
      %p148 = scmp.eq.s32.totalorder %s21, 1
      %p149 = por %p147, %p148
      %p151 = scmp.ne.s32.totalorder %s136, %s150
      %p152 = scmp.eq.s32.totalorder %s21, 0
      %p153 = por %p151, %p152
      %s154 = ssub.s32 %s15, %s22
      %p155 = scmp.eq.s32.totalorder %s154, 0
      %s157 = sadd.s32 %s156, 1
      %s158 = scalar_select %p155, %s156, %s157
      %p161 = pneg %p155
      %p162 = scmp.eq.s32.totalorder %s15, 1
      %p163 = por %p161, %p162
      %p164 = scmp.ne.s32.totalorder %s156, %s159
      %p165 = scmp.eq.s32.totalorder %s15, 0
      %p166 = por %p164, %p165
      %p167 = scmp.ne.s32.totalorder %s156, %s159
      %p168 = scmp.eq.s32.totalorder %s20, 1
      %p169 = por %p167, %p168
      %p170 = scmp.ne.s32.totalorder %s159, %s160
      %p171 = scmp.eq.s32.totalorder %s20, 0
      %p172 = por %p170, %p171
      %p173 = scmp.ne.s32.totalorder %s159, %s160
      %p174 = scmp.eq.s32.totalorder %s21, 1
      %p175 = por %p173, %p174
      %p177 = scmp.ne.s32.totalorder %s160, %s176
      %p178 = scmp.eq.s32.totalorder %s21, 0
      %p179 = por %p177, %p178
      %p180 = scmp.le.s32.totalorder 1, %s15
      %p181 = scmp.lt.s32.totalorder %s15, 3
      %p182 = pnand %p180, %p181
      %p183 = pneg %p182
      // Predicated region
      $region9: #{cnn_forward.1} parent=5 // pred_check
        _
      $region10: #{cnn_forward.1} parent=5 // pred_check_branch
        %185 = sbr.rel (%p182) target = $region12
      $region11: #{cnn_forward.1} parent=5 // pred_region
        %s186 = ssub.s32 %s15, 1
        // Predicated region
        $region13: #{cnn_forward.1} parent=11 // pred_check
          %p187 = pneg %p62
        $region14: #{cnn_forward.1} parent=11 // pred_check_branch
          %189 = sbr.rel (%p187) target = $region16
        $region15: #{cnn_forward.1} parent=11 // pred_region
          _
        $region16: #{cnn_forward.1} parent=11 // pred_fallthru
          _
        // Predicated region
        $region17: #{cnn_forward.1} parent=11 // pred_check
          %p190 = pneg %p83
        $region18: #{cnn_forward.1} parent=11 // pred_check_branch
          %192 = sbr.rel (%p190) target = $region20
        $region19: #{cnn_forward.1} parent=11 // pred_region
          _
        $region20: #{cnn_forward.1} parent=11 // pred_fallthru
          _
        // Predicated region
        $region21: #{cnn_forward.1} parent=11 // pred_check
          %p193 = pneg %p104
        $region22: #{cnn_forward.1} parent=11 // pred_check_branch
          %195 = sbr.rel (%p193) target = $region24
        $region23: #{cnn_forward.1} parent=11 // pred_region
          _
        $region24: #{cnn_forward.1} parent=11 // pred_fallthru
          _
        // Predicated region
        $region25: #{cnn_forward.1} parent=11 // pred_check
          %p196 = pneg %p125
        $region26: #{cnn_forward.1} parent=11 // pred_check_branch
          %198 = sbr.rel (%p196) target = $region28
        $region27: #{cnn_forward.1} parent=11 // pred_region
          _
        $region28: #{cnn_forward.1} parent=11 // pred_fallthru
          _
        // Predicated region
        $region29: #{cnn_forward.1} parent=11 // pred_check
          %p199 = pneg %p146
        $region30: #{cnn_forward.1} parent=11 // pred_check_branch
          %201 = sbr.rel (%p199) target = $region32
        $region31: #{cnn_forward.1} parent=11 // pred_region
          _
        $region32: #{cnn_forward.1} parent=11 // pred_fallthru
          _
      $region12: #{cnn_forward.1} parent=5 // pred_fallthru
        _
      %p202 = scmp.lt.s32.totalorder %s15, 2
      // Predicated region
      $region33: #{cnn_forward.1} parent=5 // pred_check
        %p203 = pneg %p202
      $region34: #{cnn_forward.1} parent=5 // pred_check_branch
        %205 = sbr.rel (%p203) target = $region36
      $region35: #{cnn_forward.1} parent=5 // pred_region
        // Predicated region
        $region37: #{cnn_forward.1} parent=35 // pred_check
          %p206 = pneg %p35
        $region38: #{cnn_forward.1} parent=35 // pred_check_branch
          %208 = sbr.rel (%p206) target = $region40
        $region39: #{cnn_forward.1} parent=35 // pred_region
          %p209 = scmp.lt.s32.totalorder %s15, 1
          %s210 = scalar_select %p209, %s15, 1
          %s211 = smul.addr %s210, 68
          %s212 = smul.addr %s211, 4
          %s213 = scalar_lea.vmem %s0, %s212
        $region40: #{cnn_forward.1} parent=35 // pred_fallthru
          _
      $region36: #{cnn_forward.1} parent=5 // pred_fallthru
        _
      %p214 = scmp.le.s32.totalorder 1, %s15
      %p215 = scmp.lt.s32.totalorder %s15, 3
      %p216 = pnand %p214, %p215
      %p217 = pneg %p216
      // Predicated region
      $region41: #{cnn_forward.1} parent=5 // pred_check
        _
      $region42: #{cnn_forward.1} parent=5 // pred_check_branch
        %219 = sbr.rel (%p216) target = $region44
      $region43: #{cnn_forward.1} parent=5 // pred_region
        %s220 = ssub.s32 %s15, 1
        %p221 = scmp.lt.s32.totalorder %s20, 1
        %s222 = scalar_select %p221, %s20, 1
        %s223 = smul.addr %s222, 68
        %s224 = smul.addr %s223, 4
        %s225 = scalar_lea.vmem %s0, %s224
        %p226 = pneg %p41
        %p227 = pneg %p38
        %p228 = pneg %p62
        %p229 = pneg %p59
        %p230 = pneg %p83
        %p231 = pneg %p80
        %p232 = pneg %p104
        %p233 = pneg %p101
        %p234 = pneg %p125
        %p235 = pneg %p122
        %p236 = pneg %p146
        %p237 = pneg %p143
        %p238 = pneg %p172
        %p239 = pneg %p169
        %s240 = sand.u32 %s159, 1
        %s241 = scalar_lea.sflag [#allocation7], %s240
        %s242 = sand.u32 %s159, 1
        %s243 = scalar_lea.vmem [#allocation6], %s242
        %p244 = scmp.lt.s32.totalorder %s20, 1
        %s245 = scalar_select %p244, %s20, 1
        %s246 = smul.addr %s245, 68
        %s247 = smul.addr %s246, 4
        %s248 = scalar_lea.vmem %s0, %s247
        %v250 = vld [vmem:[%s248] sm:$0xf]
        %v251 = vld [vmem:[%s248 + $0x4] sm:$0xf]
        %v252 = vld [vmem:[%s248 + $0x8] sm:$0xf]
        %v253 = vld [vmem:[%s248 + $0xc] sm:$0xf]
        %v254 = vld [vmem:[%s248 + $0x10] sm:$0xf]
        %v255 = vld [vmem:[%s248 + $0x14] sm:$0xf]
        %v256 = vld [vmem:[%s248 + $0x18] sm:$0xf]
        %v257 = vld [vmem:[%s248 + $0x1c] sm:$0xf]
        %v258 = vld [vmem:[%s248 + $0x20] sm:$0xf]
        %v259 = vld [vmem:[%s248 + $0x24] sm:$0xf]
        %v260 = vld [vmem:[%s248 + $0x28] sm:$0xf]
        %v261 = vld [vmem:[%s248 + $0x2c] sm:$0xf]
        %v262 = vld [vmem:[%s248 + $0x30] sm:$0xf]
        %v263 = vld [vmem:[%s248 + $0x34] sm:$0xf]
        %v264 = vld [vmem:[%s248 + $0x38] sm:$0xf]
        %v265 = vld [vmem:[%s248 + $0x3c] sm:$0xf]
        %v266 = vld [vmem:[%s248 + $0x40] sm:$0xf]
        %v267 = vld [vmem:[%s248 + $0x44] sm:$0xf]
        %v268 = vld [vmem:[%s248 + $0x48] sm:$0xf]
        %v269 = vld [vmem:[%s248 + $0x4c] sm:$0xf]
        %v270 = vld [vmem:[%s248 + $0x50] sm:$0xf]
        %v271 = vld [vmem:[%s248 + $0x54] sm:$0xf]
        %v272 = vld [vmem:[%s248 + $0x58] sm:$0xf]
        %v273 = vld [vmem:[%s248 + $0x5c] sm:$0xf]
        %v274 = vld [vmem:[%s248 + $0x60] sm:$0xf]
        %v275 = vld [vmem:[%s248 + $0x64] sm:$0xf]
        %v276 = vld [vmem:[%s248 + $0x68] sm:$0xf]
        %v277 = vld [vmem:[%s248 + $0x6c] sm:$0xf]
        %v278 = vld [vmem:[%s248 + $0x70] sm:$0xf]
        %v279 = vld [vmem:[%s248 + $0x74] sm:$0xf]
        %v280 = vld [vmem:[%s248 + $0x78] sm:$0xf]
        %v281 = vld [vmem:[%s248 + $0x7c] sm:$0xf]
        %v282 = vld [vmem:[%s248 + $0x80] sm:$0xf]
        %v283 = vld [vmem:[%s248 + $0x84] sm:$0xf]
        %v284 = vld [vmem:[%s248 + $0x88] sm:$0xf]
        %v285 = vld [vmem:[%s248 + $0x8c] sm:$0xf]
        %v286 = vld [vmem:[%s248 + $0x90] sm:$0xf]
        %v287 = vld [vmem:[%s248 + $0x94] sm:$0xf]
        %v288 = vld [vmem:[%s248 + $0x98] sm:$0xf]
        %v289 = vld [vmem:[%s248 + $0x9c] sm:$0xf]
        %v290 = vld [vmem:[%s248 + $0xa0] sm:$0xf]
        %v291 = vld [vmem:[%s248 + $0xa4] sm:$0xf]
        %v292 = vld [vmem:[%s248 + $0xa8] sm:$0xf]
        %v293 = vld [vmem:[%s248 + $0xac] sm:$0xf]
        %v294 = vld [vmem:[%s248 + $0xb0] sm:$0xf]
        %v295 = vld [vmem:[%s248 + $0xb4] sm:$0xf]
        %v296 = vld [vmem:[%s248 + $0xb8] sm:$0xf]
        %v297 = vld [vmem:[%s248 + $0xbc] sm:$0xf]
        %v298 = vld [vmem:[%s248 + $0xc0] sm:$0xf]
        %v299 = vld [vmem:[%s248 + $0xc4] sm:$0xf]
        %v300 = vld [vmem:[%s248 + $0xc8] sm:$0xf]
        %v301 = vld [vmem:[%s248 + $0xcc] sm:$0xf]
        %v302 = vld [vmem:[%s248 + $0xd0] sm:$0xf]
        %v303 = vld [vmem:[%s248 + $0xd4] sm:$0xf]
        %v304 = vld [vmem:[%s248 + $0xd8] sm:$0xf]
        %v305 = vld [vmem:[%s248 + $0xdc] sm:$0xf]
        %v306 = vld [vmem:[%s248 + $0xe0] sm:$0xf]
        %v307 = vld [vmem:[%s248 + $0xe4] sm:$0xf]
        %v308 = vld [vmem:[%s248 + $0xe8] sm:$0xf]
        %v309 = vld [vmem:[%s248 + $0xec] sm:$0xf]
        %v310 = vld [vmem:[%s248 + $0xf0] sm:$0xf]
        %v311 = vld [vmem:[%s248 + $0xf4] sm:$0xf]
        %v312 = vld [vmem:[%s248 + $0xf8] sm:$0xf]
        %v313 = vld [vmem:[%s248 + $0xfc] sm:$0xf]
        %v314 = vld [vmem:[%s248 + $0x100] sm:$0xf]
        %v315 = vld [vmem:[%s248 + $0x104] sm:$0xf]
        %v316 = vld [vmem:[%s248 + $0x108] sm:$0xf]
        %v317 = vld [vmem:[%s248 + $0x10c] sm:$0xf]
        %v318 = vld [vmem:[%s1] sm:$0xf]
        %v319 = vld [vmem:[%s1 + $0x4] sm:$0xf]
        %v388 = vunpack.c.l.b16 %v250
        %v389 = vunpack.c.l.b16 %v251
        %v390 = vunpack.c.l.b16 %v252
        %v391 = vunpack.c.l.b16 %v253
        %v392 = vunpack.c.l.b16 %v254
        %v393 = vunpack.c.l.b16 %v255
        %v394 = vunpack.c.l.b16 %v256
        %v395 = vunpack.c.l.b16 %v257
        %v396 = vunpack.c.l.b16 %v258
        %v397 = vunpack.c.l.b16 %v259
        %v398 = vunpack.c.l.b16 %v260
        %v399 = vunpack.c.l.b16 %v261
        %v400 = vunpack.c.l.b16 %v262
        %v401 = vunpack.c.l.b16 %v263
        %v402 = vunpack.c.l.b16 %v264
        %v403 = vunpack.c.l.b16 %v265
        %v404 = vunpack.c.l.b16 %v266
        %v405 = vunpack.c.l.b16 %v267
        %v406 = vunpack.c.l.b16 %v268
        %v407 = vunpack.c.l.b16 %v269
        %v408 = vunpack.c.l.b16 %v270
        %v409 = vunpack.c.l.b16 %v271
        %v410 = vunpack.c.l.b16 %v272
        %v411 = vunpack.c.l.b16 %v273
        %v412 = vunpack.c.l.b16 %v274
        %v413 = vunpack.c.l.b16 %v275
        %v414 = vunpack.c.l.b16 %v276
        %v415 = vunpack.c.l.b16 %v277
        %v416 = vunpack.c.l.b16 %v278
        %v417 = vunpack.c.l.b16 %v279
        %v418 = vunpack.c.l.b16 %v280
        %v419 = vunpack.c.l.b16 %v281
        %v420 = vunpack.c.l.b16 %v282
        %v421 = vunpack.c.l.b16 %v283
        %v422 = vunpack.c.l.b16 %v284
        %v423 = vunpack.c.l.b16 %v285
        %v424 = vunpack.c.l.b16 %v286
        %v425 = vunpack.c.l.b16 %v287
        %v426 = vunpack.c.l.b16 %v288
        %v427 = vunpack.c.l.b16 %v289
        %v428 = vunpack.c.l.b16 %v290
        %v429 = vunpack.c.l.b16 %v291
        %v430 = vunpack.c.l.b16 %v292
        %v431 = vunpack.c.l.b16 %v293
        %v432 = vunpack.c.l.b16 %v294
        %v433 = vunpack.c.l.b16 %v295
        %v434 = vunpack.c.l.b16 %v296
        %v435 = vunpack.c.l.b16 %v297
        %v436 = vunpack.c.l.b16 %v298
        %v437 = vunpack.c.l.b16 %v299
        %v438 = vunpack.c.l.b16 %v300
        %v439 = vunpack.c.l.b16 %v301
        %v440 = vunpack.c.l.b16 %v302
        %v441 = vunpack.c.l.b16 %v303
        %v442 = vunpack.c.l.b16 %v304
        %v443 = vunpack.c.l.b16 %v305
        %v444 = vunpack.c.l.b16 %v306
        %v445 = vunpack.c.l.b16 %v307
        %v446 = vunpack.c.l.b16 %v308
        %v447 = vunpack.c.l.b16 %v309
        %v448 = vunpack.c.l.b16 %v310
        %v449 = vunpack.c.l.b16 %v311
        %v450 = vunpack.c.l.b16 %v312
        %v451 = vunpack.c.l.b16 %v313
        %v452 = vunpack.c.l.b16 %v314
        %v453 = vunpack.c.l.b16 %v315
        %v454 = vunpack.c.l.b16 %v316
        %v455 = vunpack.c.l.b16 %v317
        %v456 = vpack.c.b16 %v389, %v388
        %v457 = vpack.c.b16 %v391, %v390
        %v458 = vpack.c.b16 %v393, %v392
        %v459 = vpack.c.b16 %v395, %v394
        %v460 = vpack.c.b16 %v397, %v396
        %v461 = vpack.c.b16 %v399, %v398
        %v462 = vpack.c.b16 %v401, %v400
        %v463 = vpack.c.b16 %v403, %v402
        %v464 = vpack.c.b16 %v405, %v404
        %v465 = vpack.c.b16 %v407, %v406
        %v466 = vpack.c.b16 %v409, %v408
        %v467 = vpack.c.b16 %v411, %v410
        %v468 = vpack.c.b16 %v413, %v412
        %v469 = vpack.c.b16 %v415, %v414
        %v470 = vpack.c.b16 %v417, %v416
        %v471 = vpack.c.b16 %v419, %v418
        %v472 = vpack.c.b16 %v421, %v420
        %v473 = vpack.c.b16 %v423, %v422
        %v474 = vpack.c.b16 %v425, %v424
        %v475 = vpack.c.b16 %v427, %v426
        %v476 = vpack.c.b16 %v429, %v428
        %v477 = vpack.c.b16 %v431, %v430
        %v478 = vpack.c.b16 %v433, %v432
        %v479 = vpack.c.b16 %v435, %v434
        %v480 = vpack.c.b16 %v437, %v436
        %v481 = vpack.c.b16 %v439, %v438
        %v482 = vpack.c.b16 %v441, %v440
        %v483 = vpack.c.b16 %v443, %v442
        %v484 = vpack.c.b16 %v445, %v444
        %v485 = vpack.c.b16 %v447, %v446
        %v486 = vpack.c.b16 %v449, %v448
        %v487 = vpack.c.b16 %v451, %v450
        %v488 = vpack.c.b16 %v453, %v452
        %v489 = vpack.c.b16 %v455, %v454
        %v492 = vunpack.c.l.b16 %v318
        %v493 = vunpack.c.l.b16 %v319
        %v494 = vpack.c.b16 %v493, %v492
        %vm496 = vcmask 130048
        %v498 = vsel %vm496, %v456, 0
        %v501 = vsel %vm496, %v457, 0
        %v504 = vsel %vm496, %v458, 0
        %v507 = vsel %vm496, %v459, 0
        %v510 = vsel %vm496, %v460, 0
        %v513 = vsel %vm496, %v461, 0
        %v516 = vsel %vm496, %v462, 0
        %v519 = vsel %vm496, %v463, 0
        %v522 = vsel %vm496, %v464, 0
        %v525 = vsel %vm496, %v465, 0
        %v528 = vsel %vm496, %v466, 0
        %v531 = vsel %vm496, %v467, 0
        %v534 = vsel %vm496, %v468, 0
        %v537 = vsel %vm496, %v469, 0
        %v540 = vsel %vm496, %v470, 0
        %v543 = vsel %vm496, %v471, 0
        %v546 = vsel %vm496, %v472, 0
        %v549 = vsel %vm496, %v473, 0
        %v552 = vsel %vm496, %v474, 0
        %v555 = vsel %vm496, %v475, 0
        %v558 = vsel %vm496, %v476, 0
        %v561 = vsel %vm496, %v477, 0
        %v564 = vsel %vm496, %v478, 0
        %v567 = vsel %vm496, %v479, 0
        %v570 = vsel %vm496, %v480, 0
        %v573 = vsel %vm496, %v481, 0
        %v576 = vsel %vm496, %v482, 0
        %v579 = vsel %vm496, %v483, 0
        %v582 = vsel %vm496, %v484, 0
        %v585 = vsel %vm496, %v485, 0
        %v588 = vsel %vm496, %v486, 0
        %v591 = vsel %vm496, %v487, 0
        %v594 = vsel %vm496, %v488, 0
        %v597 = vsel %vm496, %v489, 0
        %599 = vmatpush.bf16.msra.mxu0 0
        %600 = vmatpush.bf16.msra.mxu0 0
        %601 = vmatpush.bf16.msra.mxu0 0
        %602 = vmatpush.bf16.msra.mxu0 0
        %603 = vmatpush.bf16.msra.mxu0 0
        %604 = vmatpush.bf16.msra.mxu0 0
        %605 = vmatpush.bf16.msra.mxu0 0
        %606 = vmatpush.bf16.msra.mxu0 %v494
        %607 = vmatmul.bf16.gmra.mxu0 %v498
        %v608 = vpop.f32.mrf.mxu0
        %v609 = vadd.f32 0.0, %v608
        %v610 = vpop.f32.mrf.mxu0
        %v611 = vadd.f32 0.0, %v610
        %612 = vmatmul.bf16.gmra.mxu0 %v501
        %v613 = vpop.f32.mrf.mxu0
        %v614 = vadd.f32 0.0, %v613
        %v615 = vpop.f32.mrf.mxu0
        %v616 = vadd.f32 0.0, %v615
        %617 = vmatmul.bf16.gmra.mxu0 %v504
        %v618 = vpop.f32.mrf.mxu0
        %v619 = vadd.f32 0.0, %v618
        %v620 = vpop.f32.mrf.mxu0
        %v621 = vadd.f32 0.0, %v620
        %622 = vmatmul.bf16.gmra.mxu0 %v507
        %v623 = vpop.f32.mrf.mxu0
        %v624 = vadd.f32 0.0, %v623
        %v625 = vpop.f32.mrf.mxu0
        %v626 = vadd.f32 0.0, %v625
        %627 = vmatmul.bf16.gmra.mxu0 %v510
        %v628 = vpop.f32.mrf.mxu0
        %v629 = vadd.f32 0.0, %v628
        %v630 = vpop.f32.mrf.mxu0
        %v631 = vadd.f32 0.0, %v630
        %632 = vmatmul.bf16.gmra.mxu0 %v513
        %v633 = vpop.f32.mrf.mxu0
        %v634 = vadd.f32 0.0, %v633
        %v635 = vpop.f32.mrf.mxu0
        %v636 = vadd.f32 0.0, %v635
        %637 = vmatmul.bf16.gmra.mxu0 %v516
        %v638 = vpop.f32.mrf.mxu0
        %v639 = vadd.f32 0.0, %v638
        %v640 = vpop.f32.mrf.mxu0
        %v641 = vadd.f32 0.0, %v640
        %642 = vmatmul.bf16.gmra.mxu0 %v519
        %v643 = vpop.f32.mrf.mxu0
        %v644 = vadd.f32 0.0, %v643
        %v645 = vpop.f32.mrf.mxu0
        %v646 = vadd.f32 0.0, %v645
        %647 = vmatmul.bf16.gmra.mxu0 %v522
        %v648 = vpop.f32.mrf.mxu0
        %v649 = vadd.f32 0.0, %v648
        %v650 = vpop.f32.mrf.mxu0
        %v651 = vadd.f32 0.0, %v650
        %652 = vmatmul.bf16.gmra.mxu0 %v525
        %v653 = vpop.f32.mrf.mxu0
        %v654 = vadd.f32 0.0, %v653
        %v655 = vpop.f32.mrf.mxu0
        %v656 = vadd.f32 0.0, %v655
        %657 = vmatmul.bf16.gmra.mxu0 %v528
        %v658 = vpop.f32.mrf.mxu0
        %v659 = vadd.f32 0.0, %v658
        %v660 = vpop.f32.mrf.mxu0
        %v661 = vadd.f32 0.0, %v660
        %662 = vmatmul.bf16.gmra.mxu0 %v531
        %v663 = vpop.f32.mrf.mxu0
        %v664 = vadd.f32 0.0, %v663
        %v665 = vpop.f32.mrf.mxu0
        %v666 = vadd.f32 0.0, %v665
        %667 = vmatmul.bf16.gmra.mxu0 %v534
        %v668 = vpop.f32.mrf.mxu0
        %v669 = vadd.f32 0.0, %v668
        %v670 = vpop.f32.mrf.mxu0
        %v671 = vadd.f32 0.0, %v670
        %672 = vmatmul.bf16.gmra.mxu0 %v537
        %v673 = vpop.f32.mrf.mxu0
        %v674 = vadd.f32 0.0, %v673
        %v675 = vpop.f32.mrf.mxu0
        %v676 = vadd.f32 0.0, %v675
        %677 = vmatmul.bf16.gmra.mxu0 %v540
        %v678 = vpop.f32.mrf.mxu0
        %v679 = vadd.f32 0.0, %v678
        %v680 = vpop.f32.mrf.mxu0
        %v681 = vadd.f32 0.0, %v680
        %682 = vmatmul.bf16.gmra.mxu0 %v543
        %v683 = vpop.f32.mrf.mxu0
        %v684 = vadd.f32 0.0, %v683
        %v685 = vpop.f32.mrf.mxu0
        %v686 = vadd.f32 0.0, %v685
        %687 = vmatmul.bf16.gmra.mxu0 %v546
        %v688 = vpop.f32.mrf.mxu0
        %v689 = vadd.f32 0.0, %v688
        %v690 = vpop.f32.mrf.mxu0
        %v691 = vadd.f32 0.0, %v690
        %692 = vmatmul.bf16.gmra.mxu0 %v549
        %v693 = vpop.f32.mrf.mxu0
        %v694 = vadd.f32 0.0, %v693
        %v695 = vpop.f32.mrf.mxu0
        %v696 = vadd.f32 0.0, %v695
        %697 = vmatmul.bf16.gmra.mxu0 %v552
        %v698 = vpop.f32.mrf.mxu0
        %v699 = vadd.f32 0.0, %v698
        %v700 = vpop.f32.mrf.mxu0
        %v701 = vadd.f32 0.0, %v700
        %702 = vmatmul.bf16.gmra.mxu0 %v555
        %v703 = vpop.f32.mrf.mxu0
        %v704 = vadd.f32 0.0, %v703
        %v705 = vpop.f32.mrf.mxu0
        %v706 = vadd.f32 0.0, %v705
        %707 = vmatmul.bf16.gmra.mxu0 %v558
        %v708 = vpop.f32.mrf.mxu0
        %v709 = vadd.f32 0.0, %v708
        %v710 = vpop.f32.mrf.mxu0
        %v711 = vadd.f32 0.0, %v710
        %712 = vmatmul.bf16.gmra.mxu0 %v561
        %v713 = vpop.f32.mrf.mxu0
        %v714 = vadd.f32 0.0, %v713
        %v715 = vpop.f32.mrf.mxu0
        %v716 = vadd.f32 0.0, %v715
        %717 = vmatmul.bf16.gmra.mxu0 %v564
        %v718 = vpop.f32.mrf.mxu0
        %v719 = vadd.f32 0.0, %v718
        %v720 = vpop.f32.mrf.mxu0
        %v721 = vadd.f32 0.0, %v720
        %722 = vmatmul.bf16.gmra.mxu0 %v567
        %v723 = vpop.f32.mrf.mxu0
        %v724 = vadd.f32 0.0, %v723
        %v725 = vpop.f32.mrf.mxu0
        %v726 = vadd.f32 0.0, %v725
        %727 = vmatmul.bf16.gmra.mxu0 %v570
        %v728 = vpop.f32.mrf.mxu0
        %v729 = vadd.f32 0.0, %v728
        %v730 = vpop.f32.mrf.mxu0
        %v731 = vadd.f32 0.0, %v730
        %732 = vmatmul.bf16.gmra.mxu0 %v573
        %v733 = vpop.f32.mrf.mxu0
        %v734 = vadd.f32 0.0, %v733
        %v735 = vpop.f32.mrf.mxu0
        %v736 = vadd.f32 0.0, %v735
        %737 = vmatmul.bf16.gmra.mxu0 %v576
        %v738 = vpop.f32.mrf.mxu0
        %v739 = vadd.f32 0.0, %v738
        %v740 = vpop.f32.mrf.mxu0
        %v741 = vadd.f32 0.0, %v740
        %742 = vmatmul.bf16.gmra.mxu0 %v579
        %v743 = vpop.f32.mrf.mxu0
        %v744 = vadd.f32 0.0, %v743
        %v745 = vpop.f32.mrf.mxu0
        %v746 = vadd.f32 0.0, %v745
        %747 = vmatmul.bf16.gmra.mxu0 %v582
        %v748 = vpop.f32.mrf.mxu0
        %v749 = vadd.f32 0.0, %v748
        %v750 = vpop.f32.mrf.mxu0
        %v751 = vadd.f32 0.0, %v750
        %752 = vmatmul.bf16.gmra.mxu0 %v585
        %v753 = vpop.f32.mrf.mxu0
        %v754 = vadd.f32 0.0, %v753
        %v755 = vpop.f32.mrf.mxu0
        %v756 = vadd.f32 0.0, %v755
        %757 = vmatmul.bf16.gmra.mxu0 %v588
        %v758 = vpop.f32.mrf.mxu0
        %v759 = vadd.f32 0.0, %v758
        %v760 = vpop.f32.mrf.mxu0
        %v761 = vadd.f32 0.0, %v760
        %762 = vmatmul.bf16.gmra.mxu0 %v591
        %v763 = vpop.f32.mrf.mxu0
        %v764 = vadd.f32 0.0, %v763
        %v765 = vpop.f32.mrf.mxu0
        %v766 = vadd.f32 0.0, %v765
        %767 = vmatmul.bf16.gmra.mxu0 %v594
        %v768 = vpop.f32.mrf.mxu0
        %v769 = vadd.f32 0.0, %v768
        %v770 = vpop.f32.mrf.mxu0
        %v771 = vadd.f32 0.0, %v770
        %772 = vmatmul.bf16.gmra.mxu0 %v597
        %v773 = vpop.f32.mrf.mxu0
        %v774 = vadd.f32 0.0, %v773
        %v775 = vpop.f32.mrf.mxu0
        %v776 = vadd.f32 0.0, %v775
        %777 = vdwg.mxu0
        %vm778 = vcmp.ge.f32.partialorder %v609, 0.0
        %vm779 = vcmp.ge.f32.partialorder %v611, 0.0
        %vm780 = vcmp.ge.f32.partialorder %v614, 0.0
        %vm781 = vcmp.ge.f32.partialorder %v616, 0.0
        %vm782 = vcmp.ge.f32.partialorder %v619, 0.0
        %vm783 = vcmp.ge.f32.partialorder %v621, 0.0
        %vm784 = vcmp.ge.f32.partialorder %v624, 0.0
        %vm785 = vcmp.ge.f32.partialorder %v626, 0.0
        %vm786 = vcmp.ge.f32.partialorder %v629, 0.0
        %vm787 = vcmp.ge.f32.partialorder %v631, 0.0
        %vm788 = vcmp.ge.f32.partialorder %v634, 0.0
        %vm789 = vcmp.ge.f32.partialorder %v636, 0.0
        %vm790 = vcmp.ge.f32.partialorder %v639, 0.0
        %vm791 = vcmp.ge.f32.partialorder %v641, 0.0
        %vm792 = vcmp.ge.f32.partialorder %v644, 0.0
        %vm793 = vcmp.ge.f32.partialorder %v646, 0.0
        %vm794 = vcmp.ge.f32.partialorder %v649, 0.0
        %vm795 = vcmp.ge.f32.partialorder %v651, 0.0
        %vm796 = vcmp.ge.f32.partialorder %v654, 0.0
        %vm797 = vcmp.ge.f32.partialorder %v656, 0.0
        %vm798 = vcmp.ge.f32.partialorder %v659, 0.0
        %vm799 = vcmp.ge.f32.partialorder %v661, 0.0
        %vm800 = vcmp.ge.f32.partialorder %v664, 0.0
        %vm801 = vcmp.ge.f32.partialorder %v666, 0.0
        %vm802 = vcmp.ge.f32.partialorder %v669, 0.0
        %vm803 = vcmp.ge.f32.partialorder %v671, 0.0
        %vm804 = vcmp.ge.f32.partialorder %v674, 0.0
        %vm805 = vcmp.ge.f32.partialorder %v676, 0.0
        %vm806 = vcmp.ge.f32.partialorder %v679, 0.0
        %vm807 = vcmp.ge.f32.partialorder %v681, 0.0
        %vm808 = vcmp.ge.f32.partialorder %v684, 0.0
        %vm809 = vcmp.ge.f32.partialorder %v686, 0.0
        %vm810 = vcmp.ge.f32.partialorder %v689, 0.0
        %vm811 = vcmp.ge.f32.partialorder %v691, 0.0
        %vm812 = vcmp.ge.f32.partialorder %v694, 0.0
        %vm813 = vcmp.ge.f32.partialorder %v696, 0.0
        %vm814 = vcmp.ge.f32.partialorder %v699, 0.0
        %vm815 = vcmp.ge.f32.partialorder %v701, 0.0
        %vm816 = vcmp.ge.f32.partialorder %v704, 0.0
        %vm817 = vcmp.ge.f32.partialorder %v706, 0.0
        %vm818 = vcmp.ge.f32.partialorder %v709, 0.0
        %vm819 = vcmp.ge.f32.partialorder %v711, 0.0
        %vm820 = vcmp.ge.f32.partialorder %v714, 0.0
        %vm821 = vcmp.ge.f32.partialorder %v716, 0.0
        %vm822 = vcmp.ge.f32.partialorder %v719, 0.0
        %vm823 = vcmp.ge.f32.partialorder %v721, 0.0
        %vm824 = vcmp.ge.f32.partialorder %v724, 0.0
        %vm825 = vcmp.ge.f32.partialorder %v726, 0.0
        %vm826 = vcmp.ge.f32.partialorder %v729, 0.0
        %vm827 = vcmp.ge.f32.partialorder %v731, 0.0
        %vm828 = vcmp.ge.f32.partialorder %v734, 0.0
        %vm829 = vcmp.ge.f32.partialorder %v736, 0.0
        %vm830 = vcmp.ge.f32.partialorder %v739, 0.0
        %vm831 = vcmp.ge.f32.partialorder %v741, 0.0
        %vm832 = vcmp.ge.f32.partialorder %v744, 0.0
        %vm833 = vcmp.ge.f32.partialorder %v746, 0.0
        %vm834 = vcmp.ge.f32.partialorder %v749, 0.0
        %vm835 = vcmp.ge.f32.partialorder %v751, 0.0
        %vm836 = vcmp.ge.f32.partialorder %v754, 0.0
        %vm837 = vcmp.ge.f32.partialorder %v756, 0.0
        %vm838 = vcmp.ge.f32.partialorder %v759, 0.0
        %vm839 = vcmp.ge.f32.partialorder %v761, 0.0
        %vm840 = vcmp.ge.f32.partialorder %v764, 0.0
        %vm841 = vcmp.ge.f32.partialorder %v766, 0.0
        %vm842 = vcmp.ge.f32.partialorder %v769, 0.0
        %vm843 = vcmp.ge.f32.partialorder %v771, 0.0
        %vm844 = vcmp.ge.f32.partialorder %v774, 0.0
        %vm845 = vcmp.ge.f32.partialorder %v776, 0.0
        %v846 = vmul.f32 %v609, 0.01
        %v847 = vmul.f32 %v611, 0.01
        %v848 = vmul.f32 %v614, 0.01
        %v849 = vmul.f32 %v616, 0.01
        %v850 = vmul.f32 %v619, 0.01
        %v851 = vmul.f32 %v621, 0.01
        %v852 = vmul.f32 %v624, 0.01
        %v853 = vmul.f32 %v626, 0.01
        %v854 = vmul.f32 %v629, 0.01
        %v855 = vmul.f32 %v631, 0.01
        %v856 = vmul.f32 %v634, 0.01
        %v857 = vmul.f32 %v636, 0.01
        %v858 = vmul.f32 %v639, 0.01
        %v859 = vmul.f32 %v641, 0.01
        %v860 = vmul.f32 %v644, 0.01
        %v861 = vmul.f32 %v646, 0.01
        %v862 = vmul.f32 %v649, 0.01
        %v863 = vmul.f32 %v651, 0.01
        %v864 = vmul.f32 %v654, 0.01
        %v865 = vmul.f32 %v656, 0.01
        %v866 = vmul.f32 %v659, 0.01
        %v867 = vmul.f32 %v661, 0.01
        %v868 = vmul.f32 %v664, 0.01
        %v869 = vmul.f32 %v666, 0.01
        %v870 = vmul.f32 %v669, 0.01
        %v871 = vmul.f32 %v671, 0.01
        %v872 = vmul.f32 %v674, 0.01
        %v873 = vmul.f32 %v676, 0.01
        %v874 = vmul.f32 %v679, 0.01
        %v875 = vmul.f32 %v681, 0.01
        %v876 = vmul.f32 %v684, 0.01
        %v877 = vmul.f32 %v686, 0.01
        %v878 = vmul.f32 %v689, 0.01
        %v879 = vmul.f32 %v691, 0.01
        %v880 = vmul.f32 %v694, 0.01
        %v881 = vmul.f32 %v696, 0.01
        %v882 = vmul.f32 %v699, 0.01
        %v883 = vmul.f32 %v701, 0.01
        %v884 = vmul.f32 %v704, 0.01
        %v885 = vmul.f32 %v706, 0.01
        %v886 = vmul.f32 %v709, 0.01
        %v887 = vmul.f32 %v711, 0.01
        %v888 = vmul.f32 %v714, 0.01
        %v889 = vmul.f32 %v716, 0.01
        %v890 = vmul.f32 %v719, 0.01
        %v891 = vmul.f32 %v721, 0.01
        %v892 = vmul.f32 %v724, 0.01
        %v893 = vmul.f32 %v726, 0.01
        %v894 = vmul.f32 %v729, 0.01
        %v895 = vmul.f32 %v731, 0.01
        %v896 = vmul.f32 %v734, 0.01
        %v897 = vmul.f32 %v736, 0.01
        %v898 = vmul.f32 %v739, 0.01
        %v899 = vmul.f32 %v741, 0.01
        %v900 = vmul.f32 %v744, 0.01
        %v901 = vmul.f32 %v746, 0.01
        %v902 = vmul.f32 %v749, 0.01
        %v903 = vmul.f32 %v751, 0.01
        %v904 = vmul.f32 %v754, 0.01
        %v905 = vmul.f32 %v756, 0.01
        %v906 = vmul.f32 %v759, 0.01
        %v907 = vmul.f32 %v761, 0.01
        %v908 = vmul.f32 %v764, 0.01
        %v909 = vmul.f32 %v766, 0.01
        %v910 = vmul.f32 %v769, 0.01
        %v911 = vmul.f32 %v771, 0.01
        %v912 = vmul.f32 %v774, 0.01
        %v913 = vmul.f32 %v776, 0.01
        %v914 = vsel %vm778, %v609, %v846
        %v915 = vsel %vm779, %v611, %v847
        %v916 = vsel %vm780, %v614, %v848
        %v917 = vsel %vm781, %v616, %v849
        %v918 = vsel %vm782, %v619, %v850
        %v919 = vsel %vm783, %v621, %v851
        %v920 = vsel %vm784, %v624, %v852
        %v921 = vsel %vm785, %v626, %v853
        %v922 = vsel %vm786, %v629, %v854
        %v923 = vsel %vm787, %v631, %v855
        %v924 = vsel %vm788, %v634, %v856
        %v925 = vsel %vm789, %v636, %v857
        %v926 = vsel %vm790, %v639, %v858
        %v927 = vsel %vm791, %v641, %v859
        %v928 = vsel %vm792, %v644, %v860
        %v929 = vsel %vm793, %v646, %v861
        %v930 = vsel %vm794, %v649, %v862
        %v931 = vsel %vm795, %v651, %v863
        %v932 = vsel %vm796, %v654, %v864
        %v933 = vsel %vm797, %v656, %v865
        %v934 = vsel %vm798, %v659, %v866
        %v935 = vsel %vm799, %v661, %v867
        %v936 = vsel %vm800, %v664, %v868
        %v937 = vsel %vm801, %v666, %v869
        %v938 = vsel %vm802, %v669, %v870
        %v939 = vsel %vm803, %v671, %v871
        %v940 = vsel %vm804, %v674, %v872
        %v941 = vsel %vm805, %v676, %v873
        %v942 = vsel %vm806, %v679, %v874
        %v943 = vsel %vm807, %v681, %v875
        %v944 = vsel %vm808, %v684, %v876
        %v945 = vsel %vm809, %v686, %v877
        %v946 = vsel %vm810, %v689, %v878
        %v947 = vsel %vm811, %v691, %v879
        %v948 = vsel %vm812, %v694, %v880
        %v949 = vsel %vm813, %v696, %v881
        %v950 = vsel %vm814, %v699, %v882
        %v951 = vsel %vm815, %v701, %v883
        %v952 = vsel %vm816, %v704, %v884
        %v953 = vsel %vm817, %v706, %v885
        %v954 = vsel %vm818, %v709, %v886
        %v955 = vsel %vm819, %v711, %v887
        %v956 = vsel %vm820, %v714, %v888
        %v957 = vsel %vm821, %v716, %v889
        %v958 = vsel %vm822, %v719, %v890
        %v959 = vsel %vm823, %v721, %v891
        %v960 = vsel %vm824, %v724, %v892
        %v961 = vsel %vm825, %v726, %v893
        %v962 = vsel %vm826, %v729, %v894
        %v963 = vsel %vm827, %v731, %v895
        %v964 = vsel %vm828, %v734, %v896
        %v965 = vsel %vm829, %v736, %v897
        %v966 = vsel %vm830, %v739, %v898
        %v967 = vsel %vm831, %v741, %v899
        %v968 = vsel %vm832, %v744, %v900
        %v969 = vsel %vm833, %v746, %v901
        %v970 = vsel %vm834, %v749, %v902
        %v971 = vsel %vm835, %v751, %v903
        %v972 = vsel %vm836, %v754, %v904
        %v973 = vsel %vm837, %v756, %v905
        %v974 = vsel %vm838, %v759, %v906
        %v975 = vsel %vm839, %v761, %v907
        %v976 = vsel %vm840, %v764, %v908
        %v977 = vsel %vm841, %v766, %v909
        %v978 = vsel %vm842, %v769, %v910
        %v979 = vsel %vm843, %v771, %v911
        %v980 = vsel %vm844, %v774, %v912
        %v981 = vsel %vm845, %v776, %v913
        %vm982 = vcmask 523264
        %983 = vst.msk [vmem:[#allocation2] sm:$0xff] %vm982, %v914
        %984 = vst.msk [vmem:[#allocation2 + $0x8] sm:$0xff] %vm982, %v915
        %985 = vst.msk [vmem:[#allocation2 + $0x10] sm:$0xff] %vm982, %v916
        %986 = vst.msk [vmem:[#allocation2 + $0x18] sm:$0xff] %vm982, %v917
        %987 = vst.msk [vmem:[#allocation2 + $0x20] sm:$0xff] %vm982, %v918
        %988 = vst.msk [vmem:[#allocation2 + $0x28] sm:$0xff] %vm982, %v919
        %989 = vst.msk [vmem:[#allocation2 + $0x30] sm:$0xff] %vm982, %v920
        %990 = vst.msk [vmem:[#allocation2 + $0x38] sm:$0xff] %vm982, %v921
        %991 = vst.msk [vmem:[#allocation2 + $0x40] sm:$0xff] %vm982, %v922
        %992 = vst.msk [vmem:[#allocation2 + $0x48] sm:$0xff] %vm982, %v923
        %993 = vst.msk [vmem:[#allocation2 + $0x50] sm:$0xff] %vm982, %v924
        %994 = vst.msk [vmem:[#allocation2 + $0x58] sm:$0xff] %vm982, %v925
        %995 = vst.msk [vmem:[#allocation2 + $0x60] sm:$0xff] %vm982, %v926
        %996 = vst.msk [vmem:[#allocation2 + $0x68] sm:$0xff] %vm982, %v927
        %997 = vst.msk [vmem:[#allocation2 + $0x70] sm:$0xff] %vm982, %v928
        %998 = vst.msk [vmem:[#allocation2 + $0x78] sm:$0xff] %vm982, %v929
        %999 = vst.msk [vmem:[#allocation2 + $0x80] sm:$0xff] %vm982, %v930
        %1000 = vst.msk [vmem:[#allocation2 + $0x88] sm:$0xff] %vm982, %v931
        %1001 = vst.msk [vmem:[#allocation2 + $0x90] sm:$0xff] %vm982, %v932
        %1002 = vst.msk [vmem:[#allocation2 + $0x98] sm:$0xff] %vm982, %v933
        %1003 = vst.msk [vmem:[#allocation2 + $0xa0] sm:$0xff] %vm982, %v934
        %1004 = vst.msk [vmem:[#allocation2 + $0xa8] sm:$0xff] %vm982, %v935
        %1005 = vst.msk [vmem:[#allocation2 + $0xb0] sm:$0xff] %vm982, %v936
        %1006 = vst.msk [vmem:[#allocation2 + $0xb8] sm:$0xff] %vm982, %v937
        %1007 = vst.msk [vmem:[#allocation2 + $0xc0] sm:$0xff] %vm982, %v938
        %1008 = vst.msk [vmem:[#allocation2 + $0xc8] sm:$0xff] %vm982, %v939
        %1009 = vst.msk [vmem:[#allocation2 + $0xd0] sm:$0xff] %vm982, %v940
        %1010 = vst.msk [vmem:[#allocation2 + $0xd8] sm:$0xff] %vm982, %v941
        %1011 = vst.msk [vmem:[#allocation2 + $0xe0] sm:$0xff] %vm982, %v942
        %1012 = vst.msk [vmem:[#allocation2 + $0xe8] sm:$0xff] %vm982, %v943
        %1013 = vst.msk [vmem:[#allocation2 + $0xf0] sm:$0xff] %vm982, %v944
        %1014 = vst.msk [vmem:[#allocation2 + $0xf8] sm:$0xff] %vm982, %v945
        %1015 = vst.msk [vmem:[#allocation2 + $0x100] sm:$0xff] %vm982, %v946
        %1016 = vst.msk [vmem:[#allocation2 + $0x108] sm:$0xff] %vm982, %v947
        %1017 = vst.msk [vmem:[#allocation2 + $0x110] sm:$0xff] %vm982, %v948
        %1018 = vst.msk [vmem:[#allocation2 + $0x118] sm:$0xff] %vm982, %v949
        %1019 = vst.msk [vmem:[#allocation2 + $0x120] sm:$0xff] %vm982, %v950
        %1020 = vst.msk [vmem:[#allocation2 + $0x128] sm:$0xff] %vm982, %v951
        %1021 = vst.msk [vmem:[#allocation2 + $0x130] sm:$0xff] %vm982, %v952
        %1022 = vst.msk [vmem:[#allocation2 + $0x138] sm:$0xff] %vm982, %v953
        %1023 = vst.msk [vmem:[#allocation2 + $0x140] sm:$0xff] %vm982, %v954
        %1024 = vst.msk [vmem:[#allocation2 + $0x148] sm:$0xff] %vm982, %v955
        %1025 = vst.msk [vmem:[#allocation2 + $0x150] sm:$0xff] %vm982, %v956
        %1026 = vst.msk [vmem:[#allocation2 + $0x158] sm:$0xff] %vm982, %v957
        %1027 = vst.msk [vmem:[#allocation2 + $0x160] sm:$0xff] %vm982, %v958
        %1028 = vst.msk [vmem:[#allocation2 + $0x168] sm:$0xff] %vm982, %v959
        %1029 = vst.msk [vmem:[#allocation2 + $0x170] sm:$0xff] %vm982, %v960
        %1030 = vst.msk [vmem:[#allocation2 + $0x178] sm:$0xff] %vm982, %v961
        %1031 = vst.msk [vmem:[#allocation2 + $0x180] sm:$0xff] %vm982, %v962
        %1032 = vst.msk [vmem:[#allocation2 + $0x188] sm:$0xff] %vm982, %v963
        %1033 = vst.msk [vmem:[#allocation2 + $0x190] sm:$0xff] %vm982, %v964
        %1034 = vst.msk [vmem:[#allocation2 + $0x198] sm:$0xff] %vm982, %v965
        %1035 = vst.msk [vmem:[#allocation2 + $0x1a0] sm:$0xff] %vm982, %v966
        %1036 = vst.msk [vmem:[#allocation2 + $0x1a8] sm:$0xff] %vm982, %v967
        %1037 = vst.msk [vmem:[#allocation2 + $0x1b0] sm:$0xff] %vm982, %v968
        %1038 = vst.msk [vmem:[#allocation2 + $0x1b8] sm:$0xff] %vm982, %v969
        %1039 = vst.msk [vmem:[#allocation2 + $0x1c0] sm:$0xff] %vm982, %v970
        %1040 = vst.msk [vmem:[#allocation2 + $0x1c8] sm:$0xff] %vm982, %v971
        %1041 = vst.msk [vmem:[#allocation2 + $0x1d0] sm:$0xff] %vm982, %v972
        %1042 = vst.msk [vmem:[#allocation2 + $0x1d8] sm:$0xff] %vm982, %v973
        %1043 = vst.msk [vmem:[#allocation2 + $0x1e0] sm:$0xff] %vm982, %v974
        %1044 = vst.msk [vmem:[#allocation2 + $0x1e8] sm:$0xff] %vm982, %v975
        %1045 = vst.msk [vmem:[#allocation2 + $0x1f0] sm:$0xff] %vm982, %v976
        %1046 = vst.msk [vmem:[#allocation2 + $0x1f8] sm:$0xff] %vm982, %v977
        %1047 = vst.msk [vmem:[#allocation2 + $0x200] sm:$0xff] %vm982, %v978
        %1048 = vst.msk [vmem:[#allocation2 + $0x208] sm:$0xff] %vm982, %v979
        %1049 = vst.msk [vmem:[#allocation2 + $0x210] sm:$0xff] %vm982, %v980
        %1050 = vst.msk [vmem:[#allocation2 + $0x218] sm:$0xff] %vm982, %v981
        %1051 = vst.msk [vmem:[#allocation3] sm:$0xff] %vm982, 0.0
        %1052 = vst.msk [vmem:[#allocation3 + $0x8] sm:$0xff] %vm982, 0.0
        %1053 = vst.msk [vmem:[#allocation3 + $0x10] sm:$0xff] %vm982, 0.0
        %1054 = vst.msk [vmem:[#allocation3 + $0x18] sm:$0xff] %vm982, 0.0
        %1055 = vst.msk [vmem:[#allocation3 + $0x20] sm:$0xff] %vm982, 0.0
        %1056 = vst.msk [vmem:[#allocation3 + $0x28] sm:$0xff] %vm982, 0.0
        %1057 = vst.msk [vmem:[#allocation3 + $0x30] sm:$0xff] %vm982, 0.0
        %1058 = vst.msk [vmem:[#allocation3 + $0x38] sm:$0xff] %vm982, 0.0
        %1059 = vst.msk [vmem:[#allocation3 + $0x40] sm:$0xff] %vm982, 0.0
        %1060 = vst.msk [vmem:[#allocation3 + $0x48] sm:$0xff] %vm982, 0.0
        %1061 = vst.msk [vmem:[#allocation3 + $0x50] sm:$0xff] %vm982, 0.0
        %1062 = vst.msk [vmem:[#allocation3 + $0x58] sm:$0xff] %vm982, 0.0
        %1063 = vst.msk [vmem:[#allocation3 + $0x60] sm:$0xff] %vm982, 0.0
        %1064 = vst.msk [vmem:[#allocation3 + $0x68] sm:$0xff] %vm982, 0.0
        %1065 = vst.msk [vmem:[#allocation3 + $0x70] sm:$0xff] %vm982, 0.0
        %1066 = vst.msk [vmem:[#allocation3 + $0x78] sm:$0xff] %vm982, 0.0
        %1067 = vst.msk [vmem:[#allocation3 + $0x80] sm:$0xff] %vm982, 0.0
        %1068 = vst.msk [vmem:[#allocation3 + $0x88] sm:$0xff] %vm982, 0.0
        %1069 = vst.msk [vmem:[#allocation3 + $0x90] sm:$0xff] %vm982, 0.0
        %1070 = vst.msk [vmem:[#allocation3 + $0x98] sm:$0xff] %vm982, 0.0
        %1071 = vst.msk [vmem:[#allocation3 + $0xa0] sm:$0xff] %vm982, 0.0
        %1072 = vst.msk [vmem:[#allocation3 + $0xa8] sm:$0xff] %vm982, 0.0
        %1073 = vst.msk [vmem:[#allocation3 + $0xb0] sm:$0xff] %vm982, 0.0
        %1074 = vst.msk [vmem:[#allocation3 + $0xb8] sm:$0xff] %vm982, 0.0
        %1075 = vst.msk [vmem:[#allocation3 + $0xc0] sm:$0xff] %vm982, 0.0
        %1076 = vst.msk [vmem:[#allocation3 + $0xc8] sm:$0xff] %vm982, 0.0
        %1077 = vst.msk [vmem:[#allocation3 + $0xd0] sm:$0xff] %vm982, 0.0
        %1078 = vst.msk [vmem:[#allocation3 + $0xd8] sm:$0xff] %vm982, 0.0
        %1079 = vst.msk [vmem:[#allocation3 + $0xe0] sm:$0xff] %vm982, 0.0
        %1080 = vst.msk [vmem:[#allocation3 + $0xe8] sm:$0xff] %vm982, 0.0
        %1081 = vst.msk [vmem:[#allocation3 + $0xf0] sm:$0xff] %vm982, 0.0
        %1082 = vst.msk [vmem:[#allocation3 + $0xf8] sm:$0xff] %vm982, 0.0
        %1083 = vst.msk [vmem:[#allocation3 + $0x100] sm:$0xff] %vm982, 0.0
        %1084 = vst.msk [vmem:[#allocation3 + $0x108] sm:$0xff] %vm982, 0.0
        %1085 = vst.msk [vmem:[#allocation3 + $0x110] sm:$0xff] %vm982, 0.0
        %1086 = vst.msk [vmem:[#allocation3 + $0x118] sm:$0xff] %vm982, 0.0
        %1087 = vst.msk [vmem:[#allocation3 + $0x120] sm:$0xff] %vm982, 0.0
        %1088 = vst.msk [vmem:[#allocation3 + $0x128] sm:$0xff] %vm982, 0.0
        %1089 = vst.msk [vmem:[#allocation3 + $0x130] sm:$0xff] %vm982, 0.0
        %1090 = vst.msk [vmem:[#allocation3 + $0x138] sm:$0xff] %vm982, 0.0
        %1091 = vst.msk [vmem:[#allocation3 + $0x140] sm:$0xff] %vm982, 0.0
        %1092 = vst.msk [vmem:[#allocation3 + $0x148] sm:$0xff] %vm982, 0.0
        %1093 = vst.msk [vmem:[#allocation3 + $0x150] sm:$0xff] %vm982, 0.0
        %1094 = vst.msk [vmem:[#allocation3 + $0x158] sm:$0xff] %vm982, 0.0
        %v1095 = vld [vmem:[#allocation2] sm:$0xff]
        %v1096 = vld [vmem:[#allocation2 + $0x8] sm:$0x7f]
        %v1097 = vld [vmem:[#allocation2 + $0x11] sm:$0xff]
        %v1098 = vld [vmem:[#allocation2 + $0x19] sm:$0x7f]
        %v1099 = vmax.f32 %v1095, %v1097
        %v1100 = vmax.f32 %v1096, %v1098
        %1101 = vst.msk [vmem:[#allocation3 + $0x23] sm:$0xff] %vm982, %v1099
        %vm1102 = vcmask 522240
        %1103 = vst.msk [vmem:[#allocation3 + $0x2b] sm:$0x7f] %vm1102, %v1100
        %v1104 = vld [vmem:[#allocation2 + $0x22] sm:$0xff]
        %v1105 = vld [vmem:[#allocation2 + $0x2a] sm:$0x7f]
        %v1106 = vld [vmem:[#allocation2 + $0x33] sm:$0xff]
        %v1107 = vld [vmem:[#allocation2 + $0x3b] sm:$0x7f]
        %v1108 = vmax.f32 %v1104, %v1106
        %v1109 = vmax.f32 %v1105, %v1107
        %1110 = vst.msk [vmem:[#allocation3 + $0x34] sm:$0xff] %vm982, %v1108
        %1111 = vst.msk [vmem:[#allocation3 + $0x3c] sm:$0x7f] %vm1102, %v1109
        %v1112 = vld [vmem:[#allocation2 + $0x44] sm:$0xff]
        %v1113 = vld [vmem:[#allocation2 + $0x4c] sm:$0x7f]
        %v1114 = vld [vmem:[#allocation2 + $0x55] sm:$0xff]
        %v1115 = vld [vmem:[#allocation2 + $0x5d] sm:$0x7f]
        %v1116 = vmax.f32 %v1112, %v1114
        %v1117 = vmax.f32 %v1113, %v1115
        %1118 = vst.msk [vmem:[#allocation3 + $0x45] sm:$0xff] %vm982, %v1116
        %1119 = vst.msk [vmem:[#allocation3 + $0x4d] sm:$0x7f] %vm1102, %v1117
        %v1120 = vld [vmem:[#allocation2 + $0x66] sm:$0xff]
        %v1121 = vld [vmem:[#allocation2 + $0x6e] sm:$0x7f]
        %v1122 = vld [vmem:[#allocation2 + $0x77] sm:$0xff]
        %v1123 = vld [vmem:[#allocation2 + $0x7f] sm:$0x7f]
        %v1124 = vmax.f32 %v1120, %v1122
        %v1125 = vmax.f32 %v1121, %v1123
        %1126 = vst.msk [vmem:[#allocation3 + $0x56] sm:$0xff] %vm982, %v1124
        %1127 = vst.msk [vmem:[#allocation3 + $0x5e] sm:$0x7f] %vm1102, %v1125
        %v1128 = vld [vmem:[#allocation2 + $0x88] sm:$0xff]
        %v1129 = vld [vmem:[#allocation2 + $0x90] sm:$0x7f]
        %v1130 = vld [vmem:[#allocation2 + $0x99] sm:$0xff]
        %v1131 = vld [vmem:[#allocation2 + $0xa1] sm:$0x7f]
        %v1132 = vmax.f32 %v1128, %v1130
        %v1133 = vmax.f32 %v1129, %v1131
        %1134 = vst.msk [vmem:[#allocation3 + $0x67] sm:$0xff] %vm982, %v1132
        %1135 = vst.msk [vmem:[#allocation3 + $0x6f] sm:$0x7f] %vm1102, %v1133
        %v1136 = vld [vmem:[#allocation2 + $0xaa] sm:$0xff]
        %v1137 = vld [vmem:[#allocation2 + $0xb2] sm:$0x7f]
        %v1138 = vld [vmem:[#allocation2 + $0xbb] sm:$0xff]
        %v1139 = vld [vmem:[#allocation2 + $0xc3] sm:$0x7f]
        %v1140 = vmax.f32 %v1136, %v1138
        %v1141 = vmax.f32 %v1137, %v1139
        %1142 = vst.msk [vmem:[#allocation3 + $0x78] sm:$0xff] %vm982, %v1140
        %1143 = vst.msk [vmem:[#allocation3 + $0x80] sm:$0x7f] %vm1102, %v1141
        %v1144 = vld [vmem:[#allocation2 + $0xcc] sm:$0xff]
        %v1145 = vld [vmem:[#allocation2 + $0xd4] sm:$0x7f]
        %v1146 = vld [vmem:[#allocation2 + $0xdd] sm:$0xff]
        %v1147 = vld [vmem:[#allocation2 + $0xe5] sm:$0x7f]
        %v1148 = vmax.f32 %v1144, %v1146
        %v1149 = vmax.f32 %v1145, %v1147
        %1150 = vst.msk [vmem:[#allocation3 + $0x89] sm:$0xff] %vm982, %v1148
        %1151 = vst.msk [vmem:[#allocation3 + $0x91] sm:$0x7f] %vm1102, %v1149
        %v1152 = vld [vmem:[#allocation2 + $0xee] sm:$0xff]
        %v1153 = vld [vmem:[#allocation2 + $0xf6] sm:$0x7f]
        %v1154 = vld [vmem:[#allocation2 + $0xff] sm:$0xff]
        %v1155 = vld [vmem:[#allocation2 + $0x107] sm:$0x7f]
        %v1156 = vmax.f32 %v1152, %v1154
        %v1157 = vmax.f32 %v1153, %v1155
        %1158 = vst.msk [vmem:[#allocation3 + $0x9a] sm:$0xff] %vm982, %v1156
        %1159 = vst.msk [vmem:[#allocation3 + $0xa2] sm:$0x7f] %vm1102, %v1157
        %v1160 = vld [vmem:[#allocation2 + $0x110] sm:$0xff]
        %v1161 = vld [vmem:[#allocation2 + $0x118] sm:$0x7f]
        %v1162 = vld [vmem:[#allocation2 + $0x121] sm:$0xff]
        %v1163 = vld [vmem:[#allocation2 + $0x129] sm:$0x7f]
        %v1164 = vmax.f32 %v1160, %v1162
        %v1165 = vmax.f32 %v1161, %v1163
        %1166 = vst.msk [vmem:[#allocation3 + $0xab] sm:$0xff] %vm982, %v1164
        %1167 = vst.msk [vmem:[#allocation3 + $0xb3] sm:$0x7f] %vm1102, %v1165
        %v1168 = vld [vmem:[#allocation2 + $0x132] sm:$0xff]
        %v1169 = vld [vmem:[#allocation2 + $0x13a] sm:$0x7f]
        %v1170 = vld [vmem:[#allocation2 + $0x143] sm:$0xff]
        %v1171 = vld [vmem:[#allocation2 + $0x14b] sm:$0x7f]
        %v1172 = vmax.f32 %v1168, %v1170
        %v1173 = vmax.f32 %v1169, %v1171
        %1174 = vst.msk [vmem:[#allocation3 + $0xbc] sm:$0xff] %vm982, %v1172
        %1175 = vst.msk [vmem:[#allocation3 + $0xc4] sm:$0x7f] %vm1102, %v1173
        %v1176 = vld [vmem:[#allocation2 + $0x154] sm:$0xff]
        %v1177 = vld [vmem:[#allocation2 + $0x15c] sm:$0x7f]
        %v1178 = vld [vmem:[#allocation2 + $0x165] sm:$0xff]
        %v1179 = vld [vmem:[#allocation2 + $0x16d] sm:$0x7f]
        %v1180 = vmax.f32 %v1176, %v1178
        %v1181 = vmax.f32 %v1177, %v1179
        %1182 = vst.msk [vmem:[#allocation3 + $0xcd] sm:$0xff] %vm982, %v1180
        %1183 = vst.msk [vmem:[#allocation3 + $0xd5] sm:$0x7f] %vm1102, %v1181
        %v1184 = vld [vmem:[#allocation2 + $0x176] sm:$0xff]
        %v1185 = vld [vmem:[#allocation2 + $0x17e] sm:$0x7f]
        %v1186 = vld [vmem:[#allocation2 + $0x187] sm:$0xff]
        %v1187 = vld [vmem:[#allocation2 + $0x18f] sm:$0x7f]
        %v1188 = vmax.f32 %v1184, %v1186
        %v1189 = vmax.f32 %v1185, %v1187
        %1190 = vst.msk [vmem:[#allocation3 + $0xde] sm:$0xff] %vm982, %v1188
        %1191 = vst.msk [vmem:[#allocation3 + $0xe6] sm:$0x7f] %vm1102, %v1189
        %v1192 = vld [vmem:[#allocation2 + $0x198] sm:$0xff]
        %v1193 = vld [vmem:[#allocation2 + $0x1a0] sm:$0x7f]
        %v1194 = vld [vmem:[#allocation2 + $0x1a9] sm:$0xff]
        %v1195 = vld [vmem:[#allocation2 + $0x1b1] sm:$0x7f]
        %v1196 = vmax.f32 %v1192, %v1194
        %v1197 = vmax.f32 %v1193, %v1195
        %1198 = vst.msk [vmem:[#allocation3 + $0xef] sm:$0xff] %vm982, %v1196
        %1199 = vst.msk [vmem:[#allocation3 + $0xf7] sm:$0x7f] %vm1102, %v1197
        %v1200 = vld [vmem:[#allocation2 + $0x1ba] sm:$0xff]
        %v1201 = vld [vmem:[#allocation2 + $0x1c2] sm:$0x7f]
        %v1202 = vld [vmem:[#allocation2 + $0x1cb] sm:$0xff]
        %v1203 = vld [vmem:[#allocation2 + $0x1d3] sm:$0x7f]
        %v1204 = vmax.f32 %v1200, %v1202
        %v1205 = vmax.f32 %v1201, %v1203
        %1206 = vst.msk [vmem:[#allocation3 + $0x100] sm:$0xff] %vm982, %v1204
        %1207 = vst.msk [vmem:[#allocation3 + $0x108] sm:$0x7f] %vm1102, %v1205
        %v1208 = vld [vmem:[#allocation2 + $0x1dc] sm:$0xff]
        %v1209 = vld [vmem:[#allocation2 + $0x1e4] sm:$0x7f]
        %v1210 = vld [vmem:[#allocation2 + $0x1ed] sm:$0xff]
        %v1211 = vld [vmem:[#allocation2 + $0x1f5] sm:$0x7f]
        %v1212 = vmax.f32 %v1208, %v1210
        %v1213 = vmax.f32 %v1209, %v1211
        %1214 = vst.msk [vmem:[#allocation3 + $0x111] sm:$0xff] %vm982, %v1212
        %1215 = vst.msk [vmem:[#allocation3 + $0x119] sm:$0x7f] %vm1102, %v1213
        %v1216 = vld [vmem:[#allocation2 + $0x1fe] sm:$0xff]
        %v1217 = vld [vmem:[#allocation2 + $0x206] sm:$0x7f]
        %v1218 = vld [vmem:[#allocation2 + $0x20f] sm:$0xff]
        %v1219 = vld [vmem:[#allocation2 + $0x217] sm:$0x7f]
        %v1220 = vmax.f32 %v1216, %v1218
        %v1221 = vmax.f32 %v1217, %v1219
        %1222 = vst.msk [vmem:[#allocation3 + $0x122] sm:$0xff] %vm982, %v1220
        %1223 = vst.msk [vmem:[#allocation3 + $0x12a] sm:$0x7f] %vm1102, %v1221
        %v1224 = vld [vmem:[#allocation3] sm:$0xff]
        %v1225 = vld [vmem:[#allocation3 + $0x8] sm:$0xff]
        %v1226 = vld [vmem:[#allocation3 + $0x10] sm:$0xff]
        %v1227 = vld [vmem:[#allocation3 + $0x18] sm:$0xff]
        %v1228 = vld [vmem:[#allocation3 + $0x20] sm:$0xff]
        %v1229 = vld [vmem:[#allocation3 + $0x28] sm:$0xff]
        %v1230 = vld [vmem:[#allocation3 + $0x30] sm:$0xff]
        %v1231 = vld [vmem:[#allocation3 + $0x38] sm:$0xff]
        %v1232 = vld [vmem:[#allocation3 + $0x40] sm:$0xff]
        %v1233 = vld [vmem:[#allocation3 + $0x48] sm:$0xff]
        %v1234 = vld [vmem:[#allocation3 + $0x50] sm:$0xff]
        %v1235 = vld [vmem:[#allocation3 + $0x58] sm:$0xff]
        %v1236 = vld [vmem:[#allocation3 + $0x60] sm:$0xff]
        %v1237 = vld [vmem:[#allocation3 + $0x68] sm:$0xff]
        %v1238 = vld [vmem:[#allocation3 + $0x70] sm:$0xff]
        %v1239 = vld [vmem:[#allocation3 + $0x78] sm:$0xff]
        %v1240 = vld [vmem:[#allocation3 + $0x80] sm:$0xff]
        %v1241 = vld [vmem:[#allocation3 + $0x88] sm:$0xff]
        %v1242 = vld [vmem:[#allocation3 + $0x90] sm:$0xff]
        %v1243 = vld [vmem:[#allocation3 + $0x98] sm:$0xff]
        %v1244 = vld [vmem:[#allocation3 + $0xa0] sm:$0xff]
        %v1245 = vld [vmem:[#allocation3 + $0xa8] sm:$0xff]
        %v1246 = vld [vmem:[#allocation3 + $0xb0] sm:$0xff]
        %v1247 = vld [vmem:[#allocation3 + $0xb8] sm:$0xff]
        %v1248 = vld [vmem:[#allocation3 + $0xc0] sm:$0xff]
        %v1249 = vld [vmem:[#allocation3 + $0xc8] sm:$0xff]
        %v1250 = vld [vmem:[#allocation3 + $0xd0] sm:$0xff]
        %v1251 = vld [vmem:[#allocation3 + $0xd8] sm:$0xff]
        %v1252 = vld [vmem:[#allocation3 + $0xe0] sm:$0xff]
        %v1253 = vld [vmem:[#allocation3 + $0xe8] sm:$0xff]
        %v1254 = vld [vmem:[#allocation3 + $0xf0] sm:$0xff]
        %v1255 = vld [vmem:[#allocation3 + $0xf8] sm:$0xff]
        %v1256 = vld [vmem:[#allocation3 + $0x100] sm:$0xff]
        %v1257 = vld [vmem:[#allocation3 + $0x108] sm:$0xff]
        %v1258 = vpack.c.bf16 %v1224, %v1224
        %v1259 = vpack.c.bf16 %v1225, %v1225
        %v1260 = vpack.c.bf16 %v1226, %v1226
        %v1261 = vpack.c.bf16 %v1227, %v1227
        %v1262 = vpack.c.bf16 %v1228, %v1228
        %v1263 = vpack.c.bf16 %v1229, %v1229
        %v1264 = vpack.c.bf16 %v1230, %v1230
        %v1265 = vpack.c.bf16 %v1231, %v1231
        %v1266 = vpack.c.bf16 %v1232, %v1232
        %v1267 = vpack.c.bf16 %v1233, %v1233
        %v1268 = vpack.c.bf16 %v1234, %v1234
        %v1269 = vpack.c.bf16 %v1235, %v1235
        %v1270 = vpack.c.bf16 %v1236, %v1236
        %v1271 = vpack.c.bf16 %v1237, %v1237
        %v1272 = vpack.c.bf16 %v1238, %v1238
        %v1273 = vpack.c.bf16 %v1239, %v1239
        %v1274 = vpack.c.bf16 %v1240, %v1240
        %v1275 = vpack.c.bf16 %v1241, %v1241
        %v1276 = vpack.c.bf16 %v1242, %v1242
        %v1277 = vpack.c.bf16 %v1243, %v1243
        %v1278 = vpack.c.bf16 %v1244, %v1244
        %v1279 = vpack.c.bf16 %v1245, %v1245
        %v1280 = vpack.c.bf16 %v1246, %v1246
        %v1281 = vpack.c.bf16 %v1247, %v1247
        %v1282 = vpack.c.bf16 %v1248, %v1248
        %v1283 = vpack.c.bf16 %v1249, %v1249
        %v1284 = vpack.c.bf16 %v1250, %v1250
        %v1285 = vpack.c.bf16 %v1251, %v1251
        %v1286 = vpack.c.bf16 %v1252, %v1252
        %v1287 = vpack.c.bf16 %v1253, %v1253
        %v1288 = vpack.c.bf16 %v1254, %v1254
        %v1289 = vpack.c.bf16 %v1255, %v1255
        %v1290 = vpack.c.bf16 %v1256, %v1256
        %v1291 = vpack.c.bf16 %v1257, %v1257
        %vm1292 = vcmask 519168
        %1293 = vst.msk [vmem:[#allocation4] sm:$0xf] %vm1292, %v1258
        %1294 = vst.msk [vmem:[#allocation4 + $0x20] sm:$0xf] %vm1292, %v1259
        %1295 = vst.msk [vmem:[#allocation4 + $0x40] sm:$0xf] %vm1292, %v1260
        %1296 = vst.msk [vmem:[#allocation4 + $0x60] sm:$0xf] %vm1292, %v1261
        %1297 = vst.msk [vmem:[#allocation4 + $0x80] sm:$0xf] %vm1292, %v1262
        %1298 = vst.msk [vmem:[#allocation4 + $0xa0] sm:$0xf] %vm1292, %v1263
        %1299 = vst.msk [vmem:[#allocation4 + $0xc0] sm:$0xf] %vm1292, %v1264
        %1300 = vst.msk [vmem:[#allocation4 + $0xe0] sm:$0xf] %vm1292, %v1265
        %1301 = vst.msk [vmem:[#allocation4 + $0x100] sm:$0xf] %vm1292, %v1266
        %1302 = vst.msk [vmem:[#allocation4 + $0x120] sm:$0xf] %vm1292, %v1267
        %1303 = vst.msk [vmem:[#allocation4 + $0x140] sm:$0xf] %vm1292, %v1268
        %1304 = vst.msk [vmem:[#allocation4 + $0x160] sm:$0xf] %vm1292, %v1269
        %1305 = vst.msk [vmem:[#allocation4 + $0x180] sm:$0xf] %vm1292, %v1270
        %1306 = vst.msk [vmem:[#allocation4 + $0x1a0] sm:$0xf] %vm1292, %v1271
        %1307 = vst.msk [vmem:[#allocation4 + $0x1c0] sm:$0xf] %vm1292, %v1272
        %1308 = vst.msk [vmem:[#allocation4 + $0x1e0] sm:$0xf] %vm1292, %v1273
        %1309 = vst.msk [vmem:[#allocation4 + $0x200] sm:$0xf] %vm1292, %v1274
        %1310 = vst.msk [vmem:[#allocation4 + $0x220] sm:$0xf] %vm1292, %v1275
        %1311 = vst.msk [vmem:[#allocation4 + $0x240] sm:$0xf] %vm1292, %v1276
        %1312 = vst.msk [vmem:[#allocation4 + $0x260] sm:$0xf] %vm1292, %v1277
        %1313 = vst.msk [vmem:[#allocation4 + $0x280] sm:$0xf] %vm1292, %v1278
        %1314 = vst.msk [vmem:[#allocation4 + $0x2a0] sm:$0xf] %vm1292, %v1279
        %1315 = vst.msk [vmem:[#allocation4 + $0x2c0] sm:$0xf] %vm1292, %v1280
        %1316 = vst.msk [vmem:[#allocation4 + $0x2e0] sm:$0xf] %vm1292, %v1281
        %1317 = vst.msk [vmem:[#allocation4 + $0x300] sm:$0xf] %vm1292, %v1282
        %1318 = vst.msk [vmem:[#allocation4 + $0x320] sm:$0xf] %vm1292, %v1283
        %1319 = vst.msk [vmem:[#allocation4 + $0x340] sm:$0xf] %vm1292, %v1284
        %1320 = vst.msk [vmem:[#allocation4 + $0x360] sm:$0xf] %vm1292, %v1285
        %1321 = vst.msk [vmem:[#allocation4 + $0x380] sm:$0xf] %vm1292, %v1286
        %1322 = vst.msk [vmem:[#allocation4 + $0x3a0] sm:$0xf] %vm1292, %v1287
        %1323 = vst.msk [vmem:[#allocation4 + $0x3c0] sm:$0xf] %vm1292, %v1288
        %1324 = vst.msk [vmem:[#allocation4 + $0x3e0] sm:$0xf] %vm1292, %v1289
        %1325 = vst.msk [vmem:[#allocation4 + $0x400] sm:$0xf] %vm1292, %v1290
        %1326 = vst.msk [vmem:[#allocation4 + $0x420] sm:$0xf] %vm1292, %v1291
        %v1327 = vld [vmem:[#allocation3 + $0x1] sm:$0xff]
        %v1328 = vld [vmem:[#allocation3 + $0x9] sm:$0xff]
        %v1329 = vld [vmem:[#allocation3 + $0x11] sm:$0xff]
        %v1330 = vld [vmem:[#allocation3 + $0x19] sm:$0xff]
        %v1331 = vld [vmem:[#allocation3 + $0x21] sm:$0xff]
        %v1332 = vld [vmem:[#allocation3 + $0x29] sm:$0xff]
        %v1333 = vld [vmem:[#allocation3 + $0x31] sm:$0xff]
        %v1334 = vld [vmem:[#allocation3 + $0x39] sm:$0xff]
        %v1335 = vld [vmem:[#allocation3 + $0x41] sm:$0xff]
        %v1336 = vld [vmem:[#allocation3 + $0x49] sm:$0xff]
        %v1337 = vld [vmem:[#allocation3 + $0x51] sm:$0xff]
        %v1338 = vld [vmem:[#allocation3 + $0x59] sm:$0xff]
        %v1339 = vld [vmem:[#allocation3 + $0x61] sm:$0xff]
        %v1340 = vld [vmem:[#allocation3 + $0x69] sm:$0xff]
        %v1341 = vld [vmem:[#allocation3 + $0x71] sm:$0xff]
        %v1342 = vld [vmem:[#allocation3 + $0x79] sm:$0xff]
        %v1343 = vld [vmem:[#allocation3 + $0x81] sm:$0xff]
        %v1344 = vld [vmem:[#allocation3 + $0x89] sm:$0xff]
        %v1345 = vld [vmem:[#allocation3 + $0x91] sm:$0xff]
        %v1346 = vld [vmem:[#allocation3 + $0x99] sm:$0xff]
        %v1347 = vld [vmem:[#allocation3 + $0xa1] sm:$0xff]
        %v1348 = vld [vmem:[#allocation3 + $0xa9] sm:$0xff]
        %v1349 = vld [vmem:[#allocation3 + $0xb1] sm:$0xff]
        %v1350 = vld [vmem:[#allocation3 + $0xb9] sm:$0xff]
        %v1351 = vld [vmem:[#allocation3 + $0xc1] sm:$0xff]
        %v1352 = vld [vmem:[#allocation3 + $0xc9] sm:$0xff]
        %v1353 = vld [vmem:[#allocation3 + $0xd1] sm:$0xff]
        %v1354 = vld [vmem:[#allocation3 + $0xd9] sm:$0xff]
        %v1355 = vld [vmem:[#allocation3 + $0xe1] sm:$0xff]
        %v1356 = vld [vmem:[#allocation3 + $0xe9] sm:$0xff]
        %v1357 = vld [vmem:[#allocation3 + $0xf1] sm:$0xff]
        %v1358 = vld [vmem:[#allocation3 + $0xf9] sm:$0xff]
        %v1359 = vld [vmem:[#allocation3 + $0x101] sm:$0xff]
        %v1360 = vld [vmem:[#allocation3 + $0x109] sm:$0xff]
        %v1361 = vpack.c.bf16 %v1327, %v1327
        %v1362 = vpack.c.bf16 %v1328, %v1328
        %v1363 = vpack.c.bf16 %v1329, %v1329
        %v1364 = vpack.c.bf16 %v1330, %v1330
        %v1365 = vpack.c.bf16 %v1331, %v1331
        %v1366 = vpack.c.bf16 %v1332, %v1332
        %v1367 = vpack.c.bf16 %v1333, %v1333
        %v1368 = vpack.c.bf16 %v1334, %v1334
        %v1369 = vpack.c.bf16 %v1335, %v1335
        %v1370 = vpack.c.bf16 %v1336, %v1336
        %v1371 = vpack.c.bf16 %v1337, %v1337
        %v1372 = vpack.c.bf16 %v1338, %v1338
        %v1373 = vpack.c.bf16 %v1339, %v1339
        %v1374 = vpack.c.bf16 %v1340, %v1340
        %v1375 = vpack.c.bf16 %v1341, %v1341
        %v1376 = vpack.c.bf16 %v1342, %v1342
        %v1377 = vpack.c.bf16 %v1343, %v1343
        %v1378 = vpack.c.bf16 %v1344, %v1344
        %v1379 = vpack.c.bf16 %v1345, %v1345
        %v1380 = vpack.c.bf16 %v1346, %v1346
        %v1381 = vpack.c.bf16 %v1347, %v1347
        %v1382 = vpack.c.bf16 %v1348, %v1348
        %v1383 = vpack.c.bf16 %v1349, %v1349
        %v1384 = vpack.c.bf16 %v1350, %v1350
        %v1385 = vpack.c.bf16 %v1351, %v1351
        %v1386 = vpack.c.bf16 %v1352, %v1352
        %v1387 = vpack.c.bf16 %v1353, %v1353
        %v1388 = vpack.c.bf16 %v1354, %v1354
        %v1389 = vpack.c.bf16 %v1355, %v1355
        %v1390 = vpack.c.bf16 %v1356, %v1356
        %v1391 = vpack.c.bf16 %v1357, %v1357
        %v1392 = vpack.c.bf16 %v1358, %v1358
        %v1393 = vpack.c.bf16 %v1359, %v1359
        %v1394 = vpack.c.bf16 %v1360, %v1360
        %1429 = vrot.lane.b32.xlu0 %v1361, 64
        %v1430 = vpop.permute.xlu0 %1429
        %1431 = vrot.lane.b32.xlu0 %v1362, 64
        %v1432 = vpop.permute.xlu0 %1431
        %1433 = vrot.lane.b32.xlu0 %v1363, 64
        %v1434 = vpop.permute.xlu0 %1433
        %1435 = vrot.lane.b32.xlu0 %v1364, 64
        %v1436 = vpop.permute.xlu0 %1435
        %1437 = vrot.lane.b32.xlu0 %v1365, 64
        %v1438 = vpop.permute.xlu0 %1437
        %1439 = vrot.lane.b32.xlu0 %v1366, 64
        %v1440 = vpop.permute.xlu0 %1439
        %1441 = vrot.lane.b32.xlu0 %v1367, 64
        %v1442 = vpop.permute.xlu0 %1441
        %1443 = vrot.lane.b32.xlu0 %v1368, 64
        %v1444 = vpop.permute.xlu0 %1443
        %1445 = vrot.lane.b32.xlu0 %v1369, 64
        %v1446 = vpop.permute.xlu0 %1445
        %1447 = vrot.lane.b32.xlu0 %v1370, 64
        %v1448 = vpop.permute.xlu0 %1447
        %1449 = vrot.lane.b32.xlu0 %v1371, 64
        %v1450 = vpop.permute.xlu0 %1449
        %1451 = vrot.lane.b32.xlu0 %v1372, 64
        %v1452 = vpop.permute.xlu0 %1451
        %1453 = vrot.lane.b32.xlu0 %v1373, 64
        %v1454 = vpop.permute.xlu0 %1453
        %1455 = vrot.lane.b32.xlu0 %v1374, 64
        %v1456 = vpop.permute.xlu0 %1455
        %1457 = vrot.lane.b32.xlu0 %v1375, 64
        %v1458 = vpop.permute.xlu0 %1457
        %1459 = vrot.lane.b32.xlu0 %v1376, 64
        %v1460 = vpop.permute.xlu0 %1459
        %1461 = vrot.lane.b32.xlu0 %v1377, 64
        %v1462 = vpop.permute.xlu0 %1461
        %1463 = vrot.lane.b32.xlu0 %v1378, 64
        %v1464 = vpop.permute.xlu0 %1463
        %1465 = vrot.lane.b32.xlu0 %v1379, 64
        %v1466 = vpop.permute.xlu0 %1465
        %1467 = vrot.lane.b32.xlu0 %v1380, 64
        %v1468 = vpop.permute.xlu0 %1467
        %1469 = vrot.lane.b32.xlu0 %v1381, 64
        %v1470 = vpop.permute.xlu0 %1469
        %1471 = vrot.lane.b32.xlu0 %v1382, 64
        %v1472 = vpop.permute.xlu0 %1471
        %1473 = vrot.lane.b32.xlu0 %v1383, 64
        %v1474 = vpop.permute.xlu0 %1473
        %1475 = vrot.lane.b32.xlu0 %v1384, 64
        %v1476 = vpop.permute.xlu0 %1475
        %1477 = vrot.lane.b32.xlu0 %v1385, 64
        %v1478 = vpop.permute.xlu0 %1477
        %1479 = vrot.lane.b32.xlu0 %v1386, 64
        %v1480 = vpop.permute.xlu0 %1479
        %1481 = vrot.lane.b32.xlu0 %v1387, 64
        %v1482 = vpop.permute.xlu0 %1481
        %1483 = vrot.lane.b32.xlu0 %v1388, 64
        %v1484 = vpop.permute.xlu0 %1483
        %1485 = vrot.lane.b32.xlu0 %v1389, 64
        %v1486 = vpop.permute.xlu0 %1485
        %1487 = vrot.lane.b32.xlu0 %v1390, 64
        %v1488 = vpop.permute.xlu0 %1487
        %1489 = vrot.lane.b32.xlu0 %v1391, 64
        %v1490 = vpop.permute.xlu0 %1489
        %1491 = vrot.lane.b32.xlu0 %v1392, 64
        %v1492 = vpop.permute.xlu0 %1491
        %1493 = vrot.lane.b32.xlu0 %v1393, 64
        %v1494 = vpop.permute.xlu0 %1493
        %1495 = vrot.lane.b32.xlu0 %v1394, 64
        %v1496 = vpop.permute.xlu0 %1495
        %vm1531 = vcmask 1043968
        %1532 = vst.msk [vmem:[#allocation4] sm:$0xf] %vm1531, %v1430
        %1533 = vst.msk [vmem:[#allocation4 + $0x20] sm:$0xf] %vm1531, %v1432
        %1534 = vst.msk [vmem:[#allocation4 + $0x40] sm:$0xf] %vm1531, %v1434
        %1535 = vst.msk [vmem:[#allocation4 + $0x60] sm:$0xf] %vm1531, %v1436
        %1536 = vst.msk [vmem:[#allocation4 + $0x80] sm:$0xf] %vm1531, %v1438
        %1537 = vst.msk [vmem:[#allocation4 + $0xa0] sm:$0xf] %vm1531, %v1440
        %1538 = vst.msk [vmem:[#allocation4 + $0xc0] sm:$0xf] %vm1531, %v1442
        %1539 = vst.msk [vmem:[#allocation4 + $0xe0] sm:$0xf] %vm1531, %v1444
        %1540 = vst.msk [vmem:[#allocation4 + $0x100] sm:$0xf] %vm1531, %v1446
        %1541 = vst.msk [vmem:[#allocation4 + $0x120] sm:$0xf] %vm1531, %v1448
        %1542 = vst.msk [vmem:[#allocation4 + $0x140] sm:$0xf] %vm1531, %v1450
        %1543 = vst.msk [vmem:[#allocation4 + $0x160] sm:$0xf] %vm1531, %v1452
        %1544 = vst.msk [vmem:[#allocation4 + $0x180] sm:$0xf] %vm1531, %v1454
        %1545 = vst.msk [vmem:[#allocation4 + $0x1a0] sm:$0xf] %vm1531, %v1456
        %1546 = vst.msk [vmem:[#allocation4 + $0x1c0] sm:$0xf] %vm1531, %v1458
        %1547 = vst.msk [vmem:[#allocation4 + $0x1e0] sm:$0xf] %vm1531, %v1460
        %1548 = vst.msk [vmem:[#allocation4 + $0x200] sm:$0xf] %vm1531, %v1462
        %1549 = vst.msk [vmem:[#allocation4 + $0x220] sm:$0xf] %vm1531, %v1464
        %1550 = vst.msk [vmem:[#allocation4 + $0x240] sm:$0xf] %vm1531, %v1466
        %1551 = vst.msk [vmem:[#allocation4 + $0x260] sm:$0xf] %vm1531, %v1468
        %1552 = vst.msk [vmem:[#allocation4 + $0x280] sm:$0xf] %vm1531, %v1470
        %1553 = vst.msk [vmem:[#allocation4 + $0x2a0] sm:$0xf] %vm1531, %v1472
        %1554 = vst.msk [vmem:[#allocation4 + $0x2c0] sm:$0xf] %vm1531, %v1474
        %1555 = vst.msk [vmem:[#allocation4 + $0x2e0] sm:$0xf] %vm1531, %v1476
        %1556 = vst.msk [vmem:[#allocation4 + $0x300] sm:$0xf] %vm1531, %v1478
        %1557 = vst.msk [vmem:[#allocation4 + $0x320] sm:$0xf] %vm1531, %v1480
        %1558 = vst.msk [vmem:[#allocation4 + $0x340] sm:$0xf] %vm1531, %v1482
        %1559 = vst.msk [vmem:[#allocation4 + $0x360] sm:$0xf] %vm1531, %v1484
        %1560 = vst.msk [vmem:[#allocation4 + $0x380] sm:$0xf] %vm1531, %v1486
        %1561 = vst.msk [vmem:[#allocation4 + $0x3a0] sm:$0xf] %vm1531, %v1488
        %1562 = vst.msk [vmem:[#allocation4 + $0x3c0] sm:$0xf] %vm1531, %v1490
        %1563 = vst.msk [vmem:[#allocation4 + $0x3e0] sm:$0xf] %vm1531, %v1492
        %1564 = vst.msk [vmem:[#allocation4 + $0x400] sm:$0xf] %vm1531, %v1494
        %1565 = vst.msk [vmem:[#allocation4 + $0x420] sm:$0xf] %vm1531, %v1496
        %v1566 = vld [vmem:[#allocation3 + $0x2] sm:$0xff]
        %v1567 = vld [vmem:[#allocation3 + $0xa] sm:$0xff]
        %v1568 = vld [vmem:[#allocation3 + $0x12] sm:$0xff]
        %v1569 = vld [vmem:[#allocation3 + $0x1a] sm:$0xff]
        %v1570 = vld [vmem:[#allocation3 + $0x22] sm:$0xff]
        %v1571 = vld [vmem:[#allocation3 + $0x2a] sm:$0xff]
        %v1572 = vld [vmem:[#allocation3 + $0x32] sm:$0xff]
        %v1573 = vld [vmem:[#allocation3 + $0x3a] sm:$0xff]
        %v1574 = vld [vmem:[#allocation3 + $0x42] sm:$0xff]
        %v1575 = vld [vmem:[#allocation3 + $0x4a] sm:$0xff]
        %v1576 = vld [vmem:[#allocation3 + $0x52] sm:$0xff]
        %v1577 = vld [vmem:[#allocation3 + $0x5a] sm:$0xff]
        %v1578 = vld [vmem:[#allocation3 + $0x62] sm:$0xff]
        %v1579 = vld [vmem:[#allocation3 + $0x6a] sm:$0xff]
        %v1580 = vld [vmem:[#allocation3 + $0x72] sm:$0xff]
        %v1581 = vld [vmem:[#allocation3 + $0x7a] sm:$0xff]
        %v1582 = vld [vmem:[#allocation3 + $0x82] sm:$0xff]
        %v1583 = vld [vmem:[#allocation3 + $0x8a] sm:$0xff]
        %v1584 = vld [vmem:[#allocation3 + $0x92] sm:$0xff]
        %v1585 = vld [vmem:[#allocation3 + $0x9a] sm:$0xff]
        %v1586 = vld [vmem:[#allocation3 + $0xa2] sm:$0xff]
        %v1587 = vld [vmem:[#allocation3 + $0xaa] sm:$0xff]
        %v1588 = vld [vmem:[#allocation3 + $0xb2] sm:$0xff]
        %v1589 = vld [vmem:[#allocation3 + $0xba] sm:$0xff]
        %v1590 = vld [vmem:[#allocation3 + $0xc2] sm:$0xff]
        %v1591 = vld [vmem:[#allocation3 + $0xca] sm:$0xff]
        %v1592 = vld [vmem:[#allocation3 + $0xd2] sm:$0xff]
        %v1593 = vld [vmem:[#allocation3 + $0xda] sm:$0xff]
        %v1594 = vld [vmem:[#allocation3 + $0xe2] sm:$0xff]
        %v1595 = vld [vmem:[#allocation3 + $0xea] sm:$0xff]
        %v1596 = vld [vmem:[#allocation3 + $0xf2] sm:$0xff]
        %v1597 = vld [vmem:[#allocation3 + $0xfa] sm:$0xff]
        %v1598 = vld [vmem:[#allocation3 + $0x102] sm:$0xff]
        %v1599 = vld [vmem:[#allocation3 + $0x10a] sm:$0xff]
        %v1600 = vpack.c.bf16 %v1566, %v1566
        %v1601 = vpack.c.bf16 %v1567, %v1567
        %v1602 = vpack.c.bf16 %v1568, %v1568
        %v1603 = vpack.c.bf16 %v1569, %v1569
        %v1604 = vpack.c.bf16 %v1570, %v1570
        %v1605 = vpack.c.bf16 %v1571, %v1571
        %v1606 = vpack.c.bf16 %v1572, %v1572
        %v1607 = vpack.c.bf16 %v1573, %v1573
        %v1608 = vpack.c.bf16 %v1574, %v1574
        %v1609 = vpack.c.bf16 %v1575, %v1575
        %v1610 = vpack.c.bf16 %v1576, %v1576
        %v1611 = vpack.c.bf16 %v1577, %v1577
        %v1612 = vpack.c.bf16 %v1578, %v1578
        %v1613 = vpack.c.bf16 %v1579, %v1579
        %v1614 = vpack.c.bf16 %v1580, %v1580
        %v1615 = vpack.c.bf16 %v1581, %v1581
        %v1616 = vpack.c.bf16 %v1582, %v1582
        %v1617 = vpack.c.bf16 %v1583, %v1583
        %v1618 = vpack.c.bf16 %v1584, %v1584
        %v1619 = vpack.c.bf16 %v1585, %v1585
        %v1620 = vpack.c.bf16 %v1586, %v1586
        %v1621 = vpack.c.bf16 %v1587, %v1587
        %v1622 = vpack.c.bf16 %v1588, %v1588
        %v1623 = vpack.c.bf16 %v1589, %v1589
        %v1624 = vpack.c.bf16 %v1590, %v1590
        %v1625 = vpack.c.bf16 %v1591, %v1591
        %v1626 = vpack.c.bf16 %v1592, %v1592
        %v1627 = vpack.c.bf16 %v1593, %v1593
        %v1628 = vpack.c.bf16 %v1594, %v1594
        %v1629 = vpack.c.bf16 %v1595, %v1595
        %v1630 = vpack.c.bf16 %v1596, %v1596
        %v1631 = vpack.c.bf16 %v1597, %v1597
        %v1632 = vpack.c.bf16 %v1598, %v1598
        %v1633 = vpack.c.bf16 %v1599, %v1599
        %1634 = vst.msk [vmem:[#allocation4 + $0x4] sm:$0xf] %vm1292, %v1600
        %1635 = vst.msk [vmem:[#allocation4 + $0x24] sm:$0xf] %vm1292, %v1601
        %1636 = vst.msk [vmem:[#allocation4 + $0x44] sm:$0xf] %vm1292, %v1602
        %1637 = vst.msk [vmem:[#allocation4 + $0x64] sm:$0xf] %vm1292, %v1603
        %1638 = vst.msk [vmem:[#allocation4 + $0x84] sm:$0xf] %vm1292, %v1604
        %1639 = vst.msk [vmem:[#allocation4 + $0xa4] sm:$0xf] %vm1292, %v1605
        %1640 = vst.msk [vmem:[#allocation4 + $0xc4] sm:$0xf] %vm1292, %v1606
        %1641 = vst.msk [vmem:[#allocation4 + $0xe4] sm:$0xf] %vm1292, %v1607
        %1642 = vst.msk [vmem:[#allocation4 + $0x104] sm:$0xf] %vm1292, %v1608
        %1643 = vst.msk [vmem:[#allocation4 + $0x124] sm:$0xf] %vm1292, %v1609
        %1644 = vst.msk [vmem:[#allocation4 + $0x144] sm:$0xf] %vm1292, %v1610
        %1645 = vst.msk [vmem:[#allocation4 + $0x164] sm:$0xf] %vm1292, %v1611
        %1646 = vst.msk [vmem:[#allocation4 + $0x184] sm:$0xf] %vm1292, %v1612
        %1647 = vst.msk [vmem:[#allocation4 + $0x1a4] sm:$0xf] %vm1292, %v1613
        %1648 = vst.msk [vmem:[#allocation4 + $0x1c4] sm:$0xf] %vm1292, %v1614
        %1649 = vst.msk [vmem:[#allocation4 + $0x1e4] sm:$0xf] %vm1292, %v1615
        %1650 = vst.msk [vmem:[#allocation4 + $0x204] sm:$0xf] %vm1292, %v1616
        %1651 = vst.msk [vmem:[#allocation4 + $0x224] sm:$0xf] %vm1292, %v1617
        %1652 = vst.msk [vmem:[#allocation4 + $0x244] sm:$0xf] %vm1292, %v1618
        %1653 = vst.msk [vmem:[#allocation4 + $0x264] sm:$0xf] %vm1292, %v1619
        %1654 = vst.msk [vmem:[#allocation4 + $0x284] sm:$0xf] %vm1292, %v1620
        %1655 = vst.msk [vmem:[#allocation4 + $0x2a4] sm:$0xf] %vm1292, %v1621
        %1656 = vst.msk [vmem:[#allocation4 + $0x2c4] sm:$0xf] %vm1292, %v1622
        %1657 = vst.msk [vmem:[#allocation4 + $0x2e4] sm:$0xf] %vm1292, %v1623
        %1658 = vst.msk [vmem:[#allocation4 + $0x304] sm:$0xf] %vm1292, %v1624
        %1659 = vst.msk [vmem:[#allocation4 + $0x324] sm:$0xf] %vm1292, %v1625
        %1660 = vst.msk [vmem:[#allocation4 + $0x344] sm:$0xf] %vm1292, %v1626
        %1661 = vst.msk [vmem:[#allocation4 + $0x364] sm:$0xf] %vm1292, %v1627
        %1662 = vst.msk [vmem:[#allocation4 + $0x384] sm:$0xf] %vm1292, %v1628
        %1663 = vst.msk [vmem:[#allocation4 + $0x3a4] sm:$0xf] %vm1292, %v1629
        %1664 = vst.msk [vmem:[#allocation4 + $0x3c4] sm:$0xf] %vm1292, %v1630
        %1665 = vst.msk [vmem:[#allocation4 + $0x3e4] sm:$0xf] %vm1292, %v1631
        %1666 = vst.msk [vmem:[#allocation4 + $0x404] sm:$0xf] %vm1292, %v1632
        %1667 = vst.msk [vmem:[#allocation4 + $0x424] sm:$0xf] %vm1292, %v1633
        %v1668 = vld [vmem:[#allocation3 + $0x11] sm:$0xff]
        %v1669 = vld [vmem:[#allocation3 + $0x19] sm:$0xff]
        %v1670 = vld [vmem:[#allocation3 + $0x21] sm:$0xff]
        %v1671 = vld [vmem:[#allocation3 + $0x29] sm:$0xff]
        %v1672 = vld [vmem:[#allocation3 + $0x31] sm:$0xff]
        %v1673 = vld [vmem:[#allocation3 + $0x39] sm:$0xff]
        %v1674 = vld [vmem:[#allocation3 + $0x41] sm:$0xff]
        %v1675 = vld [vmem:[#allocation3 + $0x49] sm:$0xff]
        %v1676 = vld [vmem:[#allocation3 + $0x51] sm:$0xff]
        %v1677 = vld [vmem:[#allocation3 + $0x59] sm:$0xff]
        %v1678 = vld [vmem:[#allocation3 + $0x61] sm:$0xff]
        %v1679 = vld [vmem:[#allocation3 + $0x69] sm:$0xff]
        %v1680 = vld [vmem:[#allocation3 + $0x71] sm:$0xff]
        %v1681 = vld [vmem:[#allocation3 + $0x79] sm:$0xff]
        %v1682 = vld [vmem:[#allocation3 + $0x81] sm:$0xff]
        %v1683 = vld [vmem:[#allocation3 + $0x89] sm:$0xff]
        %v1684 = vld [vmem:[#allocation3 + $0x91] sm:$0xff]
        %v1685 = vld [vmem:[#allocation3 + $0x99] sm:$0xff]
        %v1686 = vld [vmem:[#allocation3 + $0xa1] sm:$0xff]
        %v1687 = vld [vmem:[#allocation3 + $0xa9] sm:$0xff]
        %v1688 = vld [vmem:[#allocation3 + $0xb1] sm:$0xff]
        %v1689 = vld [vmem:[#allocation3 + $0xb9] sm:$0xff]
        %v1690 = vld [vmem:[#allocation3 + $0xc1] sm:$0xff]
        %v1691 = vld [vmem:[#allocation3 + $0xc9] sm:$0xff]
        %v1692 = vld [vmem:[#allocation3 + $0xd1] sm:$0xff]
        %v1693 = vld [vmem:[#allocation3 + $0xd9] sm:$0xff]
        %v1694 = vld [vmem:[#allocation3 + $0xe1] sm:$0xff]
        %v1695 = vld [vmem:[#allocation3 + $0xe9] sm:$0xff]
        %v1696 = vld [vmem:[#allocation3 + $0xf1] sm:$0xff]
        %v1697 = vld [vmem:[#allocation3 + $0xf9] sm:$0xff]
        %v1698 = vld [vmem:[#allocation3 + $0x101] sm:$0xff]
        %v1699 = vld [vmem:[#allocation3 + $0x109] sm:$0xff]
        %v1700 = vld [vmem:[#allocation3 + $0x111] sm:$0xff]
        %v1701 = vld [vmem:[#allocation3 + $0x119] sm:$0xff]
        %v1702 = vpack.c.bf16 %v1668, %v1668
        %v1703 = vpack.c.bf16 %v1669, %v1669
        %v1704 = vpack.c.bf16 %v1670, %v1670
        %v1705 = vpack.c.bf16 %v1671, %v1671
        %v1706 = vpack.c.bf16 %v1672, %v1672
        %v1707 = vpack.c.bf16 %v1673, %v1673
        %v1708 = vpack.c.bf16 %v1674, %v1674
        %v1709 = vpack.c.bf16 %v1675, %v1675
        %v1710 = vpack.c.bf16 %v1676, %v1676
        %v1711 = vpack.c.bf16 %v1677, %v1677
        %v1712 = vpack.c.bf16 %v1678, %v1678
        %v1713 = vpack.c.bf16 %v1679, %v1679
        %v1714 = vpack.c.bf16 %v1680, %v1680
        %v1715 = vpack.c.bf16 %v1681, %v1681
        %v1716 = vpack.c.bf16 %v1682, %v1682
        %v1717 = vpack.c.bf16 %v1683, %v1683
        %v1718 = vpack.c.bf16 %v1684, %v1684
        %v1719 = vpack.c.bf16 %v1685, %v1685
        %v1720 = vpack.c.bf16 %v1686, %v1686
        %v1721 = vpack.c.bf16 %v1687, %v1687
        %v1722 = vpack.c.bf16 %v1688, %v1688
        %v1723 = vpack.c.bf16 %v1689, %v1689
        %v1724 = vpack.c.bf16 %v1690, %v1690
        %v1725 = vpack.c.bf16 %v1691, %v1691
        %v1726 = vpack.c.bf16 %v1692, %v1692
        %v1727 = vpack.c.bf16 %v1693, %v1693
        %v1728 = vpack.c.bf16 %v1694, %v1694
        %v1729 = vpack.c.bf16 %v1695, %v1695
        %v1730 = vpack.c.bf16 %v1696, %v1696
        %v1731 = vpack.c.bf16 %v1697, %v1697
        %v1732 = vpack.c.bf16 %v1698, %v1698
        %v1733 = vpack.c.bf16 %v1699, %v1699
        %v1734 = vpack.c.bf16 %v1700, %v1700
        %v1735 = vpack.c.bf16 %v1701, %v1701
        %1770 = vrot.lane.b32.xlu0 %v1702, 64
        %v1771 = vpop.permute.xlu0 %1770
        %1772 = vrot.lane.b32.xlu0 %v1703, 64
        %v1773 = vpop.permute.xlu0 %1772
        %1774 = vrot.lane.b32.xlu0 %v1704, 64
        %v1775 = vpop.permute.xlu0 %1774
        %1776 = vrot.lane.b32.xlu0 %v1705, 64
        %v1777 = vpop.permute.xlu0 %1776
        %1778 = vrot.lane.b32.xlu0 %v1706, 64
        %v1779 = vpop.permute.xlu0 %1778
        %1780 = vrot.lane.b32.xlu0 %v1707, 64
        %v1781 = vpop.permute.xlu0 %1780
        %1782 = vrot.lane.b32.xlu0 %v1708, 64
        %v1783 = vpop.permute.xlu0 %1782
        %1784 = vrot.lane.b32.xlu0 %v1709, 64
        %v1785 = vpop.permute.xlu0 %1784
        %1786 = vrot.lane.b32.xlu0 %v1710, 64
        %v1787 = vpop.permute.xlu0 %1786
        %1788 = vrot.lane.b32.xlu0 %v1711, 64
        %v1789 = vpop.permute.xlu0 %1788
        %1790 = vrot.lane.b32.xlu0 %v1712, 64
        %v1791 = vpop.permute.xlu0 %1790
        %1792 = vrot.lane.b32.xlu0 %v1713, 64
        %v1793 = vpop.permute.xlu0 %1792
        %1794 = vrot.lane.b32.xlu0 %v1714, 64
        %v1795 = vpop.permute.xlu0 %1794
        %1796 = vrot.lane.b32.xlu0 %v1715, 64
        %v1797 = vpop.permute.xlu0 %1796
        %1798 = vrot.lane.b32.xlu0 %v1716, 64
        %v1799 = vpop.permute.xlu0 %1798
        %1800 = vrot.lane.b32.xlu0 %v1717, 64
        %v1801 = vpop.permute.xlu0 %1800
        %1802 = vrot.lane.b32.xlu0 %v1718, 64
        %v1803 = vpop.permute.xlu0 %1802
        %1804 = vrot.lane.b32.xlu0 %v1719, 64
        %v1805 = vpop.permute.xlu0 %1804
        %1806 = vrot.lane.b32.xlu0 %v1720, 64
        %v1807 = vpop.permute.xlu0 %1806
        %1808 = vrot.lane.b32.xlu0 %v1721, 64
        %v1809 = vpop.permute.xlu0 %1808
        %1810 = vrot.lane.b32.xlu0 %v1722, 64
        %v1811 = vpop.permute.xlu0 %1810
        %1812 = vrot.lane.b32.xlu0 %v1723, 64
        %v1813 = vpop.permute.xlu0 %1812
        %1814 = vrot.lane.b32.xlu0 %v1724, 64
        %v1815 = vpop.permute.xlu0 %1814
        %1816 = vrot.lane.b32.xlu0 %v1725, 64
        %v1817 = vpop.permute.xlu0 %1816
        %1818 = vrot.lane.b32.xlu0 %v1726, 64
        %v1819 = vpop.permute.xlu0 %1818
        %1820 = vrot.lane.b32.xlu0 %v1727, 64
        %v1821 = vpop.permute.xlu0 %1820
        %1822 = vrot.lane.b32.xlu0 %v1728, 64
        %v1823 = vpop.permute.xlu0 %1822
        %1824 = vrot.lane.b32.xlu0 %v1729, 64
        %v1825 = vpop.permute.xlu0 %1824
        %1826 = vrot.lane.b32.xlu0 %v1730, 64
        %v1827 = vpop.permute.xlu0 %1826
        %1828 = vrot.lane.b32.xlu0 %v1731, 64
        %v1829 = vpop.permute.xlu0 %1828
        %1830 = vrot.lane.b32.xlu0 %v1732, 64
        %v1831 = vpop.permute.xlu0 %1830
        %1832 = vrot.lane.b32.xlu0 %v1733, 64
        %v1833 = vpop.permute.xlu0 %1832
        %1834 = vrot.lane.b32.xlu0 %v1734, 64
        %v1835 = vpop.permute.xlu0 %1834
        %1836 = vrot.lane.b32.xlu0 %v1735, 64
        %v1837 = vpop.permute.xlu0 %1836
        %1872 = vst.msk [vmem:[#allocation4 + $0x4] sm:$0xf] %vm1531, %v1771
        %1873 = vst.msk [vmem:[#allocation4 + $0x24] sm:$0xf] %vm1531, %v1773
        %1874 = vst.msk [vmem:[#allocation4 + $0x44] sm:$0xf] %vm1531, %v1775
        %1875 = vst.msk [vmem:[#allocation4 + $0x64] sm:$0xf] %vm1531, %v1777
        %1876 = vst.msk [vmem:[#allocation4 + $0x84] sm:$0xf] %vm1531, %v1779
        %1877 = vst.msk [vmem:[#allocation4 + $0xa4] sm:$0xf] %vm1531, %v1781
        %1878 = vst.msk [vmem:[#allocation4 + $0xc4] sm:$0xf] %vm1531, %v1783
        %1879 = vst.msk [vmem:[#allocation4 + $0xe4] sm:$0xf] %vm1531, %v1785
        %1880 = vst.msk [vmem:[#allocation4 + $0x104] sm:$0xf] %vm1531, %v1787
        %1881 = vst.msk [vmem:[#allocation4 + $0x124] sm:$0xf] %vm1531, %v1789
        %1882 = vst.msk [vmem:[#allocation4 + $0x144] sm:$0xf] %vm1531, %v1791
        %1883 = vst.msk [vmem:[#allocation4 + $0x164] sm:$0xf] %vm1531, %v1793
        %1884 = vst.msk [vmem:[#allocation4 + $0x184] sm:$0xf] %vm1531, %v1795
        %1885 = vst.msk [vmem:[#allocation4 + $0x1a4] sm:$0xf] %vm1531, %v1797
        %1886 = vst.msk [vmem:[#allocation4 + $0x1c4] sm:$0xf] %vm1531, %v1799
        %1887 = vst.msk [vmem:[#allocation4 + $0x1e4] sm:$0xf] %vm1531, %v1801
        %1888 = vst.msk [vmem:[#allocation4 + $0x204] sm:$0xf] %vm1531, %v1803
        %1889 = vst.msk [vmem:[#allocation4 + $0x224] sm:$0xf] %vm1531, %v1805
        %1890 = vst.msk [vmem:[#allocation4 + $0x244] sm:$0xf] %vm1531, %v1807
        %1891 = vst.msk [vmem:[#allocation4 + $0x264] sm:$0xf] %vm1531, %v1809
        %1892 = vst.msk [vmem:[#allocation4 + $0x284] sm:$0xf] %vm1531, %v1811
        %1893 = vst.msk [vmem:[#allocation4 + $0x2a4] sm:$0xf] %vm1531, %v1813
        %1894 = vst.msk [vmem:[#allocation4 + $0x2c4] sm:$0xf] %vm1531, %v1815
        %1895 = vst.msk [vmem:[#allocation4 + $0x2e4] sm:$0xf] %vm1531, %v1817
        %1896 = vst.msk [vmem:[#allocation4 + $0x304] sm:$0xf] %vm1531, %v1819
        %1897 = vst.msk [vmem:[#allocation4 + $0x324] sm:$0xf] %vm1531, %v1821
        %1898 = vst.msk [vmem:[#allocation4 + $0x344] sm:$0xf] %vm1531, %v1823
        %1899 = vst.msk [vmem:[#allocation4 + $0x364] sm:$0xf] %vm1531, %v1825
        %1900 = vst.msk [vmem:[#allocation4 + $0x384] sm:$0xf] %vm1531, %v1827
        %1901 = vst.msk [vmem:[#allocation4 + $0x3a4] sm:$0xf] %vm1531, %v1829
        %1902 = vst.msk [vmem:[#allocation4 + $0x3c4] sm:$0xf] %vm1531, %v1831
        %1903 = vst.msk [vmem:[#allocation4 + $0x3e4] sm:$0xf] %vm1531, %v1833
        %1904 = vst.msk [vmem:[#allocation4 + $0x404] sm:$0xf] %vm1531, %v1835
        %1905 = vst.msk [vmem:[#allocation4 + $0x424] sm:$0xf] %vm1531, %v1837
        %v1906 = vld [vmem:[#allocation3 + $0x12] sm:$0xff]
        %v1907 = vld [vmem:[#allocation3 + $0x1a] sm:$0xff]
        %v1908 = vld [vmem:[#allocation3 + $0x22] sm:$0xff]
        %v1909 = vld [vmem:[#allocation3 + $0x2a] sm:$0xff]
        %v1910 = vld [vmem:[#allocation3 + $0x32] sm:$0xff]
        %v1911 = vld [vmem:[#allocation3 + $0x3a] sm:$0xff]
        %v1912 = vld [vmem:[#allocation3 + $0x42] sm:$0xff]
        %v1913 = vld [vmem:[#allocation3 + $0x4a] sm:$0xff]
        %v1914 = vld [vmem:[#allocation3 + $0x52] sm:$0xff]
        %v1915 = vld [vmem:[#allocation3 + $0x5a] sm:$0xff]
        %v1916 = vld [vmem:[#allocation3 + $0x62] sm:$0xff]
        %v1917 = vld [vmem:[#allocation3 + $0x6a] sm:$0xff]
        %v1918 = vld [vmem:[#allocation3 + $0x72] sm:$0xff]
        %v1919 = vld [vmem:[#allocation3 + $0x7a] sm:$0xff]
        %v1920 = vld [vmem:[#allocation3 + $0x82] sm:$0xff]
        %v1921 = vld [vmem:[#allocation3 + $0x8a] sm:$0xff]
        %v1922 = vld [vmem:[#allocation3 + $0x92] sm:$0xff]
        %v1923 = vld [vmem:[#allocation3 + $0x9a] sm:$0xff]
        %v1924 = vld [vmem:[#allocation3 + $0xa2] sm:$0xff]
        %v1925 = vld [vmem:[#allocation3 + $0xaa] sm:$0xff]
        %v1926 = vld [vmem:[#allocation3 + $0xb2] sm:$0xff]
        %v1927 = vld [vmem:[#allocation3 + $0xba] sm:$0xff]
        %v1928 = vld [vmem:[#allocation3 + $0xc2] sm:$0xff]
        %v1929 = vld [vmem:[#allocation3 + $0xca] sm:$0xff]
        %v1930 = vld [vmem:[#allocation3 + $0xd2] sm:$0xff]
        %v1931 = vld [vmem:[#allocation3 + $0xda] sm:$0xff]
        %v1932 = vld [vmem:[#allocation3 + $0xe2] sm:$0xff]
        %v1933 = vld [vmem:[#allocation3 + $0xea] sm:$0xff]
        %v1934 = vld [vmem:[#allocation3 + $0xf2] sm:$0xff]
        %v1935 = vld [vmem:[#allocation3 + $0xfa] sm:$0xff]
        %v1936 = vld [vmem:[#allocation3 + $0x102] sm:$0xff]
        %v1937 = vld [vmem:[#allocation3 + $0x10a] sm:$0xff]
        %v1938 = vld [vmem:[#allocation3 + $0x112] sm:$0xff]
        %v1939 = vld [vmem:[#allocation3 + $0x11a] sm:$0xff]
        %v1940 = vpack.c.bf16 %v1906, %v1906
        %v1941 = vpack.c.bf16 %v1907, %v1907
        %v1942 = vpack.c.bf16 %v1908, %v1908
        %v1943 = vpack.c.bf16 %v1909, %v1909
        %v1944 = vpack.c.bf16 %v1910, %v1910
        %v1945 = vpack.c.bf16 %v1911, %v1911
        %v1946 = vpack.c.bf16 %v1912, %v1912
        %v1947 = vpack.c.bf16 %v1913, %v1913
        %v1948 = vpack.c.bf16 %v1914, %v1914
        %v1949 = vpack.c.bf16 %v1915, %v1915
        %v1950 = vpack.c.bf16 %v1916, %v1916
        %v1951 = vpack.c.bf16 %v1917, %v1917
        %v1952 = vpack.c.bf16 %v1918, %v1918
        %v1953 = vpack.c.bf16 %v1919, %v1919
        %v1954 = vpack.c.bf16 %v1920, %v1920
        %v1955 = vpack.c.bf16 %v1921, %v1921
        %v1956 = vpack.c.bf16 %v1922, %v1922
        %v1957 = vpack.c.bf16 %v1923, %v1923
        %v1958 = vpack.c.bf16 %v1924, %v1924
        %v1959 = vpack.c.bf16 %v1925, %v1925
        %v1960 = vpack.c.bf16 %v1926, %v1926
        %v1961 = vpack.c.bf16 %v1927, %v1927
        %v1962 = vpack.c.bf16 %v1928, %v1928
        %v1963 = vpack.c.bf16 %v1929, %v1929
        %v1964 = vpack.c.bf16 %v1930, %v1930
        %v1965 = vpack.c.bf16 %v1931, %v1931
        %v1966 = vpack.c.bf16 %v1932, %v1932
        %v1967 = vpack.c.bf16 %v1933, %v1933
        %v1968 = vpack.c.bf16 %v1934, %v1934
        %v1969 = vpack.c.bf16 %v1935, %v1935
        %v1970 = vpack.c.bf16 %v1936, %v1936
        %v1971 = vpack.c.bf16 %v1937, %v1937
        %v1972 = vpack.c.bf16 %v1938, %v1938
        %v1973 = vpack.c.bf16 %v1939, %v1939
        %1974 = vst.msk [vmem:[#allocation4 + $0x8] sm:$0xf] %vm1292, %v1940
        %1975 = vst.msk [vmem:[#allocation4 + $0x28] sm:$0xf] %vm1292, %v1941
        %1976 = vst.msk [vmem:[#allocation4 + $0x48] sm:$0xf] %vm1292, %v1942
        %1977 = vst.msk [vmem:[#allocation4 + $0x68] sm:$0xf] %vm1292, %v1943
        %1978 = vst.msk [vmem:[#allocation4 + $0x88] sm:$0xf] %vm1292, %v1944
        %1979 = vst.msk [vmem:[#allocation4 + $0xa8] sm:$0xf] %vm1292, %v1945
        %1980 = vst.msk [vmem:[#allocation4 + $0xc8] sm:$0xf] %vm1292, %v1946
        %1981 = vst.msk [vmem:[#allocation4 + $0xe8] sm:$0xf] %vm1292, %v1947
        %1982 = vst.msk [vmem:[#allocation4 + $0x108] sm:$0xf] %vm1292, %v1948
        %1983 = vst.msk [vmem:[#allocation4 + $0x128] sm:$0xf] %vm1292, %v1949
        %1984 = vst.msk [vmem:[#allocation4 + $0x148] sm:$0xf] %vm1292, %v1950
        %1985 = vst.msk [vmem:[#allocation4 + $0x168] sm:$0xf] %vm1292, %v1951
        %1986 = vst.msk [vmem:[#allocation4 + $0x188] sm:$0xf] %vm1292, %v1952
        %1987 = vst.msk [vmem:[#allocation4 + $0x1a8] sm:$0xf] %vm1292, %v1953
        %1988 = vst.msk [vmem:[#allocation4 + $0x1c8] sm:$0xf] %vm1292, %v1954
        %1989 = vst.msk [vmem:[#allocation4 + $0x1e8] sm:$0xf] %vm1292, %v1955
        %1990 = vst.msk [vmem:[#allocation4 + $0x208] sm:$0xf] %vm1292, %v1956
        %1991 = vst.msk [vmem:[#allocation4 + $0x228] sm:$0xf] %vm1292, %v1957
        %1992 = vst.msk [vmem:[#allocation4 + $0x248] sm:$0xf] %vm1292, %v1958
        %1993 = vst.msk [vmem:[#allocation4 + $0x268] sm:$0xf] %vm1292, %v1959
        %1994 = vst.msk [vmem:[#allocation4 + $0x288] sm:$0xf] %vm1292, %v1960
        %1995 = vst.msk [vmem:[#allocation4 + $0x2a8] sm:$0xf] %vm1292, %v1961
        %1996 = vst.msk [vmem:[#allocation4 + $0x2c8] sm:$0xf] %vm1292, %v1962
        %1997 = vst.msk [vmem:[#allocation4 + $0x2e8] sm:$0xf] %vm1292, %v1963
        %1998 = vst.msk [vmem:[#allocation4 + $0x308] sm:$0xf] %vm1292, %v1964
        %1999 = vst.msk [vmem:[#allocation4 + $0x328] sm:$0xf] %vm1292, %v1965
        %2000 = vst.msk [vmem:[#allocation4 + $0x348] sm:$0xf] %vm1292, %v1966
        %2001 = vst.msk [vmem:[#allocation4 + $0x368] sm:$0xf] %vm1292, %v1967
        %2002 = vst.msk [vmem:[#allocation4 + $0x388] sm:$0xf] %vm1292, %v1968
        %2003 = vst.msk [vmem:[#allocation4 + $0x3a8] sm:$0xf] %vm1292, %v1969
        %2004 = vst.msk [vmem:[#allocation4 + $0x3c8] sm:$0xf] %vm1292, %v1970
        %2005 = vst.msk [vmem:[#allocation4 + $0x3e8] sm:$0xf] %vm1292, %v1971
        %2006 = vst.msk [vmem:[#allocation4 + $0x408] sm:$0xf] %vm1292, %v1972
        %2007 = vst.msk [vmem:[#allocation4 + $0x428] sm:$0xf] %vm1292, %v1973
        %v2008 = vld [vmem:[#allocation3 + $0x13] sm:$0xff]
        %v2009 = vld [vmem:[#allocation3 + $0x1b] sm:$0xff]
        %v2010 = vld [vmem:[#allocation3 + $0x23] sm:$0xff]
        %v2011 = vld [vmem:[#allocation3 + $0x2b] sm:$0xff]
        %v2012 = vld [vmem:[#allocation3 + $0x33] sm:$0xff]
        %v2013 = vld [vmem:[#allocation3 + $0x3b] sm:$0xff]
        %v2014 = vld [vmem:[#allocation3 + $0x43] sm:$0xff]
        %v2015 = vld [vmem:[#allocation3 + $0x4b] sm:$0xff]
        %v2016 = vld [vmem:[#allocation3 + $0x53] sm:$0xff]
        %v2017 = vld [vmem:[#allocation3 + $0x5b] sm:$0xff]
        %v2018 = vld [vmem:[#allocation3 + $0x63] sm:$0xff]
        %v2019 = vld [vmem:[#allocation3 + $0x6b] sm:$0xff]
        %v2020 = vld [vmem:[#allocation3 + $0x73] sm:$0xff]
        %v2021 = vld [vmem:[#allocation3 + $0x7b] sm:$0xff]
        %v2022 = vld [vmem:[#allocation3 + $0x83] sm:$0xff]
        %v2023 = vld [vmem:[#allocation3 + $0x8b] sm:$0xff]
        %v2024 = vld [vmem:[#allocation3 + $0x93] sm:$0xff]
        %v2025 = vld [vmem:[#allocation3 + $0x9b] sm:$0xff]
        %v2026 = vld [vmem:[#allocation3 + $0xa3] sm:$0xff]
        %v2027 = vld [vmem:[#allocation3 + $0xab] sm:$0xff]
        %v2028 = vld [vmem:[#allocation3 + $0xb3] sm:$0xff]
        %v2029 = vld [vmem:[#allocation3 + $0xbb] sm:$0xff]
        %v2030 = vld [vmem:[#allocation3 + $0xc3] sm:$0xff]
        %v2031 = vld [vmem:[#allocation3 + $0xcb] sm:$0xff]
        %v2032 = vld [vmem:[#allocation3 + $0xd3] sm:$0xff]
        %v2033 = vld [vmem:[#allocation3 + $0xdb] sm:$0xff]
        %v2034 = vld [vmem:[#allocation3 + $0xe3] sm:$0xff]
        %v2035 = vld [vmem:[#allocation3 + $0xeb] sm:$0xff]
        %v2036 = vld [vmem:[#allocation3 + $0xf3] sm:$0xff]
        %v2037 = vld [vmem:[#allocation3 + $0xfb] sm:$0xff]
        %v2038 = vld [vmem:[#allocation3 + $0x103] sm:$0xff]
        %v2039 = vld [vmem:[#allocation3 + $0x10b] sm:$0xff]
        %v2040 = vld [vmem:[#allocation3 + $0x113] sm:$0xff]
        %v2041 = vld [vmem:[#allocation3 + $0x11b] sm:$0xff]
        %v2042 = vpack.c.bf16 %v2008, %v2008
        %v2043 = vpack.c.bf16 %v2009, %v2009
        %v2044 = vpack.c.bf16 %v2010, %v2010
        %v2045 = vpack.c.bf16 %v2011, %v2011
        %v2046 = vpack.c.bf16 %v2012, %v2012
        %v2047 = vpack.c.bf16 %v2013, %v2013
        %v2048 = vpack.c.bf16 %v2014, %v2014
        %v2049 = vpack.c.bf16 %v2015, %v2015
        %v2050 = vpack.c.bf16 %v2016, %v2016
        %v2051 = vpack.c.bf16 %v2017, %v2017
        %v2052 = vpack.c.bf16 %v2018, %v2018
        %v2053 = vpack.c.bf16 %v2019, %v2019
        %v2054 = vpack.c.bf16 %v2020, %v2020
        %v2055 = vpack.c.bf16 %v2021, %v2021
        %v2056 = vpack.c.bf16 %v2022, %v2022
        %v2057 = vpack.c.bf16 %v2023, %v2023
        %v2058 = vpack.c.bf16 %v2024, %v2024
        %v2059 = vpack.c.bf16 %v2025, %v2025
        %v2060 = vpack.c.bf16 %v2026, %v2026
        %v2061 = vpack.c.bf16 %v2027, %v2027
        %v2062 = vpack.c.bf16 %v2028, %v2028
        %v2063 = vpack.c.bf16 %v2029, %v2029
        %v2064 = vpack.c.bf16 %v2030, %v2030
        %v2065 = vpack.c.bf16 %v2031, %v2031
        %v2066 = vpack.c.bf16 %v2032, %v2032
        %v2067 = vpack.c.bf16 %v2033, %v2033
        %v2068 = vpack.c.bf16 %v2034, %v2034
        %v2069 = vpack.c.bf16 %v2035, %v2035
        %v2070 = vpack.c.bf16 %v2036, %v2036
        %v2071 = vpack.c.bf16 %v2037, %v2037
        %v2072 = vpack.c.bf16 %v2038, %v2038
        %v2073 = vpack.c.bf16 %v2039, %v2039
        %v2074 = vpack.c.bf16 %v2040, %v2040
        %v2075 = vpack.c.bf16 %v2041, %v2041
        %2110 = vrot.lane.b32.xlu0 %v2042, 64
        %v2111 = vpop.permute.xlu0 %2110
        %2112 = vrot.lane.b32.xlu0 %v2043, 64
        %v2113 = vpop.permute.xlu0 %2112
        %2114 = vrot.lane.b32.xlu0 %v2044, 64
        %v2115 = vpop.permute.xlu0 %2114
        %2116 = vrot.lane.b32.xlu0 %v2045, 64
        %v2117 = vpop.permute.xlu0 %2116
        %2118 = vrot.lane.b32.xlu0 %v2046, 64
        %v2119 = vpop.permute.xlu0 %2118
        %2120 = vrot.lane.b32.xlu0 %v2047, 64
        %v2121 = vpop.permute.xlu0 %2120
        %2122 = vrot.lane.b32.xlu0 %v2048, 64
        %v2123 = vpop.permute.xlu0 %2122
        %2124 = vrot.lane.b32.xlu0 %v2049, 64
        %v2125 = vpop.permute.xlu0 %2124
        %2126 = vrot.lane.b32.xlu0 %v2050, 64
        %v2127 = vpop.permute.xlu0 %2126
        %2128 = vrot.lane.b32.xlu0 %v2051, 64
        %v2129 = vpop.permute.xlu0 %2128
        %2130 = vrot.lane.b32.xlu0 %v2052, 64
        %v2131 = vpop.permute.xlu0 %2130
        %2132 = vrot.lane.b32.xlu0 %v2053, 64
        %v2133 = vpop.permute.xlu0 %2132
        %2134 = vrot.lane.b32.xlu0 %v2054, 64
        %v2135 = vpop.permute.xlu0 %2134
        %2136 = vrot.lane.b32.xlu0 %v2055, 64
        %v2137 = vpop.permute.xlu0 %2136
        %2138 = vrot.lane.b32.xlu0 %v2056, 64
        %v2139 = vpop.permute.xlu0 %2138
        %2140 = vrot.lane.b32.xlu0 %v2057, 64
        %v2141 = vpop.permute.xlu0 %2140
        %2142 = vrot.lane.b32.xlu0 %v2058, 64
        %v2143 = vpop.permute.xlu0 %2142
        %2144 = vrot.lane.b32.xlu0 %v2059, 64
        %v2145 = vpop.permute.xlu0 %2144
        %2146 = vrot.lane.b32.xlu0 %v2060, 64
        %v2147 = vpop.permute.xlu0 %2146
        %2148 = vrot.lane.b32.xlu0 %v2061, 64
        %v2149 = vpop.permute.xlu0 %2148
        %2150 = vrot.lane.b32.xlu0 %v2062, 64
        %v2151 = vpop.permute.xlu0 %2150
        %2152 = vrot.lane.b32.xlu0 %v2063, 64
        %v2153 = vpop.permute.xlu0 %2152
        %2154 = vrot.lane.b32.xlu0 %v2064, 64
        %v2155 = vpop.permute.xlu0 %2154
        %2156 = vrot.lane.b32.xlu0 %v2065, 64
        %v2157 = vpop.permute.xlu0 %2156
        %2158 = vrot.lane.b32.xlu0 %v2066, 64
        %v2159 = vpop.permute.xlu0 %2158
        %2160 = vrot.lane.b32.xlu0 %v2067, 64
        %v2161 = vpop.permute.xlu0 %2160
        %2162 = vrot.lane.b32.xlu0 %v2068, 64
        %v2163 = vpop.permute.xlu0 %2162
        %2164 = vrot.lane.b32.xlu0 %v2069, 64
        %v2165 = vpop.permute.xlu0 %2164
        %2166 = vrot.lane.b32.xlu0 %v2070, 64
        %v2167 = vpop.permute.xlu0 %2166
        %2168 = vrot.lane.b32.xlu0 %v2071, 64
        %v2169 = vpop.permute.xlu0 %2168
        %2170 = vrot.lane.b32.xlu0 %v2072, 64
        %v2171 = vpop.permute.xlu0 %2170
        %2172 = vrot.lane.b32.xlu0 %v2073, 64
        %v2173 = vpop.permute.xlu0 %2172
        %2174 = vrot.lane.b32.xlu0 %v2074, 64
        %v2175 = vpop.permute.xlu0 %2174
        %2176 = vrot.lane.b32.xlu0 %v2075, 64
        %v2177 = vpop.permute.xlu0 %2176
        %2212 = vst.msk [vmem:[#allocation4 + $0x8] sm:$0xf] %vm1531, %v2111
        %2213 = vst.msk [vmem:[#allocation4 + $0x28] sm:$0xf] %vm1531, %v2113
        %2214 = vst.msk [vmem:[#allocation4 + $0x48] sm:$0xf] %vm1531, %v2115
        %2215 = vst.msk [vmem:[#allocation4 + $0x68] sm:$0xf] %vm1531, %v2117
        %2216 = vst.msk [vmem:[#allocation4 + $0x88] sm:$0xf] %vm1531, %v2119
        %2217 = vst.msk [vmem:[#allocation4 + $0xa8] sm:$0xf] %vm1531, %v2121
        %2218 = vst.msk [vmem:[#allocation4 + $0xc8] sm:$0xf] %vm1531, %v2123
        %2219 = vst.msk [vmem:[#allocation4 + $0xe8] sm:$0xf] %vm1531, %v2125
        %2220 = vst.msk [vmem:[#allocation4 + $0x108] sm:$0xf] %vm1531, %v2127
        %2221 = vst.msk [vmem:[#allocation4 + $0x128] sm:$0xf] %vm1531, %v2129
        %2222 = vst.msk [vmem:[#allocation4 + $0x148] sm:$0xf] %vm1531, %v2131
        %2223 = vst.msk [vmem:[#allocation4 + $0x168] sm:$0xf] %vm1531, %v2133
        %2224 = vst.msk [vmem:[#allocation4 + $0x188] sm:$0xf] %vm1531, %v2135
        %2225 = vst.msk [vmem:[#allocation4 + $0x1a8] sm:$0xf] %vm1531, %v2137
        %2226 = vst.msk [vmem:[#allocation4 + $0x1c8] sm:$0xf] %vm1531, %v2139
        %2227 = vst.msk [vmem:[#allocation4 + $0x1e8] sm:$0xf] %vm1531, %v2141
        %2228 = vst.msk [vmem:[#allocation4 + $0x208] sm:$0xf] %vm1531, %v2143
        %2229 = vst.msk [vmem:[#allocation4 + $0x228] sm:$0xf] %vm1531, %v2145
        %2230 = vst.msk [vmem:[#allocation4 + $0x248] sm:$0xf] %vm1531, %v2147
        %2231 = vst.msk [vmem:[#allocation4 + $0x268] sm:$0xf] %vm1531, %v2149
        %2232 = vst.msk [vmem:[#allocation4 + $0x288] sm:$0xf] %vm1531, %v2151
        %2233 = vst.msk [vmem:[#allocation4 + $0x2a8] sm:$0xf] %vm1531, %v2153
        %2234 = vst.msk [vmem:[#allocation4 + $0x2c8] sm:$0xf] %vm1531, %v2155
        %2235 = vst.msk [vmem:[#allocation4 + $0x2e8] sm:$0xf] %vm1531, %v2157
        %2236 = vst.msk [vmem:[#allocation4 + $0x308] sm:$0xf] %vm1531, %v2159
        %2237 = vst.msk [vmem:[#allocation4 + $0x328] sm:$0xf] %vm1531, %v2161
        %2238 = vst.msk [vmem:[#allocation4 + $0x348] sm:$0xf] %vm1531, %v2163
        %2239 = vst.msk [vmem:[#allocation4 + $0x368] sm:$0xf] %vm1531, %v2165
        %2240 = vst.msk [vmem:[#allocation4 + $0x388] sm:$0xf] %vm1531, %v2167
        %2241 = vst.msk [vmem:[#allocation4 + $0x3a8] sm:$0xf] %vm1531, %v2169
        %2242 = vst.msk [vmem:[#allocation4 + $0x3c8] sm:$0xf] %vm1531, %v2171
        %2243 = vst.msk [vmem:[#allocation4 + $0x3e8] sm:$0xf] %vm1531, %v2173
        %2244 = vst.msk [vmem:[#allocation4 + $0x408] sm:$0xf] %vm1531, %v2175
        %2245 = vst.msk [vmem:[#allocation4 + $0x428] sm:$0xf] %vm1531, %v2177
        %v2246 = vld [vmem:[#allocation3 + $0x22] sm:$0xff]
        %v2247 = vld [vmem:[#allocation3 + $0x2a] sm:$0xff]
        %v2248 = vld [vmem:[#allocation3 + $0x32] sm:$0xff]
        %v2249 = vld [vmem:[#allocation3 + $0x3a] sm:$0xff]
        %v2250 = vld [vmem:[#allocation3 + $0x42] sm:$0xff]
        %v2251 = vld [vmem:[#allocation3 + $0x4a] sm:$0xff]
        %v2252 = vld [vmem:[#allocation3 + $0x52] sm:$0xff]
        %v2253 = vld [vmem:[#allocation3 + $0x5a] sm:$0xff]
        %v2254 = vld [vmem:[#allocation3 + $0x62] sm:$0xff]
        %v2255 = vld [vmem:[#allocation3 + $0x6a] sm:$0xff]
        %v2256 = vld [vmem:[#allocation3 + $0x72] sm:$0xff]
        %v2257 = vld [vmem:[#allocation3 + $0x7a] sm:$0xff]
        %v2258 = vld [vmem:[#allocation3 + $0x82] sm:$0xff]
        %v2259 = vld [vmem:[#allocation3 + $0x8a] sm:$0xff]
        %v2260 = vld [vmem:[#allocation3 + $0x92] sm:$0xff]
        %v2261 = vld [vmem:[#allocation3 + $0x9a] sm:$0xff]
        %v2262 = vld [vmem:[#allocation3 + $0xa2] sm:$0xff]
        %v2263 = vld [vmem:[#allocation3 + $0xaa] sm:$0xff]
        %v2264 = vld [vmem:[#allocation3 + $0xb2] sm:$0xff]
        %v2265 = vld [vmem:[#allocation3 + $0xba] sm:$0xff]
        %v2266 = vld [vmem:[#allocation3 + $0xc2] sm:$0xff]
        %v2267 = vld [vmem:[#allocation3 + $0xca] sm:$0xff]
        %v2268 = vld [vmem:[#allocation3 + $0xd2] sm:$0xff]
        %v2269 = vld [vmem:[#allocation3 + $0xda] sm:$0xff]
        %v2270 = vld [vmem:[#allocation3 + $0xe2] sm:$0xff]
        %v2271 = vld [vmem:[#allocation3 + $0xea] sm:$0xff]
        %v2272 = vld [vmem:[#allocation3 + $0xf2] sm:$0xff]
        %v2273 = vld [vmem:[#allocation3 + $0xfa] sm:$0xff]
        %v2274 = vld [vmem:[#allocation3 + $0x102] sm:$0xff]
        %v2275 = vld [vmem:[#allocation3 + $0x10a] sm:$0xff]
        %v2276 = vld [vmem:[#allocation3 + $0x112] sm:$0xff]
        %v2277 = vld [vmem:[#allocation3 + $0x11a] sm:$0xff]
        %v2278 = vld [vmem:[#allocation3 + $0x122] sm:$0xff]
        %v2279 = vld [vmem:[#allocation3 + $0x12a] sm:$0xff]
        %v2280 = vpack.c.bf16 %v2246, %v2246
        %v2281 = vpack.c.bf16 %v2247, %v2247
        %v2282 = vpack.c.bf16 %v2248, %v2248
        %v2283 = vpack.c.bf16 %v2249, %v2249
        %v2284 = vpack.c.bf16 %v2250, %v2250
        %v2285 = vpack.c.bf16 %v2251, %v2251
        %v2286 = vpack.c.bf16 %v2252, %v2252
        %v2287 = vpack.c.bf16 %v2253, %v2253
        %v2288 = vpack.c.bf16 %v2254, %v2254
        %v2289 = vpack.c.bf16 %v2255, %v2255
        %v2290 = vpack.c.bf16 %v2256, %v2256
        %v2291 = vpack.c.bf16 %v2257, %v2257
        %v2292 = vpack.c.bf16 %v2258, %v2258
        %v2293 = vpack.c.bf16 %v2259, %v2259
        %v2294 = vpack.c.bf16 %v2260, %v2260
        %v2295 = vpack.c.bf16 %v2261, %v2261
        %v2296 = vpack.c.bf16 %v2262, %v2262
        %v2297 = vpack.c.bf16 %v2263, %v2263
        %v2298 = vpack.c.bf16 %v2264, %v2264
        %v2299 = vpack.c.bf16 %v2265, %v2265
        %v2300 = vpack.c.bf16 %v2266, %v2266
        %v2301 = vpack.c.bf16 %v2267, %v2267
        %v2302 = vpack.c.bf16 %v2268, %v2268
        %v2303 = vpack.c.bf16 %v2269, %v2269
        %v2304 = vpack.c.bf16 %v2270, %v2270
        %v2305 = vpack.c.bf16 %v2271, %v2271
        %v2306 = vpack.c.bf16 %v2272, %v2272
        %v2307 = vpack.c.bf16 %v2273, %v2273
        %v2308 = vpack.c.bf16 %v2274, %v2274
        %v2309 = vpack.c.bf16 %v2275, %v2275
        %v2310 = vpack.c.bf16 %v2276, %v2276
        %v2311 = vpack.c.bf16 %v2277, %v2277
        %v2312 = vpack.c.bf16 %v2278, %v2278
        %v2313 = vpack.c.bf16 %v2279, %v2279
        %2314 = vst.msk [vmem:[#allocation4 + $0xc] sm:$0xf] %vm1292, %v2280
        %2315 = vst.msk [vmem:[#allocation4 + $0x2c] sm:$0xf] %vm1292, %v2281
        %2316 = vst.msk [vmem:[#allocation4 + $0x4c] sm:$0xf] %vm1292, %v2282
        %2317 = vst.msk [vmem:[#allocation4 + $0x6c] sm:$0xf] %vm1292, %v2283
        %2318 = vst.msk [vmem:[#allocation4 + $0x8c] sm:$0xf] %vm1292, %v2284
        %2319 = vst.msk [vmem:[#allocation4 + $0xac] sm:$0xf] %vm1292, %v2285
        %2320 = vst.msk [vmem:[#allocation4 + $0xcc] sm:$0xf] %vm1292, %v2286
        %2321 = vst.msk [vmem:[#allocation4 + $0xec] sm:$0xf] %vm1292, %v2287
        %2322 = vst.msk [vmem:[#allocation4 + $0x10c] sm:$0xf] %vm1292, %v2288
        %2323 = vst.msk [vmem:[#allocation4 + $0x12c] sm:$0xf] %vm1292, %v2289
        %2324 = vst.msk [vmem:[#allocation4 + $0x14c] sm:$0xf] %vm1292, %v2290
        %2325 = vst.msk [vmem:[#allocation4 + $0x16c] sm:$0xf] %vm1292, %v2291
        %2326 = vst.msk [vmem:[#allocation4 + $0x18c] sm:$0xf] %vm1292, %v2292
        %2327 = vst.msk [vmem:[#allocation4 + $0x1ac] sm:$0xf] %vm1292, %v2293
        %2328 = vst.msk [vmem:[#allocation4 + $0x1cc] sm:$0xf] %vm1292, %v2294
        %2329 = vst.msk [vmem:[#allocation4 + $0x1ec] sm:$0xf] %vm1292, %v2295
        %2330 = vst.msk [vmem:[#allocation4 + $0x20c] sm:$0xf] %vm1292, %v2296
        %2331 = vst.msk [vmem:[#allocation4 + $0x22c] sm:$0xf] %vm1292, %v2297
        %2332 = vst.msk [vmem:[#allocation4 + $0x24c] sm:$0xf] %vm1292, %v2298
        %2333 = vst.msk [vmem:[#allocation4 + $0x26c] sm:$0xf] %vm1292, %v2299
        %2334 = vst.msk [vmem:[#allocation4 + $0x28c] sm:$0xf] %vm1292, %v2300
        %2335 = vst.msk [vmem:[#allocation4 + $0x2ac] sm:$0xf] %vm1292, %v2301
        %2336 = vst.msk [vmem:[#allocation4 + $0x2cc] sm:$0xf] %vm1292, %v2302
        %2337 = vst.msk [vmem:[#allocation4 + $0x2ec] sm:$0xf] %vm1292, %v2303
        %2338 = vst.msk [vmem:[#allocation4 + $0x30c] sm:$0xf] %vm1292, %v2304
        %2339 = vst.msk [vmem:[#allocation4 + $0x32c] sm:$0xf] %vm1292, %v2305
        %2340 = vst.msk [vmem:[#allocation4 + $0x34c] sm:$0xf] %vm1292, %v2306
        %2341 = vst.msk [vmem:[#allocation4 + $0x36c] sm:$0xf] %vm1292, %v2307
        %2342 = vst.msk [vmem:[#allocation4 + $0x38c] sm:$0xf] %vm1292, %v2308
        %2343 = vst.msk [vmem:[#allocation4 + $0x3ac] sm:$0xf] %vm1292, %v2309
        %2344 = vst.msk [vmem:[#allocation4 + $0x3cc] sm:$0xf] %vm1292, %v2310
        %2345 = vst.msk [vmem:[#allocation4 + $0x3ec] sm:$0xf] %vm1292, %v2311
        %2346 = vst.msk [vmem:[#allocation4 + $0x40c] sm:$0xf] %vm1292, %v2312
        %2347 = vst.msk [vmem:[#allocation4 + $0x42c] sm:$0xf] %vm1292, %v2313
        %v2348 = vld [vmem:[#allocation3 + $0x23] sm:$0xff]
        %v2349 = vld [vmem:[#allocation3 + $0x2b] sm:$0xff]
        %v2350 = vld [vmem:[#allocation3 + $0x33] sm:$0xff]
        %v2351 = vld [vmem:[#allocation3 + $0x3b] sm:$0xff]
        %v2352 = vld [vmem:[#allocation3 + $0x43] sm:$0xff]
        %v2353 = vld [vmem:[#allocation3 + $0x4b] sm:$0xff]
        %v2354 = vld [vmem:[#allocation3 + $0x53] sm:$0xff]
        %v2355 = vld [vmem:[#allocation3 + $0x5b] sm:$0xff]
        %v2356 = vld [vmem:[#allocation3 + $0x63] sm:$0xff]
        %v2357 = vld [vmem:[#allocation3 + $0x6b] sm:$0xff]
        %v2358 = vld [vmem:[#allocation3 + $0x73] sm:$0xff]
        %v2359 = vld [vmem:[#allocation3 + $0x7b] sm:$0xff]
        %v2360 = vld [vmem:[#allocation3 + $0x83] sm:$0xff]
        %v2361 = vld [vmem:[#allocation3 + $0x8b] sm:$0xff]
        %v2362 = vld [vmem:[#allocation3 + $0x93] sm:$0xff]
        %v2363 = vld [vmem:[#allocation3 + $0x9b] sm:$0xff]
        %v2364 = vld [vmem:[#allocation3 + $0xa3] sm:$0xff]
        %v2365 = vld [vmem:[#allocation3 + $0xab] sm:$0xff]
        %v2366 = vld [vmem:[#allocation3 + $0xb3] sm:$0xff]
        %v2367 = vld [vmem:[#allocation3 + $0xbb] sm:$0xff]
        %v2368 = vld [vmem:[#allocation3 + $0xc3] sm:$0xff]
        %v2369 = vld [vmem:[#allocation3 + $0xcb] sm:$0xff]
        %v2370 = vld [vmem:[#allocation3 + $0xd3] sm:$0xff]
        %v2371 = vld [vmem:[#allocation3 + $0xdb] sm:$0xff]
        %v2372 = vld [vmem:[#allocation3 + $0xe3] sm:$0xff]
        %v2373 = vld [vmem:[#allocation3 + $0xeb] sm:$0xff]
        %v2374 = vld [vmem:[#allocation3 + $0xf3] sm:$0xff]
        %v2375 = vld [vmem:[#allocation3 + $0xfb] sm:$0xff]
        %v2376 = vld [vmem:[#allocation3 + $0x103] sm:$0xff]
        %v2377 = vld [vmem:[#allocation3 + $0x10b] sm:$0xff]
        %v2378 = vld [vmem:[#allocation3 + $0x113] sm:$0xff]
        %v2379 = vld [vmem:[#allocation3 + $0x11b] sm:$0xff]
        %v2380 = vld [vmem:[#allocation3 + $0x123] sm:$0xff]
        %v2381 = vld [vmem:[#allocation3 + $0x12b] sm:$0xff]
        %v2382 = vpack.c.bf16 %v2348, %v2348
        %v2383 = vpack.c.bf16 %v2349, %v2349
        %v2384 = vpack.c.bf16 %v2350, %v2350
        %v2385 = vpack.c.bf16 %v2351, %v2351
        %v2386 = vpack.c.bf16 %v2352, %v2352
        %v2387 = vpack.c.bf16 %v2353, %v2353
        %v2388 = vpack.c.bf16 %v2354, %v2354
        %v2389 = vpack.c.bf16 %v2355, %v2355
        %v2390 = vpack.c.bf16 %v2356, %v2356
        %v2391 = vpack.c.bf16 %v2357, %v2357
        %v2392 = vpack.c.bf16 %v2358, %v2358
        %v2393 = vpack.c.bf16 %v2359, %v2359
        %v2394 = vpack.c.bf16 %v2360, %v2360
        %v2395 = vpack.c.bf16 %v2361, %v2361
        %v2396 = vpack.c.bf16 %v2362, %v2362
        %v2397 = vpack.c.bf16 %v2363, %v2363
        %v2398 = vpack.c.bf16 %v2364, %v2364
        %v2399 = vpack.c.bf16 %v2365, %v2365
        %v2400 = vpack.c.bf16 %v2366, %v2366
        %v2401 = vpack.c.bf16 %v2367, %v2367
        %v2402 = vpack.c.bf16 %v2368, %v2368
        %v2403 = vpack.c.bf16 %v2369, %v2369
        %v2404 = vpack.c.bf16 %v2370, %v2370
        %v2405 = vpack.c.bf16 %v2371, %v2371
        %v2406 = vpack.c.bf16 %v2372, %v2372
        %v2407 = vpack.c.bf16 %v2373, %v2373
        %v2408 = vpack.c.bf16 %v2374, %v2374
        %v2409 = vpack.c.bf16 %v2375, %v2375
        %v2410 = vpack.c.bf16 %v2376, %v2376
        %v2411 = vpack.c.bf16 %v2377, %v2377
        %v2412 = vpack.c.bf16 %v2378, %v2378
        %v2413 = vpack.c.bf16 %v2379, %v2379
        %v2414 = vpack.c.bf16 %v2380, %v2380
        %v2415 = vpack.c.bf16 %v2381, %v2381
        %2450 = vrot.lane.b32.xlu0 %v2382, 64
        %v2451 = vpop.permute.xlu0 %2450
        %2452 = vrot.lane.b32.xlu0 %v2383, 64
        %v2453 = vpop.permute.xlu0 %2452
        %2454 = vrot.lane.b32.xlu0 %v2384, 64
        %v2455 = vpop.permute.xlu0 %2454
        %2456 = vrot.lane.b32.xlu0 %v2385, 64
        %v2457 = vpop.permute.xlu0 %2456
        %2458 = vrot.lane.b32.xlu0 %v2386, 64
        %v2459 = vpop.permute.xlu0 %2458
        %2460 = vrot.lane.b32.xlu0 %v2387, 64
        %v2461 = vpop.permute.xlu0 %2460
        %2462 = vrot.lane.b32.xlu0 %v2388, 64
        %v2463 = vpop.permute.xlu0 %2462
        %2464 = vrot.lane.b32.xlu0 %v2389, 64
        %v2465 = vpop.permute.xlu0 %2464
        %2466 = vrot.lane.b32.xlu0 %v2390, 64
        %v2467 = vpop.permute.xlu0 %2466
        %2468 = vrot.lane.b32.xlu0 %v2391, 64
        %v2469 = vpop.permute.xlu0 %2468
        %2470 = vrot.lane.b32.xlu0 %v2392, 64
        %v2471 = vpop.permute.xlu0 %2470
        %2472 = vrot.lane.b32.xlu0 %v2393, 64
        %v2473 = vpop.permute.xlu0 %2472
        %2474 = vrot.lane.b32.xlu0 %v2394, 64
        %v2475 = vpop.permute.xlu0 %2474
        %2476 = vrot.lane.b32.xlu0 %v2395, 64
        %v2477 = vpop.permute.xlu0 %2476
        %2478 = vrot.lane.b32.xlu0 %v2396, 64
        %v2479 = vpop.permute.xlu0 %2478
        %2480 = vrot.lane.b32.xlu0 %v2397, 64
        %v2481 = vpop.permute.xlu0 %2480
        %2482 = vrot.lane.b32.xlu0 %v2398, 64
        %v2483 = vpop.permute.xlu0 %2482
        %2484 = vrot.lane.b32.xlu0 %v2399, 64
        %v2485 = vpop.permute.xlu0 %2484
        %2486 = vrot.lane.b32.xlu0 %v2400, 64
        %v2487 = vpop.permute.xlu0 %2486
        %2488 = vrot.lane.b32.xlu0 %v2401, 64
        %v2489 = vpop.permute.xlu0 %2488
        %2490 = vrot.lane.b32.xlu0 %v2402, 64
        %v2491 = vpop.permute.xlu0 %2490
        %2492 = vrot.lane.b32.xlu0 %v2403, 64
        %v2493 = vpop.permute.xlu0 %2492
        %2494 = vrot.lane.b32.xlu0 %v2404, 64
        %v2495 = vpop.permute.xlu0 %2494
        %2496 = vrot.lane.b32.xlu0 %v2405, 64
        %v2497 = vpop.permute.xlu0 %2496
        %2498 = vrot.lane.b32.xlu0 %v2406, 64
        %v2499 = vpop.permute.xlu0 %2498
        %2500 = vrot.lane.b32.xlu0 %v2407, 64
        %v2501 = vpop.permute.xlu0 %2500
        %2502 = vrot.lane.b32.xlu0 %v2408, 64
        %v2503 = vpop.permute.xlu0 %2502
        %2504 = vrot.lane.b32.xlu0 %v2409, 64
        %v2505 = vpop.permute.xlu0 %2504
        %2506 = vrot.lane.b32.xlu0 %v2410, 64
        %v2507 = vpop.permute.xlu0 %2506
        %2508 = vrot.lane.b32.xlu0 %v2411, 64
        %v2509 = vpop.permute.xlu0 %2508
        %2510 = vrot.lane.b32.xlu0 %v2412, 64
        %v2511 = vpop.permute.xlu0 %2510
        %2512 = vrot.lane.b32.xlu0 %v2413, 64
        %v2513 = vpop.permute.xlu0 %2512
        %2514 = vrot.lane.b32.xlu0 %v2414, 64
        %v2515 = vpop.permute.xlu0 %2514
        %2516 = vrot.lane.b32.xlu0 %v2415, 64
        %v2517 = vpop.permute.xlu0 %2516
        %2552 = vst.msk [vmem:[#allocation4 + $0xc] sm:$0xf] %vm1531, %v2451
        %2553 = vst.msk [vmem:[#allocation4 + $0x2c] sm:$0xf] %vm1531, %v2453
        %2554 = vst.msk [vmem:[#allocation4 + $0x4c] sm:$0xf] %vm1531, %v2455
        %2555 = vst.msk [vmem:[#allocation4 + $0x6c] sm:$0xf] %vm1531, %v2457
        %2556 = vst.msk [vmem:[#allocation4 + $0x8c] sm:$0xf] %vm1531, %v2459
        %2557 = vst.msk [vmem:[#allocation4 + $0xac] sm:$0xf] %vm1531, %v2461
        %2558 = vst.msk [vmem:[#allocation4 + $0xcc] sm:$0xf] %vm1531, %v2463
        %2559 = vst.msk [vmem:[#allocation4 + $0xec] sm:$0xf] %vm1531, %v2465
        %2560 = vst.msk [vmem:[#allocation4 + $0x10c] sm:$0xf] %vm1531, %v2467
        %2561 = vst.msk [vmem:[#allocation4 + $0x12c] sm:$0xf] %vm1531, %v2469
        %2562 = vst.msk [vmem:[#allocation4 + $0x14c] sm:$0xf] %vm1531, %v2471
        %2563 = vst.msk [vmem:[#allocation4 + $0x16c] sm:$0xf] %vm1531, %v2473
        %2564 = vst.msk [vmem:[#allocation4 + $0x18c] sm:$0xf] %vm1531, %v2475
        %2565 = vst.msk [vmem:[#allocation4 + $0x1ac] sm:$0xf] %vm1531, %v2477
        %2566 = vst.msk [vmem:[#allocation4 + $0x1cc] sm:$0xf] %vm1531, %v2479
        %2567 = vst.msk [vmem:[#allocation4 + $0x1ec] sm:$0xf] %vm1531, %v2481
        %2568 = vst.msk [vmem:[#allocation4 + $0x20c] sm:$0xf] %vm1531, %v2483
        %2569 = vst.msk [vmem:[#allocation4 + $0x22c] sm:$0xf] %vm1531, %v2485
        %2570 = vst.msk [vmem:[#allocation4 + $0x24c] sm:$0xf] %vm1531, %v2487
        %2571 = vst.msk [vmem:[#allocation4 + $0x26c] sm:$0xf] %vm1531, %v2489
        %2572 = vst.msk [vmem:[#allocation4 + $0x28c] sm:$0xf] %vm1531, %v2491
        %2573 = vst.msk [vmem:[#allocation4 + $0x2ac] sm:$0xf] %vm1531, %v2493
        %2574 = vst.msk [vmem:[#allocation4 + $0x2cc] sm:$0xf] %vm1531, %v2495
        %2575 = vst.msk [vmem:[#allocation4 + $0x2ec] sm:$0xf] %vm1531, %v2497
        %2576 = vst.msk [vmem:[#allocation4 + $0x30c] sm:$0xf] %vm1531, %v2499
        %2577 = vst.msk [vmem:[#allocation4 + $0x32c] sm:$0xf] %vm1531, %v2501
        %2578 = vst.msk [vmem:[#allocation4 + $0x34c] sm:$0xf] %vm1531, %v2503
        %2579 = vst.msk [vmem:[#allocation4 + $0x36c] sm:$0xf] %vm1531, %v2505
        %2580 = vst.msk [vmem:[#allocation4 + $0x38c] sm:$0xf] %vm1531, %v2507
        %2581 = vst.msk [vmem:[#allocation4 + $0x3ac] sm:$0xf] %vm1531, %v2509
        %2582 = vst.msk [vmem:[#allocation4 + $0x3cc] sm:$0xf] %vm1531, %v2511
        %2583 = vst.msk [vmem:[#allocation4 + $0x3ec] sm:$0xf] %vm1531, %v2513
        %2584 = vst.msk [vmem:[#allocation4 + $0x40c] sm:$0xf] %vm1531, %v2515
        %2585 = vst.msk [vmem:[#allocation4 + $0x42c] sm:$0xf] %vm1531, %v2517
        %v2586 = vld [vmem:[#allocation3 + $0x24] sm:$0xff]
        %v2587 = vld [vmem:[#allocation3 + $0x2c] sm:$0xff]
        %v2588 = vld [vmem:[#allocation3 + $0x34] sm:$0xff]
        %v2589 = vld [vmem:[#allocation3 + $0x3c] sm:$0xff]
        %v2590 = vld [vmem:[#allocation3 + $0x44] sm:$0xff]
        %v2591 = vld [vmem:[#allocation3 + $0x4c] sm:$0xff]
        %v2592 = vld [vmem:[#allocation3 + $0x54] sm:$0xff]
        %v2593 = vld [vmem:[#allocation3 + $0x5c] sm:$0xff]
        %v2594 = vld [vmem:[#allocation3 + $0x64] sm:$0xff]
        %v2595 = vld [vmem:[#allocation3 + $0x6c] sm:$0xff]
        %v2596 = vld [vmem:[#allocation3 + $0x74] sm:$0xff]
        %v2597 = vld [vmem:[#allocation3 + $0x7c] sm:$0xff]
        %v2598 = vld [vmem:[#allocation3 + $0x84] sm:$0xff]
        %v2599 = vld [vmem:[#allocation3 + $0x8c] sm:$0xff]
        %v2600 = vld [vmem:[#allocation3 + $0x94] sm:$0xff]
        %v2601 = vld [vmem:[#allocation3 + $0x9c] sm:$0xff]
        %v2602 = vld [vmem:[#allocation3 + $0xa4] sm:$0xff]
        %v2603 = vld [vmem:[#allocation3 + $0xac] sm:$0xff]
        %v2604 = vld [vmem:[#allocation3 + $0xb4] sm:$0xff]
        %v2605 = vld [vmem:[#allocation3 + $0xbc] sm:$0xff]
        %v2606 = vld [vmem:[#allocation3 + $0xc4] sm:$0xff]
        %v2607 = vld [vmem:[#allocation3 + $0xcc] sm:$0xff]
        %v2608 = vld [vmem:[#allocation3 + $0xd4] sm:$0xff]
        %v2609 = vld [vmem:[#allocation3 + $0xdc] sm:$0xff]
        %v2610 = vld [vmem:[#allocation3 + $0xe4] sm:$0xff]
        %v2611 = vld [vmem:[#allocation3 + $0xec] sm:$0xff]
        %v2612 = vld [vmem:[#allocation3 + $0xf4] sm:$0xff]
        %v2613 = vld [vmem:[#allocation3 + $0xfc] sm:$0xff]
        %v2614 = vld [vmem:[#allocation3 + $0x104] sm:$0xff]
        %v2615 = vld [vmem:[#allocation3 + $0x10c] sm:$0xff]
        %v2616 = vld [vmem:[#allocation3 + $0x114] sm:$0xff]
        %v2617 = vld [vmem:[#allocation3 + $0x11c] sm:$0xff]
        %v2618 = vld [vmem:[#allocation3 + $0x124] sm:$0xff]
        %v2619 = vld [vmem:[#allocation3 + $0x12c] sm:$0xff]
        %v2620 = vpack.c.bf16 %v2586, %v2586
        %v2621 = vpack.c.bf16 %v2587, %v2587
        %v2622 = vpack.c.bf16 %v2588, %v2588
        %v2623 = vpack.c.bf16 %v2589, %v2589
        %v2624 = vpack.c.bf16 %v2590, %v2590
        %v2625 = vpack.c.bf16 %v2591, %v2591
        %v2626 = vpack.c.bf16 %v2592, %v2592
        %v2627 = vpack.c.bf16 %v2593, %v2593
        %v2628 = vpack.c.bf16 %v2594, %v2594
        %v2629 = vpack.c.bf16 %v2595, %v2595
        %v2630 = vpack.c.bf16 %v2596, %v2596
        %v2631 = vpack.c.bf16 %v2597, %v2597
        %v2632 = vpack.c.bf16 %v2598, %v2598
        %v2633 = vpack.c.bf16 %v2599, %v2599
        %v2634 = vpack.c.bf16 %v2600, %v2600
        %v2635 = vpack.c.bf16 %v2601, %v2601
        %v2636 = vpack.c.bf16 %v2602, %v2602
        %v2637 = vpack.c.bf16 %v2603, %v2603
        %v2638 = vpack.c.bf16 %v2604, %v2604
        %v2639 = vpack.c.bf16 %v2605, %v2605
        %v2640 = vpack.c.bf16 %v2606, %v2606
        %v2641 = vpack.c.bf16 %v2607, %v2607
        %v2642 = vpack.c.bf16 %v2608, %v2608
        %v2643 = vpack.c.bf16 %v2609, %v2609
        %v2644 = vpack.c.bf16 %v2610, %v2610
        %v2645 = vpack.c.bf16 %v2611, %v2611
        %v2646 = vpack.c.bf16 %v2612, %v2612
        %v2647 = vpack.c.bf16 %v2613, %v2613
        %v2648 = vpack.c.bf16 %v2614, %v2614
        %v2649 = vpack.c.bf16 %v2615, %v2615
        %v2650 = vpack.c.bf16 %v2616, %v2616
        %v2651 = vpack.c.bf16 %v2617, %v2617
        %v2652 = vpack.c.bf16 %v2618, %v2618
        %v2653 = vpack.c.bf16 %v2619, %v2619
        %2654 = vst.msk [vmem:[#allocation4 + $0x10] sm:$0xf] %vm1292, %v2620
        %2655 = vst.msk [vmem:[#allocation4 + $0x30] sm:$0xf] %vm1292, %v2621
        %2656 = vst.msk [vmem:[#allocation4 + $0x50] sm:$0xf] %vm1292, %v2622
        %2657 = vst.msk [vmem:[#allocation4 + $0x70] sm:$0xf] %vm1292, %v2623
        %2658 = vst.msk [vmem:[#allocation4 + $0x90] sm:$0xf] %vm1292, %v2624
        %2659 = vst.msk [vmem:[#allocation4 + $0xb0] sm:$0xf] %vm1292, %v2625
        %2660 = vst.msk [vmem:[#allocation4 + $0xd0] sm:$0xf] %vm1292, %v2626
        %2661 = vst.msk [vmem:[#allocation4 + $0xf0] sm:$0xf] %vm1292, %v2627
        %2662 = vst.msk [vmem:[#allocation4 + $0x110] sm:$0xf] %vm1292, %v2628
        %2663 = vst.msk [vmem:[#allocation4 + $0x130] sm:$0xf] %vm1292, %v2629
        %2664 = vst.msk [vmem:[#allocation4 + $0x150] sm:$0xf] %vm1292, %v2630
        %2665 = vst.msk [vmem:[#allocation4 + $0x170] sm:$0xf] %vm1292, %v2631
        %2666 = vst.msk [vmem:[#allocation4 + $0x190] sm:$0xf] %vm1292, %v2632
        %2667 = vst.msk [vmem:[#allocation4 + $0x1b0] sm:$0xf] %vm1292, %v2633
        %2668 = vst.msk [vmem:[#allocation4 + $0x1d0] sm:$0xf] %vm1292, %v2634
        %2669 = vst.msk [vmem:[#allocation4 + $0x1f0] sm:$0xf] %vm1292, %v2635
        %2670 = vst.msk [vmem:[#allocation4 + $0x210] sm:$0xf] %vm1292, %v2636
        %2671 = vst.msk [vmem:[#allocation4 + $0x230] sm:$0xf] %vm1292, %v2637
        %2672 = vst.msk [vmem:[#allocation4 + $0x250] sm:$0xf] %vm1292, %v2638
        %2673 = vst.msk [vmem:[#allocation4 + $0x270] sm:$0xf] %vm1292, %v2639
        %2674 = vst.msk [vmem:[#allocation4 + $0x290] sm:$0xf] %vm1292, %v2640
        %2675 = vst.msk [vmem:[#allocation4 + $0x2b0] sm:$0xf] %vm1292, %v2641
        %2676 = vst.msk [vmem:[#allocation4 + $0x2d0] sm:$0xf] %vm1292, %v2642
        %2677 = vst.msk [vmem:[#allocation4 + $0x2f0] sm:$0xf] %vm1292, %v2643
        %2678 = vst.msk [vmem:[#allocation4 + $0x310] sm:$0xf] %vm1292, %v2644
        %2679 = vst.msk [vmem:[#allocation4 + $0x330] sm:$0xf] %vm1292, %v2645
        %2680 = vst.msk [vmem:[#allocation4 + $0x350] sm:$0xf] %vm1292, %v2646
        %2681 = vst.msk [vmem:[#allocation4 + $0x370] sm:$0xf] %vm1292, %v2647
        %2682 = vst.msk [vmem:[#allocation4 + $0x390] sm:$0xf] %vm1292, %v2648
        %2683 = vst.msk [vmem:[#allocation4 + $0x3b0] sm:$0xf] %vm1292, %v2649
        %2684 = vst.msk [vmem:[#allocation4 + $0x3d0] sm:$0xf] %vm1292, %v2650
        %2685 = vst.msk [vmem:[#allocation4 + $0x3f0] sm:$0xf] %vm1292, %v2651
        %2686 = vst.msk [vmem:[#allocation4 + $0x410] sm:$0xf] %vm1292, %v2652
        %2687 = vst.msk [vmem:[#allocation4 + $0x430] sm:$0xf] %vm1292, %v2653
        %v2688 = vld [vmem:[#allocation3 + $0x33] sm:$0xff]
        %v2689 = vld [vmem:[#allocation3 + $0x3b] sm:$0xff]
        %v2690 = vld [vmem:[#allocation3 + $0x43] sm:$0xff]
        %v2691 = vld [vmem:[#allocation3 + $0x4b] sm:$0xff]
        %v2692 = vld [vmem:[#allocation3 + $0x53] sm:$0xff]
        %v2693 = vld [vmem:[#allocation3 + $0x5b] sm:$0xff]
        %v2694 = vld [vmem:[#allocation3 + $0x63] sm:$0xff]
        %v2695 = vld [vmem:[#allocation3 + $0x6b] sm:$0xff]
        %v2696 = vld [vmem:[#allocation3 + $0x73] sm:$0xff]
        %v2697 = vld [vmem:[#allocation3 + $0x7b] sm:$0xff]
        %v2698 = vld [vmem:[#allocation3 + $0x83] sm:$0xff]
        %v2699 = vld [vmem:[#allocation3 + $0x8b] sm:$0xff]
        %v2700 = vld [vmem:[#allocation3 + $0x93] sm:$0xff]
        %v2701 = vld [vmem:[#allocation3 + $0x9b] sm:$0xff]
        %v2702 = vld [vmem:[#allocation3 + $0xa3] sm:$0xff]
        %v2703 = vld [vmem:[#allocation3 + $0xab] sm:$0xff]
        %v2704 = vld [vmem:[#allocation3 + $0xb3] sm:$0xff]
        %v2705 = vld [vmem:[#allocation3 + $0xbb] sm:$0xff]
        %v2706 = vld [vmem:[#allocation3 + $0xc3] sm:$0xff]
        %v2707 = vld [vmem:[#allocation3 + $0xcb] sm:$0xff]
        %v2708 = vld [vmem:[#allocation3 + $0xd3] sm:$0xff]
        %v2709 = vld [vmem:[#allocation3 + $0xdb] sm:$0xff]
        %v2710 = vld [vmem:[#allocation3 + $0xe3] sm:$0xff]
        %v2711 = vld [vmem:[#allocation3 + $0xeb] sm:$0xff]
        %v2712 = vld [vmem:[#allocation3 + $0xf3] sm:$0xff]
        %v2713 = vld [vmem:[#allocation3 + $0xfb] sm:$0xff]
        %v2714 = vld [vmem:[#allocation3 + $0x103] sm:$0xff]
        %v2715 = vld [vmem:[#allocation3 + $0x10b] sm:$0xff]
        %v2716 = vld [vmem:[#allocation3 + $0x113] sm:$0xff]
        %v2717 = vld [vmem:[#allocation3 + $0x11b] sm:$0xff]
        %v2718 = vld [vmem:[#allocation3 + $0x123] sm:$0xff]
        %v2719 = vld [vmem:[#allocation3 + $0x12b] sm:$0xff]
        %v2720 = vld [vmem:[#allocation3 + $0x133] sm:$0xff]
        %v2721 = vld [vmem:[#allocation3 + $0x13b] sm:$0xff]
        %v2722 = vpack.c.bf16 %v2688, %v2688
        %v2723 = vpack.c.bf16 %v2689, %v2689
        %v2724 = vpack.c.bf16 %v2690, %v2690
        %v2725 = vpack.c.bf16 %v2691, %v2691
        %v2726 = vpack.c.bf16 %v2692, %v2692
        %v2727 = vpack.c.bf16 %v2693, %v2693
        %v2728 = vpack.c.bf16 %v2694, %v2694
        %v2729 = vpack.c.bf16 %v2695, %v2695
        %v2730 = vpack.c.bf16 %v2696, %v2696
        %v2731 = vpack.c.bf16 %v2697, %v2697
        %v2732 = vpack.c.bf16 %v2698, %v2698
        %v2733 = vpack.c.bf16 %v2699, %v2699
        %v2734 = vpack.c.bf16 %v2700, %v2700
        %v2735 = vpack.c.bf16 %v2701, %v2701
        %v2736 = vpack.c.bf16 %v2702, %v2702
        %v2737 = vpack.c.bf16 %v2703, %v2703
        %v2738 = vpack.c.bf16 %v2704, %v2704
        %v2739 = vpack.c.bf16 %v2705, %v2705
        %v2740 = vpack.c.bf16 %v2706, %v2706
        %v2741 = vpack.c.bf16 %v2707, %v2707
        %v2742 = vpack.c.bf16 %v2708, %v2708
        %v2743 = vpack.c.bf16 %v2709, %v2709
        %v2744 = vpack.c.bf16 %v2710, %v2710
        %v2745 = vpack.c.bf16 %v2711, %v2711
        %v2746 = vpack.c.bf16 %v2712, %v2712
        %v2747 = vpack.c.bf16 %v2713, %v2713
        %v2748 = vpack.c.bf16 %v2714, %v2714
        %v2749 = vpack.c.bf16 %v2715, %v2715
        %v2750 = vpack.c.bf16 %v2716, %v2716
        %v2751 = vpack.c.bf16 %v2717, %v2717
        %v2752 = vpack.c.bf16 %v2718, %v2718
        %v2753 = vpack.c.bf16 %v2719, %v2719
        %v2754 = vpack.c.bf16 %v2720, %v2720
        %v2755 = vpack.c.bf16 %v2721, %v2721
        %2790 = vrot.lane.b32.xlu0 %v2722, 64
        %v2791 = vpop.permute.xlu0 %2790
        %2792 = vrot.lane.b32.xlu0 %v2723, 64
        %v2793 = vpop.permute.xlu0 %2792
        %2794 = vrot.lane.b32.xlu0 %v2724, 64
        %v2795 = vpop.permute.xlu0 %2794
        %2796 = vrot.lane.b32.xlu0 %v2725, 64
        %v2797 = vpop.permute.xlu0 %2796
        %2798 = vrot.lane.b32.xlu0 %v2726, 64
        %v2799 = vpop.permute.xlu0 %2798
        %2800 = vrot.lane.b32.xlu0 %v2727, 64
        %v2801 = vpop.permute.xlu0 %2800
        %2802 = vrot.lane.b32.xlu0 %v2728, 64
        %v2803 = vpop.permute.xlu0 %2802
        %2804 = vrot.lane.b32.xlu0 %v2729, 64
        %v2805 = vpop.permute.xlu0 %2804
        %2806 = vrot.lane.b32.xlu0 %v2730, 64
        %v2807 = vpop.permute.xlu0 %2806
        %2808 = vrot.lane.b32.xlu0 %v2731, 64
        %v2809 = vpop.permute.xlu0 %2808
        %2810 = vrot.lane.b32.xlu0 %v2732, 64
        %v2811 = vpop.permute.xlu0 %2810
        %2812 = vrot.lane.b32.xlu0 %v2733, 64
        %v2813 = vpop.permute.xlu0 %2812
        %2814 = vrot.lane.b32.xlu0 %v2734, 64
        %v2815 = vpop.permute.xlu0 %2814
        %2816 = vrot.lane.b32.xlu0 %v2735, 64
        %v2817 = vpop.permute.xlu0 %2816
        %2818 = vrot.lane.b32.xlu0 %v2736, 64
        %v2819 = vpop.permute.xlu0 %2818
        %2820 = vrot.lane.b32.xlu0 %v2737, 64
        %v2821 = vpop.permute.xlu0 %2820
        %2822 = vrot.lane.b32.xlu0 %v2738, 64
        %v2823 = vpop.permute.xlu0 %2822
        %2824 = vrot.lane.b32.xlu0 %v2739, 64
        %v2825 = vpop.permute.xlu0 %2824
        %2826 = vrot.lane.b32.xlu0 %v2740, 64
        %v2827 = vpop.permute.xlu0 %2826
        %2828 = vrot.lane.b32.xlu0 %v2741, 64
        %v2829 = vpop.permute.xlu0 %2828
        %2830 = vrot.lane.b32.xlu0 %v2742, 64
        %v2831 = vpop.permute.xlu0 %2830
        %2832 = vrot.lane.b32.xlu0 %v2743, 64
        %v2833 = vpop.permute.xlu0 %2832
        %2834 = vrot.lane.b32.xlu0 %v2744, 64
        %v2835 = vpop.permute.xlu0 %2834
        %2836 = vrot.lane.b32.xlu0 %v2745, 64
        %v2837 = vpop.permute.xlu0 %2836
        %2838 = vrot.lane.b32.xlu0 %v2746, 64
        %v2839 = vpop.permute.xlu0 %2838
        %2840 = vrot.lane.b32.xlu0 %v2747, 64
        %v2841 = vpop.permute.xlu0 %2840
        %2842 = vrot.lane.b32.xlu0 %v2748, 64
        %v2843 = vpop.permute.xlu0 %2842
        %2844 = vrot.lane.b32.xlu0 %v2749, 64
        %v2845 = vpop.permute.xlu0 %2844
        %2846 = vrot.lane.b32.xlu0 %v2750, 64
        %v2847 = vpop.permute.xlu0 %2846
        %2848 = vrot.lane.b32.xlu0 %v2751, 64
        %v2849 = vpop.permute.xlu0 %2848
        %2850 = vrot.lane.b32.xlu0 %v2752, 64
        %v2851 = vpop.permute.xlu0 %2850
        %2852 = vrot.lane.b32.xlu0 %v2753, 64
        %v2853 = vpop.permute.xlu0 %2852
        %2854 = vrot.lane.b32.xlu0 %v2754, 64
        %v2855 = vpop.permute.xlu0 %2854
        %2856 = vrot.lane.b32.xlu0 %v2755, 64
        %v2857 = vpop.permute.xlu0 %2856
        %2892 = vst.msk [vmem:[#allocation4 + $0x10] sm:$0xf] %vm1531, %v2791
        %2893 = vst.msk [vmem:[#allocation4 + $0x30] sm:$0xf] %vm1531, %v2793
        %2894 = vst.msk [vmem:[#allocation4 + $0x50] sm:$0xf] %vm1531, %v2795
        %2895 = vst.msk [vmem:[#allocation4 + $0x70] sm:$0xf] %vm1531, %v2797
        %2896 = vst.msk [vmem:[#allocation4 + $0x90] sm:$0xf] %vm1531, %v2799
        %2897 = vst.msk [vmem:[#allocation4 + $0xb0] sm:$0xf] %vm1531, %v2801
        %2898 = vst.msk [vmem:[#allocation4 + $0xd0] sm:$0xf] %vm1531, %v2803
        %2899 = vst.msk [vmem:[#allocation4 + $0xf0] sm:$0xf] %vm1531, %v2805
        %2900 = vst.msk [vmem:[#allocation4 + $0x110] sm:$0xf] %vm1531, %v2807
        %2901 = vst.msk [vmem:[#allocation4 + $0x130] sm:$0xf] %vm1531, %v2809
        %2902 = vst.msk [vmem:[#allocation4 + $0x150] sm:$0xf] %vm1531, %v2811
        %2903 = vst.msk [vmem:[#allocation4 + $0x170] sm:$0xf] %vm1531, %v2813
        %2904 = vst.msk [vmem:[#allocation4 + $0x190] sm:$0xf] %vm1531, %v2815
        %2905 = vst.msk [vmem:[#allocation4 + $0x1b0] sm:$0xf] %vm1531, %v2817
        %2906 = vst.msk [vmem:[#allocation4 + $0x1d0] sm:$0xf] %vm1531, %v2819
        %2907 = vst.msk [vmem:[#allocation4 + $0x1f0] sm:$0xf] %vm1531, %v2821
        %2908 = vst.msk [vmem:[#allocation4 + $0x210] sm:$0xf] %vm1531, %v2823
        %2909 = vst.msk [vmem:[#allocation4 + $0x230] sm:$0xf] %vm1531, %v2825
        %2910 = vst.msk [vmem:[#allocation4 + $0x250] sm:$0xf] %vm1531, %v2827
        %2911 = vst.msk [vmem:[#allocation4 + $0x270] sm:$0xf] %vm1531, %v2829
        %2912 = vst.msk [vmem:[#allocation4 + $0x290] sm:$0xf] %vm1531, %v2831
        %2913 = vst.msk [vmem:[#allocation4 + $0x2b0] sm:$0xf] %vm1531, %v2833
        %2914 = vst.msk [vmem:[#allocation4 + $0x2d0] sm:$0xf] %vm1531, %v2835
        %2915 = vst.msk [vmem:[#allocation4 + $0x2f0] sm:$0xf] %vm1531, %v2837
        %2916 = vst.msk [vmem:[#allocation4 + $0x310] sm:$0xf] %vm1531, %v2839
        %2917 = vst.msk [vmem:[#allocation4 + $0x330] sm:$0xf] %vm1531, %v2841
        %2918 = vst.msk [vmem:[#allocation4 + $0x350] sm:$0xf] %vm1531, %v2843
        %2919 = vst.msk [vmem:[#allocation4 + $0x370] sm:$0xf] %vm1531, %v2845
        %2920 = vst.msk [vmem:[#allocation4 + $0x390] sm:$0xf] %vm1531, %v2847
        %2921 = vst.msk [vmem:[#allocation4 + $0x3b0] sm:$0xf] %vm1531, %v2849
        %2922 = vst.msk [vmem:[#allocation4 + $0x3d0] sm:$0xf] %vm1531, %v2851
        %2923 = vst.msk [vmem:[#allocation4 + $0x3f0] sm:$0xf] %vm1531, %v2853
        %2924 = vst.msk [vmem:[#allocation4 + $0x410] sm:$0xf] %vm1531, %v2855
        %2925 = vst.msk [vmem:[#allocation4 + $0x430] sm:$0xf] %vm1531, %v2857
        %v2926 = vld [vmem:[#allocation3 + $0x34] sm:$0xff]
        %v2927 = vld [vmem:[#allocation3 + $0x3c] sm:$0xff]
        %v2928 = vld [vmem:[#allocation3 + $0x44] sm:$0xff]
        %v2929 = vld [vmem:[#allocation3 + $0x4c] sm:$0xff]
        %v2930 = vld [vmem:[#allocation3 + $0x54] sm:$0xff]
        %v2931 = vld [vmem:[#allocation3 + $0x5c] sm:$0xff]
        %v2932 = vld [vmem:[#allocation3 + $0x64] sm:$0xff]
        %v2933 = vld [vmem:[#allocation3 + $0x6c] sm:$0xff]
        %v2934 = vld [vmem:[#allocation3 + $0x74] sm:$0xff]
        %v2935 = vld [vmem:[#allocation3 + $0x7c] sm:$0xff]
        %v2936 = vld [vmem:[#allocation3 + $0x84] sm:$0xff]
        %v2937 = vld [vmem:[#allocation3 + $0x8c] sm:$0xff]
        %v2938 = vld [vmem:[#allocation3 + $0x94] sm:$0xff]
        %v2939 = vld [vmem:[#allocation3 + $0x9c] sm:$0xff]
        %v2940 = vld [vmem:[#allocation3 + $0xa4] sm:$0xff]
        %v2941 = vld [vmem:[#allocation3 + $0xac] sm:$0xff]
        %v2942 = vld [vmem:[#allocation3 + $0xb4] sm:$0xff]
        %v2943 = vld [vmem:[#allocation3 + $0xbc] sm:$0xff]
        %v2944 = vld [vmem:[#allocation3 + $0xc4] sm:$0xff]
        %v2945 = vld [vmem:[#allocation3 + $0xcc] sm:$0xff]
        %v2946 = vld [vmem:[#allocation3 + $0xd4] sm:$0xff]
        %v2947 = vld [vmem:[#allocation3 + $0xdc] sm:$0xff]
        %v2948 = vld [vmem:[#allocation3 + $0xe4] sm:$0xff]
        %v2949 = vld [vmem:[#allocation3 + $0xec] sm:$0xff]
        %v2950 = vld [vmem:[#allocation3 + $0xf4] sm:$0xff]
        %v2951 = vld [vmem:[#allocation3 + $0xfc] sm:$0xff]
        %v2952 = vld [vmem:[#allocation3 + $0x104] sm:$0xff]
        %v2953 = vld [vmem:[#allocation3 + $0x10c] sm:$0xff]
        %v2954 = vld [vmem:[#allocation3 + $0x114] sm:$0xff]
        %v2955 = vld [vmem:[#allocation3 + $0x11c] sm:$0xff]
        %v2956 = vld [vmem:[#allocation3 + $0x124] sm:$0xff]
        %v2957 = vld [vmem:[#allocation3 + $0x12c] sm:$0xff]
        %v2958 = vld [vmem:[#allocation3 + $0x134] sm:$0xff]
        %v2959 = vld [vmem:[#allocation3 + $0x13c] sm:$0xff]
        %v2960 = vpack.c.bf16 %v2926, %v2926
        %v2961 = vpack.c.bf16 %v2927, %v2927
        %v2962 = vpack.c.bf16 %v2928, %v2928
        %v2963 = vpack.c.bf16 %v2929, %v2929
        %v2964 = vpack.c.bf16 %v2930, %v2930
        %v2965 = vpack.c.bf16 %v2931, %v2931
        %v2966 = vpack.c.bf16 %v2932, %v2932
        %v2967 = vpack.c.bf16 %v2933, %v2933
        %v2968 = vpack.c.bf16 %v2934, %v2934
        %v2969 = vpack.c.bf16 %v2935, %v2935
        %v2970 = vpack.c.bf16 %v2936, %v2936
        %v2971 = vpack.c.bf16 %v2937, %v2937
        %v2972 = vpack.c.bf16 %v2938, %v2938
        %v2973 = vpack.c.bf16 %v2939, %v2939
        %v2974 = vpack.c.bf16 %v2940, %v2940
        %v2975 = vpack.c.bf16 %v2941, %v2941
        %v2976 = vpack.c.bf16 %v2942, %v2942
        %v2977 = vpack.c.bf16 %v2943, %v2943
        %v2978 = vpack.c.bf16 %v2944, %v2944
        %v2979 = vpack.c.bf16 %v2945, %v2945
        %v2980 = vpack.c.bf16 %v2946, %v2946
        %v2981 = vpack.c.bf16 %v2947, %v2947
        %v2982 = vpack.c.bf16 %v2948, %v2948
        %v2983 = vpack.c.bf16 %v2949, %v2949
        %v2984 = vpack.c.bf16 %v2950, %v2950
        %v2985 = vpack.c.bf16 %v2951, %v2951
        %v2986 = vpack.c.bf16 %v2952, %v2952
        %v2987 = vpack.c.bf16 %v2953, %v2953
        %v2988 = vpack.c.bf16 %v2954, %v2954
        %v2989 = vpack.c.bf16 %v2955, %v2955
        %v2990 = vpack.c.bf16 %v2956, %v2956
        %v2991 = vpack.c.bf16 %v2957, %v2957
        %v2992 = vpack.c.bf16 %v2958, %v2958
        %v2993 = vpack.c.bf16 %v2959, %v2959
        %2994 = vst.msk [vmem:[#allocation4 + $0x14] sm:$0xf] %vm1292, %v2960
        %2995 = vst.msk [vmem:[#allocation4 + $0x34] sm:$0xf] %vm1292, %v2961
        %2996 = vst.msk [vmem:[#allocation4 + $0x54] sm:$0xf] %vm1292, %v2962
        %2997 = vst.msk [vmem:[#allocation4 + $0x74] sm:$0xf] %vm1292, %v2963
        %2998 = vst.msk [vmem:[#allocation4 + $0x94] sm:$0xf] %vm1292, %v2964
        %2999 = vst.msk [vmem:[#allocation4 + $0xb4] sm:$0xf] %vm1292, %v2965
        %3000 = vst.msk [vmem:[#allocation4 + $0xd4] sm:$0xf] %vm1292, %v2966
        %3001 = vst.msk [vmem:[#allocation4 + $0xf4] sm:$0xf] %vm1292, %v2967
        %3002 = vst.msk [vmem:[#allocation4 + $0x114] sm:$0xf] %vm1292, %v2968
        %3003 = vst.msk [vmem:[#allocation4 + $0x134] sm:$0xf] %vm1292, %v2969
        %3004 = vst.msk [vmem:[#allocation4 + $0x154] sm:$0xf] %vm1292, %v2970
        %3005 = vst.msk [vmem:[#allocation4 + $0x174] sm:$0xf] %vm1292, %v2971
        %3006 = vst.msk [vmem:[#allocation4 + $0x194] sm:$0xf] %vm1292, %v2972
        %3007 = vst.msk [vmem:[#allocation4 + $0x1b4] sm:$0xf] %vm1292, %v2973
        %3008 = vst.msk [vmem:[#allocation4 + $0x1d4] sm:$0xf] %vm1292, %v2974
        %3009 = vst.msk [vmem:[#allocation4 + $0x1f4] sm:$0xf] %vm1292, %v2975
        %3010 = vst.msk [vmem:[#allocation4 + $0x214] sm:$0xf] %vm1292, %v2976
        %3011 = vst.msk [vmem:[#allocation4 + $0x234] sm:$0xf] %vm1292, %v2977
        %3012 = vst.msk [vmem:[#allocation4 + $0x254] sm:$0xf] %vm1292, %v2978
        %3013 = vst.msk [vmem:[#allocation4 + $0x274] sm:$0xf] %vm1292, %v2979
        %3014 = vst.msk [vmem:[#allocation4 + $0x294] sm:$0xf] %vm1292, %v2980
        %3015 = vst.msk [vmem:[#allocation4 + $0x2b4] sm:$0xf] %vm1292, %v2981
        %3016 = vst.msk [vmem:[#allocation4 + $0x2d4] sm:$0xf] %vm1292, %v2982
        %3017 = vst.msk [vmem:[#allocation4 + $0x2f4] sm:$0xf] %vm1292, %v2983
        %3018 = vst.msk [vmem:[#allocation4 + $0x314] sm:$0xf] %vm1292, %v2984
        %3019 = vst.msk [vmem:[#allocation4 + $0x334] sm:$0xf] %vm1292, %v2985
        %3020 = vst.msk [vmem:[#allocation4 + $0x354] sm:$0xf] %vm1292, %v2986
        %3021 = vst.msk [vmem:[#allocation4 + $0x374] sm:$0xf] %vm1292, %v2987
        %3022 = vst.msk [vmem:[#allocation4 + $0x394] sm:$0xf] %vm1292, %v2988
        %3023 = vst.msk [vmem:[#allocation4 + $0x3b4] sm:$0xf] %vm1292, %v2989
        %3024 = vst.msk [vmem:[#allocation4 + $0x3d4] sm:$0xf] %vm1292, %v2990
        %3025 = vst.msk [vmem:[#allocation4 + $0x3f4] sm:$0xf] %vm1292, %v2991
        %3026 = vst.msk [vmem:[#allocation4 + $0x414] sm:$0xf] %vm1292, %v2992
        %3027 = vst.msk [vmem:[#allocation4 + $0x434] sm:$0xf] %vm1292, %v2993
        %v3028 = vld [vmem:[#allocation3 + $0x35] sm:$0xff]
        %v3029 = vld [vmem:[#allocation3 + $0x3d] sm:$0xff]
        %v3030 = vld [vmem:[#allocation3 + $0x45] sm:$0xff]
        %v3031 = vld [vmem:[#allocation3 + $0x4d] sm:$0xff]
        %v3032 = vld [vmem:[#allocation3 + $0x55] sm:$0xff]
        %v3033 = vld [vmem:[#allocation3 + $0x5d] sm:$0xff]
        %v3034 = vld [vmem:[#allocation3 + $0x65] sm:$0xff]
        %v3035 = vld [vmem:[#allocation3 + $0x6d] sm:$0xff]
        %v3036 = vld [vmem:[#allocation3 + $0x75] sm:$0xff]
        %v3037 = vld [vmem:[#allocation3 + $0x7d] sm:$0xff]
        %v3038 = vld [vmem:[#allocation3 + $0x85] sm:$0xff]
        %v3039 = vld [vmem:[#allocation3 + $0x8d] sm:$0xff]
        %v3040 = vld [vmem:[#allocation3 + $0x95] sm:$0xff]
        %v3041 = vld [vmem:[#allocation3 + $0x9d] sm:$0xff]
        %v3042 = vld [vmem:[#allocation3 + $0xa5] sm:$0xff]
        %v3043 = vld [vmem:[#allocation3 + $0xad] sm:$0xff]
        %v3044 = vld [vmem:[#allocation3 + $0xb5] sm:$0xff]
        %v3045 = vld [vmem:[#allocation3 + $0xbd] sm:$0xff]
        %v3046 = vld [vmem:[#allocation3 + $0xc5] sm:$0xff]
        %v3047 = vld [vmem:[#allocation3 + $0xcd] sm:$0xff]
        %v3048 = vld [vmem:[#allocation3 + $0xd5] sm:$0xff]
        %v3049 = vld [vmem:[#allocation3 + $0xdd] sm:$0xff]
        %v3050 = vld [vmem:[#allocation3 + $0xe5] sm:$0xff]
        %v3051 = vld [vmem:[#allocation3 + $0xed] sm:$0xff]
        %v3052 = vld [vmem:[#allocation3 + $0xf5] sm:$0xff]
        %v3053 = vld [vmem:[#allocation3 + $0xfd] sm:$0xff]
        %v3054 = vld [vmem:[#allocation3 + $0x105] sm:$0xff]
        %v3055 = vld [vmem:[#allocation3 + $0x10d] sm:$0xff]
        %v3056 = vld [vmem:[#allocation3 + $0x115] sm:$0xff]
        %v3057 = vld [vmem:[#allocation3 + $0x11d] sm:$0xff]
        %v3058 = vld [vmem:[#allocation3 + $0x125] sm:$0xff]
        %v3059 = vld [vmem:[#allocation3 + $0x12d] sm:$0xff]
        %v3060 = vld [vmem:[#allocation3 + $0x135] sm:$0xff]
        %v3061 = vld [vmem:[#allocation3 + $0x13d] sm:$0xff]
        %v3062 = vpack.c.bf16 %v3028, %v3028
        %v3063 = vpack.c.bf16 %v3029, %v3029
        %v3064 = vpack.c.bf16 %v3030, %v3030
        %v3065 = vpack.c.bf16 %v3031, %v3031
        %v3066 = vpack.c.bf16 %v3032, %v3032
        %v3067 = vpack.c.bf16 %v3033, %v3033
        %v3068 = vpack.c.bf16 %v3034, %v3034
        %v3069 = vpack.c.bf16 %v3035, %v3035
        %v3070 = vpack.c.bf16 %v3036, %v3036
        %v3071 = vpack.c.bf16 %v3037, %v3037
        %v3072 = vpack.c.bf16 %v3038, %v3038
        %v3073 = vpack.c.bf16 %v3039, %v3039
        %v3074 = vpack.c.bf16 %v3040, %v3040
        %v3075 = vpack.c.bf16 %v3041, %v3041
        %v3076 = vpack.c.bf16 %v3042, %v3042
        %v3077 = vpack.c.bf16 %v3043, %v3043
        %v3078 = vpack.c.bf16 %v3044, %v3044
        %v3079 = vpack.c.bf16 %v3045, %v3045
        %v3080 = vpack.c.bf16 %v3046, %v3046
        %v3081 = vpack.c.bf16 %v3047, %v3047
        %v3082 = vpack.c.bf16 %v3048, %v3048
        %v3083 = vpack.c.bf16 %v3049, %v3049
        %v3084 = vpack.c.bf16 %v3050, %v3050
        %v3085 = vpack.c.bf16 %v3051, %v3051
        %v3086 = vpack.c.bf16 %v3052, %v3052
        %v3087 = vpack.c.bf16 %v3053, %v3053
        %v3088 = vpack.c.bf16 %v3054, %v3054
        %v3089 = vpack.c.bf16 %v3055, %v3055
        %v3090 = vpack.c.bf16 %v3056, %v3056
        %v3091 = vpack.c.bf16 %v3057, %v3057
        %v3092 = vpack.c.bf16 %v3058, %v3058
        %v3093 = vpack.c.bf16 %v3059, %v3059
        %v3094 = vpack.c.bf16 %v3060, %v3060
        %v3095 = vpack.c.bf16 %v3061, %v3061
        %3130 = vrot.lane.b32.xlu0 %v3062, 64
        %v3131 = vpop.permute.xlu0 %3130
        %3132 = vrot.lane.b32.xlu0 %v3063, 64
        %v3133 = vpop.permute.xlu0 %3132
        %3134 = vrot.lane.b32.xlu0 %v3064, 64
        %v3135 = vpop.permute.xlu0 %3134
        %3136 = vrot.lane.b32.xlu0 %v3065, 64
        %v3137 = vpop.permute.xlu0 %3136
        %3138 = vrot.lane.b32.xlu0 %v3066, 64
        %v3139 = vpop.permute.xlu0 %3138
        %3140 = vrot.lane.b32.xlu0 %v3067, 64
        %v3141 = vpop.permute.xlu0 %3140
        %3142 = vrot.lane.b32.xlu0 %v3068, 64
        %v3143 = vpop.permute.xlu0 %3142
        %3144 = vrot.lane.b32.xlu0 %v3069, 64
        %v3145 = vpop.permute.xlu0 %3144
        %3146 = vrot.lane.b32.xlu0 %v3070, 64
        %v3147 = vpop.permute.xlu0 %3146
        %3148 = vrot.lane.b32.xlu0 %v3071, 64
        %v3149 = vpop.permute.xlu0 %3148
        %3150 = vrot.lane.b32.xlu0 %v3072, 64
        %v3151 = vpop.permute.xlu0 %3150
        %3152 = vrot.lane.b32.xlu0 %v3073, 64
        %v3153 = vpop.permute.xlu0 %3152
        %3154 = vrot.lane.b32.xlu0 %v3074, 64
        %v3155 = vpop.permute.xlu0 %3154
        %3156 = vrot.lane.b32.xlu0 %v3075, 64
        %v3157 = vpop.permute.xlu0 %3156
        %3158 = vrot.lane.b32.xlu0 %v3076, 64
        %v3159 = vpop.permute.xlu0 %3158
        %3160 = vrot.lane.b32.xlu0 %v3077, 64
        %v3161 = vpop.permute.xlu0 %3160
        %3162 = vrot.lane.b32.xlu0 %v3078, 64
        %v3163 = vpop.permute.xlu0 %3162
        %3164 = vrot.lane.b32.xlu0 %v3079, 64
        %v3165 = vpop.permute.xlu0 %3164
        %3166 = vrot.lane.b32.xlu0 %v3080, 64
        %v3167 = vpop.permute.xlu0 %3166
        %3168 = vrot.lane.b32.xlu0 %v3081, 64
        %v3169 = vpop.permute.xlu0 %3168
        %3170 = vrot.lane.b32.xlu0 %v3082, 64
        %v3171 = vpop.permute.xlu0 %3170
        %3172 = vrot.lane.b32.xlu0 %v3083, 64
        %v3173 = vpop.permute.xlu0 %3172
        %3174 = vrot.lane.b32.xlu0 %v3084, 64
        %v3175 = vpop.permute.xlu0 %3174
        %3176 = vrot.lane.b32.xlu0 %v3085, 64
        %v3177 = vpop.permute.xlu0 %3176
        %3178 = vrot.lane.b32.xlu0 %v3086, 64
        %v3179 = vpop.permute.xlu0 %3178
        %3180 = vrot.lane.b32.xlu0 %v3087, 64
        %v3181 = vpop.permute.xlu0 %3180
        %3182 = vrot.lane.b32.xlu0 %v3088, 64
        %v3183 = vpop.permute.xlu0 %3182
        %3184 = vrot.lane.b32.xlu0 %v3089, 64
        %v3185 = vpop.permute.xlu0 %3184
        %3186 = vrot.lane.b32.xlu0 %v3090, 64
        %v3187 = vpop.permute.xlu0 %3186
        %3188 = vrot.lane.b32.xlu0 %v3091, 64
        %v3189 = vpop.permute.xlu0 %3188
        %3190 = vrot.lane.b32.xlu0 %v3092, 64
        %v3191 = vpop.permute.xlu0 %3190
        %3192 = vrot.lane.b32.xlu0 %v3093, 64
        %v3193 = vpop.permute.xlu0 %3192
        %3194 = vrot.lane.b32.xlu0 %v3094, 64
        %v3195 = vpop.permute.xlu0 %3194
        %3196 = vrot.lane.b32.xlu0 %v3095, 64
        %v3197 = vpop.permute.xlu0 %3196
        %3232 = vst.msk [vmem:[#allocation4 + $0x14] sm:$0xf] %vm1531, %v3131
        %3233 = vst.msk [vmem:[#allocation4 + $0x34] sm:$0xf] %vm1531, %v3133
        %3234 = vst.msk [vmem:[#allocation4 + $0x54] sm:$0xf] %vm1531, %v3135
        %3235 = vst.msk [vmem:[#allocation4 + $0x74] sm:$0xf] %vm1531, %v3137
        %3236 = vst.msk [vmem:[#allocation4 + $0x94] sm:$0xf] %vm1531, %v3139
        %3237 = vst.msk [vmem:[#allocation4 + $0xb4] sm:$0xf] %vm1531, %v3141
        %3238 = vst.msk [vmem:[#allocation4 + $0xd4] sm:$0xf] %vm1531, %v3143
        %3239 = vst.msk [vmem:[#allocation4 + $0xf4] sm:$0xf] %vm1531, %v3145
        %3240 = vst.msk [vmem:[#allocation4 + $0x114] sm:$0xf] %vm1531, %v3147
        %3241 = vst.msk [vmem:[#allocation4 + $0x134] sm:$0xf] %vm1531, %v3149
        %3242 = vst.msk [vmem:[#allocation4 + $0x154] sm:$0xf] %vm1531, %v3151
        %3243 = vst.msk [vmem:[#allocation4 + $0x174] sm:$0xf] %vm1531, %v3153
        %3244 = vst.msk [vmem:[#allocation4 + $0x194] sm:$0xf] %vm1531, %v3155
        %3245 = vst.msk [vmem:[#allocation4 + $0x1b4] sm:$0xf] %vm1531, %v3157
        %3246 = vst.msk [vmem:[#allocation4 + $0x1d4] sm:$0xf] %vm1531, %v3159
        %3247 = vst.msk [vmem:[#allocation4 + $0x1f4] sm:$0xf] %vm1531, %v3161
        %3248 = vst.msk [vmem:[#allocation4 + $0x214] sm:$0xf] %vm1531, %v3163
        %3249 = vst.msk [vmem:[#allocation4 + $0x234] sm:$0xf] %vm1531, %v3165
        %3250 = vst.msk [vmem:[#allocation4 + $0x254] sm:$0xf] %vm1531, %v3167
        %3251 = vst.msk [vmem:[#allocation4 + $0x274] sm:$0xf] %vm1531, %v3169
        %3252 = vst.msk [vmem:[#allocation4 + $0x294] sm:$0xf] %vm1531, %v3171
        %3253 = vst.msk [vmem:[#allocation4 + $0x2b4] sm:$0xf] %vm1531, %v3173
        %3254 = vst.msk [vmem:[#allocation4 + $0x2d4] sm:$0xf] %vm1531, %v3175
        %3255 = vst.msk [vmem:[#allocation4 + $0x2f4] sm:$0xf] %vm1531, %v3177
        %3256 = vst.msk [vmem:[#allocation4 + $0x314] sm:$0xf] %vm1531, %v3179
        %3257 = vst.msk [vmem:[#allocation4 + $0x334] sm:$0xf] %vm1531, %v3181
        %3258 = vst.msk [vmem:[#allocation4 + $0x354] sm:$0xf] %vm1531, %v3183
        %3259 = vst.msk [vmem:[#allocation4 + $0x374] sm:$0xf] %vm1531, %v3185
        %3260 = vst.msk [vmem:[#allocation4 + $0x394] sm:$0xf] %vm1531, %v3187
        %3261 = vst.msk [vmem:[#allocation4 + $0x3b4] sm:$0xf] %vm1531, %v3189
        %3262 = vst.msk [vmem:[#allocation4 + $0x3d4] sm:$0xf] %vm1531, %v3191
        %3263 = vst.msk [vmem:[#allocation4 + $0x3f4] sm:$0xf] %vm1531, %v3193
        %3264 = vst.msk [vmem:[#allocation4 + $0x414] sm:$0xf] %vm1531, %v3195
        %3265 = vst.msk [vmem:[#allocation4 + $0x434] sm:$0xf] %vm1531, %v3197
        %v3266 = vld [vmem:[#allocation3 + $0x44] sm:$0xff]
        %v3267 = vld [vmem:[#allocation3 + $0x4c] sm:$0xff]
        %v3268 = vld [vmem:[#allocation3 + $0x54] sm:$0xff]
        %v3269 = vld [vmem:[#allocation3 + $0x5c] sm:$0xff]
        %v3270 = vld [vmem:[#allocation3 + $0x64] sm:$0xff]
        %v3271 = vld [vmem:[#allocation3 + $0x6c] sm:$0xff]
        %v3272 = vld [vmem:[#allocation3 + $0x74] sm:$0xff]
        %v3273 = vld [vmem:[#allocation3 + $0x7c] sm:$0xff]
        %v3274 = vld [vmem:[#allocation3 + $0x84] sm:$0xff]
        %v3275 = vld [vmem:[#allocation3 + $0x8c] sm:$0xff]
        %v3276 = vld [vmem:[#allocation3 + $0x94] sm:$0xff]
        %v3277 = vld [vmem:[#allocation3 + $0x9c] sm:$0xff]
        %v3278 = vld [vmem:[#allocation3 + $0xa4] sm:$0xff]
        %v3279 = vld [vmem:[#allocation3 + $0xac] sm:$0xff]
        %v3280 = vld [vmem:[#allocation3 + $0xb4] sm:$0xff]
        %v3281 = vld [vmem:[#allocation3 + $0xbc] sm:$0xff]
        %v3282 = vld [vmem:[#allocation3 + $0xc4] sm:$0xff]
        %v3283 = vld [vmem:[#allocation3 + $0xcc] sm:$0xff]
        %v3284 = vld [vmem:[#allocation3 + $0xd4] sm:$0xff]
        %v3285 = vld [vmem:[#allocation3 + $0xdc] sm:$0xff]
        %v3286 = vld [vmem:[#allocation3 + $0xe4] sm:$0xff]
        %v3287 = vld [vmem:[#allocation3 + $0xec] sm:$0xff]
        %v3288 = vld [vmem:[#allocation3 + $0xf4] sm:$0xff]
        %v3289 = vld [vmem:[#allocation3 + $0xfc] sm:$0xff]
        %v3290 = vld [vmem:[#allocation3 + $0x104] sm:$0xff]
        %v3291 = vld [vmem:[#allocation3 + $0x10c] sm:$0xff]
        %v3292 = vld [vmem:[#allocation3 + $0x114] sm:$0xff]
        %v3293 = vld [vmem:[#allocation3 + $0x11c] sm:$0xff]
        %v3294 = vld [vmem:[#allocation3 + $0x124] sm:$0xff]
        %v3295 = vld [vmem:[#allocation3 + $0x12c] sm:$0xff]
        %v3296 = vld [vmem:[#allocation3 + $0x134] sm:$0xff]
        %v3297 = vld [vmem:[#allocation3 + $0x13c] sm:$0xff]
        %v3298 = vld [vmem:[#allocation3 + $0x144] sm:$0xff]
        %v3299 = vld [vmem:[#allocation3 + $0x14c] sm:$0xff]
        %v3300 = vpack.c.bf16 %v3266, %v3266
        %v3301 = vpack.c.bf16 %v3267, %v3267
        %v3302 = vpack.c.bf16 %v3268, %v3268
        %v3303 = vpack.c.bf16 %v3269, %v3269
        %v3304 = vpack.c.bf16 %v3270, %v3270
        %v3305 = vpack.c.bf16 %v3271, %v3271
        %v3306 = vpack.c.bf16 %v3272, %v3272
        %v3307 = vpack.c.bf16 %v3273, %v3273
        %v3308 = vpack.c.bf16 %v3274, %v3274
        %v3309 = vpack.c.bf16 %v3275, %v3275
        %v3310 = vpack.c.bf16 %v3276, %v3276
        %v3311 = vpack.c.bf16 %v3277, %v3277
        %v3312 = vpack.c.bf16 %v3278, %v3278
        %v3313 = vpack.c.bf16 %v3279, %v3279
        %v3314 = vpack.c.bf16 %v3280, %v3280
        %v3315 = vpack.c.bf16 %v3281, %v3281
        %v3316 = vpack.c.bf16 %v3282, %v3282
        %v3317 = vpack.c.bf16 %v3283, %v3283
        %v3318 = vpack.c.bf16 %v3284, %v3284
        %v3319 = vpack.c.bf16 %v3285, %v3285
        %v3320 = vpack.c.bf16 %v3286, %v3286
        %v3321 = vpack.c.bf16 %v3287, %v3287
        %v3322 = vpack.c.bf16 %v3288, %v3288
        %v3323 = vpack.c.bf16 %v3289, %v3289
        %v3324 = vpack.c.bf16 %v3290, %v3290
        %v3325 = vpack.c.bf16 %v3291, %v3291
        %v3326 = vpack.c.bf16 %v3292, %v3292
        %v3327 = vpack.c.bf16 %v3293, %v3293
        %v3328 = vpack.c.bf16 %v3294, %v3294
        %v3329 = vpack.c.bf16 %v3295, %v3295
        %v3330 = vpack.c.bf16 %v3296, %v3296
        %v3331 = vpack.c.bf16 %v3297, %v3297
        %v3332 = vpack.c.bf16 %v3298, %v3298
        %v3333 = vpack.c.bf16 %v3299, %v3299
        %3334 = vst.msk [vmem:[#allocation4 + $0x18] sm:$0xf] %vm1292, %v3300
        %3335 = vst.msk [vmem:[#allocation4 + $0x38] sm:$0xf] %vm1292, %v3301
        %3336 = vst.msk [vmem:[#allocation4 + $0x58] sm:$0xf] %vm1292, %v3302
        %3337 = vst.msk [vmem:[#allocation4 + $0x78] sm:$0xf] %vm1292, %v3303
        %3338 = vst.msk [vmem:[#allocation4 + $0x98] sm:$0xf] %vm1292, %v3304
        %3339 = vst.msk [vmem:[#allocation4 + $0xb8] sm:$0xf] %vm1292, %v3305
        %3340 = vst.msk [vmem:[#allocation4 + $0xd8] sm:$0xf] %vm1292, %v3306
        %3341 = vst.msk [vmem:[#allocation4 + $0xf8] sm:$0xf] %vm1292, %v3307
        %3342 = vst.msk [vmem:[#allocation4 + $0x118] sm:$0xf] %vm1292, %v3308
        %3343 = vst.msk [vmem:[#allocation4 + $0x138] sm:$0xf] %vm1292, %v3309
        %3344 = vst.msk [vmem:[#allocation4 + $0x158] sm:$0xf] %vm1292, %v3310
        %3345 = vst.msk [vmem:[#allocation4 + $0x178] sm:$0xf] %vm1292, %v3311
        %3346 = vst.msk [vmem:[#allocation4 + $0x198] sm:$0xf] %vm1292, %v3312
        %3347 = vst.msk [vmem:[#allocation4 + $0x1b8] sm:$0xf] %vm1292, %v3313
        %3348 = vst.msk [vmem:[#allocation4 + $0x1d8] sm:$0xf] %vm1292, %v3314
        %3349 = vst.msk [vmem:[#allocation4 + $0x1f8] sm:$0xf] %vm1292, %v3315
        %3350 = vst.msk [vmem:[#allocation4 + $0x218] sm:$0xf] %vm1292, %v3316
        %3351 = vst.msk [vmem:[#allocation4 + $0x238] sm:$0xf] %vm1292, %v3317
        %3352 = vst.msk [vmem:[#allocation4 + $0x258] sm:$0xf] %vm1292, %v3318
        %3353 = vst.msk [vmem:[#allocation4 + $0x278] sm:$0xf] %vm1292, %v3319
        %3354 = vst.msk [vmem:[#allocation4 + $0x298] sm:$0xf] %vm1292, %v3320
        %3355 = vst.msk [vmem:[#allocation4 + $0x2b8] sm:$0xf] %vm1292, %v3321
        %3356 = vst.msk [vmem:[#allocation4 + $0x2d8] sm:$0xf] %vm1292, %v3322
        %3357 = vst.msk [vmem:[#allocation4 + $0x2f8] sm:$0xf] %vm1292, %v3323
        %3358 = vst.msk [vmem:[#allocation4 + $0x318] sm:$0xf] %vm1292, %v3324
        %3359 = vst.msk [vmem:[#allocation4 + $0x338] sm:$0xf] %vm1292, %v3325
        %3360 = vst.msk [vmem:[#allocation4 + $0x358] sm:$0xf] %vm1292, %v3326
        %3361 = vst.msk [vmem:[#allocation4 + $0x378] sm:$0xf] %vm1292, %v3327
        %3362 = vst.msk [vmem:[#allocation4 + $0x398] sm:$0xf] %vm1292, %v3328
        %3363 = vst.msk [vmem:[#allocation4 + $0x3b8] sm:$0xf] %vm1292, %v3329
        %3364 = vst.msk [vmem:[#allocation4 + $0x3d8] sm:$0xf] %vm1292, %v3330
        %3365 = vst.msk [vmem:[#allocation4 + $0x3f8] sm:$0xf] %vm1292, %v3331
        %3366 = vst.msk [vmem:[#allocation4 + $0x418] sm:$0xf] %vm1292, %v3332
        %3367 = vst.msk [vmem:[#allocation4 + $0x438] sm:$0xf] %vm1292, %v3333
        %v3368 = vld [vmem:[#allocation3 + $0x45] sm:$0xff]
        %v3369 = vld [vmem:[#allocation3 + $0x4d] sm:$0xff]
        %v3370 = vld [vmem:[#allocation3 + $0x55] sm:$0xff]
        %v3371 = vld [vmem:[#allocation3 + $0x5d] sm:$0xff]
        %v3372 = vld [vmem:[#allocation3 + $0x65] sm:$0xff]
        %v3373 = vld [vmem:[#allocation3 + $0x6d] sm:$0xff]
        %v3374 = vld [vmem:[#allocation3 + $0x75] sm:$0xff]
        %v3375 = vld [vmem:[#allocation3 + $0x7d] sm:$0xff]
        %v3376 = vld [vmem:[#allocation3 + $0x85] sm:$0xff]
        %v3377 = vld [vmem:[#allocation3 + $0x8d] sm:$0xff]
        %v3378 = vld [vmem:[#allocation3 + $0x95] sm:$0xff]
        %v3379 = vld [vmem:[#allocation3 + $0x9d] sm:$0xff]
        %v3380 = vld [vmem:[#allocation3 + $0xa5] sm:$0xff]
        %v3381 = vld [vmem:[#allocation3 + $0xad] sm:$0xff]
        %v3382 = vld [vmem:[#allocation3 + $0xb5] sm:$0xff]
        %v3383 = vld [vmem:[#allocation3 + $0xbd] sm:$0xff]
        %v3384 = vld [vmem:[#allocation3 + $0xc5] sm:$0xff]
        %v3385 = vld [vmem:[#allocation3 + $0xcd] sm:$0xff]
        %v3386 = vld [vmem:[#allocation3 + $0xd5] sm:$0xff]
        %v3387 = vld [vmem:[#allocation3 + $0xdd] sm:$0xff]
        %v3388 = vld [vmem:[#allocation3 + $0xe5] sm:$0xff]
        %v3389 = vld [vmem:[#allocation3 + $0xed] sm:$0xff]
        %v3390 = vld [vmem:[#allocation3 + $0xf5] sm:$0xff]
        %v3391 = vld [vmem:[#allocation3 + $0xfd] sm:$0xff]
        %v3392 = vld [vmem:[#allocation3 + $0x105] sm:$0xff]
        %v3393 = vld [vmem:[#allocation3 + $0x10d] sm:$0xff]
        %v3394 = vld [vmem:[#allocation3 + $0x115] sm:$0xff]
        %v3395 = vld [vmem:[#allocation3 + $0x11d] sm:$0xff]
        %v3396 = vld [vmem:[#allocation3 + $0x125] sm:$0xff]
        %v3397 = vld [vmem:[#allocation3 + $0x12d] sm:$0xff]
        %v3398 = vld [vmem:[#allocation3 + $0x135] sm:$0xff]
        %v3399 = vld [vmem:[#allocation3 + $0x13d] sm:$0xff]
        %v3400 = vld [vmem:[#allocation3 + $0x145] sm:$0xff]
        %v3401 = vld [vmem:[#allocation3 + $0x14d] sm:$0xff]
        %v3402 = vpack.c.bf16 %v3368, %v3368
        %v3403 = vpack.c.bf16 %v3369, %v3369
        %v3404 = vpack.c.bf16 %v3370, %v3370
        %v3405 = vpack.c.bf16 %v3371, %v3371
        %v3406 = vpack.c.bf16 %v3372, %v3372
        %v3407 = vpack.c.bf16 %v3373, %v3373
        %v3408 = vpack.c.bf16 %v3374, %v3374
        %v3409 = vpack.c.bf16 %v3375, %v3375
        %v3410 = vpack.c.bf16 %v3376, %v3376
        %v3411 = vpack.c.bf16 %v3377, %v3377
        %v3412 = vpack.c.bf16 %v3378, %v3378
        %v3413 = vpack.c.bf16 %v3379, %v3379
        %v3414 = vpack.c.bf16 %v3380, %v3380
        %v3415 = vpack.c.bf16 %v3381, %v3381
        %v3416 = vpack.c.bf16 %v3382, %v3382
        %v3417 = vpack.c.bf16 %v3383, %v3383
        %v3418 = vpack.c.bf16 %v3384, %v3384
        %v3419 = vpack.c.bf16 %v3385, %v3385
        %v3420 = vpack.c.bf16 %v3386, %v3386
        %v3421 = vpack.c.bf16 %v3387, %v3387
        %v3422 = vpack.c.bf16 %v3388, %v3388
        %v3423 = vpack.c.bf16 %v3389, %v3389
        %v3424 = vpack.c.bf16 %v3390, %v3390
        %v3425 = vpack.c.bf16 %v3391, %v3391
        %v3426 = vpack.c.bf16 %v3392, %v3392
        %v3427 = vpack.c.bf16 %v3393, %v3393
        %v3428 = vpack.c.bf16 %v3394, %v3394
        %v3429 = vpack.c.bf16 %v3395, %v3395
        %v3430 = vpack.c.bf16 %v3396, %v3396
        %v3431 = vpack.c.bf16 %v3397, %v3397
        %v3432 = vpack.c.bf16 %v3398, %v3398
        %v3433 = vpack.c.bf16 %v3399, %v3399
        %v3434 = vpack.c.bf16 %v3400, %v3400
        %v3435 = vpack.c.bf16 %v3401, %v3401
        %3470 = vrot.lane.b32.xlu0 %v3402, 64
        %v3471 = vpop.permute.xlu0 %3470
        %3472 = vrot.lane.b32.xlu0 %v3403, 64
        %v3473 = vpop.permute.xlu0 %3472
        %3474 = vrot.lane.b32.xlu0 %v3404, 64
        %v3475 = vpop.permute.xlu0 %3474
        %3476 = vrot.lane.b32.xlu0 %v3405, 64
        %v3477 = vpop.permute.xlu0 %3476
        %3478 = vrot.lane.b32.xlu0 %v3406, 64
        %v3479 = vpop.permute.xlu0 %3478
        %3480 = vrot.lane.b32.xlu0 %v3407, 64
        %v3481 = vpop.permute.xlu0 %3480
        %3482 = vrot.lane.b32.xlu0 %v3408, 64
        %v3483 = vpop.permute.xlu0 %3482
        %3484 = vrot.lane.b32.xlu0 %v3409, 64
        %v3485 = vpop.permute.xlu0 %3484
        %3486 = vrot.lane.b32.xlu0 %v3410, 64
        %v3487 = vpop.permute.xlu0 %3486
        %3488 = vrot.lane.b32.xlu0 %v3411, 64
        %v3489 = vpop.permute.xlu0 %3488
        %3490 = vrot.lane.b32.xlu0 %v3412, 64
        %v3491 = vpop.permute.xlu0 %3490
        %3492 = vrot.lane.b32.xlu0 %v3413, 64
        %v3493 = vpop.permute.xlu0 %3492
        %3494 = vrot.lane.b32.xlu0 %v3414, 64
        %v3495 = vpop.permute.xlu0 %3494
        %3496 = vrot.lane.b32.xlu0 %v3415, 64
        %v3497 = vpop.permute.xlu0 %3496
        %3498 = vrot.lane.b32.xlu0 %v3416, 64
        %v3499 = vpop.permute.xlu0 %3498
        %3500 = vrot.lane.b32.xlu0 %v3417, 64
        %v3501 = vpop.permute.xlu0 %3500
        %3502 = vrot.lane.b32.xlu0 %v3418, 64
        %v3503 = vpop.permute.xlu0 %3502
        %3504 = vrot.lane.b32.xlu0 %v3419, 64
        %v3505 = vpop.permute.xlu0 %3504
        %3506 = vrot.lane.b32.xlu0 %v3420, 64
        %v3507 = vpop.permute.xlu0 %3506
        %3508 = vrot.lane.b32.xlu0 %v3421, 64
        %v3509 = vpop.permute.xlu0 %3508
        %3510 = vrot.lane.b32.xlu0 %v3422, 64
        %v3511 = vpop.permute.xlu0 %3510
        %3512 = vrot.lane.b32.xlu0 %v3423, 64
        %v3513 = vpop.permute.xlu0 %3512
        %3514 = vrot.lane.b32.xlu0 %v3424, 64
        %v3515 = vpop.permute.xlu0 %3514
        %3516 = vrot.lane.b32.xlu0 %v3425, 64
        %v3517 = vpop.permute.xlu0 %3516
        %3518 = vrot.lane.b32.xlu0 %v3426, 64
        %v3519 = vpop.permute.xlu0 %3518
        %3520 = vrot.lane.b32.xlu0 %v3427, 64
        %v3521 = vpop.permute.xlu0 %3520
        %3522 = vrot.lane.b32.xlu0 %v3428, 64
        %v3523 = vpop.permute.xlu0 %3522
        %3524 = vrot.lane.b32.xlu0 %v3429, 64
        %v3525 = vpop.permute.xlu0 %3524
        %3526 = vrot.lane.b32.xlu0 %v3430, 64
        %v3527 = vpop.permute.xlu0 %3526
        %3528 = vrot.lane.b32.xlu0 %v3431, 64
        %v3529 = vpop.permute.xlu0 %3528
        %3530 = vrot.lane.b32.xlu0 %v3432, 64
        %v3531 = vpop.permute.xlu0 %3530
        %3532 = vrot.lane.b32.xlu0 %v3433, 64
        %v3533 = vpop.permute.xlu0 %3532
        %3534 = vrot.lane.b32.xlu0 %v3434, 64
        %v3535 = vpop.permute.xlu0 %3534
        %3536 = vrot.lane.b32.xlu0 %v3435, 64
        %v3537 = vpop.permute.xlu0 %3536
        %3572 = vst.msk [vmem:[#allocation4 + $0x18] sm:$0xf] %vm1531, %v3471
        %3573 = vst.msk [vmem:[#allocation4 + $0x38] sm:$0xf] %vm1531, %v3473
        %3574 = vst.msk [vmem:[#allocation4 + $0x58] sm:$0xf] %vm1531, %v3475
        %3575 = vst.msk [vmem:[#allocation4 + $0x78] sm:$0xf] %vm1531, %v3477
        %3576 = vst.msk [vmem:[#allocation4 + $0x98] sm:$0xf] %vm1531, %v3479
        %3577 = vst.msk [vmem:[#allocation4 + $0xb8] sm:$0xf] %vm1531, %v3481
        %3578 = vst.msk [vmem:[#allocation4 + $0xd8] sm:$0xf] %vm1531, %v3483
        %3579 = vst.msk [vmem:[#allocation4 + $0xf8] sm:$0xf] %vm1531, %v3485
        %3580 = vst.msk [vmem:[#allocation4 + $0x118] sm:$0xf] %vm1531, %v3487
        %3581 = vst.msk [vmem:[#allocation4 + $0x138] sm:$0xf] %vm1531, %v3489
        %3582 = vst.msk [vmem:[#allocation4 + $0x158] sm:$0xf] %vm1531, %v3491
        %3583 = vst.msk [vmem:[#allocation4 + $0x178] sm:$0xf] %vm1531, %v3493
        %3584 = vst.msk [vmem:[#allocation4 + $0x198] sm:$0xf] %vm1531, %v3495
        %3585 = vst.msk [vmem:[#allocation4 + $0x1b8] sm:$0xf] %vm1531, %v3497
        %3586 = vst.msk [vmem:[#allocation4 + $0x1d8] sm:$0xf] %vm1531, %v3499
        %3587 = vst.msk [vmem:[#allocation4 + $0x1f8] sm:$0xf] %vm1531, %v3501
        %3588 = vst.msk [vmem:[#allocation4 + $0x218] sm:$0xf] %vm1531, %v3503
        %3589 = vst.msk [vmem:[#allocation4 + $0x238] sm:$0xf] %vm1531, %v3505
        %3590 = vst.msk [vmem:[#allocation4 + $0x258] sm:$0xf] %vm1531, %v3507
        %3591 = vst.msk [vmem:[#allocation4 + $0x278] sm:$0xf] %vm1531, %v3509
        %3592 = vst.msk [vmem:[#allocation4 + $0x298] sm:$0xf] %vm1531, %v3511
        %3593 = vst.msk [vmem:[#allocation4 + $0x2b8] sm:$0xf] %vm1531, %v3513
        %3594 = vst.msk [vmem:[#allocation4 + $0x2d8] sm:$0xf] %vm1531, %v3515
        %3595 = vst.msk [vmem:[#allocation4 + $0x2f8] sm:$0xf] %vm1531, %v3517
        %3596 = vst.msk [vmem:[#allocation4 + $0x318] sm:$0xf] %vm1531, %v3519
        %3597 = vst.msk [vmem:[#allocation4 + $0x338] sm:$0xf] %vm1531, %v3521
        %3598 = vst.msk [vmem:[#allocation4 + $0x358] sm:$0xf] %vm1531, %v3523
        %3599 = vst.msk [vmem:[#allocation4 + $0x378] sm:$0xf] %vm1531, %v3525
        %3600 = vst.msk [vmem:[#allocation4 + $0x398] sm:$0xf] %vm1531, %v3527
        %3601 = vst.msk [vmem:[#allocation4 + $0x3b8] sm:$0xf] %vm1531, %v3529
        %3602 = vst.msk [vmem:[#allocation4 + $0x3d8] sm:$0xf] %vm1531, %v3531
        %3603 = vst.msk [vmem:[#allocation4 + $0x3f8] sm:$0xf] %vm1531, %v3533
        %3604 = vst.msk [vmem:[#allocation4 + $0x418] sm:$0xf] %vm1531, %v3535
        %3605 = vst.msk [vmem:[#allocation4 + $0x438] sm:$0xf] %vm1531, %v3537
        %v3606 = vld [vmem:[#allocation3 + $0x46] sm:$0xff]
        %v3607 = vld [vmem:[#allocation3 + $0x4e] sm:$0xff]
        %v3608 = vld [vmem:[#allocation3 + $0x56] sm:$0xff]
        %v3609 = vld [vmem:[#allocation3 + $0x5e] sm:$0xff]
        %v3610 = vld [vmem:[#allocation3 + $0x66] sm:$0xff]
        %v3611 = vld [vmem:[#allocation3 + $0x6e] sm:$0xff]
        %v3612 = vld [vmem:[#allocation3 + $0x76] sm:$0xff]
        %v3613 = vld [vmem:[#allocation3 + $0x7e] sm:$0xff]
        %v3614 = vld [vmem:[#allocation3 + $0x86] sm:$0xff]
        %v3615 = vld [vmem:[#allocation3 + $0x8e] sm:$0xff]
        %v3616 = vld [vmem:[#allocation3 + $0x96] sm:$0xff]
        %v3617 = vld [vmem:[#allocation3 + $0x9e] sm:$0xff]
        %v3618 = vld [vmem:[#allocation3 + $0xa6] sm:$0xff]
        %v3619 = vld [vmem:[#allocation3 + $0xae] sm:$0xff]
        %v3620 = vld [vmem:[#allocation3 + $0xb6] sm:$0xff]
        %v3621 = vld [vmem:[#allocation3 + $0xbe] sm:$0xff]
        %v3622 = vld [vmem:[#allocation3 + $0xc6] sm:$0xff]
        %v3623 = vld [vmem:[#allocation3 + $0xce] sm:$0xff]
        %v3624 = vld [vmem:[#allocation3 + $0xd6] sm:$0xff]
        %v3625 = vld [vmem:[#allocation3 + $0xde] sm:$0xff]
        %v3626 = vld [vmem:[#allocation3 + $0xe6] sm:$0xff]
        %v3627 = vld [vmem:[#allocation3 + $0xee] sm:$0xff]
        %v3628 = vld [vmem:[#allocation3 + $0xf6] sm:$0xff]
        %v3629 = vld [vmem:[#allocation3 + $0xfe] sm:$0xff]
        %v3630 = vld [vmem:[#allocation3 + $0x106] sm:$0xff]
        %v3631 = vld [vmem:[#allocation3 + $0x10e] sm:$0xff]
        %v3632 = vld [vmem:[#allocation3 + $0x116] sm:$0xff]
        %v3633 = vld [vmem:[#allocation3 + $0x11e] sm:$0xff]
        %v3634 = vld [vmem:[#allocation3 + $0x126] sm:$0xff]
        %v3635 = vld [vmem:[#allocation3 + $0x12e] sm:$0xff]
        %v3636 = vld [vmem:[#allocation3 + $0x136] sm:$0xff]
        %v3637 = vld [vmem:[#allocation3 + $0x13e] sm:$0xff]
        %v3638 = vld [vmem:[#allocation3 + $0x146] sm:$0xff]
        %v3639 = vld [vmem:[#allocation3 + $0x14e] sm:$0xff]
        %v3640 = vpack.c.bf16 %v3606, %v3606
        %v3641 = vpack.c.bf16 %v3607, %v3607
        %v3642 = vpack.c.bf16 %v3608, %v3608
        %v3643 = vpack.c.bf16 %v3609, %v3609
        %v3644 = vpack.c.bf16 %v3610, %v3610
        %v3645 = vpack.c.bf16 %v3611, %v3611
        %v3646 = vpack.c.bf16 %v3612, %v3612
        %v3647 = vpack.c.bf16 %v3613, %v3613
        %v3648 = vpack.c.bf16 %v3614, %v3614
        %v3649 = vpack.c.bf16 %v3615, %v3615
        %v3650 = vpack.c.bf16 %v3616, %v3616
        %v3651 = vpack.c.bf16 %v3617, %v3617
        %v3652 = vpack.c.bf16 %v3618, %v3618
        %v3653 = vpack.c.bf16 %v3619, %v3619
        %v3654 = vpack.c.bf16 %v3620, %v3620
        %v3655 = vpack.c.bf16 %v3621, %v3621
        %v3656 = vpack.c.bf16 %v3622, %v3622
        %v3657 = vpack.c.bf16 %v3623, %v3623
        %v3658 = vpack.c.bf16 %v3624, %v3624
        %v3659 = vpack.c.bf16 %v3625, %v3625
        %v3660 = vpack.c.bf16 %v3626, %v3626
        %v3661 = vpack.c.bf16 %v3627, %v3627
        %v3662 = vpack.c.bf16 %v3628, %v3628
        %v3663 = vpack.c.bf16 %v3629, %v3629
        %v3664 = vpack.c.bf16 %v3630, %v3630
        %v3665 = vpack.c.bf16 %v3631, %v3631
        %v3666 = vpack.c.bf16 %v3632, %v3632
        %v3667 = vpack.c.bf16 %v3633, %v3633
        %v3668 = vpack.c.bf16 %v3634, %v3634
        %v3669 = vpack.c.bf16 %v3635, %v3635
        %v3670 = vpack.c.bf16 %v3636, %v3636
        %v3671 = vpack.c.bf16 %v3637, %v3637
        %v3672 = vpack.c.bf16 %v3638, %v3638
        %v3673 = vpack.c.bf16 %v3639, %v3639
        %3674 = vst.msk [vmem:[#allocation4 + $0x1c] sm:$0xf] %vm1292, %v3640
        %3675 = vst.msk [vmem:[#allocation4 + $0x3c] sm:$0xf] %vm1292, %v3641
        %3676 = vst.msk [vmem:[#allocation4 + $0x5c] sm:$0xf] %vm1292, %v3642
        %3677 = vst.msk [vmem:[#allocation4 + $0x7c] sm:$0xf] %vm1292, %v3643
        %3678 = vst.msk [vmem:[#allocation4 + $0x9c] sm:$0xf] %vm1292, %v3644
        %3679 = vst.msk [vmem:[#allocation4 + $0xbc] sm:$0xf] %vm1292, %v3645
        %3680 = vst.msk [vmem:[#allocation4 + $0xdc] sm:$0xf] %vm1292, %v3646
        %3681 = vst.msk [vmem:[#allocation4 + $0xfc] sm:$0xf] %vm1292, %v3647
        %3682 = vst.msk [vmem:[#allocation4 + $0x11c] sm:$0xf] %vm1292, %v3648
        %3683 = vst.msk [vmem:[#allocation4 + $0x13c] sm:$0xf] %vm1292, %v3649
        %3684 = vst.msk [vmem:[#allocation4 + $0x15c] sm:$0xf] %vm1292, %v3650
        %3685 = vst.msk [vmem:[#allocation4 + $0x17c] sm:$0xf] %vm1292, %v3651
        %3686 = vst.msk [vmem:[#allocation4 + $0x19c] sm:$0xf] %vm1292, %v3652
        %3687 = vst.msk [vmem:[#allocation4 + $0x1bc] sm:$0xf] %vm1292, %v3653
        %3688 = vst.msk [vmem:[#allocation4 + $0x1dc] sm:$0xf] %vm1292, %v3654
        %3689 = vst.msk [vmem:[#allocation4 + $0x1fc] sm:$0xf] %vm1292, %v3655
        %3690 = vst.msk [vmem:[#allocation4 + $0x21c] sm:$0xf] %vm1292, %v3656
        %3691 = vst.msk [vmem:[#allocation4 + $0x23c] sm:$0xf] %vm1292, %v3657
        %3692 = vst.msk [vmem:[#allocation4 + $0x25c] sm:$0xf] %vm1292, %v3658
        %3693 = vst.msk [vmem:[#allocation4 + $0x27c] sm:$0xf] %vm1292, %v3659
        %3694 = vst.msk [vmem:[#allocation4 + $0x29c] sm:$0xf] %vm1292, %v3660
        %3695 = vst.msk [vmem:[#allocation4 + $0x2bc] sm:$0xf] %vm1292, %v3661
        %3696 = vst.msk [vmem:[#allocation4 + $0x2dc] sm:$0xf] %vm1292, %v3662
        %3697 = vst.msk [vmem:[#allocation4 + $0x2fc] sm:$0xf] %vm1292, %v3663
        %3698 = vst.msk [vmem:[#allocation4 + $0x31c] sm:$0xf] %vm1292, %v3664
        %3699 = vst.msk [vmem:[#allocation4 + $0x33c] sm:$0xf] %vm1292, %v3665
        %3700 = vst.msk [vmem:[#allocation4 + $0x35c] sm:$0xf] %vm1292, %v3666
        %3701 = vst.msk [vmem:[#allocation4 + $0x37c] sm:$0xf] %vm1292, %v3667
        %3702 = vst.msk [vmem:[#allocation4 + $0x39c] sm:$0xf] %vm1292, %v3668
        %3703 = vst.msk [vmem:[#allocation4 + $0x3bc] sm:$0xf] %vm1292, %v3669
        %3704 = vst.msk [vmem:[#allocation4 + $0x3dc] sm:$0xf] %vm1292, %v3670
        %3705 = vst.msk [vmem:[#allocation4 + $0x3fc] sm:$0xf] %vm1292, %v3671
        %3706 = vst.msk [vmem:[#allocation4 + $0x41c] sm:$0xf] %vm1292, %v3672
        %3707 = vst.msk [vmem:[#allocation4 + $0x43c] sm:$0xf] %vm1292, %v3673
        %3708 = vst.msk [vmem:[#allocation4 + $0x1c] sm:$0xf] %vm1531, 0
        %3709 = vst.msk [vmem:[#allocation4 + $0x3c] sm:$0xf] %vm1531, 0
        %3710 = vst.msk [vmem:[#allocation4 + $0x5c] sm:$0xf] %vm1531, 0
        %3711 = vst.msk [vmem:[#allocation4 + $0x7c] sm:$0xf] %vm1531, 0
        %3712 = vst.msk [vmem:[#allocation4 + $0x9c] sm:$0xf] %vm1531, 0
        %3713 = vst.msk [vmem:[#allocation4 + $0xbc] sm:$0xf] %vm1531, 0
        %3714 = vst.msk [vmem:[#allocation4 + $0xdc] sm:$0xf] %vm1531, 0
        %3715 = vst.msk [vmem:[#allocation4 + $0xfc] sm:$0xf] %vm1531, 0
        %3716 = vst.msk [vmem:[#allocation4 + $0x11c] sm:$0xf] %vm1531, 0
        %3717 = vst.msk [vmem:[#allocation4 + $0x13c] sm:$0xf] %vm1531, 0
        %3718 = vst.msk [vmem:[#allocation4 + $0x15c] sm:$0xf] %vm1531, 0
        %3719 = vst.msk [vmem:[#allocation4 + $0x17c] sm:$0xf] %vm1531, 0
        %3720 = vst.msk [vmem:[#allocation4 + $0x19c] sm:$0xf] %vm1531, 0
        %3721 = vst.msk [vmem:[#allocation4 + $0x1bc] sm:$0xf] %vm1531, 0
        %3722 = vst.msk [vmem:[#allocation4 + $0x1dc] sm:$0xf] %vm1531, 0
        %3723 = vst.msk [vmem:[#allocation4 + $0x1fc] sm:$0xf] %vm1531, 0
        %3724 = vst.msk [vmem:[#allocation4 + $0x21c] sm:$0xf] %vm1531, 0
        %3725 = vst.msk [vmem:[#allocation4 + $0x23c] sm:$0xf] %vm1531, 0
        %3726 = vst.msk [vmem:[#allocation4 + $0x25c] sm:$0xf] %vm1531, 0
        %3727 = vst.msk [vmem:[#allocation4 + $0x27c] sm:$0xf] %vm1531, 0
        %3728 = vst.msk [vmem:[#allocation4 + $0x29c] sm:$0xf] %vm1531, 0
        %3729 = vst.msk [vmem:[#allocation4 + $0x2bc] sm:$0xf] %vm1531, 0
        %3730 = vst.msk [vmem:[#allocation4 + $0x2dc] sm:$0xf] %vm1531, 0
        %3731 = vst.msk [vmem:[#allocation4 + $0x2fc] sm:$0xf] %vm1531, 0
        %3732 = vst.msk [vmem:[#allocation4 + $0x31c] sm:$0xf] %vm1531, 0
        %3733 = vst.msk [vmem:[#allocation4 + $0x33c] sm:$0xf] %vm1531, 0
        %3734 = vst.msk [vmem:[#allocation4 + $0x35c] sm:$0xf] %vm1531, 0
        %3735 = vst.msk [vmem:[#allocation4 + $0x37c] sm:$0xf] %vm1531, 0
        %3736 = vst.msk [vmem:[#allocation4 + $0x39c] sm:$0xf] %vm1531, 0
        %3737 = vst.msk [vmem:[#allocation4 + $0x3bc] sm:$0xf] %vm1531, 0
        %3738 = vst.msk [vmem:[#allocation4 + $0x3dc] sm:$0xf] %vm1531, 0
        %3739 = vst.msk [vmem:[#allocation4 + $0x3fc] sm:$0xf] %vm1531, 0
        %3740 = vst.msk [vmem:[#allocation4 + $0x41c] sm:$0xf] %vm1531, 0
        %3741 = vst.msk [vmem:[#allocation4 + $0x43c] sm:$0xf] %vm1531, 0
        %v3742 = vld [vmem:[#allocation4] sm:$0xff]
        %v3743 = vld [vmem:[#allocation4 + $0x8] sm:$0xff]
        %v3744 = vld [vmem:[#allocation4 + $0x10] sm:$0xff]
        %v3745 = vld [vmem:[#allocation4 + $0x18] sm:$0xff]
        %v3746 = vld [vmem:[#allocation4 + $0x20] sm:$0xff]
        %v3747 = vld [vmem:[#allocation4 + $0x28] sm:$0xff]
        %v3748 = vld [vmem:[#allocation4 + $0x30] sm:$0xff]
        %v3749 = vld [vmem:[#allocation4 + $0x38] sm:$0xff]
        %v3750 = vld [vmem:[#allocation4 + $0x40] sm:$0xff]
        %v3751 = vld [vmem:[#allocation4 + $0x48] sm:$0xff]
        %v3752 = vld [vmem:[#allocation4 + $0x50] sm:$0xff]
        %v3753 = vld [vmem:[#allocation4 + $0x58] sm:$0xff]
        %v3754 = vld [vmem:[#allocation4 + $0x60] sm:$0xff]
        %v3755 = vld [vmem:[#allocation4 + $0x68] sm:$0xff]
        %v3756 = vld [vmem:[#allocation4 + $0x70] sm:$0xff]
        %v3757 = vld [vmem:[#allocation4 + $0x78] sm:$0xff]
        %v3758 = vld [vmem:[#allocation4 + $0x80] sm:$0xff]
        %v3759 = vld [vmem:[#allocation4 + $0x88] sm:$0xff]
        %v3760 = vld [vmem:[#allocation4 + $0x90] sm:$0xff]
        %v3761 = vld [vmem:[#allocation4 + $0x98] sm:$0xff]
        %v3762 = vld [vmem:[#allocation4 + $0xa0] sm:$0xff]
        %v3763 = vld [vmem:[#allocation4 + $0xa8] sm:$0xff]
        %v3764 = vld [vmem:[#allocation4 + $0xb0] sm:$0xff]
        %v3765 = vld [vmem:[#allocation4 + $0xb8] sm:$0xff]
        %v3766 = vld [vmem:[#allocation4 + $0xc0] sm:$0xff]
        %v3767 = vld [vmem:[#allocation4 + $0xc8] sm:$0xff]
        %v3768 = vld [vmem:[#allocation4 + $0xd0] sm:$0xff]
        %v3769 = vld [vmem:[#allocation4 + $0xd8] sm:$0xff]
        %v3770 = vld [vmem:[#allocation4 + $0xe0] sm:$0xff]
        %v3771 = vld [vmem:[#allocation4 + $0xe8] sm:$0xff]
        %v3772 = vld [vmem:[#allocation4 + $0xf0] sm:$0xff]
        %v3773 = vld [vmem:[#allocation4 + $0xf8] sm:$0xff]
        %v3774 = vld [vmem:[#allocation4 + $0x100] sm:$0xff]
        %v3775 = vld [vmem:[#allocation4 + $0x108] sm:$0xff]
        %v3776 = vld [vmem:[#allocation4 + $0x110] sm:$0xff]
        %v3777 = vld [vmem:[#allocation4 + $0x118] sm:$0xff]
        %v3778 = vld [vmem:[#allocation4 + $0x120] sm:$0xff]
        %v3779 = vld [vmem:[#allocation4 + $0x128] sm:$0xff]
        %v3780 = vld [vmem:[#allocation4 + $0x130] sm:$0xff]
        %v3781 = vld [vmem:[#allocation4 + $0x138] sm:$0xff]
        %v3782 = vld [vmem:[#allocation4 + $0x140] sm:$0xff]
        %v3783 = vld [vmem:[#allocation4 + $0x148] sm:$0xff]
        %v3784 = vld [vmem:[#allocation4 + $0x150] sm:$0xff]
        %v3785 = vld [vmem:[#allocation4 + $0x158] sm:$0xff]
        %v3786 = vld [vmem:[#allocation4 + $0x160] sm:$0xff]
        %v3787 = vld [vmem:[#allocation4 + $0x168] sm:$0xff]
        %v3788 = vld [vmem:[#allocation4 + $0x170] sm:$0xff]
        %v3789 = vld [vmem:[#allocation4 + $0x178] sm:$0xff]
        %v3790 = vld [vmem:[#allocation4 + $0x180] sm:$0xff]
        %v3791 = vld [vmem:[#allocation4 + $0x188] sm:$0xff]
        %v3792 = vld [vmem:[#allocation4 + $0x190] sm:$0xff]
        %v3793 = vld [vmem:[#allocation4 + $0x198] sm:$0xff]
        %v3794 = vld [vmem:[#allocation4 + $0x1a0] sm:$0xff]
        %v3795 = vld [vmem:[#allocation4 + $0x1a8] sm:$0xff]
        %v3796 = vld [vmem:[#allocation4 + $0x1b0] sm:$0xff]
        %v3797 = vld [vmem:[#allocation4 + $0x1b8] sm:$0xff]
        %v3798 = vld [vmem:[#allocation4 + $0x1c0] sm:$0xff]
        %v3799 = vld [vmem:[#allocation4 + $0x1c8] sm:$0xff]
        %v3800 = vld [vmem:[#allocation4 + $0x1d0] sm:$0xff]
        %v3801 = vld [vmem:[#allocation4 + $0x1d8] sm:$0xff]
        %v3802 = vld [vmem:[#allocation4 + $0x1e0] sm:$0xff]
        %v3803 = vld [vmem:[#allocation4 + $0x1e8] sm:$0xff]
        %v3804 = vld [vmem:[#allocation4 + $0x1f0] sm:$0xff]
        %v3805 = vld [vmem:[#allocation4 + $0x1f8] sm:$0xff]
        %v3806 = vld [vmem:[#allocation4 + $0x200] sm:$0xff]
        %v3807 = vld [vmem:[#allocation4 + $0x208] sm:$0xff]
        %v3808 = vld [vmem:[#allocation4 + $0x210] sm:$0xff]
        %v3809 = vld [vmem:[#allocation4 + $0x218] sm:$0xff]
        %v3810 = vld [vmem:[#allocation4 + $0x220] sm:$0xff]
        %v3811 = vld [vmem:[#allocation4 + $0x228] sm:$0xff]
        %v3812 = vld [vmem:[#allocation4 + $0x230] sm:$0xff]
        %v3813 = vld [vmem:[#allocation4 + $0x238] sm:$0xff]
        %v3814 = vld [vmem:[#allocation4 + $0x240] sm:$0xff]
        %v3815 = vld [vmem:[#allocation4 + $0x248] sm:$0xff]
        %v3816 = vld [vmem:[#allocation4 + $0x250] sm:$0xff]
        %v3817 = vld [vmem:[#allocation4 + $0x258] sm:$0xff]
        %v3818 = vld [vmem:[#allocation4 + $0x260] sm:$0xff]
        %v3819 = vld [vmem:[#allocation4 + $0x268] sm:$0xff]
        %v3820 = vld [vmem:[#allocation4 + $0x270] sm:$0xff]
        %v3821 = vld [vmem:[#allocation4 + $0x278] sm:$0xff]
        %v3822 = vld [vmem:[#allocation4 + $0x280] sm:$0xff]
        %v3823 = vld [vmem:[#allocation4 + $0x288] sm:$0xff]
        %v3824 = vld [vmem:[#allocation4 + $0x290] sm:$0xff]
        %v3825 = vld [vmem:[#allocation4 + $0x298] sm:$0xff]
        %v3826 = vld [vmem:[#allocation4 + $0x2a0] sm:$0xff]
        %v3827 = vld [vmem:[#allocation4 + $0x2a8] sm:$0xff]
        %v3828 = vld [vmem:[#allocation4 + $0x2b0] sm:$0xff]
        %v3829 = vld [vmem:[#allocation4 + $0x2b8] sm:$0xff]
        %v3830 = vld [vmem:[#allocation4 + $0x2c0] sm:$0xff]
        %v3831 = vld [vmem:[#allocation4 + $0x2c8] sm:$0xff]
        %v3832 = vld [vmem:[#allocation4 + $0x2d0] sm:$0xff]
        %v3833 = vld [vmem:[#allocation4 + $0x2d8] sm:$0xff]
        %v3834 = vld [vmem:[#allocation4 + $0x2e0] sm:$0xff]
        %v3835 = vld [vmem:[#allocation4 + $0x2e8] sm:$0xff]
        %v3836 = vld [vmem:[#allocation4 + $0x2f0] sm:$0xff]
        %v3837 = vld [vmem:[#allocation4 + $0x2f8] sm:$0xff]
        %v3838 = vld [vmem:[#allocation4 + $0x300] sm:$0xff]
        %v3839 = vld [vmem:[#allocation4 + $0x308] sm:$0xff]
        %v3840 = vld [vmem:[#allocation4 + $0x310] sm:$0xff]
        %v3841 = vld [vmem:[#allocation4 + $0x318] sm:$0xff]
        %v3842 = vld [vmem:[#allocation4 + $0x320] sm:$0xff]
        %v3843 = vld [vmem:[#allocation4 + $0x328] sm:$0xff]
        %v3844 = vld [vmem:[#allocation4 + $0x330] sm:$0xff]
        %v3845 = vld [vmem:[#allocation4 + $0x338] sm:$0xff]
        %v3846 = vld [vmem:[#allocation4 + $0x340] sm:$0xff]
        %v3847 = vld [vmem:[#allocation4 + $0x348] sm:$0xff]
        %v3848 = vld [vmem:[#allocation4 + $0x350] sm:$0xff]
        %v3849 = vld [vmem:[#allocation4 + $0x358] sm:$0xff]
        %v3850 = vld [vmem:[#allocation4 + $0x360] sm:$0xff]
        %v3851 = vld [vmem:[#allocation4 + $0x368] sm:$0xff]
        %v3852 = vld [vmem:[#allocation4 + $0x370] sm:$0xff]
        %v3853 = vld [vmem:[#allocation4 + $0x378] sm:$0xff]
        %v3854 = vld [vmem:[#allocation4 + $0x380] sm:$0xff]
        %v3855 = vld [vmem:[#allocation4 + $0x388] sm:$0xff]
        %v3856 = vld [vmem:[#allocation4 + $0x390] sm:$0xff]
        %v3857 = vld [vmem:[#allocation4 + $0x398] sm:$0xff]
        %v3858 = vld [vmem:[#allocation4 + $0x3a0] sm:$0xff]
        %v3859 = vld [vmem:[#allocation4 + $0x3a8] sm:$0xff]
        %v3860 = vld [vmem:[#allocation4 + $0x3b0] sm:$0xff]
        %v3861 = vld [vmem:[#allocation4 + $0x3b8] sm:$0xff]
        %v3862 = vld [vmem:[#allocation4 + $0x3c0] sm:$0xff]
        %v3863 = vld [vmem:[#allocation4 + $0x3c8] sm:$0xff]
        %v3864 = vld [vmem:[#allocation4 + $0x3d0] sm:$0xff]
        %v3865 = vld [vmem:[#allocation4 + $0x3d8] sm:$0xff]
        %v3866 = vld [vmem:[#allocation4 + $0x3e0] sm:$0xff]
        %v3867 = vld [vmem:[#allocation4 + $0x3e8] sm:$0xff]
        %v3868 = vld [vmem:[#allocation4 + $0x3f0] sm:$0xff]
        %v3869 = vld [vmem:[#allocation4 + $0x3f8] sm:$0xff]
        %v3870 = vld [vmem:[#allocation4 + $0x400] sm:$0xff]
        %v3871 = vld [vmem:[#allocation4 + $0x408] sm:$0xff]
        %v3872 = vld [vmem:[#allocation4 + $0x410] sm:$0xff]
        %v3873 = vld [vmem:[#allocation4 + $0x418] sm:$0xff]
        %v3874 = vld [vmem:[#allocation4 + $0x420] sm:$0xff]
        %v3875 = vld [vmem:[#allocation4 + $0x428] sm:$0xff]
        %v3876 = vld [vmem:[#allocation4 + $0x430] sm:$0xff]
        %v3877 = vld [vmem:[#allocation4 + $0x438] sm:$0xff]
        %v3878 = vld [vmem:[%s2] sm:$0xf]
        %v3879 = vld [vmem:[%s2 + $0x4] sm:$0xf]
        %v3880 = vld [vmem:[%s2 + $0x8] sm:$0xf]
        %v3881 = vld [vmem:[%s2 + $0xc] sm:$0xf]
        %v3882 = vld [vmem:[%s2 + $0x10] sm:$0xf]
        %v3883 = vld [vmem:[%s2 + $0x14] sm:$0xf]
        %v3884 = vld [vmem:[%s2 + $0x18] sm:$0xf]
        %v3885 = vld [vmem:[%s2 + $0x1c] sm:$0xf]
        %v3886 = vld [vmem:[%s2 + $0x20] sm:$0xf]
        %v3887 = vld [vmem:[%s2 + $0x24] sm:$0xf]
        %v3888 = vld [vmem:[%s2 + $0x28] sm:$0xf]
        %v3889 = vld [vmem:[%s2 + $0x2c] sm:$0xf]
        %v3890 = vld [vmem:[%s2 + $0x30] sm:$0xf]
        %v3891 = vld [vmem:[%s2 + $0x34] sm:$0xf]
        %v3892 = vld [vmem:[%s2 + $0x38] sm:$0xf]
        %v3893 = vld [vmem:[%s2 + $0x3c] sm:$0xf]
        %v3894 = vld [vmem:[%s2 + $0x40] sm:$0xf]
        %v3895 = vld [vmem:[%s2 + $0x44] sm:$0xf]
        %v3896 = vld [vmem:[%s2 + $0x48] sm:$0xf]
        %v3897 = vld [vmem:[%s2 + $0x4c] sm:$0xf]
        %v3898 = vld [vmem:[%s2 + $0x50] sm:$0xf]
        %v3899 = vld [vmem:[%s2 + $0x54] sm:$0xf]
        %v3900 = vld [vmem:[%s2 + $0x58] sm:$0xf]
        %v3901 = vld [vmem:[%s2 + $0x5c] sm:$0xf]
        %v3902 = vld [vmem:[%s2 + $0x60] sm:$0xf]
        %v3903 = vld [vmem:[%s2 + $0x64] sm:$0xf]
        %v3904 = vld [vmem:[%s2 + $0x68] sm:$0xf]
        %v3905 = vld [vmem:[%s2 + $0x6c] sm:$0xf]
        %v3906 = vld [vmem:[%s2 + $0x70] sm:$0xf]
        %v3907 = vld [vmem:[%s2 + $0x74] sm:$0xf]
        %v3908 = vld [vmem:[%s2 + $0x78] sm:$0xf]
        %v3909 = vld [vmem:[%s2 + $0x7c] sm:$0xf]
        %v3910 = vld [vmem:[%s2 + $0x80] sm:$0xf]
        %v3911 = vld [vmem:[%s2 + $0x84] sm:$0xf]
        %v3912 = vld [vmem:[%s2 + $0x88] sm:$0xf]
        %v3913 = vld [vmem:[%s2 + $0x8c] sm:$0xf]
        %v3914 = vld [vmem:[%s2 + $0x90] sm:$0xf]
        %v3915 = vld [vmem:[%s2 + $0x94] sm:$0xf]
        %v3916 = vld [vmem:[%s2 + $0x98] sm:$0xf]
        %v3917 = vld [vmem:[%s2 + $0x9c] sm:$0xf]
        %v3918 = vld [vmem:[%s2 + $0xa0] sm:$0xf]
        %v3919 = vld [vmem:[%s2 + $0xa4] sm:$0xf]
        %v3920 = vld [vmem:[%s2 + $0xa8] sm:$0xf]
        %v3921 = vld [vmem:[%s2 + $0xac] sm:$0xf]
        %v3922 = vld [vmem:[%s2 + $0xb0] sm:$0xf]
        %v3923 = vld [vmem:[%s2 + $0xb4] sm:$0xf]
        %v3924 = vld [vmem:[%s2 + $0xb8] sm:$0xf]
        %v3925 = vld [vmem:[%s2 + $0xbc] sm:$0xf]
        %v3926 = vld [vmem:[%s2 + $0xc0] sm:$0xf]
        %v3927 = vld [vmem:[%s2 + $0xc4] sm:$0xf]
        %v3928 = vld [vmem:[%s2 + $0xc8] sm:$0xf]
        %v3929 = vld [vmem:[%s2 + $0xcc] sm:$0xf]
        %v3930 = vld [vmem:[%s2 + $0xd0] sm:$0xf]
        %v3931 = vld [vmem:[%s2 + $0xd4] sm:$0xf]
        %v3932 = vld [vmem:[%s2 + $0xd8] sm:$0xf]
        %v3933 = vld [vmem:[%s2 + $0xdc] sm:$0xf]
        %v3934 = vld [vmem:[%s2 + $0xe0] sm:$0xf]
        %v3935 = vld [vmem:[%s2 + $0xe4] sm:$0xf]
        %v3936 = vld [vmem:[%s2 + $0xe8] sm:$0xf]
        %v3937 = vld [vmem:[%s2 + $0xec] sm:$0xf]
        %v3938 = vld [vmem:[%s2 + $0xf0] sm:$0xf]
        %v3939 = vld [vmem:[%s2 + $0xf4] sm:$0xf]
        %v3940 = vld [vmem:[%s2 + $0xf8] sm:$0xf]
        %v3941 = vld [vmem:[%s2 + $0xfc] sm:$0xf]
        %v3942 = vld [vmem:[%s2 + $0x100] sm:$0xf]
        %v3943 = vld [vmem:[%s2 + $0x104] sm:$0xf]
        %v3944 = vld [vmem:[%s2 + $0x108] sm:$0xf]
        %v3945 = vld [vmem:[%s2 + $0x10c] sm:$0xf]
        %v3946 = vld [vmem:[%s2 + $0x110] sm:$0xf]
        %v3947 = vld [vmem:[%s2 + $0x114] sm:$0xf]
        %v3948 = vld [vmem:[%s2 + $0x118] sm:$0xf]
        %v3949 = vld [vmem:[%s2 + $0x11c] sm:$0xf]
        %v3950 = vld [vmem:[%s2 + $0x120] sm:$0xf]
        %v3951 = vld [vmem:[%s2 + $0x124] sm:$0xf]
        %v3952 = vld [vmem:[%s2 + $0x128] sm:$0xf]
        %v3953 = vld [vmem:[%s2 + $0x12c] sm:$0xf]
        %v3954 = vld [vmem:[%s2 + $0x130] sm:$0xf]
        %v3955 = vld [vmem:[%s2 + $0x134] sm:$0xf]
        %v3956 = vld [vmem:[%s2 + $0x138] sm:$0xf]
        %v3957 = vld [vmem:[%s2 + $0x13c] sm:$0xf]
        %v3958 = vld [vmem:[%s2 + $0x140] sm:$0xf]
        %v3959 = vld [vmem:[%s2 + $0x144] sm:$0xf]
        %v3960 = vld [vmem:[%s2 + $0x148] sm:$0xf]
        %v3961 = vld [vmem:[%s2 + $0x14c] sm:$0xf]
        %v3962 = vld [vmem:[%s2 + $0x150] sm:$0xf]
        %v3963 = vld [vmem:[%s2 + $0x154] sm:$0xf]
        %v3964 = vld [vmem:[%s2 + $0x158] sm:$0xf]
        %v3965 = vld [vmem:[%s2 + $0x15c] sm:$0xf]
        %v3966 = vld [vmem:[%s2 + $0x160] sm:$0xf]
        %v3967 = vld [vmem:[%s2 + $0x164] sm:$0xf]
        %v3968 = vld [vmem:[%s2 + $0x168] sm:$0xf]
        %v3969 = vld [vmem:[%s2 + $0x16c] sm:$0xf]
        %v3970 = vld [vmem:[%s2 + $0x170] sm:$0xf]
        %v3971 = vld [vmem:[%s2 + $0x174] sm:$0xf]
        %v3972 = vld [vmem:[%s2 + $0x178] sm:$0xf]
        %v3973 = vld [vmem:[%s2 + $0x17c] sm:$0xf]
        %v3974 = vld [vmem:[%s2 + $0x180] sm:$0xf]
        %v3975 = vld [vmem:[%s2 + $0x184] sm:$0xf]
        %v3976 = vld [vmem:[%s2 + $0x188] sm:$0xf]
        %v3977 = vld [vmem:[%s2 + $0x18c] sm:$0xf]
        %v3978 = vld [vmem:[%s2 + $0x190] sm:$0xf]
        %v3979 = vld [vmem:[%s2 + $0x194] sm:$0xf]
        %v3980 = vld [vmem:[%s2 + $0x198] sm:$0xf]
        %v3981 = vld [vmem:[%s2 + $0x19c] sm:$0xf]
        %v3982 = vld [vmem:[%s2 + $0x1a0] sm:$0xf]
        %v3983 = vld [vmem:[%s2 + $0x1a4] sm:$0xf]
        %v3984 = vld [vmem:[%s2 + $0x1a8] sm:$0xf]
        %v3985 = vld [vmem:[%s2 + $0x1ac] sm:$0xf]
        %v3986 = vld [vmem:[%s2 + $0x1b0] sm:$0xf]
        %v3987 = vld [vmem:[%s2 + $0x1b4] sm:$0xf]
        %v3988 = vld [vmem:[%s2 + $0x1b8] sm:$0xf]
        %v3989 = vld [vmem:[%s2 + $0x1bc] sm:$0xf]
        %v3990 = vld [vmem:[%s2 + $0x1c0] sm:$0xf]
        %v3991 = vld [vmem:[%s2 + $0x1c4] sm:$0xf]
        %v3992 = vld [vmem:[%s2 + $0x1c8] sm:$0xf]
        %v3993 = vld [vmem:[%s2 + $0x1cc] sm:$0xf]
        %v3994 = vld [vmem:[%s2 + $0x1d0] sm:$0xf]
        %v3995 = vld [vmem:[%s2 + $0x1d4] sm:$0xf]
        %v3996 = vld [vmem:[%s2 + $0x1d8] sm:$0xf]
        %v3997 = vld [vmem:[%s2 + $0x1dc] sm:$0xf]
        %v3998 = vld [vmem:[%s2 + $0x1e0] sm:$0xf]
        %v3999 = vld [vmem:[%s2 + $0x1e4] sm:$0xf]
        %v4000 = vld [vmem:[%s2 + $0x1e8] sm:$0xf]
        %v4001 = vld [vmem:[%s2 + $0x1ec] sm:$0xf]
        %v4002 = vld [vmem:[%s2 + $0x1f0] sm:$0xf]
        %v4003 = vld [vmem:[%s2 + $0x1f4] sm:$0xf]
        %v4004 = vld [vmem:[%s2 + $0x1f8] sm:$0xf]
        %v4005 = vld [vmem:[%s2 + $0x1fc] sm:$0xf]
        %v4006 = vld [vmem:[%s3] sm:$0x1]
        %v4008 = vperm.slane %v4006, 0
        %v4146 = vunpack.c.l.b16 %v3742
        %v4147 = vunpack.c.h.b16 %v3742
        %v4148 = vunpack.c.l.b16 %v3743
        %v4149 = vunpack.c.h.b16 %v3743
        %v4150 = vunpack.c.l.b16 %v3744
        %v4151 = vunpack.c.h.b16 %v3744
        %v4152 = vunpack.c.l.b16 %v3745
        %v4153 = vunpack.c.h.b16 %v3745
        %v4154 = vunpack.c.l.b16 %v3746
        %v4155 = vunpack.c.h.b16 %v3746
        %v4156 = vunpack.c.l.b16 %v3747
        %v4157 = vunpack.c.h.b16 %v3747
        %v4158 = vunpack.c.l.b16 %v3748
        %v4159 = vunpack.c.h.b16 %v3748
        %v4160 = vunpack.c.l.b16 %v3749
        %v4161 = vunpack.c.h.b16 %v3749
        %v4162 = vunpack.c.l.b16 %v3750
        %v4163 = vunpack.c.h.b16 %v3750
        %v4164 = vunpack.c.l.b16 %v3751
        %v4165 = vunpack.c.h.b16 %v3751
        %v4166 = vunpack.c.l.b16 %v3752
        %v4167 = vunpack.c.h.b16 %v3752
        %v4168 = vunpack.c.l.b16 %v3753
        %v4169 = vunpack.c.h.b16 %v3753
        %v4170 = vunpack.c.l.b16 %v3754
        %v4171 = vunpack.c.h.b16 %v3754
        %v4172 = vunpack.c.l.b16 %v3755
        %v4173 = vunpack.c.h.b16 %v3755
        %v4174 = vunpack.c.l.b16 %v3756
        %v4175 = vunpack.c.h.b16 %v3756
        %v4176 = vunpack.c.l.b16 %v3757
        %v4177 = vunpack.c.h.b16 %v3757
        %v4178 = vunpack.c.l.b16 %v3758
        %v4179 = vunpack.c.h.b16 %v3758
        %v4180 = vunpack.c.l.b16 %v3759
        %v4181 = vunpack.c.h.b16 %v3759
        %v4182 = vunpack.c.l.b16 %v3760
        %v4183 = vunpack.c.h.b16 %v3760
        %v4184 = vunpack.c.l.b16 %v3761
        %v4185 = vunpack.c.h.b16 %v3761
        %v4186 = vunpack.c.l.b16 %v3762
        %v4187 = vunpack.c.h.b16 %v3762
        %v4188 = vunpack.c.l.b16 %v3763
        %v4189 = vunpack.c.h.b16 %v3763
        %v4190 = vunpack.c.l.b16 %v3764
        %v4191 = vunpack.c.h.b16 %v3764
        %v4192 = vunpack.c.l.b16 %v3765
        %v4193 = vunpack.c.h.b16 %v3765
        %v4194 = vunpack.c.l.b16 %v3766
        %v4195 = vunpack.c.h.b16 %v3766
        %v4196 = vunpack.c.l.b16 %v3767
        %v4197 = vunpack.c.h.b16 %v3767
        %v4198 = vunpack.c.l.b16 %v3768
        %v4199 = vunpack.c.h.b16 %v3768
        %v4200 = vunpack.c.l.b16 %v3769
        %v4201 = vunpack.c.h.b16 %v3769
        %v4202 = vunpack.c.l.b16 %v3770
        %v4203 = vunpack.c.h.b16 %v3770
        %v4204 = vunpack.c.l.b16 %v3771
        %v4205 = vunpack.c.h.b16 %v3771
        %v4206 = vunpack.c.l.b16 %v3772
        %v4207 = vunpack.c.h.b16 %v3772
        %v4208 = vunpack.c.l.b16 %v3773
        %v4209 = vunpack.c.h.b16 %v3773
        %v4210 = vunpack.c.l.b16 %v3774
        %v4211 = vunpack.c.h.b16 %v3774
        %v4212 = vunpack.c.l.b16 %v3775
        %v4213 = vunpack.c.h.b16 %v3775
        %v4214 = vunpack.c.l.b16 %v3776
        %v4215 = vunpack.c.h.b16 %v3776
        %v4216 = vunpack.c.l.b16 %v3777
        %v4217 = vunpack.c.h.b16 %v3777
        %v4218 = vunpack.c.l.b16 %v3778
        %v4219 = vunpack.c.h.b16 %v3778
        %v4220 = vunpack.c.l.b16 %v3779
        %v4221 = vunpack.c.h.b16 %v3779
        %v4222 = vunpack.c.l.b16 %v3780
        %v4223 = vunpack.c.h.b16 %v3780
        %v4224 = vunpack.c.l.b16 %v3781
        %v4225 = vunpack.c.h.b16 %v3781
        %v4226 = vunpack.c.l.b16 %v3782
        %v4227 = vunpack.c.h.b16 %v3782
        %v4228 = vunpack.c.l.b16 %v3783
        %v4229 = vunpack.c.h.b16 %v3783
        %v4230 = vunpack.c.l.b16 %v3784
        %v4231 = vunpack.c.h.b16 %v3784
        %v4232 = vunpack.c.l.b16 %v3785
        %v4233 = vunpack.c.h.b16 %v3785
        %v4234 = vunpack.c.l.b16 %v3786
        %v4235 = vunpack.c.h.b16 %v3786
        %v4236 = vunpack.c.l.b16 %v3787
        %v4237 = vunpack.c.h.b16 %v3787
        %v4238 = vunpack.c.l.b16 %v3788
        %v4239 = vunpack.c.h.b16 %v3788
        %v4240 = vunpack.c.l.b16 %v3789
        %v4241 = vunpack.c.h.b16 %v3789
        %v4242 = vunpack.c.l.b16 %v3790
        %v4243 = vunpack.c.h.b16 %v3790
        %v4244 = vunpack.c.l.b16 %v3791
        %v4245 = vunpack.c.h.b16 %v3791
        %v4246 = vunpack.c.l.b16 %v3792
        %v4247 = vunpack.c.h.b16 %v3792
        %v4248 = vunpack.c.l.b16 %v3793
        %v4249 = vunpack.c.h.b16 %v3793
        %v4250 = vunpack.c.l.b16 %v3794
        %v4251 = vunpack.c.h.b16 %v3794
        %v4252 = vunpack.c.l.b16 %v3795
        %v4253 = vunpack.c.h.b16 %v3795
        %v4254 = vunpack.c.l.b16 %v3796
        %v4255 = vunpack.c.h.b16 %v3796
        %v4256 = vunpack.c.l.b16 %v3797
        %v4257 = vunpack.c.h.b16 %v3797
        %v4258 = vunpack.c.l.b16 %v3798
        %v4259 = vunpack.c.h.b16 %v3798
        %v4260 = vunpack.c.l.b16 %v3799
        %v4261 = vunpack.c.h.b16 %v3799
        %v4262 = vunpack.c.l.b16 %v3800
        %v4263 = vunpack.c.h.b16 %v3800
        %v4264 = vunpack.c.l.b16 %v3801
        %v4265 = vunpack.c.h.b16 %v3801
        %v4266 = vunpack.c.l.b16 %v3802
        %v4267 = vunpack.c.h.b16 %v3802
        %v4268 = vunpack.c.l.b16 %v3803
        %v4269 = vunpack.c.h.b16 %v3803
        %v4270 = vunpack.c.l.b16 %v3804
        %v4271 = vunpack.c.h.b16 %v3804
        %v4272 = vunpack.c.l.b16 %v3805
        %v4273 = vunpack.c.h.b16 %v3805
        %v4274 = vunpack.c.l.b16 %v3806
        %v4275 = vunpack.c.h.b16 %v3806
        %v4276 = vunpack.c.l.b16 %v3807
        %v4277 = vunpack.c.h.b16 %v3807
        %v4278 = vunpack.c.l.b16 %v3808
        %v4279 = vunpack.c.h.b16 %v3808
        %v4280 = vunpack.c.l.b16 %v3809
        %v4281 = vunpack.c.h.b16 %v3809
        %v4282 = vunpack.c.l.b16 %v3810
        %v4283 = vunpack.c.h.b16 %v3810
        %v4284 = vunpack.c.l.b16 %v3811
        %v4285 = vunpack.c.h.b16 %v3811
        %v4286 = vunpack.c.l.b16 %v3812
        %v4287 = vunpack.c.h.b16 %v3812
        %v4288 = vunpack.c.l.b16 %v3813
        %v4289 = vunpack.c.h.b16 %v3813
        %v4290 = vunpack.c.l.b16 %v3814
        %v4291 = vunpack.c.h.b16 %v3814
        %v4292 = vunpack.c.l.b16 %v3815
        %v4293 = vunpack.c.h.b16 %v3815
        %v4294 = vunpack.c.l.b16 %v3816
        %v4295 = vunpack.c.h.b16 %v3816
        %v4296 = vunpack.c.l.b16 %v3817
        %v4297 = vunpack.c.h.b16 %v3817
        %v4298 = vunpack.c.l.b16 %v3818
        %v4299 = vunpack.c.h.b16 %v3818
        %v4300 = vunpack.c.l.b16 %v3819
        %v4301 = vunpack.c.h.b16 %v3819
        %v4302 = vunpack.c.l.b16 %v3820
        %v4303 = vunpack.c.h.b16 %v3820
        %v4304 = vunpack.c.l.b16 %v3821
        %v4305 = vunpack.c.h.b16 %v3821
        %v4306 = vunpack.c.l.b16 %v3822
        %v4307 = vunpack.c.h.b16 %v3822
        %v4308 = vunpack.c.l.b16 %v3823
        %v4309 = vunpack.c.h.b16 %v3823
        %v4310 = vunpack.c.l.b16 %v3824
        %v4311 = vunpack.c.h.b16 %v3824
        %v4312 = vunpack.c.l.b16 %v3825
        %v4313 = vunpack.c.h.b16 %v3825
        %v4314 = vunpack.c.l.b16 %v3826
        %v4315 = vunpack.c.h.b16 %v3826
        %v4316 = vunpack.c.l.b16 %v3827
        %v4317 = vunpack.c.h.b16 %v3827
        %v4318 = vunpack.c.l.b16 %v3828
        %v4319 = vunpack.c.h.b16 %v3828
        %v4320 = vunpack.c.l.b16 %v3829
        %v4321 = vunpack.c.h.b16 %v3829
        %v4322 = vunpack.c.l.b16 %v3830
        %v4323 = vunpack.c.h.b16 %v3830
        %v4324 = vunpack.c.l.b16 %v3831
        %v4325 = vunpack.c.h.b16 %v3831
        %v4326 = vunpack.c.l.b16 %v3832
        %v4327 = vunpack.c.h.b16 %v3832
        %v4328 = vunpack.c.l.b16 %v3833
        %v4329 = vunpack.c.h.b16 %v3833
        %v4330 = vunpack.c.l.b16 %v3834
        %v4331 = vunpack.c.h.b16 %v3834
        %v4332 = vunpack.c.l.b16 %v3835
        %v4333 = vunpack.c.h.b16 %v3835
        %v4334 = vunpack.c.l.b16 %v3836
        %v4335 = vunpack.c.h.b16 %v3836
        %v4336 = vunpack.c.l.b16 %v3837
        %v4337 = vunpack.c.h.b16 %v3837
        %v4338 = vunpack.c.l.b16 %v3838
        %v4339 = vunpack.c.h.b16 %v3838
        %v4340 = vunpack.c.l.b16 %v3839
        %v4341 = vunpack.c.h.b16 %v3839
        %v4342 = vunpack.c.l.b16 %v3840
        %v4343 = vunpack.c.h.b16 %v3840
        %v4344 = vunpack.c.l.b16 %v3841
        %v4345 = vunpack.c.h.b16 %v3841
        %v4346 = vunpack.c.l.b16 %v3842
        %v4347 = vunpack.c.h.b16 %v3842
        %v4348 = vunpack.c.l.b16 %v3843
        %v4349 = vunpack.c.h.b16 %v3843
        %v4350 = vunpack.c.l.b16 %v3844
        %v4351 = vunpack.c.h.b16 %v3844
        %v4352 = vunpack.c.l.b16 %v3845
        %v4353 = vunpack.c.h.b16 %v3845
        %v4354 = vunpack.c.l.b16 %v3846
        %v4355 = vunpack.c.h.b16 %v3846
        %v4356 = vunpack.c.l.b16 %v3847
        %v4357 = vunpack.c.h.b16 %v3847
        %v4358 = vunpack.c.l.b16 %v3848
        %v4359 = vunpack.c.h.b16 %v3848
        %v4360 = vunpack.c.l.b16 %v3849
        %v4361 = vunpack.c.h.b16 %v3849
        %v4362 = vunpack.c.l.b16 %v3850
        %v4363 = vunpack.c.h.b16 %v3850
        %v4364 = vunpack.c.l.b16 %v3851
        %v4365 = vunpack.c.h.b16 %v3851
        %v4366 = vunpack.c.l.b16 %v3852
        %v4367 = vunpack.c.h.b16 %v3852
        %v4368 = vunpack.c.l.b16 %v3853
        %v4369 = vunpack.c.h.b16 %v3853
        %v4370 = vunpack.c.l.b16 %v3854
        %v4371 = vunpack.c.h.b16 %v3854
        %v4372 = vunpack.c.l.b16 %v3855
        %v4373 = vunpack.c.h.b16 %v3855
        %v4374 = vunpack.c.l.b16 %v3856
        %v4375 = vunpack.c.h.b16 %v3856
        %v4376 = vunpack.c.l.b16 %v3857
        %v4377 = vunpack.c.h.b16 %v3857
        %v4378 = vunpack.c.l.b16 %v3858
        %v4379 = vunpack.c.h.b16 %v3858
        %v4380 = vunpack.c.l.b16 %v3859
        %v4381 = vunpack.c.h.b16 %v3859
        %v4382 = vunpack.c.l.b16 %v3860
        %v4383 = vunpack.c.h.b16 %v3860
        %v4384 = vunpack.c.l.b16 %v3861
        %v4385 = vunpack.c.h.b16 %v3861
        %v4386 = vunpack.c.l.b16 %v3862
        %v4387 = vunpack.c.h.b16 %v3862
        %v4388 = vunpack.c.l.b16 %v3863
        %v4389 = vunpack.c.h.b16 %v3863
        %v4390 = vunpack.c.l.b16 %v3864
        %v4391 = vunpack.c.h.b16 %v3864
        %v4392 = vunpack.c.l.b16 %v3865
        %v4393 = vunpack.c.h.b16 %v3865
        %v4394 = vunpack.c.l.b16 %v3866
        %v4395 = vunpack.c.h.b16 %v3866
        %v4396 = vunpack.c.l.b16 %v3867
        %v4397 = vunpack.c.h.b16 %v3867
        %v4398 = vunpack.c.l.b16 %v3868
        %v4399 = vunpack.c.h.b16 %v3868
        %v4400 = vunpack.c.l.b16 %v3869
        %v4401 = vunpack.c.h.b16 %v3869
        %v4402 = vunpack.c.l.b16 %v3870
        %v4403 = vunpack.c.h.b16 %v3870
        %v4404 = vunpack.c.l.b16 %v3871
        %v4405 = vunpack.c.h.b16 %v3871
        %v4406 = vunpack.c.l.b16 %v3872
        %v4407 = vunpack.c.h.b16 %v3872
        %v4408 = vunpack.c.l.b16 %v3873
        %v4409 = vunpack.c.h.b16 %v3873
        %v4410 = vunpack.c.l.b16 %v3874
        %v4411 = vunpack.c.h.b16 %v3874
        %v4412 = vunpack.c.l.b16 %v3875
        %v4413 = vunpack.c.h.b16 %v3875
        %v4414 = vunpack.c.l.b16 %v3876
        %v4415 = vunpack.c.h.b16 %v3876
        %v4416 = vunpack.c.l.b16 %v3877
        %v4417 = vunpack.c.h.b16 %v3877
        %v4418 = vpack.c.b16 %v4154, %v4146
        %v4419 = vpack.c.b16 %v4155, %v4147
        %v4420 = vpack.c.b16 %v4156, %v4148
        %v4421 = vpack.c.b16 %v4157, %v4149
        %v4422 = vpack.c.b16 %v4158, %v4150
        %v4423 = vpack.c.b16 %v4159, %v4151
        %v4424 = vpack.c.b16 %v4160, %v4152
        %v4425 = vpack.c.b16 %v4161, %v4153
        %v4426 = vpack.c.b16 %v4170, %v4162
        %v4427 = vpack.c.b16 %v4171, %v4163
        %v4428 = vpack.c.b16 %v4172, %v4164
        %v4429 = vpack.c.b16 %v4173, %v4165
        %v4430 = vpack.c.b16 %v4174, %v4166
        %v4431 = vpack.c.b16 %v4175, %v4167
        %v4432 = vpack.c.b16 %v4176, %v4168
        %v4433 = vpack.c.b16 %v4177, %v4169
        %v4434 = vpack.c.b16 %v4186, %v4178
        %v4435 = vpack.c.b16 %v4187, %v4179
        %v4436 = vpack.c.b16 %v4188, %v4180
        %v4437 = vpack.c.b16 %v4189, %v4181
        %v4438 = vpack.c.b16 %v4190, %v4182
        %v4439 = vpack.c.b16 %v4191, %v4183
        %v4440 = vpack.c.b16 %v4192, %v4184
        %v4441 = vpack.c.b16 %v4193, %v4185
        %v4442 = vpack.c.b16 %v4202, %v4194
        %v4443 = vpack.c.b16 %v4203, %v4195
        %v4444 = vpack.c.b16 %v4204, %v4196
        %v4445 = vpack.c.b16 %v4205, %v4197
        %v4446 = vpack.c.b16 %v4206, %v4198
        %v4447 = vpack.c.b16 %v4207, %v4199
        %v4448 = vpack.c.b16 %v4208, %v4200
        %v4449 = vpack.c.b16 %v4209, %v4201
        %v4450 = vpack.c.b16 %v4218, %v4210
        %v4451 = vpack.c.b16 %v4219, %v4211
        %v4452 = vpack.c.b16 %v4220, %v4212
        %v4453 = vpack.c.b16 %v4221, %v4213
        %v4454 = vpack.c.b16 %v4222, %v4214
        %v4455 = vpack.c.b16 %v4223, %v4215
        %v4456 = vpack.c.b16 %v4224, %v4216
        %v4457 = vpack.c.b16 %v4225, %v4217
        %v4458 = vpack.c.b16 %v4234, %v4226
        %v4459 = vpack.c.b16 %v4235, %v4227
        %v4460 = vpack.c.b16 %v4236, %v4228
        %v4461 = vpack.c.b16 %v4237, %v4229
        %v4462 = vpack.c.b16 %v4238, %v4230
        %v4463 = vpack.c.b16 %v4239, %v4231
        %v4464 = vpack.c.b16 %v4240, %v4232
        %v4465 = vpack.c.b16 %v4241, %v4233
        %v4466 = vpack.c.b16 %v4250, %v4242
        %v4467 = vpack.c.b16 %v4251, %v4243
        %v4468 = vpack.c.b16 %v4252, %v4244
        %v4469 = vpack.c.b16 %v4253, %v4245
        %v4470 = vpack.c.b16 %v4254, %v4246
        %v4471 = vpack.c.b16 %v4255, %v4247
        %v4472 = vpack.c.b16 %v4256, %v4248
        %v4473 = vpack.c.b16 %v4257, %v4249
        %v4474 = vpack.c.b16 %v4266, %v4258
        %v4475 = vpack.c.b16 %v4267, %v4259
        %v4476 = vpack.c.b16 %v4268, %v4260
        %v4477 = vpack.c.b16 %v4269, %v4261
        %v4478 = vpack.c.b16 %v4270, %v4262
        %v4479 = vpack.c.b16 %v4271, %v4263
        %v4480 = vpack.c.b16 %v4272, %v4264
        %v4481 = vpack.c.b16 %v4273, %v4265
        %v4482 = vpack.c.b16 %v4282, %v4274
        %v4483 = vpack.c.b16 %v4283, %v4275
        %v4484 = vpack.c.b16 %v4284, %v4276
        %v4485 = vpack.c.b16 %v4285, %v4277
        %v4486 = vpack.c.b16 %v4286, %v4278
        %v4487 = vpack.c.b16 %v4287, %v4279
        %v4488 = vpack.c.b16 %v4288, %v4280
        %v4489 = vpack.c.b16 %v4289, %v4281
        %v4490 = vpack.c.b16 %v4298, %v4290
        %v4491 = vpack.c.b16 %v4299, %v4291
        %v4492 = vpack.c.b16 %v4300, %v4292
        %v4493 = vpack.c.b16 %v4301, %v4293
        %v4494 = vpack.c.b16 %v4302, %v4294
        %v4495 = vpack.c.b16 %v4303, %v4295
        %v4496 = vpack.c.b16 %v4304, %v4296
        %v4497 = vpack.c.b16 %v4305, %v4297
        %v4498 = vpack.c.b16 %v4314, %v4306
        %v4499 = vpack.c.b16 %v4315, %v4307
        %v4500 = vpack.c.b16 %v4316, %v4308
        %v4501 = vpack.c.b16 %v4317, %v4309
        %v4502 = vpack.c.b16 %v4318, %v4310
        %v4503 = vpack.c.b16 %v4319, %v4311
        %v4504 = vpack.c.b16 %v4320, %v4312
        %v4505 = vpack.c.b16 %v4321, %v4313
        %v4506 = vpack.c.b16 %v4330, %v4322
        %v4507 = vpack.c.b16 %v4331, %v4323
        %v4508 = vpack.c.b16 %v4332, %v4324
        %v4509 = vpack.c.b16 %v4333, %v4325
        %v4510 = vpack.c.b16 %v4334, %v4326
        %v4511 = vpack.c.b16 %v4335, %v4327
        %v4512 = vpack.c.b16 %v4336, %v4328
        %v4513 = vpack.c.b16 %v4337, %v4329
        %v4514 = vpack.c.b16 %v4346, %v4338
        %v4515 = vpack.c.b16 %v4347, %v4339
        %v4516 = vpack.c.b16 %v4348, %v4340
        %v4517 = vpack.c.b16 %v4349, %v4341
        %v4518 = vpack.c.b16 %v4350, %v4342
        %v4519 = vpack.c.b16 %v4351, %v4343
        %v4520 = vpack.c.b16 %v4352, %v4344
        %v4521 = vpack.c.b16 %v4353, %v4345
        %v4522 = vpack.c.b16 %v4362, %v4354
        %v4523 = vpack.c.b16 %v4363, %v4355
        %v4524 = vpack.c.b16 %v4364, %v4356
        %v4525 = vpack.c.b16 %v4365, %v4357
        %v4526 = vpack.c.b16 %v4366, %v4358
        %v4527 = vpack.c.b16 %v4367, %v4359
        %v4528 = vpack.c.b16 %v4368, %v4360
        %v4529 = vpack.c.b16 %v4369, %v4361
        %v4530 = vpack.c.b16 %v4378, %v4370
        %v4531 = vpack.c.b16 %v4379, %v4371
        %v4532 = vpack.c.b16 %v4380, %v4372
        %v4533 = vpack.c.b16 %v4381, %v4373
        %v4534 = vpack.c.b16 %v4382, %v4374
        %v4535 = vpack.c.b16 %v4383, %v4375
        %v4536 = vpack.c.b16 %v4384, %v4376
        %v4537 = vpack.c.b16 %v4385, %v4377
        %v4538 = vpack.c.b16 %v4394, %v4386
        %v4539 = vpack.c.b16 %v4395, %v4387
        %v4540 = vpack.c.b16 %v4396, %v4388
        %v4541 = vpack.c.b16 %v4397, %v4389
        %v4542 = vpack.c.b16 %v4398, %v4390
        %v4543 = vpack.c.b16 %v4399, %v4391
        %v4544 = vpack.c.b16 %v4400, %v4392
        %v4545 = vpack.c.b16 %v4401, %v4393
        %v4546 = vpack.c.b16 %v4410, %v4402
        %v4547 = vpack.c.b16 %v4411, %v4403
        %v4548 = vpack.c.b16 %v4412, %v4404
        %v4549 = vpack.c.b16 %v4413, %v4405
        %v4550 = vpack.c.b16 %v4414, %v4406
        %v4551 = vpack.c.b16 %v4415, %v4407
        %v4552 = vpack.c.b16 %v4416, %v4408
        %v4553 = vpack.c.b16 %v4417, %v4409
        %v4818 = vunpack.c.l.b16 %v3878
        %v4819 = vunpack.c.l.b16 %v3879
        %v4820 = vunpack.c.l.b16 %v3880
        %v4821 = vunpack.c.l.b16 %v3881
        %v4822 = vunpack.c.l.b16 %v3882
        %v4823 = vunpack.c.l.b16 %v3883
        %v4824 = vunpack.c.l.b16 %v3884
        %v4825 = vunpack.c.l.b16 %v3885
        %v4826 = vunpack.c.l.b16 %v3886
        %v4827 = vunpack.c.l.b16 %v3887
        %v4828 = vunpack.c.l.b16 %v3888
        %v4829 = vunpack.c.l.b16 %v3889
        %v4830 = vunpack.c.l.b16 %v3890
        %v4831 = vunpack.c.l.b16 %v3891
        %v4832 = vunpack.c.l.b16 %v3892
        %v4833 = vunpack.c.l.b16 %v3893
        %v4834 = vunpack.c.l.b16 %v3894
        %v4835 = vunpack.c.l.b16 %v3895
        %v4836 = vunpack.c.l.b16 %v3896
        %v4837 = vunpack.c.l.b16 %v3897
        %v4838 = vunpack.c.l.b16 %v3898
        %v4839 = vunpack.c.l.b16 %v3899
        %v4840 = vunpack.c.l.b16 %v3900
        %v4841 = vunpack.c.l.b16 %v3901
        %v4842 = vunpack.c.l.b16 %v3902
        %v4843 = vunpack.c.l.b16 %v3903
        %v4844 = vunpack.c.l.b16 %v3904
        %v4845 = vunpack.c.l.b16 %v3905
        %v4846 = vunpack.c.l.b16 %v3906
        %v4847 = vunpack.c.l.b16 %v3907
        %v4848 = vunpack.c.l.b16 %v3908
        %v4849 = vunpack.c.l.b16 %v3909
        %v4850 = vunpack.c.l.b16 %v3910
        %v4851 = vunpack.c.l.b16 %v3911
        %v4852 = vunpack.c.l.b16 %v3912
        %v4853 = vunpack.c.l.b16 %v3913
        %v4854 = vunpack.c.l.b16 %v3914
        %v4855 = vunpack.c.l.b16 %v3915
        %v4856 = vunpack.c.l.b16 %v3916
        %v4857 = vunpack.c.l.b16 %v3917
        %v4858 = vunpack.c.l.b16 %v3918
        %v4859 = vunpack.c.l.b16 %v3919
        %v4860 = vunpack.c.l.b16 %v3920
        %v4861 = vunpack.c.l.b16 %v3921
        %v4862 = vunpack.c.l.b16 %v3922
        %v4863 = vunpack.c.l.b16 %v3923
        %v4864 = vunpack.c.l.b16 %v3924
        %v4865 = vunpack.c.l.b16 %v3925
        %v4866 = vunpack.c.l.b16 %v3926
        %v4867 = vunpack.c.l.b16 %v3927
        %v4868 = vunpack.c.l.b16 %v3928
        %v4869 = vunpack.c.l.b16 %v3929
        %v4870 = vunpack.c.l.b16 %v3930
        %v4871 = vunpack.c.l.b16 %v3931
        %v4872 = vunpack.c.l.b16 %v3932
        %v4873 = vunpack.c.l.b16 %v3933
        %v4874 = vunpack.c.l.b16 %v3934
        %v4875 = vunpack.c.l.b16 %v3935
        %v4876 = vunpack.c.l.b16 %v3936
        %v4877 = vunpack.c.l.b16 %v3937
        %v4878 = vunpack.c.l.b16 %v3938
        %v4879 = vunpack.c.l.b16 %v3939
        %v4880 = vunpack.c.l.b16 %v3940
        %v4881 = vunpack.c.l.b16 %v3941
        %v4882 = vunpack.c.l.b16 %v3942
        %v4883 = vunpack.c.l.b16 %v3943
        %v4884 = vunpack.c.l.b16 %v3944
        %v4885 = vunpack.c.l.b16 %v3945
        %v4886 = vunpack.c.l.b16 %v3946
        %v4887 = vunpack.c.l.b16 %v3947
        %v4888 = vunpack.c.l.b16 %v3948
        %v4889 = vunpack.c.l.b16 %v3949
        %v4890 = vunpack.c.l.b16 %v3950
        %v4891 = vunpack.c.l.b16 %v3951
        %v4892 = vunpack.c.l.b16 %v3952
        %v4893 = vunpack.c.l.b16 %v3953
        %v4894 = vunpack.c.l.b16 %v3954
        %v4895 = vunpack.c.l.b16 %v3955
        %v4896 = vunpack.c.l.b16 %v3956
        %v4897 = vunpack.c.l.b16 %v3957
        %v4898 = vunpack.c.l.b16 %v3958
        %v4899 = vunpack.c.l.b16 %v3959
        %v4900 = vunpack.c.l.b16 %v3960
        %v4901 = vunpack.c.l.b16 %v3961
        %v4902 = vunpack.c.l.b16 %v3962
        %v4903 = vunpack.c.l.b16 %v3963
        %v4904 = vunpack.c.l.b16 %v3964
        %v4905 = vunpack.c.l.b16 %v3965
        %v4906 = vunpack.c.l.b16 %v3966
        %v4907 = vunpack.c.l.b16 %v3967
        %v4908 = vunpack.c.l.b16 %v3968
        %v4909 = vunpack.c.l.b16 %v3969
        %v4910 = vunpack.c.l.b16 %v3970
        %v4911 = vunpack.c.l.b16 %v3971
        %v4912 = vunpack.c.l.b16 %v3972
        %v4913 = vunpack.c.l.b16 %v3973
        %v4914 = vunpack.c.l.b16 %v3974
        %v4915 = vunpack.c.l.b16 %v3975
        %v4916 = vunpack.c.l.b16 %v3976
        %v4917 = vunpack.c.l.b16 %v3977
        %v4918 = vunpack.c.l.b16 %v3978
        %v4919 = vunpack.c.l.b16 %v3979
        %v4920 = vunpack.c.l.b16 %v3980
        %v4921 = vunpack.c.l.b16 %v3981
        %v4922 = vunpack.c.l.b16 %v3982
        %v4923 = vunpack.c.l.b16 %v3983
        %v4924 = vunpack.c.l.b16 %v3984
        %v4925 = vunpack.c.l.b16 %v3985
        %v4926 = vunpack.c.l.b16 %v3986
        %v4927 = vunpack.c.l.b16 %v3987
        %v4928 = vunpack.c.l.b16 %v3988
        %v4929 = vunpack.c.l.b16 %v3989
        %v4930 = vunpack.c.l.b16 %v3990
        %v4931 = vunpack.c.l.b16 %v3991
        %v4932 = vunpack.c.l.b16 %v3992
        %v4933 = vunpack.c.l.b16 %v3993
        %v4934 = vunpack.c.l.b16 %v3994
        %v4935 = vunpack.c.l.b16 %v3995
        %v4936 = vunpack.c.l.b16 %v3996
        %v4937 = vunpack.c.l.b16 %v3997
        %v4938 = vunpack.c.l.b16 %v3998
        %v4939 = vunpack.c.l.b16 %v3999
        %v4940 = vunpack.c.l.b16 %v4000
        %v4941 = vunpack.c.l.b16 %v4001
        %v4942 = vunpack.c.l.b16 %v4002
        %v4943 = vunpack.c.l.b16 %v4003
        %v4944 = vunpack.c.l.b16 %v4004
        %v4945 = vunpack.c.l.b16 %v4005
        %v4946 = vpack.c.b16 %v4819, %v4818
        %v4947 = vpack.c.b16 %v4821, %v4820
        %v4948 = vpack.c.b16 %v4823, %v4822
        %v4949 = vpack.c.b16 %v4825, %v4824
        %v4950 = vpack.c.b16 %v4827, %v4826
        %v4951 = vpack.c.b16 %v4829, %v4828
        %v4952 = vpack.c.b16 %v4831, %v4830
        %v4953 = vpack.c.b16 %v4833, %v4832
        %v4954 = vpack.c.b16 %v4835, %v4834
        %v4955 = vpack.c.b16 %v4837, %v4836
        %v4956 = vpack.c.b16 %v4839, %v4838
        %v4957 = vpack.c.b16 %v4841, %v4840
        %v4958 = vpack.c.b16 %v4843, %v4842
        %v4959 = vpack.c.b16 %v4845, %v4844
        %v4960 = vpack.c.b16 %v4847, %v4846
        %v4961 = vpack.c.b16 %v4849, %v4848
        %v4962 = vpack.c.b16 %v4851, %v4850
        %v4963 = vpack.c.b16 %v4853, %v4852
        %v4964 = vpack.c.b16 %v4855, %v4854
        %v4965 = vpack.c.b16 %v4857, %v4856
        %v4966 = vpack.c.b16 %v4859, %v4858
        %v4967 = vpack.c.b16 %v4861, %v4860
        %v4968 = vpack.c.b16 %v4863, %v4862
        %v4969 = vpack.c.b16 %v4865, %v4864
        %v4970 = vpack.c.b16 %v4867, %v4866
        %v4971 = vpack.c.b16 %v4869, %v4868
        %v4972 = vpack.c.b16 %v4871, %v4870
        %v4973 = vpack.c.b16 %v4873, %v4872
        %v4974 = vpack.c.b16 %v4875, %v4874
        %v4975 = vpack.c.b16 %v4877, %v4876
        %v4976 = vpack.c.b16 %v4879, %v4878
        %v4977 = vpack.c.b16 %v4881, %v4880
        %v4978 = vpack.c.b16 %v4883, %v4882
        %v4979 = vpack.c.b16 %v4885, %v4884
        %v4980 = vpack.c.b16 %v4887, %v4886
        %v4981 = vpack.c.b16 %v4889, %v4888
        %v4982 = vpack.c.b16 %v4891, %v4890
        %v4983 = vpack.c.b16 %v4893, %v4892
        %v4984 = vpack.c.b16 %v4895, %v4894
        %v4985 = vpack.c.b16 %v4897, %v4896
        %v4986 = vpack.c.b16 %v4899, %v4898
        %v4987 = vpack.c.b16 %v4901, %v4900
        %v4988 = vpack.c.b16 %v4903, %v4902
        %v4989 = vpack.c.b16 %v4905, %v4904
        %v4990 = vpack.c.b16 %v4907, %v4906
        %v4991 = vpack.c.b16 %v4909, %v4908
        %v4992 = vpack.c.b16 %v4911, %v4910
        %v4993 = vpack.c.b16 %v4913, %v4912
        %v4994 = vpack.c.b16 %v4915, %v4914
        %v4995 = vpack.c.b16 %v4917, %v4916
        %v4996 = vpack.c.b16 %v4919, %v4918
        %v4997 = vpack.c.b16 %v4921, %v4920
        %v4998 = vpack.c.b16 %v4923, %v4922
        %v4999 = vpack.c.b16 %v4925, %v4924
        %v5000 = vpack.c.b16 %v4927, %v4926
        %v5001 = vpack.c.b16 %v4929, %v4928
        %v5002 = vpack.c.b16 %v4931, %v4930
        %v5003 = vpack.c.b16 %v4933, %v4932
        %v5004 = vpack.c.b16 %v4935, %v4934
        %v5005 = vpack.c.b16 %v4937, %v4936
        %v5006 = vpack.c.b16 %v4939, %v4938
        %v5007 = vpack.c.b16 %v4941, %v4940
        %v5008 = vpack.c.b16 %v4943, %v4942
        %v5009 = vpack.c.b16 %v4945, %v4944
        %5074 = vmatpush.bf16.msra.mxu0 %v4953
        %5075 = vmatpush.bf16.msra.mxu0 %v4952
        %5076 = vmatpush.bf16.msra.mxu0 %v4951
        %5077 = vmatpush.bf16.msra.mxu0 %v4950
        %5078 = vmatpush.bf16.msra.mxu0 %v4949
        %5079 = vmatpush.bf16.msra.mxu0 %v4948
        %5080 = vmatpush.bf16.msra.mxu0 %v4947
        %5081 = vmatpush.bf16.msra.mxu0 %v4946
        %5082 = vmatmul.bf16.gmra.mxu0 %v4418
        %v5083 = vpop.f32.mrf.mxu0
        %v5084 = vadd.f32 %v4008, %v5083
        %v5085 = vpop.f32.mrf.mxu0
        %v5086 = vadd.f32 %v4008, %v5085
        %5087 = vmatmul.bf16.gmra.mxu0 %v4426
        %v5088 = vpop.f32.mrf.mxu0
        %v5089 = vadd.f32 %v4008, %v5088
        %v5090 = vpop.f32.mrf.mxu0
        %v5091 = vadd.f32 %v4008, %v5090
        %5092 = vmatmul.bf16.gmra.mxu0 %v4434
        %v5093 = vpop.f32.mrf.mxu0
        %v5094 = vadd.f32 %v4008, %v5093
        %v5095 = vpop.f32.mrf.mxu0
        %v5096 = vadd.f32 %v4008, %v5095
        %5097 = vmatmul.bf16.gmra.mxu0 %v4442
        %v5098 = vpop.f32.mrf.mxu0
        %v5099 = vadd.f32 %v4008, %v5098
        %v5100 = vpop.f32.mrf.mxu0
        %v5101 = vadd.f32 %v4008, %v5100
        %5102 = vmatmul.bf16.gmra.mxu0 %v4450
        %v5103 = vpop.f32.mrf.mxu0
        %v5104 = vadd.f32 %v4008, %v5103
        %v5105 = vpop.f32.mrf.mxu0
        %v5106 = vadd.f32 %v4008, %v5105
        %5107 = vmatmul.bf16.gmra.mxu0 %v4458
        %v5108 = vpop.f32.mrf.mxu0
        %v5109 = vadd.f32 %v4008, %v5108
        %v5110 = vpop.f32.mrf.mxu0
        %v5111 = vadd.f32 %v4008, %v5110
        %5112 = vmatmul.bf16.gmra.mxu0 %v4466
        %v5113 = vpop.f32.mrf.mxu0
        %v5114 = vadd.f32 %v4008, %v5113
        %v5115 = vpop.f32.mrf.mxu0
        %v5116 = vadd.f32 %v4008, %v5115
        %5117 = vmatmul.bf16.gmra.mxu0 %v4474
        %v5118 = vpop.f32.mrf.mxu0
        %v5119 = vadd.f32 %v4008, %v5118
        %v5120 = vpop.f32.mrf.mxu0
        %v5121 = vadd.f32 %v4008, %v5120
        %5122 = vmatmul.bf16.gmra.mxu0 %v4482
        %v5123 = vpop.f32.mrf.mxu0
        %v5124 = vadd.f32 %v4008, %v5123
        %v5125 = vpop.f32.mrf.mxu0
        %v5126 = vadd.f32 %v4008, %v5125
        %5127 = vmatmul.bf16.gmra.mxu0 %v4490
        %v5128 = vpop.f32.mrf.mxu0
        %v5129 = vadd.f32 %v4008, %v5128
        %v5130 = vpop.f32.mrf.mxu0
        %v5131 = vadd.f32 %v4008, %v5130
        %5132 = vmatmul.bf16.gmra.mxu0 %v4498
        %v5133 = vpop.f32.mrf.mxu0
        %v5134 = vadd.f32 %v4008, %v5133
        %v5135 = vpop.f32.mrf.mxu0
        %v5136 = vadd.f32 %v4008, %v5135
        %5137 = vmatmul.bf16.gmra.mxu0 %v4506
        %v5138 = vpop.f32.mrf.mxu0
        %v5139 = vadd.f32 %v4008, %v5138
        %v5140 = vpop.f32.mrf.mxu0
        %v5141 = vadd.f32 %v4008, %v5140
        %5142 = vmatmul.bf16.gmra.mxu0 %v4514
        %v5143 = vpop.f32.mrf.mxu0
        %v5144 = vadd.f32 %v4008, %v5143
        %v5145 = vpop.f32.mrf.mxu0
        %v5146 = vadd.f32 %v4008, %v5145
        %5147 = vmatmul.bf16.gmra.mxu0 %v4522
        %v5148 = vpop.f32.mrf.mxu0
        %v5149 = vadd.f32 %v4008, %v5148
        %v5150 = vpop.f32.mrf.mxu0
        %v5151 = vadd.f32 %v4008, %v5150
        %5152 = vmatmul.bf16.gmra.mxu0 %v4530
        %v5153 = vpop.f32.mrf.mxu0
        %v5154 = vadd.f32 %v4008, %v5153
        %v5155 = vpop.f32.mrf.mxu0
        %v5156 = vadd.f32 %v4008, %v5155
        %5157 = vmatmul.bf16.gmra.mxu0 %v4538
        %v5158 = vpop.f32.mrf.mxu0
        %v5159 = vadd.f32 %v4008, %v5158
        %v5160 = vpop.f32.mrf.mxu0
        %v5161 = vadd.f32 %v4008, %v5160
        %5162 = vmatmul.bf16.gmra.mxu0 %v4546
        %v5163 = vpop.f32.mrf.mxu0
        %v5164 = vadd.f32 %v4008, %v5163
        %v5165 = vpop.f32.mrf.mxu0
        %v5166 = vadd.f32 %v4008, %v5165
        %5167 = vdwg.mxu0
        %5168 = vmatpush.bf16.msra.mxu0 %v4961
        %5169 = vmatpush.bf16.msra.mxu0 %v4960
        %5170 = vmatpush.bf16.msra.mxu0 %v4959
        %5171 = vmatpush.bf16.msra.mxu0 %v4958
        %5172 = vmatpush.bf16.msra.mxu0 %v4957
        %5173 = vmatpush.bf16.msra.mxu0 %v4956
        %5174 = vmatpush.bf16.msra.mxu0 %v4955
        %5175 = vmatpush.bf16.msra.mxu0 %v4954
        %5176 = vmatmul.bf16.gmra.mxu0 %v4419
        %v5177 = vpop.f32.mrf.mxu0
        %v5178 = vadd.f32 %v5084, %v5177
        %v5179 = vpop.f32.mrf.mxu0
        %v5180 = vadd.f32 %v5086, %v5179
        %5181 = vmatmul.bf16.gmra.mxu0 %v4427
        %v5182 = vpop.f32.mrf.mxu0
        %v5183 = vadd.f32 %v5089, %v5182
        %v5184 = vpop.f32.mrf.mxu0
        %v5185 = vadd.f32 %v5091, %v5184
        %5186 = vmatmul.bf16.gmra.mxu0 %v4435
        %v5187 = vpop.f32.mrf.mxu0
        %v5188 = vadd.f32 %v5094, %v5187
        %v5189 = vpop.f32.mrf.mxu0
        %v5190 = vadd.f32 %v5096, %v5189
        %5191 = vmatmul.bf16.gmra.mxu0 %v4443
        %v5192 = vpop.f32.mrf.mxu0
        %v5193 = vadd.f32 %v5099, %v5192
        %v5194 = vpop.f32.mrf.mxu0
        %v5195 = vadd.f32 %v5101, %v5194
        %5196 = vmatmul.bf16.gmra.mxu0 %v4451
        %v5197 = vpop.f32.mrf.mxu0
        %v5198 = vadd.f32 %v5104, %v5197
        %v5199 = vpop.f32.mrf.mxu0
        %v5200 = vadd.f32 %v5106, %v5199
        %5201 = vmatmul.bf16.gmra.mxu0 %v4459
        %v5202 = vpop.f32.mrf.mxu0
        %v5203 = vadd.f32 %v5109, %v5202
        %v5204 = vpop.f32.mrf.mxu0
        %v5205 = vadd.f32 %v5111, %v5204
        %5206 = vmatmul.bf16.gmra.mxu0 %v4467
        %v5207 = vpop.f32.mrf.mxu0
        %v5208 = vadd.f32 %v5114, %v5207
        %v5209 = vpop.f32.mrf.mxu0
        %v5210 = vadd.f32 %v5116, %v5209
        %5211 = vmatmul.bf16.gmra.mxu0 %v4475
        %v5212 = vpop.f32.mrf.mxu0
        %v5213 = vadd.f32 %v5119, %v5212
        %v5214 = vpop.f32.mrf.mxu0
        %v5215 = vadd.f32 %v5121, %v5214
        %5216 = vmatmul.bf16.gmra.mxu0 %v4483
        %v5217 = vpop.f32.mrf.mxu0
        %v5218 = vadd.f32 %v5124, %v5217
        %v5219 = vpop.f32.mrf.mxu0
        %v5220 = vadd.f32 %v5126, %v5219
        %5221 = vmatmul.bf16.gmra.mxu0 %v4491
        %v5222 = vpop.f32.mrf.mxu0
        %v5223 = vadd.f32 %v5129, %v5222
        %v5224 = vpop.f32.mrf.mxu0
        %v5225 = vadd.f32 %v5131, %v5224
        %5226 = vmatmul.bf16.gmra.mxu0 %v4499
        %v5227 = vpop.f32.mrf.mxu0
        %v5228 = vadd.f32 %v5134, %v5227
        %v5229 = vpop.f32.mrf.mxu0
        %v5230 = vadd.f32 %v5136, %v5229
        %5231 = vmatmul.bf16.gmra.mxu0 %v4507
        %v5232 = vpop.f32.mrf.mxu0
        %v5233 = vadd.f32 %v5139, %v5232
        %v5234 = vpop.f32.mrf.mxu0
        %v5235 = vadd.f32 %v5141, %v5234
        %5236 = vmatmul.bf16.gmra.mxu0 %v4515
        %v5237 = vpop.f32.mrf.mxu0
        %v5238 = vadd.f32 %v5144, %v5237
        %v5239 = vpop.f32.mrf.mxu0
        %v5240 = vadd.f32 %v5146, %v5239
        %5241 = vmatmul.bf16.gmra.mxu0 %v4523
        %v5242 = vpop.f32.mrf.mxu0
        %v5243 = vadd.f32 %v5149, %v5242
        %v5244 = vpop.f32.mrf.mxu0
        %v5245 = vadd.f32 %v5151, %v5244
        %5246 = vmatmul.bf16.gmra.mxu0 %v4531
        %v5247 = vpop.f32.mrf.mxu0
        %v5248 = vadd.f32 %v5154, %v5247
        %v5249 = vpop.f32.mrf.mxu0
        %v5250 = vadd.f32 %v5156, %v5249
        %5251 = vmatmul.bf16.gmra.mxu0 %v4539
        %v5252 = vpop.f32.mrf.mxu0
        %v5253 = vadd.f32 %v5159, %v5252
        %v5254 = vpop.f32.mrf.mxu0
        %v5255 = vadd.f32 %v5161, %v5254
        %5256 = vmatmul.bf16.gmra.mxu0 %v4547
        %v5257 = vpop.f32.mrf.mxu0
        %v5258 = vadd.f32 %v5164, %v5257
        %v5259 = vpop.f32.mrf.mxu0
        %v5260 = vadd.f32 %v5166, %v5259
        %5261 = vdwg.mxu0
        %5262 = vmatpush.bf16.msra.mxu0 %v4969
        %5263 = vmatpush.bf16.msra.mxu0 %v4968
        %5264 = vmatpush.bf16.msra.mxu0 %v4967
        %5265 = vmatpush.bf16.msra.mxu0 %v4966
        %5266 = vmatpush.bf16.msra.mxu0 %v4965
        %5267 = vmatpush.bf16.msra.mxu0 %v4964
        %5268 = vmatpush.bf16.msra.mxu0 %v4963
        %5269 = vmatpush.bf16.msra.mxu0 %v4962
        %5270 = vmatmul.bf16.gmra.mxu0 %v4420
        %v5271 = vpop.f32.mrf.mxu0
        %v5272 = vadd.f32 %v5178, %v5271
        %v5273 = vpop.f32.mrf.mxu0
        %v5274 = vadd.f32 %v5180, %v5273
        %5275 = vmatmul.bf16.gmra.mxu0 %v4428
        %v5276 = vpop.f32.mrf.mxu0
        %v5277 = vadd.f32 %v5183, %v5276
        %v5278 = vpop.f32.mrf.mxu0
        %v5279 = vadd.f32 %v5185, %v5278
        %5280 = vmatmul.bf16.gmra.mxu0 %v4436
        %v5281 = vpop.f32.mrf.mxu0
        %v5282 = vadd.f32 %v5188, %v5281
        %v5283 = vpop.f32.mrf.mxu0
        %v5284 = vadd.f32 %v5190, %v5283
        %5285 = vmatmul.bf16.gmra.mxu0 %v4444
        %v5286 = vpop.f32.mrf.mxu0
        %v5287 = vadd.f32 %v5193, %v5286
        %v5288 = vpop.f32.mrf.mxu0
        %v5289 = vadd.f32 %v5195, %v5288
        %5290 = vmatmul.bf16.gmra.mxu0 %v4452
        %v5291 = vpop.f32.mrf.mxu0
        %v5292 = vadd.f32 %v5198, %v5291
        %v5293 = vpop.f32.mrf.mxu0
        %v5294 = vadd.f32 %v5200, %v5293
        %5295 = vmatmul.bf16.gmra.mxu0 %v4460
        %v5296 = vpop.f32.mrf.mxu0
        %v5297 = vadd.f32 %v5203, %v5296
        %v5298 = vpop.f32.mrf.mxu0
        %v5299 = vadd.f32 %v5205, %v5298
        %5300 = vmatmul.bf16.gmra.mxu0 %v4468
        %v5301 = vpop.f32.mrf.mxu0
        %v5302 = vadd.f32 %v5208, %v5301
        %v5303 = vpop.f32.mrf.mxu0
        %v5304 = vadd.f32 %v5210, %v5303
        %5305 = vmatmul.bf16.gmra.mxu0 %v4476
        %v5306 = vpop.f32.mrf.mxu0
        %v5307 = vadd.f32 %v5213, %v5306
        %v5308 = vpop.f32.mrf.mxu0
        %v5309 = vadd.f32 %v5215, %v5308
        %5310 = vmatmul.bf16.gmra.mxu0 %v4484
        %v5311 = vpop.f32.mrf.mxu0
        %v5312 = vadd.f32 %v5218, %v5311
        %v5313 = vpop.f32.mrf.mxu0
        %v5314 = vadd.f32 %v5220, %v5313
        %5315 = vmatmul.bf16.gmra.mxu0 %v4492
        %v5316 = vpop.f32.mrf.mxu0
        %v5317 = vadd.f32 %v5223, %v5316
        %v5318 = vpop.f32.mrf.mxu0
        %v5319 = vadd.f32 %v5225, %v5318
        %5320 = vmatmul.bf16.gmra.mxu0 %v4500
        %v5321 = vpop.f32.mrf.mxu0
        %v5322 = vadd.f32 %v5228, %v5321
        %v5323 = vpop.f32.mrf.mxu0
        %v5324 = vadd.f32 %v5230, %v5323
        %5325 = vmatmul.bf16.gmra.mxu0 %v4508
        %v5326 = vpop.f32.mrf.mxu0
        %v5327 = vadd.f32 %v5233, %v5326
        %v5328 = vpop.f32.mrf.mxu0
        %v5329 = vadd.f32 %v5235, %v5328
        %5330 = vmatmul.bf16.gmra.mxu0 %v4516
        %v5331 = vpop.f32.mrf.mxu0
        %v5332 = vadd.f32 %v5238, %v5331
        %v5333 = vpop.f32.mrf.mxu0
        %v5334 = vadd.f32 %v5240, %v5333
        %5335 = vmatmul.bf16.gmra.mxu0 %v4524
        %v5336 = vpop.f32.mrf.mxu0
        %v5337 = vadd.f32 %v5243, %v5336
        %v5338 = vpop.f32.mrf.mxu0
        %v5339 = vadd.f32 %v5245, %v5338
        %5340 = vmatmul.bf16.gmra.mxu0 %v4532
        %v5341 = vpop.f32.mrf.mxu0
        %v5342 = vadd.f32 %v5248, %v5341
        %v5343 = vpop.f32.mrf.mxu0
        %v5344 = vadd.f32 %v5250, %v5343
        %5345 = vmatmul.bf16.gmra.mxu0 %v4540
        %v5346 = vpop.f32.mrf.mxu0
        %v5347 = vadd.f32 %v5253, %v5346
        %v5348 = vpop.f32.mrf.mxu0
        %v5349 = vadd.f32 %v5255, %v5348
        %5350 = vmatmul.bf16.gmra.mxu0 %v4548
        %v5351 = vpop.f32.mrf.mxu0
        %v5352 = vadd.f32 %v5258, %v5351
        %v5353 = vpop.f32.mrf.mxu0
        %v5354 = vadd.f32 %v5260, %v5353
        %5355 = vdwg.mxu0
        %5356 = vmatpush.bf16.msra.mxu0 %v4977
        %5357 = vmatpush.bf16.msra.mxu0 %v4976
        %5358 = vmatpush.bf16.msra.mxu0 %v4975
        %5359 = vmatpush.bf16.msra.mxu0 %v4974
        %5360 = vmatpush.bf16.msra.mxu0 %v4973
        %5361 = vmatpush.bf16.msra.mxu0 %v4972
        %5362 = vmatpush.bf16.msra.mxu0 %v4971
        %5363 = vmatpush.bf16.msra.mxu0 %v4970
        %5364 = vmatmul.bf16.gmra.mxu0 %v4421
        %v5365 = vpop.f32.mrf.mxu0
        %v5366 = vadd.f32 %v5272, %v5365
        %v5367 = vpop.f32.mrf.mxu0
        %v5368 = vadd.f32 %v5274, %v5367
        %5369 = vmatmul.bf16.gmra.mxu0 %v4429
        %v5370 = vpop.f32.mrf.mxu0
        %v5371 = vadd.f32 %v5277, %v5370
        %v5372 = vpop.f32.mrf.mxu0
        %v5373 = vadd.f32 %v5279, %v5372
        %5374 = vmatmul.bf16.gmra.mxu0 %v4437
        %v5375 = vpop.f32.mrf.mxu0
        %v5376 = vadd.f32 %v5282, %v5375
        %v5377 = vpop.f32.mrf.mxu0
        %v5378 = vadd.f32 %v5284, %v5377
        %5379 = vmatmul.bf16.gmra.mxu0 %v4445
        %v5380 = vpop.f32.mrf.mxu0
        %v5381 = vadd.f32 %v5287, %v5380
        %v5382 = vpop.f32.mrf.mxu0
        %v5383 = vadd.f32 %v5289, %v5382
        %5384 = vmatmul.bf16.gmra.mxu0 %v4453
        %v5385 = vpop.f32.mrf.mxu0
        %v5386 = vadd.f32 %v5292, %v5385
        %v5387 = vpop.f32.mrf.mxu0
        %v5388 = vadd.f32 %v5294, %v5387
        %5389 = vmatmul.bf16.gmra.mxu0 %v4461
        %v5390 = vpop.f32.mrf.mxu0
        %v5391 = vadd.f32 %v5297, %v5390
        %v5392 = vpop.f32.mrf.mxu0
        %v5393 = vadd.f32 %v5299, %v5392
        %5394 = vmatmul.bf16.gmra.mxu0 %v4469
        %v5395 = vpop.f32.mrf.mxu0
        %v5396 = vadd.f32 %v5302, %v5395
        %v5397 = vpop.f32.mrf.mxu0
        %v5398 = vadd.f32 %v5304, %v5397
        %5399 = vmatmul.bf16.gmra.mxu0 %v4477
        %v5400 = vpop.f32.mrf.mxu0
        %v5401 = vadd.f32 %v5307, %v5400
        %v5402 = vpop.f32.mrf.mxu0
        %v5403 = vadd.f32 %v5309, %v5402
        %5404 = vmatmul.bf16.gmra.mxu0 %v4485
        %v5405 = vpop.f32.mrf.mxu0
        %v5406 = vadd.f32 %v5312, %v5405
        %v5407 = vpop.f32.mrf.mxu0
        %v5408 = vadd.f32 %v5314, %v5407
        %5409 = vmatmul.bf16.gmra.mxu0 %v4493
        %v5410 = vpop.f32.mrf.mxu0
        %v5411 = vadd.f32 %v5317, %v5410
        %v5412 = vpop.f32.mrf.mxu0
        %v5413 = vadd.f32 %v5319, %v5412
        %5414 = vmatmul.bf16.gmra.mxu0 %v4501
        %v5415 = vpop.f32.mrf.mxu0
        %v5416 = vadd.f32 %v5322, %v5415
        %v5417 = vpop.f32.mrf.mxu0
        %v5418 = vadd.f32 %v5324, %v5417
        %5419 = vmatmul.bf16.gmra.mxu0 %v4509
        %v5420 = vpop.f32.mrf.mxu0
        %v5421 = vadd.f32 %v5327, %v5420
        %v5422 = vpop.f32.mrf.mxu0
        %v5423 = vadd.f32 %v5329, %v5422
        %5424 = vmatmul.bf16.gmra.mxu0 %v4517
        %v5425 = vpop.f32.mrf.mxu0
        %v5426 = vadd.f32 %v5332, %v5425
        %v5427 = vpop.f32.mrf.mxu0
        %v5428 = vadd.f32 %v5334, %v5427
        %5429 = vmatmul.bf16.gmra.mxu0 %v4525
        %v5430 = vpop.f32.mrf.mxu0
        %v5431 = vadd.f32 %v5337, %v5430
        %v5432 = vpop.f32.mrf.mxu0
        %v5433 = vadd.f32 %v5339, %v5432
        %5434 = vmatmul.bf16.gmra.mxu0 %v4533
        %v5435 = vpop.f32.mrf.mxu0
        %v5436 = vadd.f32 %v5342, %v5435
        %v5437 = vpop.f32.mrf.mxu0
        %v5438 = vadd.f32 %v5344, %v5437
        %5439 = vmatmul.bf16.gmra.mxu0 %v4541
        %v5440 = vpop.f32.mrf.mxu0
        %v5441 = vadd.f32 %v5347, %v5440
        %v5442 = vpop.f32.mrf.mxu0
        %v5443 = vadd.f32 %v5349, %v5442
        %5444 = vmatmul.bf16.gmra.mxu0 %v4549
        %v5445 = vpop.f32.mrf.mxu0
        %v5446 = vadd.f32 %v5352, %v5445
        %v5447 = vpop.f32.mrf.mxu0
        %v5448 = vadd.f32 %v5354, %v5447
        %5449 = vdwg.mxu0
        %5450 = vmatpush.bf16.msra.mxu0 %v4985
        %5451 = vmatpush.bf16.msra.mxu0 %v4984
        %5452 = vmatpush.bf16.msra.mxu0 %v4983
        %5453 = vmatpush.bf16.msra.mxu0 %v4982
        %5454 = vmatpush.bf16.msra.mxu0 %v4981
        %5455 = vmatpush.bf16.msra.mxu0 %v4980
        %5456 = vmatpush.bf16.msra.mxu0 %v4979
        %5457 = vmatpush.bf16.msra.mxu0 %v4978
        %5458 = vmatmul.bf16.gmra.mxu0 %v4422
        %v5459 = vpop.f32.mrf.mxu0
        %v5460 = vadd.f32 %v5366, %v5459
        %v5461 = vpop.f32.mrf.mxu0
        %v5462 = vadd.f32 %v5368, %v5461
        %5463 = vmatmul.bf16.gmra.mxu0 %v4430
        %v5464 = vpop.f32.mrf.mxu0
        %v5465 = vadd.f32 %v5371, %v5464
        %v5466 = vpop.f32.mrf.mxu0
        %v5467 = vadd.f32 %v5373, %v5466
        %5468 = vmatmul.bf16.gmra.mxu0 %v4438
        %v5469 = vpop.f32.mrf.mxu0
        %v5470 = vadd.f32 %v5376, %v5469
        %v5471 = vpop.f32.mrf.mxu0
        %v5472 = vadd.f32 %v5378, %v5471
        %5473 = vmatmul.bf16.gmra.mxu0 %v4446
        %v5474 = vpop.f32.mrf.mxu0
        %v5475 = vadd.f32 %v5381, %v5474
        %v5476 = vpop.f32.mrf.mxu0
        %v5477 = vadd.f32 %v5383, %v5476
        %5478 = vmatmul.bf16.gmra.mxu0 %v4454
        %v5479 = vpop.f32.mrf.mxu0
        %v5480 = vadd.f32 %v5386, %v5479
        %v5481 = vpop.f32.mrf.mxu0
        %v5482 = vadd.f32 %v5388, %v5481
        %5483 = vmatmul.bf16.gmra.mxu0 %v4462
        %v5484 = vpop.f32.mrf.mxu0
        %v5485 = vadd.f32 %v5391, %v5484
        %v5486 = vpop.f32.mrf.mxu0
        %v5487 = vadd.f32 %v5393, %v5486
        %5488 = vmatmul.bf16.gmra.mxu0 %v4470
        %v5489 = vpop.f32.mrf.mxu0
        %v5490 = vadd.f32 %v5396, %v5489
        %v5491 = vpop.f32.mrf.mxu0
        %v5492 = vadd.f32 %v5398, %v5491
        %5493 = vmatmul.bf16.gmra.mxu0 %v4478
        %v5494 = vpop.f32.mrf.mxu0
        %v5495 = vadd.f32 %v5401, %v5494
        %v5496 = vpop.f32.mrf.mxu0
        %v5497 = vadd.f32 %v5403, %v5496
        %5498 = vmatmul.bf16.gmra.mxu0 %v4486
        %v5499 = vpop.f32.mrf.mxu0
        %v5500 = vadd.f32 %v5406, %v5499
        %v5501 = vpop.f32.mrf.mxu0
        %v5502 = vadd.f32 %v5408, %v5501
        %5503 = vmatmul.bf16.gmra.mxu0 %v4494
        %v5504 = vpop.f32.mrf.mxu0
        %v5505 = vadd.f32 %v5411, %v5504
        %v5506 = vpop.f32.mrf.mxu0
        %v5507 = vadd.f32 %v5413, %v5506
        %5508 = vmatmul.bf16.gmra.mxu0 %v4502
        %v5509 = vpop.f32.mrf.mxu0
        %v5510 = vadd.f32 %v5416, %v5509
        %v5511 = vpop.f32.mrf.mxu0
        %v5512 = vadd.f32 %v5418, %v5511
        %5513 = vmatmul.bf16.gmra.mxu0 %v4510
        %v5514 = vpop.f32.mrf.mxu0
        %v5515 = vadd.f32 %v5421, %v5514
        %v5516 = vpop.f32.mrf.mxu0
        %v5517 = vadd.f32 %v5423, %v5516
        %5518 = vmatmul.bf16.gmra.mxu0 %v4518
        %v5519 = vpop.f32.mrf.mxu0
        %v5520 = vadd.f32 %v5426, %v5519
        %v5521 = vpop.f32.mrf.mxu0
        %v5522 = vadd.f32 %v5428, %v5521
        %5523 = vmatmul.bf16.gmra.mxu0 %v4526
        %v5524 = vpop.f32.mrf.mxu0
        %v5525 = vadd.f32 %v5431, %v5524
        %v5526 = vpop.f32.mrf.mxu0
        %v5527 = vadd.f32 %v5433, %v5526
        %5528 = vmatmul.bf16.gmra.mxu0 %v4534
        %v5529 = vpop.f32.mrf.mxu0
        %v5530 = vadd.f32 %v5436, %v5529
        %v5531 = vpop.f32.mrf.mxu0
        %v5532 = vadd.f32 %v5438, %v5531
        %5533 = vmatmul.bf16.gmra.mxu0 %v4542
        %v5534 = vpop.f32.mrf.mxu0
        %v5535 = vadd.f32 %v5441, %v5534
        %v5536 = vpop.f32.mrf.mxu0
        %v5537 = vadd.f32 %v5443, %v5536
        %5538 = vmatmul.bf16.gmra.mxu0 %v4550
        %v5539 = vpop.f32.mrf.mxu0
        %v5540 = vadd.f32 %v5446, %v5539
        %v5541 = vpop.f32.mrf.mxu0
        %v5542 = vadd.f32 %v5448, %v5541
        %5543 = vdwg.mxu0
        %5544 = vmatpush.bf16.msra.mxu0 %v4993
        %5545 = vmatpush.bf16.msra.mxu0 %v4992
        %5546 = vmatpush.bf16.msra.mxu0 %v4991
        %5547 = vmatpush.bf16.msra.mxu0 %v4990
        %5548 = vmatpush.bf16.msra.mxu0 %v4989
        %5549 = vmatpush.bf16.msra.mxu0 %v4988
        %5550 = vmatpush.bf16.msra.mxu0 %v4987
        %5551 = vmatpush.bf16.msra.mxu0 %v4986
        %5552 = vmatmul.bf16.gmra.mxu0 %v4423
        %v5553 = vpop.f32.mrf.mxu0
        %v5554 = vadd.f32 %v5460, %v5553
        %v5555 = vpop.f32.mrf.mxu0
        %v5556 = vadd.f32 %v5462, %v5555
        %5557 = vmatmul.bf16.gmra.mxu0 %v4431
        %v5558 = vpop.f32.mrf.mxu0
        %v5559 = vadd.f32 %v5465, %v5558
        %v5560 = vpop.f32.mrf.mxu0
        %v5561 = vadd.f32 %v5467, %v5560
        %5562 = vmatmul.bf16.gmra.mxu0 %v4439
        %v5563 = vpop.f32.mrf.mxu0
        %v5564 = vadd.f32 %v5470, %v5563
        %v5565 = vpop.f32.mrf.mxu0
        %v5566 = vadd.f32 %v5472, %v5565
        %5567 = vmatmul.bf16.gmra.mxu0 %v4447
        %v5568 = vpop.f32.mrf.mxu0
        %v5569 = vadd.f32 %v5475, %v5568
        %v5570 = vpop.f32.mrf.mxu0
        %v5571 = vadd.f32 %v5477, %v5570
        %5572 = vmatmul.bf16.gmra.mxu0 %v4455
        %v5573 = vpop.f32.mrf.mxu0
        %v5574 = vadd.f32 %v5480, %v5573
        %v5575 = vpop.f32.mrf.mxu0
        %v5576 = vadd.f32 %v5482, %v5575
        %5577 = vmatmul.bf16.gmra.mxu0 %v4463
        %v5578 = vpop.f32.mrf.mxu0
        %v5579 = vadd.f32 %v5485, %v5578
        %v5580 = vpop.f32.mrf.mxu0
        %v5581 = vadd.f32 %v5487, %v5580
        %5582 = vmatmul.bf16.gmra.mxu0 %v4471
        %v5583 = vpop.f32.mrf.mxu0
        %v5584 = vadd.f32 %v5490, %v5583
        %v5585 = vpop.f32.mrf.mxu0
        %v5586 = vadd.f32 %v5492, %v5585
        %5587 = vmatmul.bf16.gmra.mxu0 %v4479
        %v5588 = vpop.f32.mrf.mxu0
        %v5589 = vadd.f32 %v5495, %v5588
        %v5590 = vpop.f32.mrf.mxu0
        %v5591 = vadd.f32 %v5497, %v5590
        %5592 = vmatmul.bf16.gmra.mxu0 %v4487
        %v5593 = vpop.f32.mrf.mxu0
        %v5594 = vadd.f32 %v5500, %v5593
        %v5595 = vpop.f32.mrf.mxu0
        %v5596 = vadd.f32 %v5502, %v5595
        %5597 = vmatmul.bf16.gmra.mxu0 %v4495
        %v5598 = vpop.f32.mrf.mxu0
        %v5599 = vadd.f32 %v5505, %v5598
        %v5600 = vpop.f32.mrf.mxu0
        %v5601 = vadd.f32 %v5507, %v5600
        %5602 = vmatmul.bf16.gmra.mxu0 %v4503
        %v5603 = vpop.f32.mrf.mxu0
        %v5604 = vadd.f32 %v5510, %v5603
        %v5605 = vpop.f32.mrf.mxu0
        %v5606 = vadd.f32 %v5512, %v5605
        %5607 = vmatmul.bf16.gmra.mxu0 %v4511
        %v5608 = vpop.f32.mrf.mxu0
        %v5609 = vadd.f32 %v5515, %v5608
        %v5610 = vpop.f32.mrf.mxu0
        %v5611 = vadd.f32 %v5517, %v5610
        %5612 = vmatmul.bf16.gmra.mxu0 %v4519
        %v5613 = vpop.f32.mrf.mxu0
        %v5614 = vadd.f32 %v5520, %v5613
        %v5615 = vpop.f32.mrf.mxu0
        %v5616 = vadd.f32 %v5522, %v5615
        %5617 = vmatmul.bf16.gmra.mxu0 %v4527
        %v5618 = vpop.f32.mrf.mxu0
        %v5619 = vadd.f32 %v5525, %v5618
        %v5620 = vpop.f32.mrf.mxu0
        %v5621 = vadd.f32 %v5527, %v5620
        %5622 = vmatmul.bf16.gmra.mxu0 %v4535
        %v5623 = vpop.f32.mrf.mxu0
        %v5624 = vadd.f32 %v5530, %v5623
        %v5625 = vpop.f32.mrf.mxu0
        %v5626 = vadd.f32 %v5532, %v5625
        %5627 = vmatmul.bf16.gmra.mxu0 %v4543
        %v5628 = vpop.f32.mrf.mxu0
        %v5629 = vadd.f32 %v5535, %v5628
        %v5630 = vpop.f32.mrf.mxu0
        %v5631 = vadd.f32 %v5537, %v5630
        %5632 = vmatmul.bf16.gmra.mxu0 %v4551
        %v5633 = vpop.f32.mrf.mxu0
        %v5634 = vadd.f32 %v5540, %v5633
        %v5635 = vpop.f32.mrf.mxu0
        %v5636 = vadd.f32 %v5542, %v5635
        %5637 = vdwg.mxu0
        %5638 = vmatpush.bf16.msra.mxu0 %v5001
        %5639 = vmatpush.bf16.msra.mxu0 %v5000
        %5640 = vmatpush.bf16.msra.mxu0 %v4999
        %5641 = vmatpush.bf16.msra.mxu0 %v4998
        %5642 = vmatpush.bf16.msra.mxu0 %v4997
        %5643 = vmatpush.bf16.msra.mxu0 %v4996
        %5644 = vmatpush.bf16.msra.mxu0 %v4995
        %5645 = vmatpush.bf16.msra.mxu0 %v4994
        %5646 = vmatmul.bf16.gmra.mxu0 %v4424
        %v5647 = vpop.f32.mrf.mxu0
        %v5648 = vadd.f32 %v5554, %v5647
        %v5649 = vpop.f32.mrf.mxu0
        %v5650 = vadd.f32 %v5556, %v5649
        %5651 = vmatmul.bf16.gmra.mxu0 %v4432
        %v5652 = vpop.f32.mrf.mxu0
        %v5653 = vadd.f32 %v5559, %v5652
        %v5654 = vpop.f32.mrf.mxu0
        %v5655 = vadd.f32 %v5561, %v5654
        %5656 = vmatmul.bf16.gmra.mxu0 %v4440
        %v5657 = vpop.f32.mrf.mxu0
        %v5658 = vadd.f32 %v5564, %v5657
        %v5659 = vpop.f32.mrf.mxu0
        %v5660 = vadd.f32 %v5566, %v5659
        %5661 = vmatmul.bf16.gmra.mxu0 %v4448
        %v5662 = vpop.f32.mrf.mxu0
        %v5663 = vadd.f32 %v5569, %v5662
        %v5664 = vpop.f32.mrf.mxu0
        %v5665 = vadd.f32 %v5571, %v5664
        %5666 = vmatmul.bf16.gmra.mxu0 %v4456
        %v5667 = vpop.f32.mrf.mxu0
        %v5668 = vadd.f32 %v5574, %v5667
        %v5669 = vpop.f32.mrf.mxu0
        %v5670 = vadd.f32 %v5576, %v5669
        %5671 = vmatmul.bf16.gmra.mxu0 %v4464
        %v5672 = vpop.f32.mrf.mxu0
        %v5673 = vadd.f32 %v5579, %v5672
        %v5674 = vpop.f32.mrf.mxu0
        %v5675 = vadd.f32 %v5581, %v5674
        %5676 = vmatmul.bf16.gmra.mxu0 %v4472
        %v5677 = vpop.f32.mrf.mxu0
        %v5678 = vadd.f32 %v5584, %v5677
        %v5679 = vpop.f32.mrf.mxu0
        %v5680 = vadd.f32 %v5586, %v5679
        %5681 = vmatmul.bf16.gmra.mxu0 %v4480
        %v5682 = vpop.f32.mrf.mxu0
        %v5683 = vadd.f32 %v5589, %v5682
        %v5684 = vpop.f32.mrf.mxu0
        %v5685 = vadd.f32 %v5591, %v5684
        %5686 = vmatmul.bf16.gmra.mxu0 %v4488
        %v5687 = vpop.f32.mrf.mxu0
        %v5688 = vadd.f32 %v5594, %v5687
        %v5689 = vpop.f32.mrf.mxu0
        %v5690 = vadd.f32 %v5596, %v5689
        %5691 = vmatmul.bf16.gmra.mxu0 %v4496
        %v5692 = vpop.f32.mrf.mxu0
        %v5693 = vadd.f32 %v5599, %v5692
        %v5694 = vpop.f32.mrf.mxu0
        %v5695 = vadd.f32 %v5601, %v5694
        %5696 = vmatmul.bf16.gmra.mxu0 %v4504
        %v5697 = vpop.f32.mrf.mxu0
        %v5698 = vadd.f32 %v5604, %v5697
        %v5699 = vpop.f32.mrf.mxu0
        %v5700 = vadd.f32 %v5606, %v5699
        %5701 = vmatmul.bf16.gmra.mxu0 %v4512
        %v5702 = vpop.f32.mrf.mxu0
        %v5703 = vadd.f32 %v5609, %v5702
        %v5704 = vpop.f32.mrf.mxu0
        %v5705 = vadd.f32 %v5611, %v5704
        %5706 = vmatmul.bf16.gmra.mxu0 %v4520
        %v5707 = vpop.f32.mrf.mxu0
        %v5708 = vadd.f32 %v5614, %v5707
        %v5709 = vpop.f32.mrf.mxu0
        %v5710 = vadd.f32 %v5616, %v5709
        %5711 = vmatmul.bf16.gmra.mxu0 %v4528
        %v5712 = vpop.f32.mrf.mxu0
        %v5713 = vadd.f32 %v5619, %v5712
        %v5714 = vpop.f32.mrf.mxu0
        %v5715 = vadd.f32 %v5621, %v5714
        %5716 = vmatmul.bf16.gmra.mxu0 %v4536
        %v5717 = vpop.f32.mrf.mxu0
        %v5718 = vadd.f32 %v5624, %v5717
        %v5719 = vpop.f32.mrf.mxu0
        %v5720 = vadd.f32 %v5626, %v5719
        %5721 = vmatmul.bf16.gmra.mxu0 %v4544
        %v5722 = vpop.f32.mrf.mxu0
        %v5723 = vadd.f32 %v5629, %v5722
        %v5724 = vpop.f32.mrf.mxu0
        %v5725 = vadd.f32 %v5631, %v5724
        %5726 = vmatmul.bf16.gmra.mxu0 %v4552
        %v5727 = vpop.f32.mrf.mxu0
        %v5728 = vadd.f32 %v5634, %v5727
        %v5729 = vpop.f32.mrf.mxu0
        %v5730 = vadd.f32 %v5636, %v5729
        %5731 = vdwg.mxu0
        %5732 = vmatpush.bf16.msra.mxu0 %v5009
        %5733 = vmatpush.bf16.msra.mxu0 %v5008
        %5734 = vmatpush.bf16.msra.mxu0 %v5007
        %5735 = vmatpush.bf16.msra.mxu0 %v5006
        %5736 = vmatpush.bf16.msra.mxu0 %v5005
        %5737 = vmatpush.bf16.msra.mxu0 %v5004
        %5738 = vmatpush.bf16.msra.mxu0 %v5003
        %5739 = vmatpush.bf16.msra.mxu0 %v5002
        %5740 = vmatmul.bf16.gmra.mxu0 %v4425
        %v5741 = vpop.f32.mrf.mxu0
        %v5742 = vadd.f32 %v5648, %v5741
        %v5743 = vpop.f32.mrf.mxu0
        %v5744 = vadd.f32 %v5650, %v5743
        %5745 = vmatmul.bf16.gmra.mxu0 %v4433
        %v5746 = vpop.f32.mrf.mxu0
        %v5747 = vadd.f32 %v5653, %v5746
        %v5748 = vpop.f32.mrf.mxu0
        %v5749 = vadd.f32 %v5655, %v5748
        %5750 = vmatmul.bf16.gmra.mxu0 %v4441
        %v5751 = vpop.f32.mrf.mxu0
        %v5752 = vadd.f32 %v5658, %v5751
        %v5753 = vpop.f32.mrf.mxu0
        %v5754 = vadd.f32 %v5660, %v5753
        %5755 = vmatmul.bf16.gmra.mxu0 %v4449
        %v5756 = vpop.f32.mrf.mxu0
        %v5757 = vadd.f32 %v5663, %v5756
        %v5758 = vpop.f32.mrf.mxu0
        %v5759 = vadd.f32 %v5665, %v5758
        %5760 = vmatmul.bf16.gmra.mxu0 %v4457
        %v5761 = vpop.f32.mrf.mxu0
        %v5762 = vadd.f32 %v5668, %v5761
        %v5763 = vpop.f32.mrf.mxu0
        %v5764 = vadd.f32 %v5670, %v5763
        %5765 = vmatmul.bf16.gmra.mxu0 %v4465
        %v5766 = vpop.f32.mrf.mxu0
        %v5767 = vadd.f32 %v5673, %v5766
        %v5768 = vpop.f32.mrf.mxu0
        %v5769 = vadd.f32 %v5675, %v5768
        %5770 = vmatmul.bf16.gmra.mxu0 %v4473
        %v5771 = vpop.f32.mrf.mxu0
        %v5772 = vadd.f32 %v5678, %v5771
        %v5773 = vpop.f32.mrf.mxu0
        %v5774 = vadd.f32 %v5680, %v5773
        %5775 = vmatmul.bf16.gmra.mxu0 %v4481
        %v5776 = vpop.f32.mrf.mxu0
        %v5777 = vadd.f32 %v5683, %v5776
        %v5778 = vpop.f32.mrf.mxu0
        %v5779 = vadd.f32 %v5685, %v5778
        %5780 = vmatmul.bf16.gmra.mxu0 %v4489
        %v5781 = vpop.f32.mrf.mxu0
        %v5782 = vadd.f32 %v5688, %v5781
        %v5783 = vpop.f32.mrf.mxu0
        %v5784 = vadd.f32 %v5690, %v5783
        %5785 = vmatmul.bf16.gmra.mxu0 %v4497
        %v5786 = vpop.f32.mrf.mxu0
        %v5787 = vadd.f32 %v5693, %v5786
        %v5788 = vpop.f32.mrf.mxu0
        %v5789 = vadd.f32 %v5695, %v5788
        %5790 = vmatmul.bf16.gmra.mxu0 %v4505
        %v5791 = vpop.f32.mrf.mxu0
        %v5792 = vadd.f32 %v5698, %v5791
        %v5793 = vpop.f32.mrf.mxu0
        %v5794 = vadd.f32 %v5700, %v5793
        %5795 = vmatmul.bf16.gmra.mxu0 %v4513
        %v5796 = vpop.f32.mrf.mxu0
        %v5797 = vadd.f32 %v5703, %v5796
        %v5798 = vpop.f32.mrf.mxu0
        %v5799 = vadd.f32 %v5705, %v5798
        %5800 = vmatmul.bf16.gmra.mxu0 %v4521
        %v5801 = vpop.f32.mrf.mxu0
        %v5802 = vadd.f32 %v5708, %v5801
        %v5803 = vpop.f32.mrf.mxu0
        %v5804 = vadd.f32 %v5710, %v5803
        %5805 = vmatmul.bf16.gmra.mxu0 %v4529
        %v5806 = vpop.f32.mrf.mxu0
        %v5807 = vadd.f32 %v5713, %v5806
        %v5808 = vpop.f32.mrf.mxu0
        %v5809 = vadd.f32 %v5715, %v5808
        %5810 = vmatmul.bf16.gmra.mxu0 %v4537
        %v5811 = vpop.f32.mrf.mxu0
        %v5812 = vadd.f32 %v5718, %v5811
        %v5813 = vpop.f32.mrf.mxu0
        %v5814 = vadd.f32 %v5720, %v5813
        %5815 = vmatmul.bf16.gmra.mxu0 %v4545
        %v5816 = vpop.f32.mrf.mxu0
        %v5817 = vadd.f32 %v5723, %v5816
        %v5818 = vpop.f32.mrf.mxu0
        %v5819 = vadd.f32 %v5725, %v5818
        %5820 = vmatmul.bf16.gmra.mxu0 %v4553
        %v5821 = vpop.f32.mrf.mxu0
        %v5822 = vadd.f32 %v5728, %v5821
        %v5823 = vpop.f32.mrf.mxu0
        %v5824 = vadd.f32 %v5730, %v5823
        %5825 = vdwg.mxu0
        %vm5826 = vcmp.ge.f32.partialorder %v5742, 0.0
        %vm5827 = vcmp.ge.f32.partialorder %v5744, 0.0
        %vm5828 = vcmp.ge.f32.partialorder %v5747, 0.0
        %vm5829 = vcmp.ge.f32.partialorder %v5749, 0.0
        %vm5830 = vcmp.ge.f32.partialorder %v5752, 0.0
        %vm5831 = vcmp.ge.f32.partialorder %v5754, 0.0
        %vm5832 = vcmp.ge.f32.partialorder %v5757, 0.0
        %vm5833 = vcmp.ge.f32.partialorder %v5759, 0.0
        %vm5834 = vcmp.ge.f32.partialorder %v5762, 0.0
        %vm5835 = vcmp.ge.f32.partialorder %v5764, 0.0
        %vm5836 = vcmp.ge.f32.partialorder %v5767, 0.0
        %vm5837 = vcmp.ge.f32.partialorder %v5769, 0.0
        %vm5838 = vcmp.ge.f32.partialorder %v5772, 0.0
        %vm5839 = vcmp.ge.f32.partialorder %v5774, 0.0
        %vm5840 = vcmp.ge.f32.partialorder %v5777, 0.0
        %vm5841 = vcmp.ge.f32.partialorder %v5779, 0.0
        %vm5842 = vcmp.ge.f32.partialorder %v5782, 0.0
        %vm5843 = vcmp.ge.f32.partialorder %v5784, 0.0
        %vm5844 = vcmp.ge.f32.partialorder %v5787, 0.0
        %vm5845 = vcmp.ge.f32.partialorder %v5789, 0.0
        %vm5846 = vcmp.ge.f32.partialorder %v5792, 0.0
        %vm5847 = vcmp.ge.f32.partialorder %v5794, 0.0
        %vm5848 = vcmp.ge.f32.partialorder %v5797, 0.0
        %vm5849 = vcmp.ge.f32.partialorder %v5799, 0.0
        %vm5850 = vcmp.ge.f32.partialorder %v5802, 0.0
        %vm5851 = vcmp.ge.f32.partialorder %v5804, 0.0
        %vm5852 = vcmp.ge.f32.partialorder %v5807, 0.0
        %vm5853 = vcmp.ge.f32.partialorder %v5809, 0.0
        %vm5854 = vcmp.ge.f32.partialorder %v5812, 0.0
        %vm5855 = vcmp.ge.f32.partialorder %v5814, 0.0
        %vm5856 = vcmp.ge.f32.partialorder %v5817, 0.0
        %vm5857 = vcmp.ge.f32.partialorder %v5819, 0.0
        %vm5858 = vcmp.ge.f32.partialorder %v5822, 0.0
        %vm5859 = vcmp.ge.f32.partialorder %v5824, 0.0
        %v5860 = vmul.f32 %v5742, 0.01
        %v5861 = vmul.f32 %v5744, 0.01
        %v5862 = vmul.f32 %v5747, 0.01
        %v5863 = vmul.f32 %v5749, 0.01
        %v5864 = vmul.f32 %v5752, 0.01
        %v5865 = vmul.f32 %v5754, 0.01
        %v5866 = vmul.f32 %v5757, 0.01
        %v5867 = vmul.f32 %v5759, 0.01
        %v5868 = vmul.f32 %v5762, 0.01
        %v5869 = vmul.f32 %v5764, 0.01
        %v5870 = vmul.f32 %v5767, 0.01
        %v5871 = vmul.f32 %v5769, 0.01
        %v5872 = vmul.f32 %v5772, 0.01
        %v5873 = vmul.f32 %v5774, 0.01
        %v5874 = vmul.f32 %v5777, 0.01
        %v5875 = vmul.f32 %v5779, 0.01
        %v5876 = vmul.f32 %v5782, 0.01
        %v5877 = vmul.f32 %v5784, 0.01
        %v5878 = vmul.f32 %v5787, 0.01
        %v5879 = vmul.f32 %v5789, 0.01
        %v5880 = vmul.f32 %v5792, 0.01
        %v5881 = vmul.f32 %v5794, 0.01
        %v5882 = vmul.f32 %v5797, 0.01
        %v5883 = vmul.f32 %v5799, 0.01
        %v5884 = vmul.f32 %v5802, 0.01
        %v5885 = vmul.f32 %v5804, 0.01
        %v5886 = vmul.f32 %v5807, 0.01
        %v5887 = vmul.f32 %v5809, 0.01
        %v5888 = vmul.f32 %v5812, 0.01
        %v5889 = vmul.f32 %v5814, 0.01
        %v5890 = vmul.f32 %v5817, 0.01
        %v5891 = vmul.f32 %v5819, 0.01
        %v5892 = vmul.f32 %v5822, 0.01
        %v5893 = vmul.f32 %v5824, 0.01
        %v5894 = vsel %vm5826, %v5742, %v5860
        %v5895 = vsel %vm5827, %v5744, %v5861
        %v5896 = vsel %vm5828, %v5747, %v5862
        %v5897 = vsel %vm5829, %v5749, %v5863
        %v5898 = vsel %vm5830, %v5752, %v5864
        %v5899 = vsel %vm5831, %v5754, %v5865
        %v5900 = vsel %vm5832, %v5757, %v5866
        %v5901 = vsel %vm5833, %v5759, %v5867
        %v5902 = vsel %vm5834, %v5762, %v5868
        %v5903 = vsel %vm5835, %v5764, %v5869
        %v5904 = vsel %vm5836, %v5767, %v5870
        %v5905 = vsel %vm5837, %v5769, %v5871
        %v5906 = vsel %vm5838, %v5772, %v5872
        %v5907 = vsel %vm5839, %v5774, %v5873
        %v5908 = vsel %vm5840, %v5777, %v5874
        %v5909 = vsel %vm5841, %v5779, %v5875
        %v5910 = vsel %vm5842, %v5782, %v5876
        %v5911 = vsel %vm5843, %v5784, %v5877
        %v5912 = vsel %vm5844, %v5787, %v5878
        %v5913 = vsel %vm5845, %v5789, %v5879
        %v5914 = vsel %vm5846, %v5792, %v5880
        %v5915 = vsel %vm5847, %v5794, %v5881
        %v5916 = vsel %vm5848, %v5797, %v5882
        %v5917 = vsel %vm5849, %v5799, %v5883
        %v5918 = vsel %vm5850, %v5802, %v5884
        %v5919 = vsel %vm5851, %v5804, %v5885
        %v5920 = vsel %vm5852, %v5807, %v5886
        %v5921 = vsel %vm5853, %v5809, %v5887
        %v5922 = vsel %vm5854, %v5812, %v5888
        %v5923 = vsel %vm5855, %v5814, %v5889
        %v5924 = vsel %vm5856, %v5817, %v5890
        %v5925 = vsel %vm5857, %v5819, %v5891
        %v5926 = vsel %vm5858, %v5822, %v5892
        %v5927 = vsel %vm5859, %v5824, %v5893
        %5928 = vst [vmem:[#allocation5] sm:$0xff] %v5894
        %5929 = vst [vmem:[#allocation5 + $0x8] sm:$0xff] %v5895
        %5930 = vst [vmem:[#allocation5 + $0x10] sm:$0xff] %v5896
        %5931 = vst [vmem:[#allocation5 + $0x18] sm:$0xff] %v5897
        %5932 = vst [vmem:[#allocation5 + $0x20] sm:$0xff] %v5898
        %5933 = vst [vmem:[#allocation5 + $0x28] sm:$0xff] %v5899
        %5934 = vst [vmem:[#allocation5 + $0x30] sm:$0xff] %v5900
        %5935 = vst [vmem:[#allocation5 + $0x38] sm:$0xff] %v5901
        %5936 = vst [vmem:[#allocation5 + $0x40] sm:$0xff] %v5902
        %5937 = vst [vmem:[#allocation5 + $0x48] sm:$0xff] %v5903
        %5938 = vst [vmem:[#allocation5 + $0x50] sm:$0xff] %v5904
        %5939 = vst [vmem:[#allocation5 + $0x58] sm:$0xff] %v5905
        %5940 = vst [vmem:[#allocation5 + $0x60] sm:$0xff] %v5906
        %5941 = vst [vmem:[#allocation5 + $0x68] sm:$0xff] %v5907
        %5942 = vst [vmem:[#allocation5 + $0x70] sm:$0xff] %v5908
        %5943 = vst [vmem:[#allocation5 + $0x78] sm:$0xff] %v5909
        %5944 = vst [vmem:[#allocation5 + $0x80] sm:$0xff] %v5910
        %5945 = vst [vmem:[#allocation5 + $0x88] sm:$0xff] %v5911
        %5946 = vst [vmem:[#allocation5 + $0x90] sm:$0xff] %v5912
        %5947 = vst [vmem:[#allocation5 + $0x98] sm:$0xff] %v5913
        %5948 = vst [vmem:[#allocation5 + $0xa0] sm:$0xff] %v5914
        %5949 = vst [vmem:[#allocation5 + $0xa8] sm:$0xff] %v5915
        %5950 = vst [vmem:[#allocation5 + $0xb0] sm:$0xff] %v5916
        %5951 = vst [vmem:[#allocation5 + $0xb8] sm:$0xff] %v5917
        %5952 = vst [vmem:[#allocation5 + $0xc0] sm:$0xff] %v5918
        %5953 = vst [vmem:[#allocation5 + $0xc8] sm:$0xff] %v5919
        %5954 = vst [vmem:[#allocation5 + $0xd0] sm:$0xff] %v5920
        %5955 = vst [vmem:[#allocation5 + $0xd8] sm:$0xff] %v5921
        %5956 = vst [vmem:[#allocation5 + $0xe0] sm:$0xff] %v5922
        %5957 = vst [vmem:[#allocation5 + $0xe8] sm:$0xff] %v5923
        %5958 = vst [vmem:[#allocation5 + $0xf0] sm:$0xff] %v5924
        %5959 = vst [vmem:[#allocation5 + $0xf8] sm:$0xff] %v5925
        %5960 = vst [vmem:[#allocation5 + $0x100] sm:$0xff] %v5926
        %5961 = vst [vmem:[#allocation5 + $0x108] sm:$0xff] %v5927
        %v5962 = vld [vmem:[#allocation5] sm:$0xff]
        %v5963 = vld [vmem:[#allocation5 + $0x8] sm:$0xff]
        %v5964 = vld [vmem:[#allocation5 + $0x10] sm:$0xff]
        %v5965 = vld [vmem:[#allocation5 + $0x18] sm:$0xff]
        %v5966 = vld [vmem:[#allocation5 + $0x20] sm:$0xff]
        %v5967 = vld [vmem:[#allocation5 + $0x28] sm:$0xff]
        %v5968 = vld [vmem:[#allocation5 + $0x30] sm:$0xff]
        %v5969 = vld [vmem:[#allocation5 + $0x38] sm:$0xff]
        %v5970 = vld [vmem:[#allocation5 + $0x40] sm:$0xff]
        %v5971 = vld [vmem:[#allocation5 + $0x48] sm:$0xff]
        %v5972 = vld [vmem:[#allocation5 + $0x50] sm:$0xff]
        %v5973 = vld [vmem:[#allocation5 + $0x58] sm:$0xff]
        %v5974 = vld [vmem:[#allocation5 + $0x60] sm:$0xff]
        %v5975 = vld [vmem:[#allocation5 + $0x68] sm:$0xff]
        %v5976 = vld [vmem:[#allocation5 + $0x70] sm:$0xff]
        %v5977 = vld [vmem:[#allocation5 + $0x78] sm:$0xff]
        %v5978 = vld [vmem:[#allocation5 + $0x80] sm:$0xff]
        %v5979 = vld [vmem:[#allocation5 + $0x88] sm:$0xff]
        %v5980 = vld [vmem:[#allocation5 + $0x90] sm:$0xff]
        %v5981 = vld [vmem:[#allocation5 + $0x98] sm:$0xff]
        %v5982 = vld [vmem:[#allocation5 + $0xa0] sm:$0xff]
        %v5983 = vld [vmem:[#allocation5 + $0xa8] sm:$0xff]
        %v5984 = vld [vmem:[#allocation5 + $0xb0] sm:$0xff]
        %v5985 = vld [vmem:[#allocation5 + $0xb8] sm:$0xff]
        %v5986 = vld [vmem:[#allocation5 + $0xc0] sm:$0xff]
        %v5987 = vld [vmem:[#allocation5 + $0xc8] sm:$0xff]
        %v5988 = vld [vmem:[#allocation5 + $0xd0] sm:$0xff]
        %v5989 = vld [vmem:[#allocation5 + $0xd8] sm:$0xff]
        %v5990 = vld [vmem:[#allocation5 + $0xe0] sm:$0xff]
        %v5991 = vld [vmem:[#allocation5 + $0xe8] sm:$0xff]
        %v5992 = vld [vmem:[#allocation5 + $0xf0] sm:$0xff]
        %v5993 = vld [vmem:[#allocation5 + $0xf8] sm:$0x7f]
        %v5994 = vld [vmem:[#allocation5 + $0x11] sm:$0xff]
        %v5995 = vld [vmem:[#allocation5 + $0x19] sm:$0xff]
        %v5996 = vld [vmem:[#allocation5 + $0x21] sm:$0xff]
        %v5997 = vld [vmem:[#allocation5 + $0x29] sm:$0xff]
        %v5998 = vld [vmem:[#allocation5 + $0x31] sm:$0xff]
        %v5999 = vld [vmem:[#allocation5 + $0x39] sm:$0xff]
        %v6000 = vld [vmem:[#allocation5 + $0x41] sm:$0xff]
        %v6001 = vld [vmem:[#allocation5 + $0x49] sm:$0xff]
        %v6002 = vld [vmem:[#allocation5 + $0x51] sm:$0xff]
        %v6003 = vld [vmem:[#allocation5 + $0x59] sm:$0xff]
        %v6004 = vld [vmem:[#allocation5 + $0x61] sm:$0xff]
        %v6005 = vld [vmem:[#allocation5 + $0x69] sm:$0xff]
        %v6006 = vld [vmem:[#allocation5 + $0x71] sm:$0xff]
        %v6007 = vld [vmem:[#allocation5 + $0x79] sm:$0xff]
        %v6008 = vld [vmem:[#allocation5 + $0x81] sm:$0xff]
        %v6009 = vld [vmem:[#allocation5 + $0x89] sm:$0xff]
        %v6010 = vld [vmem:[#allocation5 + $0x91] sm:$0xff]
        %v6011 = vld [vmem:[#allocation5 + $0x99] sm:$0xff]
        %v6012 = vld [vmem:[#allocation5 + $0xa1] sm:$0xff]
        %v6013 = vld [vmem:[#allocation5 + $0xa9] sm:$0xff]
        %v6014 = vld [vmem:[#allocation5 + $0xb1] sm:$0xff]
        %v6015 = vld [vmem:[#allocation5 + $0xb9] sm:$0xff]
        %v6016 = vld [vmem:[#allocation5 + $0xc1] sm:$0xff]
        %v6017 = vld [vmem:[#allocation5 + $0xc9] sm:$0xff]
        %v6018 = vld [vmem:[#allocation5 + $0xd1] sm:$0xff]
        %v6019 = vld [vmem:[#allocation5 + $0xd9] sm:$0xff]
        %v6020 = vld [vmem:[#allocation5 + $0xe1] sm:$0xff]
        %v6021 = vld [vmem:[#allocation5 + $0xe9] sm:$0xff]
        %v6022 = vld [vmem:[#allocation5 + $0xf1] sm:$0xff]
        %v6023 = vld [vmem:[#allocation5 + $0xf9] sm:$0xff]
        %v6024 = vld [vmem:[#allocation5 + $0x101] sm:$0xff]
        %v6025 = vld [vmem:[#allocation5 + $0x109] sm:$0x7f]
        %v6026 = vmax.f32 %v5962, %v5994
        %v6027 = vmax.f32 %v5963, %v5995
        %v6028 = vmax.f32 %v5964, %v5996
        %v6029 = vmax.f32 %v5965, %v5997
        %v6030 = vmax.f32 %v5966, %v5998
        %v6031 = vmax.f32 %v5967, %v5999
        %v6032 = vmax.f32 %v5968, %v6000
        %v6033 = vmax.f32 %v5969, %v6001
        %v6034 = vmax.f32 %v5970, %v6002
        %v6035 = vmax.f32 %v5971, %v6003
        %v6036 = vmax.f32 %v5972, %v6004
        %v6037 = vmax.f32 %v5973, %v6005
        %v6038 = vmax.f32 %v5974, %v6006
        %v6039 = vmax.f32 %v5975, %v6007
        %v6040 = vmax.f32 %v5976, %v6008
        %v6041 = vmax.f32 %v5977, %v6009
        %v6042 = vmax.f32 %v5978, %v6010
        %v6043 = vmax.f32 %v5979, %v6011
        %v6044 = vmax.f32 %v5980, %v6012
        %v6045 = vmax.f32 %v5981, %v6013
        %v6046 = vmax.f32 %v5982, %v6014
        %v6047 = vmax.f32 %v5983, %v6015
        %v6048 = vmax.f32 %v5984, %v6016
        %v6049 = vmax.f32 %v5985, %v6017
        %v6050 = vmax.f32 %v5986, %v6018
        %v6051 = vmax.f32 %v5987, %v6019
        %v6052 = vmax.f32 %v5988, %v6020
        %v6053 = vmax.f32 %v5989, %v6021
        %v6054 = vmax.f32 %v5990, %v6022
        %v6055 = vmax.f32 %v5991, %v6023
        %v6056 = vmax.f32 %v5992, %v6024
        %v6057 = vmax.f32 %v5993, %v6025
        %v6058 = vld [vmem:[%s5] sm:$0x1]
        %v6059 = vlaneseq
        %v6060 = vand.u32 %v6059, 127
        %vm6061 = vcmp.eq.s32.totalorder %v6060, 0
        %v6062 = vsel %vm6061, 1, 0
        %v6063 = vcvt.s32.f32 %v6062
        %v6064 = vld [vmem:[%s4] sm:$0xf]
        %v6065 = vld [vmem:[%s4 + $0x4] sm:$0xf]
        %v6066 = vld [vmem:[%s4 + $0x8] sm:$0xf]
        %v6067 = vld [vmem:[%s4 + $0xc] sm:$0xf]
        %v6068 = vld [vmem:[%s4 + $0x10] sm:$0xf]
        %v6069 = vld [vmem:[%s4 + $0x14] sm:$0xf]
        %v6070 = vld [vmem:[%s4 + $0x18] sm:$0xf]
        %v6071 = vld [vmem:[%s4 + $0x1c] sm:$0xf]
        %v6072 = vld [vmem:[%s4 + $0x20] sm:$0xf]
        %v6073 = vld [vmem:[%s4 + $0x24] sm:$0xf]
        %v6074 = vld [vmem:[%s4 + $0x28] sm:$0xf]
        %v6075 = vld [vmem:[%s4 + $0x2c] sm:$0xf]
        %v6076 = vld [vmem:[%s4 + $0x30] sm:$0xf]
        %v6077 = vld [vmem:[%s4 + $0x34] sm:$0xf]
        %v6078 = vld [vmem:[%s4 + $0x38] sm:$0xf]
        %v6079 = vld [vmem:[%s4 + $0x3c] sm:$0xf]
        %v6080 = vld [vmem:[%s4 + $0x40] sm:$0xf]
        %v6081 = vld [vmem:[%s4 + $0x44] sm:$0xf]
        %v6082 = vld [vmem:[%s4 + $0x48] sm:$0xf]
        %v6083 = vld [vmem:[%s4 + $0x4c] sm:$0xf]
        %v6084 = vld [vmem:[%s4 + $0x50] sm:$0xf]
        %v6085 = vld [vmem:[%s4 + $0x54] sm:$0xf]
        %v6086 = vld [vmem:[%s4 + $0x58] sm:$0xf]
        %v6087 = vld [vmem:[%s4 + $0x5c] sm:$0xf]
        %v6088 = vld [vmem:[%s4 + $0x60] sm:$0xf]
        %v6089 = vld [vmem:[%s4 + $0x64] sm:$0xf]
        %v6090 = vld [vmem:[%s4 + $0x68] sm:$0xf]
        %v6091 = vld [vmem:[%s4 + $0x6c] sm:$0xf]
        %v6092 = vld [vmem:[%s4 + $0x70] sm:$0xf]
        %v6093 = vld [vmem:[%s4 + $0x74] sm:$0xf]
        %v6094 = vld [vmem:[%s4 + $0x78] sm:$0xf]
        %v6095 = vld [vmem:[%s4 + $0x7c] sm:$0xf]
        %v6096 = vunpack.c.l.bf16 %v6064
        %v6097 = vunpack.c.l.bf16 %v6065
        %v6098 = vunpack.c.l.bf16 %v6066
        %v6099 = vunpack.c.l.bf16 %v6067
        %v6100 = vunpack.c.l.bf16 %v6068
        %v6101 = vunpack.c.l.bf16 %v6069
        %v6102 = vunpack.c.l.bf16 %v6070
        %v6103 = vunpack.c.l.bf16 %v6071
        %v6104 = vunpack.c.l.bf16 %v6072
        %v6105 = vunpack.c.l.bf16 %v6073
        %v6106 = vunpack.c.l.bf16 %v6074
        %v6107 = vunpack.c.l.bf16 %v6075
        %v6108 = vunpack.c.l.bf16 %v6076
        %v6109 = vunpack.c.l.bf16 %v6077
        %v6110 = vunpack.c.l.bf16 %v6078
        %v6111 = vunpack.c.l.bf16 %v6079
        %v6112 = vunpack.c.l.bf16 %v6080
        %v6113 = vunpack.c.l.bf16 %v6081
        %v6114 = vunpack.c.l.bf16 %v6082
        %v6115 = vunpack.c.l.bf16 %v6083
        %v6116 = vunpack.c.l.bf16 %v6084
        %v6117 = vunpack.c.l.bf16 %v6085
        %v6118 = vunpack.c.l.bf16 %v6086
        %v6119 = vunpack.c.l.bf16 %v6087
        %v6120 = vunpack.c.l.bf16 %v6088
        %v6121 = vunpack.c.l.bf16 %v6089
        %v6122 = vunpack.c.l.bf16 %v6090
        %v6123 = vunpack.c.l.bf16 %v6091
        %v6124 = vunpack.c.l.bf16 %v6092
        %v6125 = vunpack.c.l.bf16 %v6093
        %v6126 = vunpack.c.l.bf16 %v6094
        %v6127 = vunpack.c.l.bf16 %v6095
        %v6128 = vmul.f32 %v6026, %v6096
        %v6129 = vmul.f32 %v6027, %v6097
        %v6130 = vmul.f32 %v6028, %v6098
        %v6131 = vmul.f32 %v6029, %v6099
        %v6132 = vmul.f32 %v6030, %v6100
        %v6133 = vmul.f32 %v6031, %v6101
        %v6134 = vmul.f32 %v6032, %v6102
        %v6135 = vmul.f32 %v6033, %v6103
        %v6136 = vmul.f32 %v6034, %v6104
        %v6137 = vmul.f32 %v6035, %v6105
        %v6138 = vmul.f32 %v6036, %v6106
        %v6139 = vmul.f32 %v6037, %v6107
        %v6140 = vmul.f32 %v6038, %v6108
        %v6141 = vmul.f32 %v6039, %v6109
        %v6142 = vmul.f32 %v6040, %v6110
        %v6143 = vmul.f32 %v6041, %v6111
        %v6144 = vmul.f32 %v6042, %v6112
        %v6145 = vmul.f32 %v6043, %v6113
        %v6146 = vmul.f32 %v6044, %v6114
        %v6147 = vmul.f32 %v6045, %v6115
        %v6148 = vmul.f32 %v6046, %v6116
        %v6149 = vmul.f32 %v6047, %v6117
        %v6150 = vmul.f32 %v6048, %v6118
        %v6151 = vmul.f32 %v6049, %v6119
        %v6152 = vmul.f32 %v6050, %v6120
        %v6153 = vmul.f32 %v6051, %v6121
        %v6154 = vmul.f32 %v6052, %v6122
        %v6155 = vmul.f32 %v6053, %v6123
        %v6156 = vmul.f32 %v6054, %v6124
        %v6157 = vmul.f32 %v6055, %v6125
        %v6158 = vmul.f32 %v6056, %v6126
        %v6159 = vmul.f32 %v6057, %v6127
        %v6160 = vadd.f32 %v6128, %v6129
        %v6161 = vadd.f32 %v6160, %v6130
        %v6162 = vadd.f32 %v6161, %v6131
        %v6163 = vadd.f32 %v6162, %v6132
        %v6164 = vadd.f32 %v6163, %v6133
        %v6165 = vadd.f32 %v6164, %v6134
        %v6166 = vadd.f32 %v6165, %v6135
        %v6167 = vadd.f32 %v6166, %v6136
        %v6168 = vadd.f32 %v6167, %v6137
        %v6169 = vadd.f32 %v6168, %v6138
        %v6170 = vadd.f32 %v6169, %v6139
        %v6171 = vadd.f32 %v6170, %v6140
        %v6172 = vadd.f32 %v6171, %v6141
        %v6173 = vadd.f32 %v6172, %v6142
        %v6174 = vadd.f32 %v6173, %v6143
        %v6175 = vadd.f32 %v6174, %v6144
        %v6176 = vadd.f32 %v6175, %v6145
        %v6177 = vadd.f32 %v6176, %v6146
        %v6178 = vadd.f32 %v6177, %v6147
        %v6179 = vadd.f32 %v6178, %v6148
        %v6180 = vadd.f32 %v6179, %v6149
        %v6181 = vadd.f32 %v6180, %v6150
        %v6182 = vadd.f32 %v6181, %v6151
        %v6183 = vadd.f32 %v6182, %v6152
        %v6184 = vadd.f32 %v6183, %v6153
        %v6185 = vadd.f32 %v6184, %v6154
        %v6186 = vadd.f32 %v6185, %v6155
        %v6187 = vadd.f32 %v6186, %v6156
        %v6188 = vadd.f32 %v6187, %v6157
        %v6189 = vadd.f32 %v6188, %v6158
        %vm6190 = vcmask 1046528
        %v6191 = vsel %vm6190, %v6159, 0.0
        %v6192 = vadd.f32 %v6189, %v6191
        %6193 = vadd.xlane.f32.xlu0 %v6192
        %v6194 = vpop.xlane.xlu0 %6193
        %v6195 = vrot.slane %v6194, 4
        %v6196 = vadd.f32 %v6194, %v6195
        %v6197 = vrot.slane %v6196, 2
        %v6198 = vadd.f32 %v6196, %v6197
        %v6199 = vrot.slane %v6198, 1
        %v6200 = vadd.f32 %v6198, %v6199
        %s6201 = vtos %v6200
        %v6202 = vstv %s6201
        %v6203 = vmul.f32 %v6202, %v6063
        %v6204 = vadd.f32 %v6058, %v6203
        %vm6205 = vcmp.eq.s32.totalorder %v6060, 1
        %v6206 = vsel %vm6205, 1, 0
        %v6207 = vcvt.s32.f32 %v6206
        %s6208 = scalar_lea.vmem %s4, 128
        %v6209 = vld [vmem:[%s6208] sm:$0xf]
        %v6210 = vld [vmem:[%s6208 + $0x4] sm:$0xf]
        %v6211 = vld [vmem:[%s6208 + $0x8] sm:$0xf]
        %v6212 = vld [vmem:[%s6208 + $0xc] sm:$0xf]
        %v6213 = vld [vmem:[%s6208 + $0x10] sm:$0xf]
        %v6214 = vld [vmem:[%s6208 + $0x14] sm:$0xf]
        %v6215 = vld [vmem:[%s6208 + $0x18] sm:$0xf]
        %v6216 = vld [vmem:[%s6208 + $0x1c] sm:$0xf]
        %v6217 = vld [vmem:[%s6208 + $0x20] sm:$0xf]
        %v6218 = vld [vmem:[%s6208 + $0x24] sm:$0xf]
        %v6219 = vld [vmem:[%s6208 + $0x28] sm:$0xf]
        %v6220 = vld [vmem:[%s6208 + $0x2c] sm:$0xf]
        %v6221 = vld [vmem:[%s6208 + $0x30] sm:$0xf]
        %v6222 = vld [vmem:[%s6208 + $0x34] sm:$0xf]
        %v6223 = vld [vmem:[%s6208 + $0x38] sm:$0xf]
        %v6224 = vld [vmem:[%s6208 + $0x3c] sm:$0xf]
        %v6225 = vld [vmem:[%s6208 + $0x40] sm:$0xf]
        %v6226 = vld [vmem:[%s6208 + $0x44] sm:$0xf]
        %v6227 = vld [vmem:[%s6208 + $0x48] sm:$0xf]
        %v6228 = vld [vmem:[%s6208 + $0x4c] sm:$0xf]
        %v6229 = vld [vmem:[%s6208 + $0x50] sm:$0xf]
        %v6230 = vld [vmem:[%s6208 + $0x54] sm:$0xf]
        %v6231 = vld [vmem:[%s6208 + $0x58] sm:$0xf]
        %v6232 = vld [vmem:[%s6208 + $0x5c] sm:$0xf]
        %v6233 = vld [vmem:[%s6208 + $0x60] sm:$0xf]
        %v6234 = vld [vmem:[%s6208 + $0x64] sm:$0xf]
        %v6235 = vld [vmem:[%s6208 + $0x68] sm:$0xf]
        %v6236 = vld [vmem:[%s6208 + $0x6c] sm:$0xf]
        %v6237 = vld [vmem:[%s6208 + $0x70] sm:$0xf]
        %v6238 = vld [vmem:[%s6208 + $0x74] sm:$0xf]
        %v6239 = vld [vmem:[%s6208 + $0x78] sm:$0xf]
        %v6240 = vld [vmem:[%s6208 + $0x7c] sm:$0xf]
        %v6241 = vunpack.c.l.bf16 %v6209
        %v6242 = vunpack.c.l.bf16 %v6210
        %v6243 = vunpack.c.l.bf16 %v6211
        %v6244 = vunpack.c.l.bf16 %v6212
        %v6245 = vunpack.c.l.bf16 %v6213
        %v6246 = vunpack.c.l.bf16 %v6214
        %v6247 = vunpack.c.l.bf16 %v6215
        %v6248 = vunpack.c.l.bf16 %v6216
        %v6249 = vunpack.c.l.bf16 %v6217
        %v6250 = vunpack.c.l.bf16 %v6218
        %v6251 = vunpack.c.l.bf16 %v6219
        %v6252 = vunpack.c.l.bf16 %v6220
        %v6253 = vunpack.c.l.bf16 %v6221
        %v6254 = vunpack.c.l.bf16 %v6222
        %v6255 = vunpack.c.l.bf16 %v6223
        %v6256 = vunpack.c.l.bf16 %v6224
        %v6257 = vunpack.c.l.bf16 %v6225
        %v6258 = vunpack.c.l.bf16 %v6226
        %v6259 = vunpack.c.l.bf16 %v6227
        %v6260 = vunpack.c.l.bf16 %v6228
        %v6261 = vunpack.c.l.bf16 %v6229
        %v6262 = vunpack.c.l.bf16 %v6230
        %v6263 = vunpack.c.l.bf16 %v6231
        %v6264 = vunpack.c.l.bf16 %v6232
        %v6265 = vunpack.c.l.bf16 %v6233
        %v6266 = vunpack.c.l.bf16 %v6234
        %v6267 = vunpack.c.l.bf16 %v6235
        %v6268 = vunpack.c.l.bf16 %v6236
        %v6269 = vunpack.c.l.bf16 %v6237
        %v6270 = vunpack.c.l.bf16 %v6238
        %v6271 = vunpack.c.l.bf16 %v6239
        %v6272 = vunpack.c.l.bf16 %v6240
        %v6273 = vmul.f32 %v6026, %v6241
        %v6274 = vmul.f32 %v6027, %v6242
        %v6275 = vmul.f32 %v6028, %v6243
        %v6276 = vmul.f32 %v6029, %v6244
        %v6277 = vmul.f32 %v6030, %v6245
        %v6278 = vmul.f32 %v6031, %v6246
        %v6279 = vmul.f32 %v6032, %v6247
        %v6280 = vmul.f32 %v6033, %v6248
        %v6281 = vmul.f32 %v6034, %v6249
        %v6282 = vmul.f32 %v6035, %v6250
        %v6283 = vmul.f32 %v6036, %v6251
        %v6284 = vmul.f32 %v6037, %v6252
        %v6285 = vmul.f32 %v6038, %v6253
        %v6286 = vmul.f32 %v6039, %v6254
        %v6287 = vmul.f32 %v6040, %v6255
        %v6288 = vmul.f32 %v6041, %v6256
        %v6289 = vmul.f32 %v6042, %v6257
        %v6290 = vmul.f32 %v6043, %v6258
        %v6291 = vmul.f32 %v6044, %v6259
        %v6292 = vmul.f32 %v6045, %v6260
        %v6293 = vmul.f32 %v6046, %v6261
        %v6294 = vmul.f32 %v6047, %v6262
        %v6295 = vmul.f32 %v6048, %v6263
        %v6296 = vmul.f32 %v6049, %v6264
        %v6297 = vmul.f32 %v6050, %v6265
        %v6298 = vmul.f32 %v6051, %v6266
        %v6299 = vmul.f32 %v6052, %v6267
        %v6300 = vmul.f32 %v6053, %v6268
        %v6301 = vmul.f32 %v6054, %v6269
        %v6302 = vmul.f32 %v6055, %v6270
        %v6303 = vmul.f32 %v6056, %v6271
        %v6304 = vmul.f32 %v6057, %v6272
        %v6305 = vadd.f32 %v6273, %v6274
        %v6306 = vadd.f32 %v6305, %v6275
        %v6307 = vadd.f32 %v6306, %v6276
        %v6308 = vadd.f32 %v6307, %v6277
        %v6309 = vadd.f32 %v6308, %v6278
        %v6310 = vadd.f32 %v6309, %v6279
        %v6311 = vadd.f32 %v6310, %v6280
        %v6312 = vadd.f32 %v6311, %v6281
        %v6313 = vadd.f32 %v6312, %v6282
        %v6314 = vadd.f32 %v6313, %v6283
        %v6315 = vadd.f32 %v6314, %v6284
        %v6316 = vadd.f32 %v6315, %v6285
        %v6317 = vadd.f32 %v6316, %v6286
        %v6318 = vadd.f32 %v6317, %v6287
        %v6319 = vadd.f32 %v6318, %v6288
        %v6320 = vadd.f32 %v6319, %v6289
        %v6321 = vadd.f32 %v6320, %v6290
        %v6322 = vadd.f32 %v6321, %v6291
        %v6323 = vadd.f32 %v6322, %v6292
        %v6324 = vadd.f32 %v6323, %v6293
        %v6325 = vadd.f32 %v6324, %v6294
        %v6326 = vadd.f32 %v6325, %v6295
        %v6327 = vadd.f32 %v6326, %v6296
        %v6328 = vadd.f32 %v6327, %v6297
        %v6329 = vadd.f32 %v6328, %v6298
        %v6330 = vadd.f32 %v6329, %v6299
        %v6331 = vadd.f32 %v6330, %v6300
        %v6332 = vadd.f32 %v6331, %v6301
        %v6333 = vadd.f32 %v6332, %v6302
        %v6334 = vadd.f32 %v6333, %v6303
        %v6335 = vsel %vm6190, %v6304, 0.0
        %v6336 = vadd.f32 %v6334, %v6335
        %6337 = vadd.xlane.f32.xlu0 %v6336
        %v6338 = vpop.xlane.xlu0 %6337
        %v6339 = vrot.slane %v6338, 4
        %v6340 = vadd.f32 %v6338, %v6339
        %v6341 = vrot.slane %v6340, 2
        %v6342 = vadd.f32 %v6340, %v6341
        %v6343 = vrot.slane %v6342, 1
        %v6344 = vadd.f32 %v6342, %v6343
        %s6345 = vtos %v6344
        %v6346 = vstv %s6345
        %v6347 = vmul.f32 %v6346, %v6207
        %v6348 = vadd.f32 %v6204, %v6347
        %vm6349 = vcmask 8192
        %6350 = vst.msk [vmem:[%s243] sm:$0x1] %vm6349, %v6348
        %s6351 = sand.u32 %s159, 1
        %s6352 = scalar_lea.sflag [#allocation7], %s6351
        %s6353 = sand.u32 %s159, 1
        %s6354 = scalar_lea.vmem [#allocation6], %s6353
        // Predicated region
        $region45: #{cnn_forward.1} parent=43 // pred_check
          %p6355 = pneg %p169
        $region46: #{cnn_forward.1} parent=43 // pred_check_branch
          %6357 = sbr.rel (%p6355) target = $region48
        $region47: #{cnn_forward.1} parent=43 // pred_region
          %6359 = vsyncadd %s6352, 0
          %s6360 = scalar_lea.hbm %s6, %s20
          %s6362 = sshll.u32 %s6354, 4
          %s6363 = int_to_ptr.vmem [resolvable:$true] %s6362
          %s6364 = sshll.u32 %s6360, 4
          %s6365 = int_to_ptr.hbm [resolvable:$true] %s6364
          %6367 = dma.vmem_to_hbm [thread:$0]  %s6363, 16, %s6365, %s6352
        $region48: #{cnn_forward.1} parent=43 // pred_fallthru
          _
      $region44: #{cnn_forward.1} parent=5 // pred_fallthru
        _
      %p6368 = scmp.le.s32.totalorder 2, %s15
      // Predicated region
      $region49: #{cnn_forward.1} parent=5 // pred_check
        %p6369 = pneg %p6368
      $region50: #{cnn_forward.1} parent=5 // pred_check_branch
        %6371 = sbr.rel (%p6369) target = $region52
      $region51: #{cnn_forward.1} parent=5 // pred_region
        %s6372 = ssub.s32 %s15, 2
        // Predicated region
        $region53: #{cnn_forward.1} parent=51 // pred_check
          %p6373 = pneg %p175
        $region54: #{cnn_forward.1} parent=51 // pred_check_branch
          %6375 = sbr.rel (%p6373) target = $region56
        $region55: #{cnn_forward.1} parent=51 // pred_region
          %s6376 = sand.u32 %s160, 1
          %s6377 = scalar_lea.sflag [#allocation7], %s6376
          %s6378 = sand.u32 %s160, 1
          %s6379 = scalar_lea.vmem [#allocation6], %s6378
          %6381 = dma.done %s6377, 16
        $region56: #{cnn_forward.1} parent=51 // pred_fallthru
          _
      $region52: #{cnn_forward.1} parent=5 // pred_fallthru
        _
    $region6: #{cnn_forward.1} parent=1 // loop_footer
      %s19 = sadd.s32 1, %s15
    $region7: #{cnn_forward.1} parent=1 // loop_footer_branch
      %14 = sbr.rel target = $region3
    $region8: #{cnn_forward.1} parent=1 // loop_exit
      _
    %6382 = vsyncpa [#allocation7], 1
    %s6383 = scalar_lea.sflag [#allocation7], 1
    %6384 = vsyncpa %s6383, 1

</llo_original>
